<compile_context>
chip_gen: v6e
topology: v6e:2x2x1
jax: 0.10.0
libtpu: 0.0.40
codegen_flags: <defaults>
</compile_context>

<pallas_src>
from functools import partial

import jax
import jax.numpy as jnp
import numpy as np
from jax import lax
from jax.experimental import pallas as pl
from jax.experimental.pallas import tpu as pltpu

CONV_OUT = 32
KH = KW = 3
HIDDEN = 256
NEG_BIG = -1e9           # mask value for padded logit lanes (safe in f32)


# ----------------------------- generation defaults ---------------------------

def _tpu_defaults():
    """(batch tile, vmem_limit_bytes) picked per TPU generation."""
    kind = ""
    try:
        kind = jax.devices()[0].device_kind.lower()
    except Exception:
        pass
    if "v5" in kind:                     # v5e/v5p: 128-wide MXU already full at M=128
        return 128, 64 * 1024 * 1024
    if "v6" in kind:                     # v6e: 256-wide MXU, 128 MiB VMEM
        return 256, 64 * 1024 * 1024
    if "7" in kind:                      # v7x: 256-wide MXU, 64 MiB VMEM per core
        return 256, 40 * 1024 * 1024
    return 128, None                     # older / unknown: conservative


def _compiler_params(**kw):
    cls = getattr(pltpu, "CompilerParams", None) or getattr(pltpu, "TPUCompilerParams")
    return cls(**kw)


def _const_spec(shape):
    """BlockSpec for a weight that is resident across all grid steps."""
    zeros = (0,) * len(shape)
    idx = lambda i, _z=zeros: _z
    try:
        # Single-buffered: no second copy of constant weights in VMEM.
        return pl.BlockSpec(shape, idx, pipeline_mode=pl.Buffered(1))
    except Exception:                    # older jax without pipeline_mode
        return pl.BlockSpec(shape, idx)


# ------------------------------ Pallas kernel -------------------------------

def _actor_kernel(obs_ref, act_ref, wc_ref, bc_ref, w1p_ref, b1_ref,
                  w2_ref, b2_ref, w3p_ref, b3_ref, out_ref, *, act_dim, kh):
    """Fused conv (per-row MXU GEMMs) + MLP head + log-softmax + log_prob gather.

    obs_ref : (H, TB, W*C) bf16   rows of the image, batch tile, channels-last lanes
    w1p_ref : (Ho, Wo*Cout, HID)  fc1 weights, rows permuted offline to (y,(x,co))
    out_ref : (TB, AP) f32        lanes [0,act_dim) = log-softmax, lane act_dim = logp(a)
    """
    bf16, f32 = jnp.bfloat16, jnp.float32
    ho = w1p_ref.shape[0]
    hid = b1_ref.shape[-1]
    tb = out_ref.shape[0]

    wc = wc_ref[...]                                   # (kh*W*C, Wo*Cout) bf16
    bc = bc_ref[...]                                   # (1, Wo*Cout) f32

    # Conv2d(valid) + ReLU + Flatten + Linear(flat, 256), fused per output row y.
    h1 = jnp.zeros((tb, hid), f32)
    for y in range(ho):
        xcat = jnp.concatenate([obs_ref[y + k] for k in range(kh)],
                               axis=-1).astype(bf16)   # (TB, kh*W*C)
        feat = jnp.dot(xcat, wc, preferred_element_type=f32) + bc
        feat = jnp.maximum(feat, 0.0).astype(bf16)     # (TB, Wo*Cout) conv row y
        h1 = h1 + jnp.dot(feat, w1p_ref[y], preferred_element_type=f32)

    h1 = jnp.maximum(h1 + b1_ref[...], 0.0).astype(bf16)
    # Linear(256, 256) + ReLU
    h2 = jnp.dot(h1, w2_ref[...], preferred_element_type=f32) + b2_ref[...]
    h2 = jnp.maximum(h2, 0.0).astype(bf16)
    # Linear(256, act_dim), zero-padded to AP lanes; padded lanes masked below.
    logits = jnp.dot(h2, w3p_ref[...], preferred_element_type=f32) + b3_ref[...]

    lane = lax.broadcasted_iota(jnp.int32, logits.shape, 1)
    logits = jnp.where(lane < act_dim, logits, NEG_BIG)

    # Categorical(logits=...).logits == log_softmax(logits)
    m = jnp.max(logits, axis=-1, keepdims=True)
    z = logits - m
    lse = jnp.log(jnp.sum(jnp.exp(z), axis=-1, keepdims=True))
    logsm = z - lse                                    # (TB, AP)

    # pi.log_prob(act): one-hot gather over lanes (act_ref is (TB,1) int32).
    logp_a = jnp.sum(jnp.where(lane == act_ref[...], logsm, 0.0),
                     axis=-1, keepdims=True)

    # Single lane-dense store: logsm everywhere, logp(a) packed into lane act_dim.
    out_ref[...] = jnp.where(lane == act_dim, logp_a, logsm)


# ------------------------------- pallas wrapper ------------------------------

def _actor_pallas(obs_hbc, act2d, kp, act_dim, tb, vmem_limit):
    H, B, WC = obs_hbc.shape
    ho, wocout, hid = kp["w1p"].shape
    ap = kp["w3p"].shape[1]
    grid = (pl.cdiv(B, tb),)

    flops = 2 * B * (ho * (KH * WC * wocout + wocout * hid) + hid * hid + hid * ap)
    bytes_accessed = (obs_hbc.size * 2 + act2d.size * 4 + B * ap * 4
                      + (kp["wc"].size + kp["w1p"].size
                         + kp["w2"].size + kp["w3p"].size) * 2
                      + (kp["bc"].size + kp["b1"].size
                         + kp["b2"].size + kp["b3p"].size) * 4)
    cost = pl.CostEstimate(flops=flops, transcendentals=B * (ap + 1),
                           bytes_accessed=bytes_accessed)

    return pl.pallas_call(
        partial(_actor_kernel, act_dim=act_dim, kh=KH),
        out_shape=jax.ShapeDtypeStruct((B, ap), jnp.float32),
        grid=grid,
        in_specs=[
            pl.BlockSpec((H, tb, WC), lambda i: (0, i, 0)),   # obs tile (streamed)
            pl.BlockSpec((tb, 1), lambda i: (i, 0)),          # actions
            _const_spec(kp["wc"].shape),                      # conv weight (bf16)
            _const_spec(kp["bc"].shape),                      # conv bias lanes (f32)
            _const_spec(kp["w1p"].shape),                     # fc1 (permuted, bf16)
            _const_spec(kp["b1"].shape),
            _const_spec(kp["w2"].shape),                      # fc2 (bf16)
            _const_spec(kp["b2"].shape),
            _const_spec(kp["w3p"].shape),                     # fc3 zero-padded (bf16)
            _const_spec(kp["b3p"].shape),
        ],
        out_specs=pl.BlockSpec((tb, ap), lambda i: (i, 0)),   # lane-dense output
        compiler_params=_compiler_params(
            # NOTE(v7x): with 2 TensorCores each core holds its own (now only
            # ~3.6 MB) copy of the resident weights; batch-parallel is kept.
            dimension_semantics=("parallel",),
            vmem_limit_bytes=vmem_limit),
        cost_estimate=cost,
    )(obs_hbc, act2d, kp["wc"], kp["bc"], kp["w1p"], kp["b1"],
      kp["w2"], kp["b2"], kp["w3p"], kp["b3p"])


def cnn_categorical_actor_forward(kparams, obs, act, *, act_dim, tb=None):
    """
    obs: (B, C, H, W) float32, act: (B,) int
    Returns:
      log_probs: (B, act_dim)  normalized logits of Categorical(pi) (log-softmax)
      logp_a:    (B,)          pi.log_prob(act)
    """
    B, C, H, W = obs.shape
    # Stage obs as (H, B, W*C) bf16: rows = image row, lanes = (x, c).
    # TODO(synk): for arbitrary W*C not a multiple of 128, pad the lane dim (and
    # the matching conv-weight rows) to keep loads unmasked.
    obs_hbc = jnp.transpose(obs, (2, 0, 3, 1)).reshape(H, B, W * C).astype(jnp.bfloat16)
    act2d = act.reshape(B, 1).astype(jnp.int32)

    tb_def, vmem_limit = _tpu_defaults()
    tb = tb_def if tb is None else tb
    tb = min(tb, B)

    out = _actor_pallas(obs_hbc, act2d, kparams, act_dim, tb, vmem_limit)
    return out[:, :act_dim], out[:, act_dim]


# --------------------------- params & weight folding -------------------------

def init_params(key, input_shape, act_dim):
    """Torch-equivalent parameters (conv weight OIHW; linear weights stored as
    (in, out) == torch weight.T)."""
    C, H, W = input_shape
    Ho, Wo = H - KH + 1, W - KW + 1
    flat = CONV_OUT * Ho * Wo
    ks = jax.random.split(key, 8)
    s = 0.05
    return {
        "w_conv": jax.random.normal(ks[0], (CONV_OUT, C, KH, KW), jnp.float32) * s,
        "b_conv": jax.random.normal(ks[1], (CONV_OUT,), jnp.float32) * s,
        "w1": jax.random.normal(ks[2], (flat, HIDDEN), jnp.float32) * s,
        "b1": jax.random.normal(ks[3], (1, HIDDEN), jnp.float32) * s,
        "w2": jax.random.normal(ks[4], (HIDDEN, HIDDEN), jnp.float32) * s,
        "b2": jax.random.normal(ks[5], (1, HIDDEN), jnp.float32) * s,
        "w3": jax.random.normal(ks[6], (HIDDEN, act_dim), jnp.float32) * s,
        "b3": jax.random.normal(ks[7], (1, act_dim), jnp.float32) * s,
    }


def prepare_kernel_params(params, input_shape, act_dim):
    """One-time weight transform:
       * x-block-Toeplitz conv weight (KH*W*C, Wo*Cout) — tiny, streams once,
       * fc1 rows permuted from torch (Cout,Ho,Wo) flatten order to per-y (x,Cout),
       * fc3 zero-padded to a 128-multiple lane width (+1 reserved lane for logp(a)),
       * bf16 casts for the MXU; biases stay f32."""
    C, H, W = input_shape
    Cout = params["w_conv"].shape[0]
    Ho, Wo = H - KH + 1, W - KW + 1
    hid = params["w1"].shape[1]
    w = np.asarray(params["w_conv"], np.float32)            # (Cout, C, KH, KW)

    wc = np.zeros((KH * W * C, Wo * Cout), np.float32)
    for ki in range(KH):
        for kj in range(KW):
            wkk = w[:, :, ki, kj].T                          # (C, Cout)
            for x in range(Wo):
                r = ki * W * C + (x + kj) * C
                wc[r:r + C, x * Cout:(x + 1) * Cout] = wkk

    bc = np.tile(np.asarray(params["b_conv"], np.float32), Wo)[None, :]  # (1, Wo*Cout)

    w1p = np.asarray(params["w1"], np.float32).reshape(Cout, Ho, Wo, hid)
    w1p = np.transpose(w1p, (1, 2, 0, 3)).reshape(Ho, Wo * Cout, hid)    # (Ho, Wo*Cout, hid)

    ap = ((act_dim + 1 + 127) // 128) * 128                  # logits lanes + logp(a) lane
    w3p = np.zeros((hid, ap), np.float32)
    w3p[:, :act_dim] = np.asarray(params["w3"], np.float32)
    b3p = np.zeros((1, ap), np.float32)
    b3p[:, :act_dim] = np.asarray(params["b3"], np.float32).reshape(1, act_dim)

    bf = jnp.bfloat16
    return {
        "wc": jnp.asarray(wc, bf), "bc": jnp.asarray(bc),
        "w1p": jnp.asarray(w1p, bf), "b1": jnp.asarray(params["b1"]),
        "w2": jnp.asarray(params["w2"], bf), "b2": jnp.asarray(params["b2"]),
        "w3p": jnp.asarray(w3p, bf), "b3p": jnp.asarray(b3p),
    }


# ------------------------------ pure-JAX reference ---------------------------

def reference_forward(params, obs, act):
    """Reference using a real convolution (validates the conv folding / w1 permute).
    Mirrors the kernel's bf16 weight/activation rounding so tolerances stay tight."""
    bf = lambda t: t.astype(jnp.bfloat16)
    f32 = jnp.float32
    conv = lax.conv_general_dilated(
        bf(obs), bf(params["w_conv"]), window_strides=(1, 1), padding="VALID",
        dimension_numbers=("NCHW", "OIHW", "NCHW"), preferred_element_type=f32)
    conv = jnp.maximum(conv + params["b_conv"].reshape(1, -1, 1, 1), 0.0)
    feat = conv.reshape(obs.shape[0], -1)                    # torch Flatten order
    h1 = jnp.maximum(jnp.dot(bf(feat), bf(params["w1"]),
                             preferred_element_type=f32) + params["b1"], 0.0)
    h2 = jnp.maximum(jnp.dot(bf(h1), bf(params["w2"]),
                             preferred_element_type=f32) + params["b2"], 0.0)
    logits = jnp.dot(bf(h2), bf(params["w3"]),
                     preferred_element_type=f32) + params["b3"]
    logsm = jax.nn.log_softmax(logits, axis=-1)
    logp_a = jnp.take_along_axis(logsm, act[:, None].astype(jnp.int32), axis=-1)[:, 0]
    return logsm, logp_a


# ------------------------------------ demo -----------------------------------

if __name__ == "__main__":
    C, H, W = 4, 16, 16
    act_dim = 4

    key = jax.random.PRNGKey(0)
    k_obs, k_params, k_obs2, k_act2 = jax.random.split(key, 4)

    params = init_params(k_params, (C, H, W), act_dim)
    kparams = prepare_kernel_params(params, (C, H, W), act_dim)

    fwd = jax.jit(cnn_categorical_actor_forward, static_argnames=("act_dim", "tb"))

    # --- small demo batch ---
    B = 2
    obs = jax.random.normal(k_obs, (B, C, H, W), jnp.float32)
    act = jnp.array([1, 3], dtype=jnp.int32)

    log_probs, logp_a = fwd(kparams, obs, act, act_dim=act_dim)
    jax.block_until_ready((log_probs, logp_a))

    assert log_probs.shape == (B, act_dim) and logp_a.shape == (B,)
    # distribution sanity: probs sum to 1, logp_a matches gathered normalized logits
    assert jnp.allclose(jnp.sum(jnp.exp(log_probs), axis=-1), 1.0, atol=1e-4)
    assert jnp.allclose(logp_a, log_probs[jnp.arange(B), act], atol=1e-5)
    # cross-check against a real-conv pure-JAX reference (validates folding/permute)
    ref_lp, ref_la = reference_forward(params, obs, act)
    assert jnp.allclose(log_probs, ref_lp, atol=5e-3, rtol=5e-3), (
        float(jnp.max(jnp.abs(log_probs - ref_lp))))
    assert jnp.allclose(logp_a, ref_la, atol=5e-3, rtol=5e-3)

    # --- batch NOT a multiple of the tile (remainder path, review concern) ---
    B2 = 12
    obs2 = jax.random.normal(k_obs2, (B2, C, H, W), jnp.float32)
    act2 = jax.random.randint(k_act2, (B2,), 0, act_dim, dtype=jnp.int32)
    lp2, la2 = fwd(kparams, obs2, act2, act_dim=act_dim, tb=8)
    jax.block_until_ready((lp2, la2))
    ref_lp2, ref_la2 = reference_forward(params, obs2, act2)
    assert jnp.allclose(lp2, ref_lp2, atol=5e-3, rtol=5e-3)
    assert jnp.allclose(la2, ref_la2, atol=5e-3, rtol=5e-3)

    print("KERNEL_OK")
</pallas_src>

<mosaic_0001>
module attributes {stable_mosaic.version = 11 : i64} {
  func.func @_actor_kernel(%arg0: i32, %arg1: memref<16x2x64xbf16, #tpu.memory_space<vmem>>, %arg2: memref<2x1xi32, #tpu.memory_space<vmem>>, %arg3: memref<192x448xbf16, #tpu.memory_space<vmem>>, %arg4: memref<1x448xf32, #tpu.memory_space<vmem>>, %arg5: memref<14x448x256xbf16, #tpu.memory_space<vmem>>, %arg6: memref<1x256xf32, #tpu.memory_space<vmem>>, %arg7: memref<256x256xbf16, #tpu.memory_space<vmem>>, %arg8: memref<1x256xf32, #tpu.memory_space<vmem>>, %arg9: memref<256x128xbf16, #tpu.memory_space<vmem>>, %arg10: memref<1x128xf32, #tpu.memory_space<vmem>>, %arg11: memref<2x128xf32, #tpu.memory_space<vmem>>) attributes {dimension_semantics = [#tpu.dimension_semantics<parallel>], iteration_bounds = array<i64: 1>, scalar_prefetch = 0 : i64, scratch_operands = 0 : i64, tpu.core_type = #tpu.core_type<tc>, window_params = [{transform_indices = @transform_0, window_bounds = array<i64: 16, 2, 64>}, {transform_indices = @transform_1, window_bounds = array<i64: 2, 1>}, {pipeline_mode = #tpu.pipeline_mode<synchronous>, transform_indices = @transform_2, window_bounds = array<i64: 192, 448>}, {pipeline_mode = #tpu.pipeline_mode<synchronous>, transform_indices = @transform_3, window_bounds = array<i64: 1, 448>}, {pipeline_mode = #tpu.pipeline_mode<synchronous>, transform_indices = @transform_4, window_bounds = array<i64: 14, 448, 256>}, {pipeline_mode = #tpu.pipeline_mode<synchronous>, transform_indices = @transform_5, window_bounds = array<i64: 1, 256>}, {pipeline_mode = #tpu.pipeline_mode<synchronous>, transform_indices = @transform_6, window_bounds = array<i64: 256, 256>}, {pipeline_mode = #tpu.pipeline_mode<synchronous>, transform_indices = @transform_7, window_bounds = array<i64: 1, 256>}, {pipeline_mode = #tpu.pipeline_mode<synchronous>, transform_indices = @transform_8, window_bounds = array<i64: 256, 128>}, {pipeline_mode = #tpu.pipeline_mode<synchronous>, transform_indices = @transform_9, window_bounds = array<i64: 1, 128>}, {transform_indices = @transform_10, window_bounds = array<i64: 2, 128>}]} {
    %c0 = arith.constant 0 : index
    %c0_0 = arith.constant 0 : index
    %0 = vector.load %arg3[%c0, %c0_0] : memref<192x448xbf16, #tpu.memory_space<vmem>>, vector<192x448xbf16>
    %c0_1 = arith.constant 0 : index
    %c0_2 = arith.constant 0 : index
    %1 = vector.load %arg4[%c0_1, %c0_2] : memref<1x448xf32, #tpu.memory_space<vmem>>, vector<1x448xf32>
    %cst = arith.constant 0.000000e+00 : f32
    %2 = vector.broadcast %cst : f32 to vector<2x256xf32>
    %c0_3 = arith.constant 0 : index
    %c0_4 = arith.constant 0 : index
    %c0_5 = arith.constant 0 : index
    %3 = vector.load %arg1[%c0_3, %c0_4, %c0_5] : memref<16x2x64xbf16, #tpu.memory_space<vmem>>, vector<1x2x64xbf16>
    %4 = vector.shape_cast %3 : vector<1x2x64xbf16> to vector<2x64xbf16>
    %c1 = arith.constant 1 : index
    %c0_6 = arith.constant 0 : index
    %c0_7 = arith.constant 0 : index
    %5 = vector.load %arg1[%c1, %c0_6, %c0_7] : memref<16x2x64xbf16, #tpu.memory_space<vmem>>, vector<1x2x64xbf16>
    %6 = vector.shape_cast %5 : vector<1x2x64xbf16> to vector<2x64xbf16>
    %c2 = arith.constant 2 : index
    %c0_8 = arith.constant 0 : index
    %c0_9 = arith.constant 0 : index
    %7 = vector.load %arg1[%c2, %c0_8, %c0_9] : memref<16x2x64xbf16, #tpu.memory_space<vmem>>, vector<1x2x64xbf16>
    %8 = vector.shape_cast %7 : vector<1x2x64xbf16> to vector<2x64xbf16>
    %9 = tpu.concatenate %4, %6, %8 in 1 : vector<2x64xbf16>, vector<2x64xbf16>, vector<2x64xbf16> -> vector<2x192xbf16>
    %cst_10 = arith.constant dense<0.000000e+00> : vector<2x448xf32>
    %10 = tpu.matmul %9, %0, %cst_10 {dimension_numbers = #tpu.dot_dimension_numbers<[1], [0], [0], [1], [0, 0, 1, 1], [], []>} : vector<2x192xbf16>, vector<192x448xbf16>, vector<2x448xf32> -> vector<2x448xf32>
    %11 = vector.broadcast %1 : vector<1x448xf32> to vector<2x448xf32>
    %12 = arith.addf %10, %11 : vector<2x448xf32>
    %cst_11 = arith.constant 0.000000e+00 : f32
    %13 = vector.broadcast %cst_11 : f32 to vector<2x448xf32>
    %14 = arith.maximumf %12, %13 : vector<2x448xf32>
    %15 = arith.truncf %14 : vector<2x448xf32> to vector<2x448xbf16>
    %c0_12 = arith.constant 0 : index
    %c0_13 = arith.constant 0 : index
    %c0_14 = arith.constant 0 : index
    %16 = vector.load %arg5[%c0_12, %c0_13, %c0_14] : memref<14x448x256xbf16, #tpu.memory_space<vmem>>, vector<1x448x256xbf16>
    %17 = vector.shape_cast %16 : vector<1x448x256xbf16> to vector<448x256xbf16>
    %cst_15 = arith.constant dense<0.000000e+00> : vector<2x256xf32>
    %18 = tpu.matmul %15, %17, %cst_15 {dimension_numbers = #tpu.dot_dimension_numbers<[1], [0], [0], [1], [0, 0, 1, 1], [], []>} : vector<2x448xbf16>, vector<448x256xbf16>, vector<2x256xf32> -> vector<2x256xf32>
    %19 = arith.addf %2, %18 : vector<2x256xf32>
    %c1_16 = arith.constant 1 : index
    %c0_17 = arith.constant 0 : index
    %c0_18 = arith.constant 0 : index
    %20 = vector.load %arg1[%c1_16, %c0_17, %c0_18] : memref<16x2x64xbf16, #tpu.memory_space<vmem>>, vector<1x2x64xbf16>
    %21 = vector.shape_cast %20 : vector<1x2x64xbf16> to vector<2x64xbf16>
    %c2_19 = arith.constant 2 : index
    %c0_20 = arith.constant 0 : index
    %c0_21 = arith.constant 0 : index
    %22 = vector.load %arg1[%c2_19, %c0_20, %c0_21] : memref<16x2x64xbf16, #tpu.memory_space<vmem>>, vector<1x2x64xbf16>
    %23 = vector.shape_cast %22 : vector<1x2x64xbf16> to vector<2x64xbf16>
    %c3 = arith.constant 3 : index
    %c0_22 = arith.constant 0 : index
    %c0_23 = arith.constant 0 : index
    %24 = vector.load %arg1[%c3, %c0_22, %c0_23] : memref<16x2x64xbf16, #tpu.memory_space<vmem>>, vector<1x2x64xbf16>
    %25 = vector.shape_cast %24 : vector<1x2x64xbf16> to vector<2x64xbf16>
    %26 = tpu.concatenate %21, %23, %25 in 1 : vector<2x64xbf16>, vector<2x64xbf16>, vector<2x64xbf16> -> vector<2x192xbf16>
    %cst_24 = arith.constant dense<0.000000e+00> : vector<2x448xf32>
    %27 = tpu.matmul %26, %0, %cst_24 {dimension_numbers = #tpu.dot_dimension_numbers<[1], [0], [0], [1], [0, 0, 1, 1], [], []>} : vector<2x192xbf16>, vector<192x448xbf16>, vector<2x448xf32> -> vector<2x448xf32>
    %28 = vector.broadcast %1 : vector<1x448xf32> to vector<2x448xf32>
    %29 = arith.addf %27, %28 : vector<2x448xf32>
    %cst_25 = arith.constant 0.000000e+00 : f32
    %30 = vector.broadcast %cst_25 : f32 to vector<2x448xf32>
    %31 = arith.maximumf %29, %30 : vector<2x448xf32>
    %32 = arith.truncf %31 : vector<2x448xf32> to vector<2x448xbf16>
    %c1_26 = arith.constant 1 : index
    %c0_27 = arith.constant 0 : index
    %c0_28 = arith.constant 0 : index
    %33 = vector.load %arg5[%c1_26, %c0_27, %c0_28] : memref<14x448x256xbf16, #tpu.memory_space<vmem>>, vector<1x448x256xbf16>
    %34 = vector.shape_cast %33 : vector<1x448x256xbf16> to vector<448x256xbf16>
    %cst_29 = arith.constant dense<0.000000e+00> : vector<2x256xf32>
    %35 = tpu.matmul %32, %34, %cst_29 {dimension_numbers = #tpu.dot_dimension_numbers<[1], [0], [0], [1], [0, 0, 1, 1], [], []>} : vector<2x448xbf16>, vector<448x256xbf16>, vector<2x256xf32> -> vector<2x256xf32>
    %36 = arith.addf %19, %35 : vector<2x256xf32>
    %c2_30 = arith.constant 2 : index
    %c0_31 = arith.constant 0 : index
    %c0_32 = arith.constant 0 : index
    %37 = vector.load %arg1[%c2_30, %c0_31, %c0_32] : memref<16x2x64xbf16, #tpu.memory_space<vmem>>, vector<1x2x64xbf16>
    %38 = vector.shape_cast %37 : vector<1x2x64xbf16> to vector<2x64xbf16>
    %c3_33 = arith.constant 3 : index
    %c0_34 = arith.constant 0 : index
    %c0_35 = arith.constant 0 : index
    %39 = vector.load %arg1[%c3_33, %c0_34, %c0_35] : memref<16x2x64xbf16, #tpu.memory_space<vmem>>, vector<1x2x64xbf16>
    %40 = vector.shape_cast %39 : vector<1x2x64xbf16> to vector<2x64xbf16>
    %c4 = arith.constant 4 : index
    %c0_36 = arith.constant 0 : index
    %c0_37 = arith.constant 0 : index
    %41 = vector.load %arg1[%c4, %c0_36, %c0_37] : memref<16x2x64xbf16, #tpu.memory_space<vmem>>, vector<1x2x64xbf16>
    %42 = vector.shape_cast %41 : vector<1x2x64xbf16> to vector<2x64xbf16>
    %43 = tpu.concatenate %38, %40, %42 in 1 : vector<2x64xbf16>, vector<2x64xbf16>, vector<2x64xbf16> -> vector<2x192xbf16>
    %cst_38 = arith.constant dense<0.000000e+00> : vector<2x448xf32>
    %44 = tpu.matmul %43, %0, %cst_38 {dimension_numbers = #tpu.dot_dimension_numbers<[1], [0], [0], [1], [0, 0, 1, 1], [], []>} : vector<2x192xbf16>, vector<192x448xbf16>, vector<2x448xf32> -> vector<2x448xf32>
    %45 = vector.broadcast %1 : vector<1x448xf32> to vector<2x448xf32>
    %46 = arith.addf %44, %45 : vector<2x448xf32>
    %cst_39 = arith.constant 0.000000e+00 : f32
    %47 = vector.broadcast %cst_39 : f32 to vector<2x448xf32>
    %48 = arith.maximumf %46, %47 : vector<2x448xf32>
    %49 = arith.truncf %48 : vector<2x448xf32> to vector<2x448xbf16>
    %c2_40 = arith.constant 2 : index
    %c0_41 = arith.constant 0 : index
    %c0_42 = arith.constant 0 : index
    %50 = vector.load %arg5[%c2_40, %c0_41, %c0_42] : memref<14x448x256xbf16, #tpu.memory_space<vmem>>, vector<1x448x256xbf16>
    %51 = vector.shape_cast %50 : vector<1x448x256xbf16> to vector<448x256xbf16>
    %cst_43 = arith.constant dense<0.000000e+00> : vector<2x256xf32>
    %52 = tpu.matmul %49, %51, %cst_43 {dimension_numbers = #tpu.dot_dimension_numbers<[1], [0], [0], [1], [0, 0, 1, 1], [], []>} : vector<2x448xbf16>, vector<448x256xbf16>, vector<2x256xf32> -> vector<2x256xf32>
    %53 = arith.addf %36, %52 : vector<2x256xf32>
    %c3_44 = arith.constant 3 : index
    %c0_45 = arith.constant 0 : index
    %c0_46 = arith.constant 0 : index
    %54 = vector.load %arg1[%c3_44, %c0_45, %c0_46] : memref<16x2x64xbf16, #tpu.memory_space<vmem>>, vector<1x2x64xbf16>
    %55 = vector.shape_cast %54 : vector<1x2x64xbf16> to vector<2x64xbf16>
    %c4_47 = arith.constant 4 : index
    %c0_48 = arith.constant 0 : index
    %c0_49 = arith.constant 0 : index
    %56 = vector.load %arg1[%c4_47, %c0_48, %c0_49] : memref<16x2x64xbf16, #tpu.memory_space<vmem>>, vector<1x2x64xbf16>
    %57 = vector.shape_cast %56 : vector<1x2x64xbf16> to vector<2x64xbf16>
    %c5 = arith.constant 5 : index
    %c0_50 = arith.constant 0 : index
    %c0_51 = arith.constant 0 : index
    %58 = vector.load %arg1[%c5, %c0_50, %c0_51] : memref<16x2x64xbf16, #tpu.memory_space<vmem>>, vector<1x2x64xbf16>
    %59 = vector.shape_cast %58 : vector<1x2x64xbf16> to vector<2x64xbf16>
    %60 = tpu.concatenate %55, %57, %59 in 1 : vector<2x64xbf16>, vector<2x64xbf16>, vector<2x64xbf16> -> vector<2x192xbf16>
    %cst_52 = arith.constant dense<0.000000e+00> : vector<2x448xf32>
    %61 = tpu.matmul %60, %0, %cst_52 {dimension_numbers = #tpu.dot_dimension_numbers<[1], [0], [0], [1], [0, 0, 1, 1], [], []>} : vector<2x192xbf16>, vector<192x448xbf16>, vector<2x448xf32> -> vector<2x448xf32>
    %62 = vector.broadcast %1 : vector<1x448xf32> to vector<2x448xf32>
    %63 = arith.addf %61, %62 : vector<2x448xf32>
    %cst_53 = arith.constant 0.000000e+00 : f32
    %64 = vector.broadcast %cst_53 : f32 to vector<2x448xf32>
    %65 = arith.maximumf %63, %64 : vector<2x448xf32>
    %66 = arith.truncf %65 : vector<2x448xf32> to vector<2x448xbf16>
    %c3_54 = arith.constant 3 : index
    %c0_55 = arith.constant 0 : index
    %c0_56 = arith.constant 0 : index
    %67 = vector.load %arg5[%c3_54, %c0_55, %c0_56] : memref<14x448x256xbf16, #tpu.memory_space<vmem>>, vector<1x448x256xbf16>
    %68 = vector.shape_cast %67 : vector<1x448x256xbf16> to vector<448x256xbf16>
    %cst_57 = arith.constant dense<0.000000e+00> : vector<2x256xf32>
    %69 = tpu.matmul %66, %68, %cst_57 {dimension_numbers = #tpu.dot_dimension_numbers<[1], [0], [0], [1], [0, 0, 1, 1], [], []>} : vector<2x448xbf16>, vector<448x256xbf16>, vector<2x256xf32> -> vector<2x256xf32>
    %70 = arith.addf %53, %69 : vector<2x256xf32>
    %c4_58 = arith.constant 4 : index
    %c0_59 = arith.constant 0 : index
    %c0_60 = arith.constant 0 : index
    %71 = vector.load %arg1[%c4_58, %c0_59, %c0_60] : memref<16x2x64xbf16, #tpu.memory_space<vmem>>, vector<1x2x64xbf16>
    %72 = vector.shape_cast %71 : vector<1x2x64xbf16> to vector<2x64xbf16>
    %c5_61 = arith.constant 5 : index
    %c0_62 = arith.constant 0 : index
    %c0_63 = arith.constant 0 : index
    %73 = vector.load %arg1[%c5_61, %c0_62, %c0_63] : memref<16x2x64xbf16, #tpu.memory_space<vmem>>, vector<1x2x64xbf16>
    %74 = vector.shape_cast %73 : vector<1x2x64xbf16> to vector<2x64xbf16>
    %c6 = arith.constant 6 : index
    %c0_64 = arith.constant 0 : index
    %c0_65 = arith.constant 0 : index
    %75 = vector.load %arg1[%c6, %c0_64, %c0_65] : memref<16x2x64xbf16, #tpu.memory_space<vmem>>, vector<1x2x64xbf16>
    %76 = vector.shape_cast %75 : vector<1x2x64xbf16> to vector<2x64xbf16>
    %77 = tpu.concatenate %72, %74, %76 in 1 : vector<2x64xbf16>, vector<2x64xbf16>, vector<2x64xbf16> -> vector<2x192xbf16>
    %cst_66 = arith.constant dense<0.000000e+00> : vector<2x448xf32>
    %78 = tpu.matmul %77, %0, %cst_66 {dimension_numbers = #tpu.dot_dimension_numbers<[1], [0], [0], [1], [0, 0, 1, 1], [], []>} : vector<2x192xbf16>, vector<192x448xbf16>, vector<2x448xf32> -> vector<2x448xf32>
    %79 = vector.broadcast %1 : vector<1x448xf32> to vector<2x448xf32>
    %80 = arith.addf %78, %79 : vector<2x448xf32>
    %cst_67 = arith.constant 0.000000e+00 : f32
    %81 = vector.broadcast %cst_67 : f32 to vector<2x448xf32>
    %82 = arith.maximumf %80, %81 : vector<2x448xf32>
    %83 = arith.truncf %82 : vector<2x448xf32> to vector<2x448xbf16>
    %c4_68 = arith.constant 4 : index
    %c0_69 = arith.constant 0 : index
    %c0_70 = arith.constant 0 : index
    %84 = vector.load %arg5[%c4_68, %c0_69, %c0_70] : memref<14x448x256xbf16, #tpu.memory_space<vmem>>, vector<1x448x256xbf16>
    %85 = vector.shape_cast %84 : vector<1x448x256xbf16> to vector<448x256xbf16>
    %cst_71 = arith.constant dense<0.000000e+00> : vector<2x256xf32>
    %86 = tpu.matmul %83, %85, %cst_71 {dimension_numbers = #tpu.dot_dimension_numbers<[1], [0], [0], [1], [0, 0, 1, 1], [], []>} : vector<2x448xbf16>, vector<448x256xbf16>, vector<2x256xf32> -> vector<2x256xf32>
    %87 = arith.addf %70, %86 : vector<2x256xf32>
    %c5_72 = arith.constant 5 : index
    %c0_73 = arith.constant 0 : index
    %c0_74 = arith.constant 0 : index
    %88 = vector.load %arg1[%c5_72, %c0_73, %c0_74] : memref<16x2x64xbf16, #tpu.memory_space<vmem>>, vector<1x2x64xbf16>
    %89 = vector.shape_cast %88 : vector<1x2x64xbf16> to vector<2x64xbf16>
    %c6_75 = arith.constant 6 : index
    %c0_76 = arith.constant 0 : index
    %c0_77 = arith.constant 0 : index
    %90 = vector.load %arg1[%c6_75, %c0_76, %c0_77] : memref<16x2x64xbf16, #tpu.memory_space<vmem>>, vector<1x2x64xbf16>
    %91 = vector.shape_cast %90 : vector<1x2x64xbf16> to vector<2x64xbf16>
    %c7 = arith.constant 7 : index
    %c0_78 = arith.constant 0 : index
    %c0_79 = arith.constant 0 : index
    %92 = vector.load %arg1[%c7, %c0_78, %c0_79] : memref<16x2x64xbf16, #tpu.memory_space<vmem>>, vector<1x2x64xbf16>
    %93 = vector.shape_cast %92 : vector<1x2x64xbf16> to vector<2x64xbf16>
    %94 = tpu.concatenate %89, %91, %93 in 1 : vector<2x64xbf16>, vector<2x64xbf16>, vector<2x64xbf16> -> vector<2x192xbf16>
    %cst_80 = arith.constant dense<0.000000e+00> : vector<2x448xf32>
    %95 = tpu.matmul %94, %0, %cst_80 {dimension_numbers = #tpu.dot_dimension_numbers<[1], [0], [0], [1], [0, 0, 1, 1], [], []>} : vector<2x192xbf16>, vector<192x448xbf16>, vector<2x448xf32> -> vector<2x448xf32>
    %96 = vector.broadcast %1 : vector<1x448xf32> to vector<2x448xf32>
    %97 = arith.addf %95, %96 : vector<2x448xf32>
    %cst_81 = arith.constant 0.000000e+00 : f32
    %98 = vector.broadcast %cst_81 : f32 to vector<2x448xf32>
    %99 = arith.maximumf %97, %98 : vector<2x448xf32>
    %100 = arith.truncf %99 : vector<2x448xf32> to vector<2x448xbf16>
    %c5_82 = arith.constant 5 : index
    %c0_83 = arith.constant 0 : index
    %c0_84 = arith.constant 0 : index
    %101 = vector.load %arg5[%c5_82, %c0_83, %c0_84] : memref<14x448x256xbf16, #tpu.memory_space<vmem>>, vector<1x448x256xbf16>
    %102 = vector.shape_cast %101 : vector<1x448x256xbf16> to vector<448x256xbf16>
    %cst_85 = arith.constant dense<0.000000e+00> : vector<2x256xf32>
    %103 = tpu.matmul %100, %102, %cst_85 {dimension_numbers = #tpu.dot_dimension_numbers<[1], [0], [0], [1], [0, 0, 1, 1], [], []>} : vector<2x448xbf16>, vector<448x256xbf16>, vector<2x256xf32> -> vector<2x256xf32>
    %104 = arith.addf %87, %103 : vector<2x256xf32>
    %c6_86 = arith.constant 6 : index
    %c0_87 = arith.constant 0 : index
    %c0_88 = arith.constant 0 : index
    %105 = vector.load %arg1[%c6_86, %c0_87, %c0_88] : memref<16x2x64xbf16, #tpu.memory_space<vmem>>, vector<1x2x64xbf16>
    %106 = vector.shape_cast %105 : vector<1x2x64xbf16> to vector<2x64xbf16>
    %c7_89 = arith.constant 7 : index
    %c0_90 = arith.constant 0 : index
    %c0_91 = arith.constant 0 : index
    %107 = vector.load %arg1[%c7_89, %c0_90, %c0_91] : memref<16x2x64xbf16, #tpu.memory_space<vmem>>, vector<1x2x64xbf16>
    %108 = vector.shape_cast %107 : vector<1x2x64xbf16> to vector<2x64xbf16>
    %c8 = arith.constant 8 : index
    %c0_92 = arith.constant 0 : index
    %c0_93 = arith.constant 0 : index
    %109 = vector.load %arg1[%c8, %c0_92, %c0_93] : memref<16x2x64xbf16, #tpu.memory_space<vmem>>, vector<1x2x64xbf16>
    %110 = vector.shape_cast %109 : vector<1x2x64xbf16> to vector<2x64xbf16>
    %111 = tpu.concatenate %106, %108, %110 in 1 : vector<2x64xbf16>, vector<2x64xbf16>, vector<2x64xbf16> -> vector<2x192xbf16>
    %cst_94 = arith.constant dense<0.000000e+00> : vector<2x448xf32>
    %112 = tpu.matmul %111, %0, %cst_94 {dimension_numbers = #tpu.dot_dimension_numbers<[1], [0], [0], [1], [0, 0, 1, 1], [], []>} : vector<2x192xbf16>, vector<192x448xbf16>, vector<2x448xf32> -> vector<2x448xf32>
    %113 = vector.broadcast %1 : vector<1x448xf32> to vector<2x448xf32>
    %114 = arith.addf %112, %113 : vector<2x448xf32>
    %cst_95 = arith.constant 0.000000e+00 : f32
    %115 = vector.broadcast %cst_95 : f32 to vector<2x448xf32>
    %116 = arith.maximumf %114, %115 : vector<2x448xf32>
    %117 = arith.truncf %116 : vector<2x448xf32> to vector<2x448xbf16>
    %c6_96 = arith.constant 6 : index
    %c0_97 = arith.constant 0 : index
    %c0_98 = arith.constant 0 : index
    %118 = vector.load %arg5[%c6_96, %c0_97, %c0_98] : memref<14x448x256xbf16, #tpu.memory_space<vmem>>, vector<1x448x256xbf16>
    %119 = vector.shape_cast %118 : vector<1x448x256xbf16> to vector<448x256xbf16>
    %cst_99 = arith.constant dense<0.000000e+00> : vector<2x256xf32>
    %120 = tpu.matmul %117, %119, %cst_99 {dimension_numbers = #tpu.dot_dimension_numbers<[1], [0], [0], [1], [0, 0, 1, 1], [], []>} : vector<2x448xbf16>, vector<448x256xbf16>, vector<2x256xf32> -> vector<2x256xf32>
    %121 = arith.addf %104, %120 : vector<2x256xf32>
    %c7_100 = arith.constant 7 : index
    %c0_101 = arith.constant 0 : index
    %c0_102 = arith.constant 0 : index
    %122 = vector.load %arg1[%c7_100, %c0_101, %c0_102] : memref<16x2x64xbf16, #tpu.memory_space<vmem>>, vector<1x2x64xbf16>
    %123 = vector.shape_cast %122 : vector<1x2x64xbf16> to vector<2x64xbf16>
    %c8_103 = arith.constant 8 : index
    %c0_104 = arith.constant 0 : index
    %c0_105 = arith.constant 0 : index
    %124 = vector.load %arg1[%c8_103, %c0_104, %c0_105] : memref<16x2x64xbf16, #tpu.memory_space<vmem>>, vector<1x2x64xbf16>
    %125 = vector.shape_cast %124 : vector<1x2x64xbf16> to vector<2x64xbf16>
    %c9 = arith.constant 9 : index
    %c0_106 = arith.constant 0 : index
    %c0_107 = arith.constant 0 : index
    %126 = vector.load %arg1[%c9, %c0_106, %c0_107] : memref<16x2x64xbf16, #tpu.memory_space<vmem>>, vector<1x2x64xbf16>
    %127 = vector.shape_cast %126 : vector<1x2x64xbf16> to vector<2x64xbf16>
    %128 = tpu.concatenate %123, %125, %127 in 1 : vector<2x64xbf16>, vector<2x64xbf16>, vector<2x64xbf16> -> vector<2x192xbf16>
    %cst_108 = arith.constant dense<0.000000e+00> : vector<2x448xf32>
    %129 = tpu.matmul %128, %0, %cst_108 {dimension_numbers = #tpu.dot_dimension_numbers<[1], [0], [0], [1], [0, 0, 1, 1], [], []>} : vector<2x192xbf16>, vector<192x448xbf16>, vector<2x448xf32> -> vector<2x448xf32>
    %130 = vector.broadcast %1 : vector<1x448xf32> to vector<2x448xf32>
    %131 = arith.addf %129, %130 : vector<2x448xf32>
    %cst_109 = arith.constant 0.000000e+00 : f32
    %132 = vector.broadcast %cst_109 : f32 to vector<2x448xf32>
    %133 = arith.maximumf %131, %132 : vector<2x448xf32>
    %134 = arith.truncf %133 : vector<2x448xf32> to vector<2x448xbf16>
    %c7_110 = arith.constant 7 : index
    %c0_111 = arith.constant 0 : index
    %c0_112 = arith.constant 0 : index
    %135 = vector.load %arg5[%c7_110, %c0_111, %c0_112] : memref<14x448x256xbf16, #tpu.memory_space<vmem>>, vector<1x448x256xbf16>
    %136 = vector.shape_cast %135 : vector<1x448x256xbf16> to vector<448x256xbf16>
    %cst_113 = arith.constant dense<0.000000e+00> : vector<2x256xf32>
    %137 = tpu.matmul %134, %136, %cst_113 {dimension_numbers = #tpu.dot_dimension_numbers<[1], [0], [0], [1], [0, 0, 1, 1], [], []>} : vector<2x448xbf16>, vector<448x256xbf16>, vector<2x256xf32> -> vector<2x256xf32>
    %138 = arith.addf %121, %137 : vector<2x256xf32>
    %c8_114 = arith.constant 8 : index
    %c0_115 = arith.constant 0 : index
    %c0_116 = arith.constant 0 : index
    %139 = vector.load %arg1[%c8_114, %c0_115, %c0_116] : memref<16x2x64xbf16, #tpu.memory_space<vmem>>, vector<1x2x64xbf16>
    %140 = vector.shape_cast %139 : vector<1x2x64xbf16> to vector<2x64xbf16>
    %c9_117 = arith.constant 9 : index
    %c0_118 = arith.constant 0 : index
    %c0_119 = arith.constant 0 : index
    %141 = vector.load %arg1[%c9_117, %c0_118, %c0_119] : memref<16x2x64xbf16, #tpu.memory_space<vmem>>, vector<1x2x64xbf16>
    %142 = vector.shape_cast %141 : vector<1x2x64xbf16> to vector<2x64xbf16>
    %c10 = arith.constant 10 : index
    %c0_120 = arith.constant 0 : index
    %c0_121 = arith.constant 0 : index
    %143 = vector.load %arg1[%c10, %c0_120, %c0_121] : memref<16x2x64xbf16, #tpu.memory_space<vmem>>, vector<1x2x64xbf16>
    %144 = vector.shape_cast %143 : vector<1x2x64xbf16> to vector<2x64xbf16>
    %145 = tpu.concatenate %140, %142, %144 in 1 : vector<2x64xbf16>, vector<2x64xbf16>, vector<2x64xbf16> -> vector<2x192xbf16>
    %cst_122 = arith.constant dense<0.000000e+00> : vector<2x448xf32>
    %146 = tpu.matmul %145, %0, %cst_122 {dimension_numbers = #tpu.dot_dimension_numbers<[1], [0], [0], [1], [0, 0, 1, 1], [], []>} : vector<2x192xbf16>, vector<192x448xbf16>, vector<2x448xf32> -> vector<2x448xf32>
    %147 = vector.broadcast %1 : vector<1x448xf32> to vector<2x448xf32>
    %148 = arith.addf %146, %147 : vector<2x448xf32>
    %cst_123 = arith.constant 0.000000e+00 : f32
    %149 = vector.broadcast %cst_123 : f32 to vector<2x448xf32>
    %150 = arith.maximumf %148, %149 : vector<2x448xf32>
    %151 = arith.truncf %150 : vector<2x448xf32> to vector<2x448xbf16>
    %c8_124 = arith.constant 8 : index
    %c0_125 = arith.constant 0 : index
    %c0_126 = arith.constant 0 : index
    %152 = vector.load %arg5[%c8_124, %c0_125, %c0_126] : memref<14x448x256xbf16, #tpu.memory_space<vmem>>, vector<1x448x256xbf16>
    %153 = vector.shape_cast %152 : vector<1x448x256xbf16> to vector<448x256xbf16>
    %cst_127 = arith.constant dense<0.000000e+00> : vector<2x256xf32>
    %154 = tpu.matmul %151, %153, %cst_127 {dimension_numbers = #tpu.dot_dimension_numbers<[1], [0], [0], [1], [0, 0, 1, 1], [], []>} : vector<2x448xbf16>, vector<448x256xbf16>, vector<2x256xf32> -> vector<2x256xf32>
    %155 = arith.addf %138, %154 : vector<2x256xf32>
    %c9_128 = arith.constant 9 : index
    %c0_129 = arith.constant 0 : index
    %c0_130 = arith.constant 0 : index
    %156 = vector.load %arg1[%c9_128, %c0_129, %c0_130] : memref<16x2x64xbf16, #tpu.memory_space<vmem>>, vector<1x2x64xbf16>
    %157 = vector.shape_cast %156 : vector<1x2x64xbf16> to vector<2x64xbf16>
    %c10_131 = arith.constant 10 : index
    %c0_132 = arith.constant 0 : index
    %c0_133 = arith.constant 0 : index
    %158 = vector.load %arg1[%c10_131, %c0_132, %c0_133] : memref<16x2x64xbf16, #tpu.memory_space<vmem>>, vector<1x2x64xbf16>
    %159 = vector.shape_cast %158 : vector<1x2x64xbf16> to vector<2x64xbf16>
    %c11 = arith.constant 11 : index
    %c0_134 = arith.constant 0 : index
    %c0_135 = arith.constant 0 : index
    %160 = vector.load %arg1[%c11, %c0_134, %c0_135] : memref<16x2x64xbf16, #tpu.memory_space<vmem>>, vector<1x2x64xbf16>
    %161 = vector.shape_cast %160 : vector<1x2x64xbf16> to vector<2x64xbf16>
    %162 = tpu.concatenate %157, %159, %161 in 1 : vector<2x64xbf16>, vector<2x64xbf16>, vector<2x64xbf16> -> vector<2x192xbf16>
    %cst_136 = arith.constant dense<0.000000e+00> : vector<2x448xf32>
    %163 = tpu.matmul %162, %0, %cst_136 {dimension_numbers = #tpu.dot_dimension_numbers<[1], [0], [0], [1], [0, 0, 1, 1], [], []>} : vector<2x192xbf16>, vector<192x448xbf16>, vector<2x448xf32> -> vector<2x448xf32>
    %164 = vector.broadcast %1 : vector<1x448xf32> to vector<2x448xf32>
    %165 = arith.addf %163, %164 : vector<2x448xf32>
    %cst_137 = arith.constant 0.000000e+00 : f32
    %166 = vector.broadcast %cst_137 : f32 to vector<2x448xf32>
    %167 = arith.maximumf %165, %166 : vector<2x448xf32>
    %168 = arith.truncf %167 : vector<2x448xf32> to vector<2x448xbf16>
    %c9_138 = arith.constant 9 : index
    %c0_139 = arith.constant 0 : index
    %c0_140 = arith.constant 0 : index
    %169 = vector.load %arg5[%c9_138, %c0_139, %c0_140] : memref<14x448x256xbf16, #tpu.memory_space<vmem>>, vector<1x448x256xbf16>
    %170 = vector.shape_cast %169 : vector<1x448x256xbf16> to vector<448x256xbf16>
    %cst_141 = arith.constant dense<0.000000e+00> : vector<2x256xf32>
    %171 = tpu.matmul %168, %170, %cst_141 {dimension_numbers = #tpu.dot_dimension_numbers<[1], [0], [0], [1], [0, 0, 1, 1], [], []>} : vector<2x448xbf16>, vector<448x256xbf16>, vector<2x256xf32> -> vector<2x256xf32>
    %172 = arith.addf %155, %171 : vector<2x256xf32>
    %c10_142 = arith.constant 10 : index
    %c0_143 = arith.constant 0 : index
    %c0_144 = arith.constant 0 : index
    %173 = vector.load %arg1[%c10_142, %c0_143, %c0_144] : memref<16x2x64xbf16, #tpu.memory_space<vmem>>, vector<1x2x64xbf16>
    %174 = vector.shape_cast %173 : vector<1x2x64xbf16> to vector<2x64xbf16>
    %c11_145 = arith.constant 11 : index
    %c0_146 = arith.constant 0 : index
    %c0_147 = arith.constant 0 : index
    %175 = vector.load %arg1[%c11_145, %c0_146, %c0_147] : memref<16x2x64xbf16, #tpu.memory_space<vmem>>, vector<1x2x64xbf16>
    %176 = vector.shape_cast %175 : vector<1x2x64xbf16> to vector<2x64xbf16>
    %c12 = arith.constant 12 : index
    %c0_148 = arith.constant 0 : index
    %c0_149 = arith.constant 0 : index
    %177 = vector.load %arg1[%c12, %c0_148, %c0_149] : memref<16x2x64xbf16, #tpu.memory_space<vmem>>, vector<1x2x64xbf16>
    %178 = vector.shape_cast %177 : vector<1x2x64xbf16> to vector<2x64xbf16>
    %179 = tpu.concatenate %174, %176, %178 in 1 : vector<2x64xbf16>, vector<2x64xbf16>, vector<2x64xbf16> -> vector<2x192xbf16>
    %cst_150 = arith.constant dense<0.000000e+00> : vector<2x448xf32>
    %180 = tpu.matmul %179, %0, %cst_150 {dimension_numbers = #tpu.dot_dimension_numbers<[1], [0], [0], [1], [0, 0, 1, 1], [], []>} : vector<2x192xbf16>, vector<192x448xbf16>, vector<2x448xf32> -> vector<2x448xf32>
    %181 = vector.broadcast %1 : vector<1x448xf32> to vector<2x448xf32>
    %182 = arith.addf %180, %181 : vector<2x448xf32>
    %cst_151 = arith.constant 0.000000e+00 : f32
    %183 = vector.broadcast %cst_151 : f32 to vector<2x448xf32>
    %184 = arith.maximumf %182, %183 : vector<2x448xf32>
    %185 = arith.truncf %184 : vector<2x448xf32> to vector<2x448xbf16>
    %c10_152 = arith.constant 10 : index
    %c0_153 = arith.constant 0 : index
    %c0_154 = arith.constant 0 : index
    %186 = vector.load %arg5[%c10_152, %c0_153, %c0_154] : memref<14x448x256xbf16, #tpu.memory_space<vmem>>, vector<1x448x256xbf16>
    %187 = vector.shape_cast %186 : vector<1x448x256xbf16> to vector<448x256xbf16>
    %cst_155 = arith.constant dense<0.000000e+00> : vector<2x256xf32>
    %188 = tpu.matmul %185, %187, %cst_155 {dimension_numbers = #tpu.dot_dimension_numbers<[1], [0], [0], [1], [0, 0, 1, 1], [], []>} : vector<2x448xbf16>, vector<448x256xbf16>, vector<2x256xf32> -> vector<2x256xf32>
    %189 = arith.addf %172, %188 : vector<2x256xf32>
    %c11_156 = arith.constant 11 : index
    %c0_157 = arith.constant 0 : index
    %c0_158 = arith.constant 0 : index
    %190 = vector.load %arg1[%c11_156, %c0_157, %c0_158] : memref<16x2x64xbf16, #tpu.memory_space<vmem>>, vector<1x2x64xbf16>
    %191 = vector.shape_cast %190 : vector<1x2x64xbf16> to vector<2x64xbf16>
    %c12_159 = arith.constant 12 : index
    %c0_160 = arith.constant 0 : index
    %c0_161 = arith.constant 0 : index
    %192 = vector.load %arg1[%c12_159, %c0_160, %c0_161] : memref<16x2x64xbf16, #tpu.memory_space<vmem>>, vector<1x2x64xbf16>
    %193 = vector.shape_cast %192 : vector<1x2x64xbf16> to vector<2x64xbf16>
    %c13 = arith.constant 13 : index
    %c0_162 = arith.constant 0 : index
    %c0_163 = arith.constant 0 : index
    %194 = vector.load %arg1[%c13, %c0_162, %c0_163] : memref<16x2x64xbf16, #tpu.memory_space<vmem>>, vector<1x2x64xbf16>
    %195 = vector.shape_cast %194 : vector<1x2x64xbf16> to vector<2x64xbf16>
    %196 = tpu.concatenate %191, %193, %195 in 1 : vector<2x64xbf16>, vector<2x64xbf16>, vector<2x64xbf16> -> vector<2x192xbf16>
    %cst_164 = arith.constant dense<0.000000e+00> : vector<2x448xf32>
    %197 = tpu.matmul %196, %0, %cst_164 {dimension_numbers = #tpu.dot_dimension_numbers<[1], [0], [0], [1], [0, 0, 1, 1], [], []>} : vector<2x192xbf16>, vector<192x448xbf16>, vector<2x448xf32> -> vector<2x448xf32>
    %198 = vector.broadcast %1 : vector<1x448xf32> to vector<2x448xf32>
    %199 = arith.addf %197, %198 : vector<2x448xf32>
    %cst_165 = arith.constant 0.000000e+00 : f32
    %200 = vector.broadcast %cst_165 : f32 to vector<2x448xf32>
    %201 = arith.maximumf %199, %200 : vector<2x448xf32>
    %202 = arith.truncf %201 : vector<2x448xf32> to vector<2x448xbf16>
    %c11_166 = arith.constant 11 : index
    %c0_167 = arith.constant 0 : index
    %c0_168 = arith.constant 0 : index
    %203 = vector.load %arg5[%c11_166, %c0_167, %c0_168] : memref<14x448x256xbf16, #tpu.memory_space<vmem>>, vector<1x448x256xbf16>
    %204 = vector.shape_cast %203 : vector<1x448x256xbf16> to vector<448x256xbf16>
    %cst_169 = arith.constant dense<0.000000e+00> : vector<2x256xf32>
    %205 = tpu.matmul %202, %204, %cst_169 {dimension_numbers = #tpu.dot_dimension_numbers<[1], [0], [0], [1], [0, 0, 1, 1], [], []>} : vector<2x448xbf16>, vector<448x256xbf16>, vector<2x256xf32> -> vector<2x256xf32>
    %206 = arith.addf %189, %205 : vector<2x256xf32>
    %c12_170 = arith.constant 12 : index
    %c0_171 = arith.constant 0 : index
    %c0_172 = arith.constant 0 : index
    %207 = vector.load %arg1[%c12_170, %c0_171, %c0_172] : memref<16x2x64xbf16, #tpu.memory_space<vmem>>, vector<1x2x64xbf16>
    %208 = vector.shape_cast %207 : vector<1x2x64xbf16> to vector<2x64xbf16>
    %c13_173 = arith.constant 13 : index
    %c0_174 = arith.constant 0 : index
    %c0_175 = arith.constant 0 : index
    %209 = vector.load %arg1[%c13_173, %c0_174, %c0_175] : memref<16x2x64xbf16, #tpu.memory_space<vmem>>, vector<1x2x64xbf16>
    %210 = vector.shape_cast %209 : vector<1x2x64xbf16> to vector<2x64xbf16>
    %c14 = arith.constant 14 : index
    %c0_176 = arith.constant 0 : index
    %c0_177 = arith.constant 0 : index
    %211 = vector.load %arg1[%c14, %c0_176, %c0_177] : memref<16x2x64xbf16, #tpu.memory_space<vmem>>, vector<1x2x64xbf16>
    %212 = vector.shape_cast %211 : vector<1x2x64xbf16> to vector<2x64xbf16>
    %213 = tpu.concatenate %208, %210, %212 in 1 : vector<2x64xbf16>, vector<2x64xbf16>, vector<2x64xbf16> -> vector<2x192xbf16>
    %cst_178 = arith.constant dense<0.000000e+00> : vector<2x448xf32>
    %214 = tpu.matmul %213, %0, %cst_178 {dimension_numbers = #tpu.dot_dimension_numbers<[1], [0], [0], [1], [0, 0, 1, 1], [], []>} : vector<2x192xbf16>, vector<192x448xbf16>, vector<2x448xf32> -> vector<2x448xf32>
    %215 = vector.broadcast %1 : vector<1x448xf32> to vector<2x448xf32>
    %216 = arith.addf %214, %215 : vector<2x448xf32>
    %cst_179 = arith.constant 0.000000e+00 : f32
    %217 = vector.broadcast %cst_179 : f32 to vector<2x448xf32>
    %218 = arith.maximumf %216, %217 : vector<2x448xf32>
    %219 = arith.truncf %218 : vector<2x448xf32> to vector<2x448xbf16>
    %c12_180 = arith.constant 12 : index
    %c0_181 = arith.constant 0 : index
    %c0_182 = arith.constant 0 : index
    %220 = vector.load %arg5[%c12_180, %c0_181, %c0_182] : memref<14x448x256xbf16, #tpu.memory_space<vmem>>, vector<1x448x256xbf16>
    %221 = vector.shape_cast %220 : vector<1x448x256xbf16> to vector<448x256xbf16>
    %cst_183 = arith.constant dense<0.000000e+00> : vector<2x256xf32>
    %222 = tpu.matmul %219, %221, %cst_183 {dimension_numbers = #tpu.dot_dimension_numbers<[1], [0], [0], [1], [0, 0, 1, 1], [], []>} : vector<2x448xbf16>, vector<448x256xbf16>, vector<2x256xf32> -> vector<2x256xf32>
    %223 = arith.addf %206, %222 : vector<2x256xf32>
    %c13_184 = arith.constant 13 : index
    %c0_185 = arith.constant 0 : index
    %c0_186 = arith.constant 0 : index
    %224 = vector.load %arg1[%c13_184, %c0_185, %c0_186] : memref<16x2x64xbf16, #tpu.memory_space<vmem>>, vector<1x2x64xbf16>
    %225 = vector.shape_cast %224 : vector<1x2x64xbf16> to vector<2x64xbf16>
    %c14_187 = arith.constant 14 : index
    %c0_188 = arith.constant 0 : index
    %c0_189 = arith.constant 0 : index
    %226 = vector.load %arg1[%c14_187, %c0_188, %c0_189] : memref<16x2x64xbf16, #tpu.memory_space<vmem>>, vector<1x2x64xbf16>
    %227 = vector.shape_cast %226 : vector<1x2x64xbf16> to vector<2x64xbf16>
    %c15 = arith.constant 15 : index
    %c0_190 = arith.constant 0 : index
    %c0_191 = arith.constant 0 : index
    %228 = vector.load %arg1[%c15, %c0_190, %c0_191] : memref<16x2x64xbf16, #tpu.memory_space<vmem>>, vector<1x2x64xbf16>
    %229 = vector.shape_cast %228 : vector<1x2x64xbf16> to vector<2x64xbf16>
    %230 = tpu.concatenate %225, %227, %229 in 1 : vector<2x64xbf16>, vector<2x64xbf16>, vector<2x64xbf16> -> vector<2x192xbf16>
    %cst_192 = arith.constant dense<0.000000e+00> : vector<2x448xf32>
    %231 = tpu.matmul %230, %0, %cst_192 {dimension_numbers = #tpu.dot_dimension_numbers<[1], [0], [0], [1], [0, 0, 1, 1], [], []>} : vector<2x192xbf16>, vector<192x448xbf16>, vector<2x448xf32> -> vector<2x448xf32>
    %232 = vector.broadcast %1 : vector<1x448xf32> to vector<2x448xf32>
    %233 = arith.addf %231, %232 : vector<2x448xf32>
    %cst_193 = arith.constant 0.000000e+00 : f32
    %234 = vector.broadcast %cst_193 : f32 to vector<2x448xf32>
    %235 = arith.maximumf %233, %234 : vector<2x448xf32>
    %236 = arith.truncf %235 : vector<2x448xf32> to vector<2x448xbf16>
    %c13_194 = arith.constant 13 : index
    %c0_195 = arith.constant 0 : index
    %c0_196 = arith.constant 0 : index
    %237 = vector.load %arg5[%c13_194, %c0_195, %c0_196] : memref<14x448x256xbf16, #tpu.memory_space<vmem>>, vector<1x448x256xbf16>
    %238 = vector.shape_cast %237 : vector<1x448x256xbf16> to vector<448x256xbf16>
    %cst_197 = arith.constant dense<0.000000e+00> : vector<2x256xf32>
    %239 = tpu.matmul %236, %238, %cst_197 {dimension_numbers = #tpu.dot_dimension_numbers<[1], [0], [0], [1], [0, 0, 1, 1], [], []>} : vector<2x448xbf16>, vector<448x256xbf16>, vector<2x256xf32> -> vector<2x256xf32>
    %240 = arith.addf %223, %239 : vector<2x256xf32>
    %c0_198 = arith.constant 0 : index
    %c0_199 = arith.constant 0 : index
    %241 = vector.load %arg6[%c0_198, %c0_199] : memref<1x256xf32, #tpu.memory_space<vmem>>, vector<1x256xf32>
    %242 = vector.broadcast %241 : vector<1x256xf32> to vector<2x256xf32>
    %243 = arith.addf %240, %242 : vector<2x256xf32>
    %cst_200 = arith.constant 0.000000e+00 : f32
    %244 = vector.broadcast %cst_200 : f32 to vector<2x256xf32>
    %245 = arith.maximumf %243, %244 : vector<2x256xf32>
    %246 = arith.truncf %245 : vector<2x256xf32> to vector<2x256xbf16>
    %c0_201 = arith.constant 0 : index
    %c0_202 = arith.constant 0 : index
    %247 = vector.load %arg7[%c0_201, %c0_202] : memref<256x256xbf16, #tpu.memory_space<vmem>>, vector<256x256xbf16>
    %cst_203 = arith.constant dense<0.000000e+00> : vector<2x256xf32>
    %248 = tpu.matmul %246, %247, %cst_203 {dimension_numbers = #tpu.dot_dimension_numbers<[1], [0], [0], [1], [0, 0, 1, 1], [], []>} : vector<2x256xbf16>, vector<256x256xbf16>, vector<2x256xf32> -> vector<2x256xf32>
    %c0_204 = arith.constant 0 : index
    %c0_205 = arith.constant 0 : index
    %249 = vector.load %arg8[%c0_204, %c0_205] : memref<1x256xf32, #tpu.memory_space<vmem>>, vector<1x256xf32>
    %250 = vector.broadcast %249 : vector<1x256xf32> to vector<2x256xf32>
    %251 = arith.addf %248, %250 : vector<2x256xf32>
    %cst_206 = arith.constant 0.000000e+00 : f32
    %252 = vector.broadcast %cst_206 : f32 to vector<2x256xf32>
    %253 = arith.maximumf %251, %252 : vector<2x256xf32>
    %254 = arith.truncf %253 : vector<2x256xf32> to vector<2x256xbf16>
    %c0_207 = arith.constant 0 : index
    %c0_208 = arith.constant 0 : index
    %255 = vector.load %arg9[%c0_207, %c0_208] : memref<256x128xbf16, #tpu.memory_space<vmem>>, vector<256x128xbf16>
    %cst_209 = arith.constant dense<0.000000e+00> : vector<2x128xf32>
    %256 = tpu.matmul %254, %255, %cst_209 {dimension_numbers = #tpu.dot_dimension_numbers<[1], [0], [0], [1], [0, 0, 1, 1], [], []>} : vector<2x256xbf16>, vector<256x128xbf16>, vector<2x128xf32> -> vector<2x128xf32>
    %c0_210 = arith.constant 0 : index
    %c0_211 = arith.constant 0 : index
    %257 = vector.load %arg10[%c0_210, %c0_211] : memref<1x128xf32, #tpu.memory_space<vmem>>, vector<1x128xf32>
    %258 = vector.broadcast %257 : vector<1x128xf32> to vector<2x128xf32>
    %259 = arith.addf %256, %258 : vector<2x128xf32>
    %260 = tpu.iota {dimensions = array<i32: 1>} : vector<2x128xi32>
    %c4_i32 = arith.constant 4 : i32
    %261 = vector.broadcast %c4_i32 : i32 to vector<2x128xi32>
    %262 = arith.cmpi slt, %260, %261 : vector<2x128xi32>
    %cst_212 = arith.constant -1.000000e+09 : f32
    %263 = vector.broadcast %cst_212 : f32 to vector<2x128xf32>
    %264 = arith.select %262, %259, %263 : vector<2x128xi1>, vector<2x128xf32>
    %cst_213 = arith.constant dense<0xFF800000> : vector<2xf32>
    %265 = vector.multi_reduction <maximumf>, %264, %cst_213 [1] : vector<2x128xf32> to vector<2xf32>
    %266 = vector.shape_cast %265 : vector<2xf32> to vector<2x1xf32>
    %267 = vector.broadcast %266 : vector<2x1xf32> to vector<2x128xf32>
    %268 = arith.subf %264, %267 : vector<2x128xf32>
    %269 = math.exp %268 : vector<2x128xf32>
    %cst_214 = arith.constant dense<0.000000e+00> : vector<2xf32>
    %270 = vector.multi_reduction <add>, %269, %cst_214 [1] : vector<2x128xf32> to vector<2xf32>
    %271 = vector.shape_cast %270 : vector<2xf32> to vector<2x1xf32>
    %272 = math.log %271 : vector<2x1xf32>
    %273 = vector.broadcast %272 : vector<2x1xf32> to vector<2x128xf32>
    %274 = arith.subf %268, %273 : vector<2x128xf32>
    %c0_215 = arith.constant 0 : index
    %c0_216 = arith.constant 0 : index
    %275 = vector.load %arg2[%c0_215, %c0_216] : memref<2x1xi32, #tpu.memory_space<vmem>>, vector<2x1xi32>
    %276 = vector.broadcast %275 : vector<2x1xi32> to vector<2x128xi32>
    %277 = arith.cmpi eq, %260, %276 : vector<2x128xi32>
    %cst_217 = arith.constant 0.000000e+00 : f32
    %278 = vector.broadcast %cst_217 : f32 to vector<2x128xf32>
    %279 = arith.select %277, %274, %278 : vector<2x128xi1>, vector<2x128xf32>
    %cst_218 = arith.constant dense<0.000000e+00> : vector<2xf32>
    %280 = vector.multi_reduction <add>, %279, %cst_218 [1] : vector<2x128xf32> to vector<2xf32>
    %281 = vector.shape_cast %280 : vector<2xf32> to vector<2x1xf32>
    %c4_i32_219 = arith.constant 4 : i32
    %282 = vector.broadcast %c4_i32_219 : i32 to vector<2x128xi32>
    %283 = arith.cmpi eq, %260, %282 : vector<2x128xi32>
    %284 = vector.shape_cast %281 : vector<2x1xf32> to vector<2x1xf32>
    %285 = vector.broadcast %284 : vector<2x1xf32> to vector<2x128xf32>
    %286 = arith.select %283, %285, %274 : vector<2x128xi1>, vector<2x128xf32>
    %c0_220 = arith.constant 0 : index
    %c0_221 = arith.constant 0 : index
    %287 = vector.load %arg11[%c0_220, %c0_221] : memref<2x128xf32, #tpu.memory_space<vmem>>, vector<2x128xf32>
    tpu.vector_store %arg11[%c0_220, %c0_221], %286 {strides = array<i32>} : memref<2x128xf32, #tpu.memory_space<vmem>>, vector<2x128xf32>,
    return
  }
  func.func @transform_0(%arg0: i32) -> (i32, i32, i32) {
    %c0_i32 = arith.constant 0 : i32
    %c0_i32_0 = arith.constant 0 : i32
    %c0_i32_1 = arith.constant 0 : i32
    return %c0_i32, %arg0, %c0_i32_0 : i32, i32, i32
  }
  func.func @transform_1(%arg0: i32) -> (i32, i32) {
    %c0_i32 = arith.constant 0 : i32
    %c0_i32_0 = arith.constant 0 : i32
    return %arg0, %c0_i32 : i32, i32
  }
  func.func @transform_2(%arg0: i32) -> (i32, i32) {
    %c0_i32 = arith.constant 0 : i32
    %c0_i32_0 = arith.constant 0 : i32
    %c0_i32_1 = arith.constant 0 : i32
    return %c0_i32, %c0_i32_0 : i32, i32
  }
  func.func @transform_3(%arg0: i32) -> (i32, i32) {
    %c0_i32 = arith.constant 0 : i32
    %c0_i32_0 = arith.constant 0 : i32
    %c0_i32_1 = arith.constant 0 : i32
    return %c0_i32, %c0_i32_0 : i32, i32
  }
  func.func @transform_4(%arg0: i32) -> (i32, i32, i32) {
    %c0_i32 = arith.constant 0 : i32
    %c0_i32_0 = arith.constant 0 : i32
    %c0_i32_1 = arith.constant 0 : i32
    %c0_i32_2 = arith.constant 0 : i32
    return %c0_i32, %c0_i32_0, %c0_i32_1 : i32, i32, i32
  }
  func.func @transform_5(%arg0: i32) -> (i32, i32) {
    %c0_i32 = arith.constant 0 : i32
    %c0_i32_0 = arith.constant 0 : i32
    %c0_i32_1 = arith.constant 0 : i32
    return %c0_i32, %c0_i32_0 : i32, i32
  }
  func.func @transform_6(%arg0: i32) -> (i32, i32) {
    %c0_i32 = arith.constant 0 : i32
    %c0_i32_0 = arith.constant 0 : i32
    %c0_i32_1 = arith.constant 0 : i32
    return %c0_i32, %c0_i32_0 : i32, i32
  }
  func.func @transform_7(%arg0: i32) -> (i32, i32) {
    %c0_i32 = arith.constant 0 : i32
    %c0_i32_0 = arith.constant 0 : i32
    %c0_i32_1 = arith.constant 0 : i32
    return %c0_i32, %c0_i32_0 : i32, i32
  }
  func.func @transform_8(%arg0: i32) -> (i32, i32) {
    %c0_i32 = arith.constant 0 : i32
    %c0_i32_0 = arith.constant 0 : i32
    %c0_i32_1 = arith.constant 0 : i32
    return %c0_i32, %c0_i32_0 : i32, i32
  }
  func.func @transform_9(%arg0: i32) -> (i32, i32) {
    %c0_i32 = arith.constant 0 : i32
    %c0_i32_0 = arith.constant 0 : i32
    %c0_i32_1 = arith.constant 0 : i32
    return %c0_i32, %c0_i32_0 : i32, i32
  }
  func.func @transform_10(%arg0: i32) -> (i32, i32) {
    %c0_i32 = arith.constant 0 : i32
    %c0_i32_0 = arith.constant 0 : i32
    return %arg0, %c0_i32 : i32, i32
  }
}

</mosaic_0001>

<llo_original>
// kernel: cnn_categorical_actor_forward.1
$region0: #{cnn_categorical_actor_forward.1}
  #allocation0 [shape = 'u32[]', space=smem, size = 0x4, offset = 0x4, fixed_abs, tag = 'smem constant byte address 0x4 - core index']
  #allocation1 [shape = 'u32[144,128]{1,0:T(1,128)}', space=vmem, size = 0x12000, scoped, tag = 'internal scratch']
  %s0 = inlined_call_operand.vmem [shape: bf16[16,2,64], index: 0, kind: input, shape index: {}]
  %s1 = inlined_call_operand.vmem [shape: s32[2,1], index: 1, kind: input, shape index: {}]
  %s2 = inlined_call_operand.hbm [shape: bf16[192,448], index: 2, kind: input, shape index: {}]
  %s3 = inlined_call_operand.hbm [shape: f32[1,448], index: 3, kind: input, shape index: {}]
  %s4 = inlined_call_operand.hbm [shape: bf16[14,448,256], index: 4, kind: input, shape index: {}]
  %s5 = inlined_call_operand.hbm [shape: f32[1,256], index: 5, kind: input, shape index: {}]
  %s6 = inlined_call_operand.hbm [shape: bf16[256,256], index: 6, kind: input, shape index: {}]
  %s7 = inlined_call_operand.hbm [shape: f32[1,256], index: 7, kind: input, shape index: {}]
  %s8 = inlined_call_operand.hbm [shape: bf16[256,128], index: 8, kind: input, shape index: {}]
  %s9 = inlined_call_operand.hbm [shape: f32[1,128], index: 9, kind: input, shape index: {}]
  %s10 = inlined_call_operand.vmem [shape: f32[2,128], index: 10, kind: output, shape index: {}]
  %s11 = sld [smem:[#allocation0]]
  $region82: #{cnn_categorical_actor_forward.1} parent=0
    _
  %s13 = ssub.s32 1, %s11
  %s14 = scalar_select 0, %s13, %s11
  $region1: #{cnn_categorical_actor_forward.1} parent=0
    #allocation2 [shape = 'u8[196608]{0}', space=vmem, size = 0x30000, scoped, tag = 'input window, operand 2, single buffered']
    #allocation3 [shape = 's32[1]{0}', space=sflag, size = 0x4, scoped, tag = 'scoped memory for cnn_categorical_actor_forward.1']
    #allocation4 [shape = 'u8[2048]{0}', space=vmem, size = 0x800, scoped, tag = 'input window, operand 3, single buffered']
    #allocation5 [shape = 's32[1]{0}', space=sflag, size = 0x4, scoped, tag = 'scoped memory for cnn_categorical_actor_forward.1']
    #allocation6 [shape = 'u8[3211264]{0}', space=vmem, size = 0x310000, scoped, tag = 'input window, operand 4, single buffered']
    #allocation7 [shape = 'u8[1024]{0}', space=vmem, size = 0x400, scoped, tag = 'input window, operand 5, single buffered']
    #allocation8 [shape = 's32[1]{0}', space=sflag, size = 0x4, scoped, tag = 'scoped memory for cnn_categorical_actor_forward.1']
    #allocation9 [shape = 'u8[131072]{0}', space=vmem, size = 0x20000, scoped, tag = 'input window, operand 6, single buffered']
    #allocation10 [shape = 'u8[1024]{0}', space=vmem, size = 0x400, scoped, tag = 'input window, operand 7, single buffered']
    #allocation11 [shape = 's32[1]{0}', space=sflag, size = 0x4, scoped, tag = 'scoped memory for cnn_categorical_actor_forward.1']
    #allocation12 [shape = 'u8[65536]{0}', space=vmem, size = 0x10000, scoped, tag = 'input window, operand 8, single buffered']
    #allocation13 [shape = 'u8[512]{0}', space=vmem, size = 0x400, scoped, tag = 'input window, operand 9, single buffered']
    #allocation14 [shape = 's32[1]{0}', space=sflag, size = 0x4, scoped, tag = 'scoped memory for cnn_categorical_actor_forward.1']
    %15 = vsyncpa [#allocation3], 0
    %16 = vsyncpa [#allocation5], 0
    %17 = vsyncpa [#allocation8], 0
    %18 = vsyncpa [#allocation11], 0
    %19 = vsyncpa [#allocation14], 0
    // Predicated region
    $region2: #{cnn_categorical_actor_forward.1} parent=1 // pred_check
      _
    $region3: #{cnn_categorical_actor_forward.1} parent=1 // pred_check_branch
      %21 = sbr.rel (0) target = $region5
    $region4: #{cnn_categorical_actor_forward.1} parent=1 // pred_region
      _
    $region5: #{cnn_categorical_actor_forward.1} parent=1 // pred_fallthru
      _
    // Predicated region
    $region6: #{cnn_categorical_actor_forward.1} parent=1 // pred_check
      _
    $region7: #{cnn_categorical_actor_forward.1} parent=1 // pred_check_branch
      %23 = sbr.rel (0) target = $region9
    $region8: #{cnn_categorical_actor_forward.1} parent=1 // pred_region
      _
    $region9: #{cnn_categorical_actor_forward.1} parent=1 // pred_fallthru
      _
    // Predicated region
    $region10: #{cnn_categorical_actor_forward.1} parent=1 // pred_check
      _
    $region11: #{cnn_categorical_actor_forward.1} parent=1 // pred_check_branch
      %25 = sbr.rel (0) target = $region13
    $region12: #{cnn_categorical_actor_forward.1} parent=1 // pred_region
      %s27 = ssub.s32 6144, 6144
      %28 = vsyncadd [#allocation3], %s27
      %s29 = sshll.u32 [#allocation2], 4
      %s30 = int_to_ptr.vmem [resolvable:$true] %s29
      %35 = dma.hbm_to_vmem [thread:$0]  %s2, 6144, %s30, [#allocation3], 256, 256, 16
    $region13: #{cnn_categorical_actor_forward.1} parent=1 // pred_fallthru
      _
    // Predicated region
    $region14: #{cnn_categorical_actor_forward.1} parent=1 // pred_check
      _
    $region15: #{cnn_categorical_actor_forward.1} parent=1 // pred_check_branch
      %37 = sbr.rel (0) target = $region17
    $region16: #{cnn_categorical_actor_forward.1} parent=1 // pred_region
      %s39 = ssub.s32 64, 64
      %40 = vsyncadd [#allocation5], %s39
      %s42 = sshll.u32 [#allocation4], 4
      %s43 = int_to_ptr.vmem [resolvable:$true] %s42
      %45 = dma.hbm_to_vmem [thread:$0]  %s3, 64, %s43, [#allocation5]
    $region17: #{cnn_categorical_actor_forward.1} parent=1 // pred_fallthru
      _
    // Predicated region
    $region18: #{cnn_categorical_actor_forward.1} parent=1 // pred_check
      _
    $region19: #{cnn_categorical_actor_forward.1} parent=1 // pred_check_branch
      %47 = sbr.rel (0) target = $region21
    $region20: #{cnn_categorical_actor_forward.1} parent=1 // pred_region
      %s49 = ssub.s32 100352, 100352
      %50 = vsyncadd [#allocation5], %s49
      %s51 = sshll.u32 [#allocation6], 4
      %s52 = int_to_ptr.vmem [resolvable:$true] %s51
      %57 = dma.hbm_to_vmem [thread:$0]  %s4, 100352, %s52, [#allocation5], 128, 128, 8
    $region21: #{cnn_categorical_actor_forward.1} parent=1 // pred_fallthru
      _
    // Predicated region
    $region22: #{cnn_categorical_actor_forward.1} parent=1 // pred_check
      _
    $region23: #{cnn_categorical_actor_forward.1} parent=1 // pred_check_branch
      %59 = sbr.rel (0) target = $region25
    $region24: #{cnn_categorical_actor_forward.1} parent=1 // pred_region
      %s61 = ssub.s32 32, 32
      %62 = vsyncadd [#allocation8], %s61
      %s64 = sshll.u32 [#allocation7], 4
      %s65 = int_to_ptr.vmem [resolvable:$true] %s64
      %67 = dma.hbm_to_vmem [thread:$0]  %s5, 32, %s65, [#allocation8]
    $region25: #{cnn_categorical_actor_forward.1} parent=1 // pred_fallthru
      _
    // Predicated region
    $region26: #{cnn_categorical_actor_forward.1} parent=1 // pred_check
      _
    $region27: #{cnn_categorical_actor_forward.1} parent=1 // pred_check_branch
      %69 = sbr.rel (0) target = $region29
    $region28: #{cnn_categorical_actor_forward.1} parent=1 // pred_region
      %s71 = ssub.s32 4096, 4096
      %72 = vsyncadd [#allocation8], %s71
      %s73 = sshll.u32 [#allocation9], 4
      %s74 = int_to_ptr.vmem [resolvable:$true] %s73
      %79 = dma.hbm_to_vmem [thread:$0]  %s6, 4096, %s74, [#allocation8], 128, 128, 8
    $region29: #{cnn_categorical_actor_forward.1} parent=1 // pred_fallthru
      _
    // Predicated region
    $region30: #{cnn_categorical_actor_forward.1} parent=1 // pred_check
      _
    $region31: #{cnn_categorical_actor_forward.1} parent=1 // pred_check_branch
      %81 = sbr.rel (0) target = $region33
    $region32: #{cnn_categorical_actor_forward.1} parent=1 // pred_region
      %s83 = ssub.s32 32, 32
      %84 = vsyncadd [#allocation11], %s83
      %s86 = sshll.u32 [#allocation10], 4
      %s87 = int_to_ptr.vmem [resolvable:$true] %s86
      %89 = dma.hbm_to_vmem [thread:$0]  %s7, 32, %s87, [#allocation11]
    $region33: #{cnn_categorical_actor_forward.1} parent=1 // pred_fallthru
      _
    // Predicated region
    $region34: #{cnn_categorical_actor_forward.1} parent=1 // pred_check
      _
    $region35: #{cnn_categorical_actor_forward.1} parent=1 // pred_check_branch
      %91 = sbr.rel (0) target = $region37
    $region36: #{cnn_categorical_actor_forward.1} parent=1 // pred_region
      %s93 = ssub.s32 2048, 2048
      %94 = vsyncadd [#allocation11], %s93
      %s95 = sshll.u32 [#allocation12], 4
      %s96 = int_to_ptr.vmem [resolvable:$true] %s95
      %101 = dma.hbm_to_vmem [thread:$0]  %s8, 2048, %s96, [#allocation11], 64, 64, 4
    $region37: #{cnn_categorical_actor_forward.1} parent=1 // pred_fallthru
      _
    // Predicated region
    $region38: #{cnn_categorical_actor_forward.1} parent=1 // pred_check
      _
    $region39: #{cnn_categorical_actor_forward.1} parent=1 // pred_check_branch
      %103 = sbr.rel (0) target = $region41
    $region40: #{cnn_categorical_actor_forward.1} parent=1 // pred_region
      %s105 = ssub.s32 16, 16
      %106 = vsyncadd [#allocation14], %s105
      %s108 = sshll.u32 [#allocation13], 4
      %s109 = int_to_ptr.vmem [resolvable:$true] %s108
      %111 = dma.hbm_to_vmem [thread:$0]  %s9, 16, %s109, [#allocation14]
    $region41: #{cnn_categorical_actor_forward.1} parent=1 // pred_fallthru
      _
    // Predicated region
    $region42: #{cnn_categorical_actor_forward.1} parent=1 // pred_check
      _
    $region43: #{cnn_categorical_actor_forward.1} parent=1 // pred_check_branch
      %113 = sbr.rel (0) target = $region45
    $region44: #{cnn_categorical_actor_forward.1} parent=1 // pred_region
      %114 = dma.done [#allocation3], 6144
    $region45: #{cnn_categorical_actor_forward.1} parent=1 // pred_fallthru
      _
    // Predicated region
    $region46: #{cnn_categorical_actor_forward.1} parent=1 // pred_check
      _
    $region47: #{cnn_categorical_actor_forward.1} parent=1 // pred_check_branch
      %116 = sbr.rel (0) target = $region49
    $region48: #{cnn_categorical_actor_forward.1} parent=1 // pred_region
      %117 = dma.done [#allocation5], 64
    $region49: #{cnn_categorical_actor_forward.1} parent=1 // pred_fallthru
      _
    // Predicated region
    $region50: #{cnn_categorical_actor_forward.1} parent=1 // pred_check
      _
    $region51: #{cnn_categorical_actor_forward.1} parent=1 // pred_check_branch
      %119 = sbr.rel (0) target = $region53
    $region52: #{cnn_categorical_actor_forward.1} parent=1 // pred_region
      %120 = dma.done [#allocation5], 100352
    $region53: #{cnn_categorical_actor_forward.1} parent=1 // pred_fallthru
      _
    // Predicated region
    $region54: #{cnn_categorical_actor_forward.1} parent=1 // pred_check
      _
    $region55: #{cnn_categorical_actor_forward.1} parent=1 // pred_check_branch
      %122 = sbr.rel (0) target = $region57
    $region56: #{cnn_categorical_actor_forward.1} parent=1 // pred_region
      %123 = dma.done [#allocation8], 32
    $region57: #{cnn_categorical_actor_forward.1} parent=1 // pred_fallthru
      _
    // Predicated region
    $region58: #{cnn_categorical_actor_forward.1} parent=1 // pred_check
      _
    $region59: #{cnn_categorical_actor_forward.1} parent=1 // pred_check_branch
      %125 = sbr.rel (0) target = $region61
    $region60: #{cnn_categorical_actor_forward.1} parent=1 // pred_region
      %126 = dma.done [#allocation8], 4096
    $region61: #{cnn_categorical_actor_forward.1} parent=1 // pred_fallthru
      _
    // Predicated region
    $region62: #{cnn_categorical_actor_forward.1} parent=1 // pred_check
      _
    $region63: #{cnn_categorical_actor_forward.1} parent=1 // pred_check_branch
      %128 = sbr.rel (0) target = $region65
    $region64: #{cnn_categorical_actor_forward.1} parent=1 // pred_region
      %129 = dma.done [#allocation11], 32
    $region65: #{cnn_categorical_actor_forward.1} parent=1 // pred_fallthru
      _
    // Predicated region
    $region66: #{cnn_categorical_actor_forward.1} parent=1 // pred_check
      _
    $region67: #{cnn_categorical_actor_forward.1} parent=1 // pred_check_branch
      %131 = sbr.rel (0) target = $region69
    $region68: #{cnn_categorical_actor_forward.1} parent=1 // pred_region
      %132 = dma.done [#allocation11], 2048
    $region69: #{cnn_categorical_actor_forward.1} parent=1 // pred_fallthru
      _
    // Predicated region
    $region70: #{cnn_categorical_actor_forward.1} parent=1 // pred_check
      _
    $region71: #{cnn_categorical_actor_forward.1} parent=1 // pred_check_branch
      %134 = sbr.rel (0) target = $region73
    $region72: #{cnn_categorical_actor_forward.1} parent=1 // pred_region
      %135 = dma.done [#allocation14], 16
    $region73: #{cnn_categorical_actor_forward.1} parent=1 // pred_fallthru
      _
    %v137 = vld [vmem:[#allocation2] sm:$0xff]
    %v138 = vld [vmem:[#allocation2 + $0x8] sm:$0xff]
    %v139 = vld [vmem:[#allocation2 + $0x10] sm:$0xff]
    %v140 = vld [vmem:[#allocation2 + $0x18] sm:$0xff]
    %v141 = vld [vmem:[#allocation2 + $0x20] sm:$0xff]
    %v142 = vld [vmem:[#allocation2 + $0x28] sm:$0xff]
    %v143 = vld [vmem:[#allocation2 + $0x30] sm:$0xff]
    %v144 = vld [vmem:[#allocation2 + $0x38] sm:$0xff]
    %v145 = vld [vmem:[#allocation2 + $0x40] sm:$0xff]
    %v146 = vld [vmem:[#allocation2 + $0x48] sm:$0xff]
    %v147 = vld [vmem:[#allocation2 + $0x50] sm:$0xff]
    %v148 = vld [vmem:[#allocation2 + $0x58] sm:$0xff]
    %v149 = vld [vmem:[#allocation2 + $0x60] sm:$0xff]
    %v150 = vld [vmem:[#allocation2 + $0x68] sm:$0xff]
    %v151 = vld [vmem:[#allocation2 + $0x70] sm:$0xff]
    %v152 = vld [vmem:[#allocation2 + $0x78] sm:$0xff]
    %v153 = vld [vmem:[#allocation2 + $0x80] sm:$0xff]
    %v154 = vld [vmem:[#allocation2 + $0x88] sm:$0xff]
    %v155 = vld [vmem:[#allocation2 + $0x90] sm:$0xff]
    %v156 = vld [vmem:[#allocation2 + $0x98] sm:$0xff]
    %v157 = vld [vmem:[#allocation2 + $0xa0] sm:$0xff]
    %v158 = vld [vmem:[#allocation2 + $0xa8] sm:$0xff]
    %v159 = vld [vmem:[#allocation2 + $0xb0] sm:$0xff]
    %v160 = vld [vmem:[#allocation2 + $0xb8] sm:$0xff]
    %v161 = vld [vmem:[#allocation2 + $0xc0] sm:$0xff]
    %v162 = vld [vmem:[#allocation2 + $0xc8] sm:$0xff]
    %v163 = vld [vmem:[#allocation2 + $0xd0] sm:$0xff]
    %v164 = vld [vmem:[#allocation2 + $0xd8] sm:$0xff]
    %v165 = vld [vmem:[#allocation2 + $0xe0] sm:$0xff]
    %v166 = vld [vmem:[#allocation2 + $0xe8] sm:$0xff]
    %v167 = vld [vmem:[#allocation2 + $0xf0] sm:$0xff]
    %v168 = vld [vmem:[#allocation2 + $0xf8] sm:$0xff]
    %v169 = vld [vmem:[#allocation2 + $0x100] sm:$0xff]
    %v170 = vld [vmem:[#allocation2 + $0x108] sm:$0xff]
    %v171 = vld [vmem:[#allocation2 + $0x110] sm:$0xff]
    %v172 = vld [vmem:[#allocation2 + $0x118] sm:$0xff]
    %v173 = vld [vmem:[#allocation2 + $0x120] sm:$0xff]
    %v174 = vld [vmem:[#allocation2 + $0x128] sm:$0xff]
    %v175 = vld [vmem:[#allocation2 + $0x130] sm:$0xff]
    %v176 = vld [vmem:[#allocation2 + $0x138] sm:$0xff]
    %v177 = vld [vmem:[#allocation2 + $0x140] sm:$0xff]
    %v178 = vld [vmem:[#allocation2 + $0x148] sm:$0xff]
    %v179 = vld [vmem:[#allocation2 + $0x150] sm:$0xff]
    %v180 = vld [vmem:[#allocation2 + $0x158] sm:$0xff]
    %v181 = vld [vmem:[#allocation2 + $0x160] sm:$0xff]
    %v182 = vld [vmem:[#allocation2 + $0x168] sm:$0xff]
    %v183 = vld [vmem:[#allocation2 + $0x170] sm:$0xff]
    %v184 = vld [vmem:[#allocation2 + $0x178] sm:$0xff]
    %v185 = vld [vmem:[#allocation4] sm:$0xf]
    %v186 = vld [vmem:[%s0] sm:$0x1]
    %s187 = scalar_lea.vmem %s0, 1
    %v188 = vld [vmem:[%s187] sm:$0x1]
    %s189 = scalar_lea.vmem %s0, 2
    %v190 = vld [vmem:[%s189] sm:$0x1]
    %v193 = vunpack.c.l.s4 1966171168
    %v194 = vunpack.c.0.s8 %v193
    %v195 = vlaneseq
    %v196 = vshrl.u32 %v195, 7
    %v197 = vsub.s32 %v194, %v196
    %v198 = vrot.slane %v188, %v197
    %v200 = vunpack.c.l.s4 1966171168
    %v201 = vunpack.c.0.s8 %v200
    %v202 = vlaneseq
    %v203 = vshrl.u32 %v202, 7
    %v204 = vsub.s32 %v201, %v203
    %v205 = vrot.slane %v198, %v204
    %206 = vrot.lane.b32.xlu0 %v205, 64
    %v207 = vpop.permute.xlu0 %206
    %vm208 = vcmask 523264
    %v211 = vsel %vm208, %v186, %v207
    %v214 = vlaneseq
    %v215 = vshrl.u32 %v214, 7
    %v216 = vsub.s32 0, %v215
    %v217 = vrot.slane %v185, %v216
    %v218 = vlaneseq
    %v219 = vshrl.u32 %v218, 7
    %v220 = vsub.s32 1, %v219
    %v221 = vrot.slane %v185, %v220
    %v222 = vlaneseq
    %v223 = vshrl.u32 %v222, 7
    %v224 = vsub.s32 2, %v223
    %v225 = vrot.slane %v185, %v224
    %v226 = vlaneseq
    %v227 = vshrl.u32 %v226, 7
    %v228 = vsub.s32 3, %v227
    %v229 = vrot.slane %v185, %v228
    %v282 = vunpack.c.l.b16 %v137
    %v283 = vunpack.c.h.b16 %v137
    %v284 = vunpack.c.l.b16 %v138
    %v285 = vunpack.c.h.b16 %v138
    %v286 = vunpack.c.l.b16 %v139
    %v287 = vunpack.c.h.b16 %v139
    %v288 = vunpack.c.l.b16 %v140
    %v289 = vunpack.c.h.b16 %v140
    %v290 = vunpack.c.l.b16 %v141
    %v291 = vunpack.c.h.b16 %v141
    %v292 = vunpack.c.l.b16 %v142
    %v293 = vunpack.c.h.b16 %v142
    %v294 = vunpack.c.l.b16 %v143
    %v295 = vunpack.c.h.b16 %v143
    %v296 = vunpack.c.l.b16 %v144
    %v297 = vunpack.c.h.b16 %v144
    %v298 = vunpack.c.l.b16 %v145
    %v299 = vunpack.c.h.b16 %v145
    %v300 = vunpack.c.l.b16 %v146
    %v301 = vunpack.c.h.b16 %v146
    %v302 = vunpack.c.l.b16 %v147
    %v303 = vunpack.c.h.b16 %v147
    %v304 = vunpack.c.l.b16 %v148
    %v305 = vunpack.c.h.b16 %v148
    %v306 = vunpack.c.l.b16 %v149
    %v307 = vunpack.c.h.b16 %v149
    %v308 = vunpack.c.l.b16 %v150
    %v309 = vunpack.c.h.b16 %v150
    %v310 = vunpack.c.l.b16 %v151
    %v311 = vunpack.c.h.b16 %v151
    %v312 = vunpack.c.l.b16 %v152
    %v313 = vunpack.c.h.b16 %v152
    %v314 = vunpack.c.l.b16 %v153
    %v315 = vunpack.c.h.b16 %v153
    %v316 = vunpack.c.l.b16 %v154
    %v317 = vunpack.c.h.b16 %v154
    %v318 = vunpack.c.l.b16 %v155
    %v319 = vunpack.c.h.b16 %v155
    %v320 = vunpack.c.l.b16 %v156
    %v321 = vunpack.c.h.b16 %v156
    %v322 = vunpack.c.l.b16 %v157
    %v323 = vunpack.c.h.b16 %v157
    %v324 = vunpack.c.l.b16 %v158
    %v325 = vunpack.c.h.b16 %v158
    %v326 = vunpack.c.l.b16 %v159
    %v327 = vunpack.c.h.b16 %v159
    %v328 = vunpack.c.l.b16 %v160
    %v329 = vunpack.c.h.b16 %v160
    %v330 = vunpack.c.l.b16 %v161
    %v331 = vunpack.c.h.b16 %v161
    %v332 = vunpack.c.l.b16 %v162
    %v333 = vunpack.c.h.b16 %v162
    %v334 = vunpack.c.l.b16 %v163
    %v335 = vunpack.c.h.b16 %v163
    %v336 = vunpack.c.l.b16 %v164
    %v337 = vunpack.c.h.b16 %v164
    %v338 = vunpack.c.l.b16 %v165
    %v339 = vunpack.c.h.b16 %v165
    %v340 = vunpack.c.l.b16 %v166
    %v341 = vunpack.c.h.b16 %v166
    %v342 = vunpack.c.l.b16 %v167
    %v343 = vunpack.c.h.b16 %v167
    %v344 = vunpack.c.l.b16 %v168
    %v345 = vunpack.c.h.b16 %v168
    %v346 = vunpack.c.l.b16 %v169
    %v347 = vunpack.c.h.b16 %v169
    %v348 = vunpack.c.l.b16 %v170
    %v349 = vunpack.c.h.b16 %v170
    %v350 = vunpack.c.l.b16 %v171
    %v351 = vunpack.c.h.b16 %v171
    %v352 = vunpack.c.l.b16 %v172
    %v353 = vunpack.c.h.b16 %v172
    %v354 = vunpack.c.l.b16 %v173
    %v355 = vunpack.c.h.b16 %v173
    %v356 = vunpack.c.l.b16 %v174
    %v357 = vunpack.c.h.b16 %v174
    %v358 = vunpack.c.l.b16 %v175
    %v359 = vunpack.c.h.b16 %v175
    %v360 = vunpack.c.l.b16 %v176
    %v361 = vunpack.c.h.b16 %v176
    %v362 = vunpack.c.l.b16 %v177
    %v363 = vunpack.c.h.b16 %v177
    %v364 = vunpack.c.l.b16 %v178
    %v365 = vunpack.c.h.b16 %v178
    %v366 = vunpack.c.l.b16 %v179
    %v367 = vunpack.c.h.b16 %v179
    %v368 = vunpack.c.l.b16 %v180
    %v369 = vunpack.c.h.b16 %v180
    %v370 = vunpack.c.l.b16 %v181
    %v371 = vunpack.c.h.b16 %v181
    %v372 = vunpack.c.l.b16 %v182
    %v373 = vunpack.c.h.b16 %v182
    %v374 = vunpack.c.l.b16 %v183
    %v375 = vunpack.c.h.b16 %v183
    %v376 = vunpack.c.l.b16 %v184
    %v377 = vunpack.c.h.b16 %v184
    %v378 = vpack.c.b16 %v286, %v282
    %v379 = vpack.c.b16 %v287, %v283
    %v380 = vpack.c.b16 %v288, %v284
    %v381 = vpack.c.b16 %v289, %v285
    %v382 = vpack.c.b16 %v294, %v290
    %v383 = vpack.c.b16 %v295, %v291
    %v384 = vpack.c.b16 %v296, %v292
    %v385 = vpack.c.b16 %v297, %v293
    %v386 = vpack.c.b16 %v302, %v298
    %v387 = vpack.c.b16 %v303, %v299
    %v388 = vpack.c.b16 %v304, %v300
    %v389 = vpack.c.b16 %v305, %v301
    %v390 = vpack.c.b16 %v310, %v306
    %v391 = vpack.c.b16 %v311, %v307
    %v392 = vpack.c.b16 %v312, %v308
    %v393 = vpack.c.b16 %v313, %v309
    %v394 = vpack.c.b16 %v318, %v314
    %v395 = vpack.c.b16 %v319, %v315
    %v396 = vpack.c.b16 %v320, %v316
    %v397 = vpack.c.b16 %v321, %v317
    %v398 = vpack.c.b16 %v326, %v322
    %v399 = vpack.c.b16 %v327, %v323
    %v400 = vpack.c.b16 %v328, %v324
    %v401 = vpack.c.b16 %v329, %v325
    %v402 = vpack.c.b16 %v334, %v330
    %v403 = vpack.c.b16 %v335, %v331
    %v404 = vpack.c.b16 %v336, %v332
    %v405 = vpack.c.b16 %v337, %v333
    %v406 = vpack.c.b16 %v342, %v338
    %v407 = vpack.c.b16 %v343, %v339
    %v408 = vpack.c.b16 %v344, %v340
    %v409 = vpack.c.b16 %v345, %v341
    %v410 = vpack.c.b16 %v350, %v346
    %v411 = vpack.c.b16 %v351, %v347
    %v412 = vpack.c.b16 %v352, %v348
    %v413 = vpack.c.b16 %v353, %v349
    %v414 = vpack.c.b16 %v358, %v354
    %v415 = vpack.c.b16 %v359, %v355
    %v416 = vpack.c.b16 %v360, %v356
    %v417 = vpack.c.b16 %v361, %v357
    %v418 = vpack.c.b16 %v366, %v362
    %v419 = vpack.c.b16 %v367, %v363
    %v420 = vpack.c.b16 %v368, %v364
    %v421 = vpack.c.b16 %v369, %v365
    %v422 = vpack.c.b16 %v374, %v370
    %v423 = vpack.c.b16 %v375, %v371
    %v424 = vpack.c.b16 %v376, %v372
    %v425 = vpack.c.b16 %v377, %v373
    %v475 = vsel %vm208, %v190, 0
    %477 = vmatprep.subr.bf16.mxu0 %v407
    %478 = vmatpush1.bf16.msra.mxu0 %v406
    %479 = vmatprep.subr.bf16.mxu0 %v403
    %480 = vmatpush1.bf16.msra.mxu0 %v402
    %481 = vmatprep.subr.bf16.mxu0 %v399
    %482 = vmatpush1.bf16.msra.mxu0 %v398
    %483 = vmatprep.subr.bf16.mxu0 %v395
    %484 = vmatpush1.bf16.msra.mxu0 %v394
    %485 = vmatprep.subr.bf16.mxu0 %v391
    %486 = vmatpush1.bf16.msra.mxu0 %v390
    %487 = vmatprep.subr.bf16.mxu0 %v387
    %488 = vmatpush1.bf16.msra.mxu0 %v386
    %489 = vmatprep.subr.bf16.mxu0 %v383
    %490 = vmatpush1.bf16.msra.mxu0 %v382
    %491 = vmatprep.subr.bf16.mxu0 %v379
    %492 = vmatpush1.bf16.msra.mxu0 %v378
    %493 = vmatprep.subr.bf16.mxu0 0
    %494 = vmatpush2.bf16.msra.mxu0 0
    %495 = vmatprep.subr.bf16.mxu0 0
    %496 = vmatpush2.bf16.msra.mxu0 0
    %497 = vmatprep.subr.bf16.mxu0 0
    %498 = vmatpush2.bf16.msra.mxu0 0
    %499 = vmatprep.subr.bf16.mxu0 0
    %500 = vmatpush2.bf16.msra.mxu0 0
    %501 = vmatprep.subr.bf16.mxu0 %v423
    %502 = vmatpush2.bf16.msra.mxu0 %v422
    %503 = vmatprep.subr.bf16.mxu0 %v419
    %504 = vmatpush2.bf16.msra.mxu0 %v418
    %505 = vmatprep.subr.bf16.mxu0 %v415
    %506 = vmatpush2.bf16.msra.mxu0 %v414
    %507 = vmatprep.subr.bf16.mxu0 %v411
    %508 = vmatpush2.bf16.msra.mxu0 %v410
    %509 = vmatprep.mubr.bf16.mxu0 %v475
    %510 = vmatmul.mubr.bf16.gmra.mxu0 %v211
    %v511 = vpop.f32.mrf.mxu0
    %v512 = vadd.f32 %v217, %v511
    %v513 = vpop.f32.mrf.mxu0
    %v514 = vadd.f32 %v221, %v513
    %v515 = vpop.f32.mrf.mxu0
    %v516 = vpop.f32.mrf.mxu0
    %517 = vdwg.mxu0
    %518 = vmatprep.subr.bf16.mxu0 %v409
    %519 = vmatpush1.bf16.msra.mxu0 %v408
    %520 = vmatprep.subr.bf16.mxu0 %v405
    %521 = vmatpush1.bf16.msra.mxu0 %v404
    %522 = vmatprep.subr.bf16.mxu0 %v401
    %523 = vmatpush1.bf16.msra.mxu0 %v400
    %524 = vmatprep.subr.bf16.mxu0 %v397
    %525 = vmatpush1.bf16.msra.mxu0 %v396
    %526 = vmatprep.subr.bf16.mxu0 %v393
    %527 = vmatpush1.bf16.msra.mxu0 %v392
    %528 = vmatprep.subr.bf16.mxu0 %v389
    %529 = vmatpush1.bf16.msra.mxu0 %v388
    %530 = vmatprep.subr.bf16.mxu0 %v385
    %531 = vmatpush1.bf16.msra.mxu0 %v384
    %532 = vmatprep.subr.bf16.mxu0 %v381
    %533 = vmatpush1.bf16.msra.mxu0 %v380
    %534 = vmatprep.subr.bf16.mxu0 0
    %535 = vmatpush2.bf16.msra.mxu0 0
    %536 = vmatprep.subr.bf16.mxu0 0
    %537 = vmatpush2.bf16.msra.mxu0 0
    %538 = vmatprep.subr.bf16.mxu0 0
    %539 = vmatpush2.bf16.msra.mxu0 0
    %540 = vmatprep.subr.bf16.mxu0 0
    %541 = vmatpush2.bf16.msra.mxu0 0
    %542 = vmatprep.subr.bf16.mxu0 %v425
    %543 = vmatpush2.bf16.msra.mxu0 %v424
    %544 = vmatprep.subr.bf16.mxu0 %v421
    %545 = vmatpush2.bf16.msra.mxu0 %v420
    %546 = vmatprep.subr.bf16.mxu0 %v417
    %547 = vmatpush2.bf16.msra.mxu0 %v416
    %548 = vmatprep.subr.bf16.mxu0 %v413
    %549 = vmatpush2.bf16.msra.mxu0 %v412
    %550 = vmatprep.mubr.bf16.mxu0 %v475
    %551 = vmatmul.mubr.bf16.gmra.mxu0 %v211
    %v552 = vpop.f32.mrf.mxu0
    %v553 = vadd.f32 %v225, %v552
    %v554 = vpop.f32.mrf.mxu0
    %v555 = vadd.f32 %v229, %v554
    %v556 = vpop.f32.mrf.mxu0
    %v557 = vpop.f32.mrf.mxu0
    %558 = vdwg.mxu0
    %v559 = vmax.f32 %v512, 0.0
    %v560 = vmax.f32 %v514, 0.0
    %v561 = vmax.f32 %v553, 0.0
    %v562 = vmax.f32 %v555, 0.0
    %v563 = vpack.c.bf16 %v559, %v559
    %v564 = vpack.c.bf16 %v560, %v560
    %v565 = vpack.c.bf16 %v561, %v561
    %v566 = vpack.c.bf16 %v562, %v562
    %v567 = vld [vmem:[#allocation6] sm:$0xff]
    %v568 = vld [vmem:[#allocation6 + $0x8] sm:$0xff]
    %v569 = vld [vmem:[#allocation6 + $0x10] sm:$0xff]
    %v570 = vld [vmem:[#allocation6 + $0x18] sm:$0xff]
    %v571 = vld [vmem:[#allocation6 + $0x20] sm:$0xff]
    %v572 = vld [vmem:[#allocation6 + $0x28] sm:$0xff]
    %v573 = vld [vmem:[#allocation6 + $0x30] sm:$0xff]
    %v574 = vld [vmem:[#allocation6 + $0x38] sm:$0xff]
    %v575 = vld [vmem:[#allocation6 + $0x40] sm:$0xff]
    %v576 = vld [vmem:[#allocation6 + $0x48] sm:$0xff]
    %v577 = vld [vmem:[#allocation6 + $0x50] sm:$0xff]
    %v578 = vld [vmem:[#allocation6 + $0x58] sm:$0xff]
    %v579 = vld [vmem:[#allocation6 + $0x60] sm:$0xff]
    %v580 = vld [vmem:[#allocation6 + $0x68] sm:$0xff]
    %v581 = vld [vmem:[#allocation6 + $0x70] sm:$0xff]
    %v582 = vld [vmem:[#allocation6 + $0x78] sm:$0xff]
    %v583 = vld [vmem:[#allocation6 + $0x80] sm:$0xff]
    %v584 = vld [vmem:[#allocation6 + $0x88] sm:$0xff]
    %v585 = vld [vmem:[#allocation6 + $0x90] sm:$0xff]
    %v586 = vld [vmem:[#allocation6 + $0x98] sm:$0xff]
    %v587 = vld [vmem:[#allocation6 + $0xa0] sm:$0xff]
    %v588 = vld [vmem:[#allocation6 + $0xa8] sm:$0xff]
    %v589 = vld [vmem:[#allocation6 + $0xb0] sm:$0xff]
    %v590 = vld [vmem:[#allocation6 + $0xb8] sm:$0xff]
    %v591 = vld [vmem:[#allocation6 + $0xc0] sm:$0xff]
    %v592 = vld [vmem:[#allocation6 + $0xc8] sm:$0xff]
    %v593 = vld [vmem:[#allocation6 + $0xd0] sm:$0xff]
    %v594 = vld [vmem:[#allocation6 + $0xd8] sm:$0xff]
    %v595 = vld [vmem:[#allocation6 + $0xe0] sm:$0xff]
    %v596 = vld [vmem:[#allocation6 + $0xe8] sm:$0xff]
    %v597 = vld [vmem:[#allocation6 + $0xf0] sm:$0xff]
    %v598 = vld [vmem:[#allocation6 + $0xf8] sm:$0xff]
    %v599 = vld [vmem:[#allocation6 + $0x100] sm:$0xff]
    %v600 = vld [vmem:[#allocation6 + $0x108] sm:$0xff]
    %v601 = vld [vmem:[#allocation6 + $0x110] sm:$0xff]
    %v602 = vld [vmem:[#allocation6 + $0x118] sm:$0xff]
    %v603 = vld [vmem:[#allocation6 + $0x120] sm:$0xff]
    %v604 = vld [vmem:[#allocation6 + $0x128] sm:$0xff]
    %v605 = vld [vmem:[#allocation6 + $0x130] sm:$0xff]
    %v606 = vld [vmem:[#allocation6 + $0x138] sm:$0xff]
    %v607 = vld [vmem:[#allocation6 + $0x140] sm:$0xff]
    %v608 = vld [vmem:[#allocation6 + $0x148] sm:$0xff]
    %v609 = vld [vmem:[#allocation6 + $0x150] sm:$0xff]
    %v610 = vld [vmem:[#allocation6 + $0x158] sm:$0xff]
    %v611 = vld [vmem:[#allocation6 + $0x160] sm:$0xff]
    %v612 = vld [vmem:[#allocation6 + $0x168] sm:$0xff]
    %v613 = vld [vmem:[#allocation6 + $0x170] sm:$0xff]
    %v614 = vld [vmem:[#allocation6 + $0x178] sm:$0xff]
    %v615 = vld [vmem:[#allocation6 + $0x180] sm:$0xff]
    %v616 = vld [vmem:[#allocation6 + $0x188] sm:$0xff]
    %v617 = vld [vmem:[#allocation6 + $0x190] sm:$0xff]
    %v618 = vld [vmem:[#allocation6 + $0x198] sm:$0xff]
    %v619 = vld [vmem:[#allocation6 + $0x1a0] sm:$0xff]
    %v620 = vld [vmem:[#allocation6 + $0x1a8] sm:$0xff]
    %v621 = vld [vmem:[#allocation6 + $0x1b0] sm:$0xff]
    %v622 = vld [vmem:[#allocation6 + $0x1b8] sm:$0xff]
    %s623 = scalar_lea.vmem %s0, 3
    %v624 = vld [vmem:[%s623] sm:$0x1]
    %v627 = vunpack.c.l.s4 1966171168
    %v628 = vunpack.c.0.s8 %v627
    %v629 = vlaneseq
    %v630 = vshrl.u32 %v629, 7
    %v631 = vsub.s32 %v628, %v630
    %v632 = vrot.slane %v190, %v631
    %v634 = vunpack.c.l.s4 1966171168
    %v635 = vunpack.c.0.s8 %v634
    %v636 = vlaneseq
    %v637 = vshrl.u32 %v636, 7
    %v638 = vsub.s32 %v635, %v637
    %v639 = vrot.slane %v632, %v638
    %640 = vrot.lane.b32.xlu0 %v639, 64
    %v641 = vpop.permute.xlu0 %640
    %v644 = vsel %vm208, %v188, %v641
    %v647 = vsel %vm208, %v624, 0
    %649 = vmatprep.subr.bf16.mxu0 %v407
    %650 = vmatpush1.bf16.msra.mxu0 %v406
    %651 = vmatprep.subr.bf16.mxu0 %v403
    %652 = vmatpush1.bf16.msra.mxu0 %v402
    %653 = vmatprep.subr.bf16.mxu0 %v399
    %654 = vmatpush1.bf16.msra.mxu0 %v398
    %655 = vmatprep.subr.bf16.mxu0 %v395
    %656 = vmatpush1.bf16.msra.mxu0 %v394
    %657 = vmatprep.subr.bf16.mxu0 %v391
    %658 = vmatpush1.bf16.msra.mxu0 %v390
    %659 = vmatprep.subr.bf16.mxu0 %v387
    %660 = vmatpush1.bf16.msra.mxu0 %v386
    %661 = vmatprep.subr.bf16.mxu0 %v383
    %662 = vmatpush1.bf16.msra.mxu0 %v382
    %663 = vmatprep.subr.bf16.mxu0 %v379
    %664 = vmatpush1.bf16.msra.mxu0 %v378
    %665 = vmatprep.subr.bf16.mxu0 0
    %666 = vmatpush2.bf16.msra.mxu0 0
    %667 = vmatprep.subr.bf16.mxu0 0
    %668 = vmatpush2.bf16.msra.mxu0 0
    %669 = vmatprep.subr.bf16.mxu0 0
    %670 = vmatpush2.bf16.msra.mxu0 0
    %671 = vmatprep.subr.bf16.mxu0 0
    %672 = vmatpush2.bf16.msra.mxu0 0
    %673 = vmatprep.subr.bf16.mxu0 %v423
    %674 = vmatpush2.bf16.msra.mxu0 %v422
    %675 = vmatprep.subr.bf16.mxu0 %v419
    %676 = vmatpush2.bf16.msra.mxu0 %v418
    %677 = vmatprep.subr.bf16.mxu0 %v415
    %678 = vmatpush2.bf16.msra.mxu0 %v414
    %679 = vmatprep.subr.bf16.mxu0 %v411
    %680 = vmatpush2.bf16.msra.mxu0 %v410
    %681 = vmatprep.mubr.bf16.mxu0 %v647
    %682 = vmatmul.mubr.bf16.gmra.mxu0 %v644
    %v683 = vpop.f32.mrf.mxu0
    %v684 = vadd.f32 %v217, %v683
    %v685 = vpop.f32.mrf.mxu0
    %v686 = vadd.f32 %v221, %v685
    %v687 = vpop.f32.mrf.mxu0
    %v688 = vpop.f32.mrf.mxu0
    %689 = vdwg.mxu0
    %690 = vmatprep.subr.bf16.mxu0 %v409
    %691 = vmatpush1.bf16.msra.mxu0 %v408
    %692 = vmatprep.subr.bf16.mxu0 %v405
    %693 = vmatpush1.bf16.msra.mxu0 %v404
    %694 = vmatprep.subr.bf16.mxu0 %v401
    %695 = vmatpush1.bf16.msra.mxu0 %v400
    %696 = vmatprep.subr.bf16.mxu0 %v397
    %697 = vmatpush1.bf16.msra.mxu0 %v396
    %698 = vmatprep.subr.bf16.mxu0 %v393
    %699 = vmatpush1.bf16.msra.mxu0 %v392
    %700 = vmatprep.subr.bf16.mxu0 %v389
    %701 = vmatpush1.bf16.msra.mxu0 %v388
    %702 = vmatprep.subr.bf16.mxu0 %v385
    %703 = vmatpush1.bf16.msra.mxu0 %v384
    %704 = vmatprep.subr.bf16.mxu0 %v381
    %705 = vmatpush1.bf16.msra.mxu0 %v380
    %706 = vmatprep.subr.bf16.mxu0 0
    %707 = vmatpush2.bf16.msra.mxu0 0
    %708 = vmatprep.subr.bf16.mxu0 0
    %709 = vmatpush2.bf16.msra.mxu0 0
    %710 = vmatprep.subr.bf16.mxu0 0
    %711 = vmatpush2.bf16.msra.mxu0 0
    %712 = vmatprep.subr.bf16.mxu0 0
    %713 = vmatpush2.bf16.msra.mxu0 0
    %714 = vmatprep.subr.bf16.mxu0 %v425
    %715 = vmatpush2.bf16.msra.mxu0 %v424
    %716 = vmatprep.subr.bf16.mxu0 %v421
    %717 = vmatpush2.bf16.msra.mxu0 %v420
    %718 = vmatprep.subr.bf16.mxu0 %v417
    %719 = vmatpush2.bf16.msra.mxu0 %v416
    %720 = vmatprep.subr.bf16.mxu0 %v413
    %721 = vmatpush2.bf16.msra.mxu0 %v412
    %722 = vmatprep.mubr.bf16.mxu0 %v647
    %723 = vmatmul.mubr.bf16.gmra.mxu0 %v644
    %v724 = vpop.f32.mrf.mxu0
    %v725 = vadd.f32 %v225, %v724
    %v726 = vpop.f32.mrf.mxu0
    %v727 = vadd.f32 %v229, %v726
    %v728 = vpop.f32.mrf.mxu0
    %v729 = vpop.f32.mrf.mxu0
    %730 = vdwg.mxu0
    %v731 = vmax.f32 %v684, 0.0
    %v732 = vmax.f32 %v686, 0.0
    %v733 = vmax.f32 %v725, 0.0
    %v734 = vmax.f32 %v727, 0.0
    %v735 = vpack.c.bf16 %v731, %v731
    %v736 = vpack.c.bf16 %v732, %v732
    %v737 = vpack.c.bf16 %v733, %v733
    %v738 = vpack.c.bf16 %v734, %v734
    %s739 = scalar_lea.vmem [#allocation6], 448
    %v740 = vld [vmem:[%s739] sm:$0xff]
    %v741 = vld [vmem:[%s739 + $0x8] sm:$0xff]
    %v742 = vld [vmem:[%s739 + $0x10] sm:$0xff]
    %v743 = vld [vmem:[%s739 + $0x18] sm:$0xff]
    %v744 = vld [vmem:[%s739 + $0x20] sm:$0xff]
    %v745 = vld [vmem:[%s739 + $0x28] sm:$0xff]
    %v746 = vld [vmem:[%s739 + $0x30] sm:$0xff]
    %v747 = vld [vmem:[%s739 + $0x38] sm:$0xff]
    %v748 = vld [vmem:[%s739 + $0x40] sm:$0xff]
    %v749 = vld [vmem:[%s739 + $0x48] sm:$0xff]
    %v750 = vld [vmem:[%s739 + $0x50] sm:$0xff]
    %v751 = vld [vmem:[%s739 + $0x58] sm:$0xff]
    %v752 = vld [vmem:[%s739 + $0x60] sm:$0xff]
    %v753 = vld [vmem:[%s739 + $0x68] sm:$0xff]
    %v754 = vld [vmem:[%s739 + $0x70] sm:$0xff]
    %v755 = vld [vmem:[%s739 + $0x78] sm:$0xff]
    %v756 = vld [vmem:[%s739 + $0x80] sm:$0xff]
    %v757 = vld [vmem:[%s739 + $0x88] sm:$0xff]
    %v758 = vld [vmem:[%s739 + $0x90] sm:$0xff]
    %v759 = vld [vmem:[%s739 + $0x98] sm:$0xff]
    %v760 = vld [vmem:[%s739 + $0xa0] sm:$0xff]
    %v761 = vld [vmem:[%s739 + $0xa8] sm:$0xff]
    %v762 = vld [vmem:[%s739 + $0xb0] sm:$0xff]
    %v763 = vld [vmem:[%s739 + $0xb8] sm:$0xff]
    %v764 = vld [vmem:[%s739 + $0xc0] sm:$0xff]
    %v765 = vld [vmem:[%s739 + $0xc8] sm:$0xff]
    %v766 = vld [vmem:[%s739 + $0xd0] sm:$0xff]
    %v767 = vld [vmem:[%s739 + $0xd8] sm:$0xff]
    %v768 = vld [vmem:[%s739 + $0xe0] sm:$0xff]
    %v769 = vld [vmem:[%s739 + $0xe8] sm:$0xff]
    %v770 = vld [vmem:[%s739 + $0xf0] sm:$0xff]
    %v771 = vld [vmem:[%s739 + $0xf8] sm:$0xff]
    %v772 = vld [vmem:[%s739 + $0x100] sm:$0xff]
    %v773 = vld [vmem:[%s739 + $0x108] sm:$0xff]
    %v774 = vld [vmem:[%s739 + $0x110] sm:$0xff]
    %v775 = vld [vmem:[%s739 + $0x118] sm:$0xff]
    %v776 = vld [vmem:[%s739 + $0x120] sm:$0xff]
    %v777 = vld [vmem:[%s739 + $0x128] sm:$0xff]
    %v778 = vld [vmem:[%s739 + $0x130] sm:$0xff]
    %v779 = vld [vmem:[%s739 + $0x138] sm:$0xff]
    %v780 = vld [vmem:[%s739 + $0x140] sm:$0xff]
    %v781 = vld [vmem:[%s739 + $0x148] sm:$0xff]
    %v782 = vld [vmem:[%s739 + $0x150] sm:$0xff]
    %v783 = vld [vmem:[%s739 + $0x158] sm:$0xff]
    %v784 = vld [vmem:[%s739 + $0x160] sm:$0xff]
    %v785 = vld [vmem:[%s739 + $0x168] sm:$0xff]
    %v786 = vld [vmem:[%s739 + $0x170] sm:$0xff]
    %v787 = vld [vmem:[%s739 + $0x178] sm:$0xff]
    %v788 = vld [vmem:[%s739 + $0x180] sm:$0xff]
    %v789 = vld [vmem:[%s739 + $0x188] sm:$0xff]
    %v790 = vld [vmem:[%s739 + $0x190] sm:$0xff]
    %v791 = vld [vmem:[%s739 + $0x198] sm:$0xff]
    %v792 = vld [vmem:[%s739 + $0x1a0] sm:$0xff]
    %v793 = vld [vmem:[%s739 + $0x1a8] sm:$0xff]
    %v794 = vld [vmem:[%s739 + $0x1b0] sm:$0xff]
    %v795 = vld [vmem:[%s739 + $0x1b8] sm:$0xff]
    %v852 = vunpack.c.l.b16 %v740
    %v853 = vunpack.c.h.b16 %v740
    %v854 = vunpack.c.l.b16 %v741
    %v855 = vunpack.c.h.b16 %v741
    %v856 = vunpack.c.l.b16 %v742
    %v857 = vunpack.c.h.b16 %v742
    %v858 = vunpack.c.l.b16 %v743
    %v859 = vunpack.c.h.b16 %v743
    %v860 = vunpack.c.l.b16 %v744
    %v861 = vunpack.c.h.b16 %v744
    %v862 = vunpack.c.l.b16 %v745
    %v863 = vunpack.c.h.b16 %v745
    %v864 = vunpack.c.l.b16 %v746
    %v865 = vunpack.c.h.b16 %v746
    %v866 = vunpack.c.l.b16 %v747
    %v867 = vunpack.c.h.b16 %v747
    %v868 = vunpack.c.l.b16 %v748
    %v869 = vunpack.c.h.b16 %v748
    %v870 = vunpack.c.l.b16 %v749
    %v871 = vunpack.c.h.b16 %v749
    %v872 = vunpack.c.l.b16 %v750
    %v873 = vunpack.c.h.b16 %v750
    %v874 = vunpack.c.l.b16 %v751
    %v875 = vunpack.c.h.b16 %v751
    %v876 = vunpack.c.l.b16 %v752
    %v877 = vunpack.c.h.b16 %v752
    %v878 = vunpack.c.l.b16 %v753
    %v879 = vunpack.c.h.b16 %v753
    %v880 = vunpack.c.l.b16 %v754
    %v881 = vunpack.c.h.b16 %v754
    %v882 = vunpack.c.l.b16 %v755
    %v883 = vunpack.c.h.b16 %v755
    %v884 = vunpack.c.l.b16 %v756
    %v885 = vunpack.c.h.b16 %v756
    %v886 = vunpack.c.l.b16 %v757
    %v887 = vunpack.c.h.b16 %v757
    %v888 = vunpack.c.l.b16 %v758
    %v889 = vunpack.c.h.b16 %v758
    %v890 = vunpack.c.l.b16 %v759
    %v891 = vunpack.c.h.b16 %v759
    %v892 = vunpack.c.l.b16 %v760
    %v893 = vunpack.c.h.b16 %v760
    %v894 = vunpack.c.l.b16 %v761
    %v895 = vunpack.c.h.b16 %v761
    %v896 = vunpack.c.l.b16 %v762
    %v897 = vunpack.c.h.b16 %v762
    %v898 = vunpack.c.l.b16 %v763
    %v899 = vunpack.c.h.b16 %v763
    %v900 = vunpack.c.l.b16 %v764
    %v901 = vunpack.c.h.b16 %v764
    %v902 = vunpack.c.l.b16 %v765
    %v903 = vunpack.c.h.b16 %v765
    %v904 = vunpack.c.l.b16 %v766
    %v905 = vunpack.c.h.b16 %v766
    %v906 = vunpack.c.l.b16 %v767
    %v907 = vunpack.c.h.b16 %v767
    %v908 = vunpack.c.l.b16 %v768
    %v909 = vunpack.c.h.b16 %v768
    %v910 = vunpack.c.l.b16 %v769
    %v911 = vunpack.c.h.b16 %v769
    %v912 = vunpack.c.l.b16 %v770
    %v913 = vunpack.c.h.b16 %v770
    %v914 = vunpack.c.l.b16 %v771
    %v915 = vunpack.c.h.b16 %v771
    %v916 = vunpack.c.l.b16 %v772
    %v917 = vunpack.c.h.b16 %v772
    %v918 = vunpack.c.l.b16 %v773
    %v919 = vunpack.c.h.b16 %v773
    %v920 = vunpack.c.l.b16 %v774
    %v921 = vunpack.c.h.b16 %v774
    %v922 = vunpack.c.l.b16 %v775
    %v923 = vunpack.c.h.b16 %v775
    %v924 = vunpack.c.l.b16 %v776
    %v925 = vunpack.c.h.b16 %v776
    %v926 = vunpack.c.l.b16 %v777
    %v927 = vunpack.c.h.b16 %v777
    %v928 = vunpack.c.l.b16 %v778
    %v929 = vunpack.c.h.b16 %v778
    %v930 = vunpack.c.l.b16 %v779
    %v931 = vunpack.c.h.b16 %v779
    %v932 = vunpack.c.l.b16 %v780
    %v933 = vunpack.c.h.b16 %v780
    %v934 = vunpack.c.l.b16 %v781
    %v935 = vunpack.c.h.b16 %v781
    %v936 = vunpack.c.l.b16 %v782
    %v937 = vunpack.c.h.b16 %v782
    %v938 = vunpack.c.l.b16 %v783
    %v939 = vunpack.c.h.b16 %v783
    %v940 = vunpack.c.l.b16 %v784
    %v941 = vunpack.c.h.b16 %v784
    %v942 = vunpack.c.l.b16 %v785
    %v943 = vunpack.c.h.b16 %v785
    %v944 = vunpack.c.l.b16 %v786
    %v945 = vunpack.c.h.b16 %v786
    %v946 = vunpack.c.l.b16 %v787
    %v947 = vunpack.c.h.b16 %v787
    %v948 = vunpack.c.l.b16 %v788
    %v949 = vunpack.c.h.b16 %v788
    %v950 = vunpack.c.l.b16 %v789
    %v951 = vunpack.c.h.b16 %v789
    %v952 = vunpack.c.l.b16 %v790
    %v953 = vunpack.c.h.b16 %v790
    %v954 = vunpack.c.l.b16 %v791
    %v955 = vunpack.c.h.b16 %v791
    %v956 = vunpack.c.l.b16 %v792
    %v957 = vunpack.c.h.b16 %v792
    %v958 = vunpack.c.l.b16 %v793
    %v959 = vunpack.c.h.b16 %v793
    %v960 = vunpack.c.l.b16 %v794
    %v961 = vunpack.c.h.b16 %v794
    %v962 = vunpack.c.l.b16 %v795
    %v963 = vunpack.c.h.b16 %v795
    %v964 = vpack.c.b16 %v854, %v852
    %v965 = vpack.c.b16 %v855, %v853
    %v966 = vpack.c.b16 %v858, %v856
    %v967 = vpack.c.b16 %v859, %v857
    %v968 = vpack.c.b16 %v862, %v860
    %v969 = vpack.c.b16 %v863, %v861
    %v970 = vpack.c.b16 %v866, %v864
    %v971 = vpack.c.b16 %v867, %v865
    %v972 = vpack.c.b16 %v870, %v868
    %v973 = vpack.c.b16 %v871, %v869
    %v974 = vpack.c.b16 %v874, %v872
    %v975 = vpack.c.b16 %v875, %v873
    %v976 = vpack.c.b16 %v878, %v876
    %v977 = vpack.c.b16 %v879, %v877
    %v978 = vpack.c.b16 %v882, %v880
    %v979 = vpack.c.b16 %v883, %v881
    %v980 = vpack.c.b16 %v886, %v884
    %v981 = vpack.c.b16 %v887, %v885
    %v982 = vpack.c.b16 %v890, %v888
    %v983 = vpack.c.b16 %v891, %v889
    %v984 = vpack.c.b16 %v894, %v892
    %v985 = vpack.c.b16 %v895, %v893
    %v986 = vpack.c.b16 %v898, %v896
    %v987 = vpack.c.b16 %v899, %v897
    %v988 = vpack.c.b16 %v902, %v900
    %v989 = vpack.c.b16 %v903, %v901
    %v990 = vpack.c.b16 %v906, %v904
    %v991 = vpack.c.b16 %v907, %v905
    %v992 = vpack.c.b16 %v910, %v908
    %v993 = vpack.c.b16 %v911, %v909
    %v994 = vpack.c.b16 %v914, %v912
    %v995 = vpack.c.b16 %v915, %v913
    %v996 = vpack.c.b16 %v918, %v916
    %v997 = vpack.c.b16 %v919, %v917
    %v998 = vpack.c.b16 %v922, %v920
    %v999 = vpack.c.b16 %v923, %v921
    %v1000 = vpack.c.b16 %v926, %v924
    %v1001 = vpack.c.b16 %v927, %v925
    %v1002 = vpack.c.b16 %v930, %v928
    %v1003 = vpack.c.b16 %v931, %v929
    %v1004 = vpack.c.b16 %v934, %v932
    %v1005 = vpack.c.b16 %v935, %v933
    %v1006 = vpack.c.b16 %v938, %v936
    %v1007 = vpack.c.b16 %v939, %v937
    %v1008 = vpack.c.b16 %v942, %v940
    %v1009 = vpack.c.b16 %v943, %v941
    %v1010 = vpack.c.b16 %v946, %v944
    %v1011 = vpack.c.b16 %v947, %v945
    %v1012 = vpack.c.b16 %v950, %v948
    %v1013 = vpack.c.b16 %v951, %v949
    %v1014 = vpack.c.b16 %v954, %v952
    %v1015 = vpack.c.b16 %v955, %v953
    %v1016 = vpack.c.b16 %v958, %v956
    %v1017 = vpack.c.b16 %v959, %v957
    %v1018 = vpack.c.b16 %v962, %v960
    %v1019 = vpack.c.b16 %v963, %v961
    %v1077 = vsel %vm208, %v738, 0
    %1079 = vmatprep.subr.bf16.mxu0 %v979
    %1080 = vmatpush1.bf16.msra.mxu0 %v978
    %1081 = vmatprep.subr.bf16.mxu0 %v977
    %1082 = vmatpush1.bf16.msra.mxu0 %v976
    %1083 = vmatprep.subr.bf16.mxu0 %v975
    %1084 = vmatpush1.bf16.msra.mxu0 %v974
    %1085 = vmatprep.subr.bf16.mxu0 %v973
    %1086 = vmatpush1.bf16.msra.mxu0 %v972
    %1087 = vmatprep.subr.bf16.mxu0 %v971
    %1088 = vmatpush1.bf16.msra.mxu0 %v970
    %1089 = vmatprep.subr.bf16.mxu0 %v969
    %1090 = vmatpush1.bf16.msra.mxu0 %v968
    %1091 = vmatprep.subr.bf16.mxu0 %v967
    %1092 = vmatpush1.bf16.msra.mxu0 %v966
    %1093 = vmatprep.subr.bf16.mxu0 %v965
    %1094 = vmatpush1.bf16.msra.mxu0 %v964
    %1095 = vmatprep.subr.bf16.mxu0 %v995
    %1096 = vmatpush2.bf16.msra.mxu0 %v994
    %1097 = vmatprep.subr.bf16.mxu0 %v993
    %1098 = vmatpush2.bf16.msra.mxu0 %v992
    %1099 = vmatprep.subr.bf16.mxu0 %v991
    %1100 = vmatpush2.bf16.msra.mxu0 %v990
    %1101 = vmatprep.subr.bf16.mxu0 %v989
    %1102 = vmatpush2.bf16.msra.mxu0 %v988
    %1103 = vmatprep.subr.bf16.mxu0 %v987
    %1104 = vmatpush2.bf16.msra.mxu0 %v986
    %1105 = vmatprep.subr.bf16.mxu0 %v985
    %1106 = vmatpush2.bf16.msra.mxu0 %v984
    %1107 = vmatprep.subr.bf16.mxu0 %v983
    %1108 = vmatpush2.bf16.msra.mxu0 %v982
    %1109 = vmatprep.subr.bf16.mxu0 %v981
    %1110 = vmatpush2.bf16.msra.mxu0 %v980
    %1111 = vmatprep.mubr.bf16.mxu0 %v736
    %1112 = vmatmul.mubr.bf16.gmra.mxu0 %v735
    %v1113 = vpop.f32.mrf.mxu0
    %v1114 = vadd.f32 0.0, %v1113
    %v1115 = vpop.f32.mrf.mxu0
    %v1116 = vadd.f32 0.0, %v1115
    %v1117 = vpop.f32.mrf.mxu0
    %v1118 = vpop.f32.mrf.mxu0
    %1119 = vdwg.mxu0
    %1120 = vmatprep.subr.bf16.mxu0 %v1011
    %1121 = vmatpush1.bf16.msra.mxu0 %v1010
    %1122 = vmatprep.subr.bf16.mxu0 %v1009
    %1123 = vmatpush1.bf16.msra.mxu0 %v1008
    %1124 = vmatprep.subr.bf16.mxu0 %v1007
    %1125 = vmatpush1.bf16.msra.mxu0 %v1006
    %1126 = vmatprep.subr.bf16.mxu0 %v1005
    %1127 = vmatpush1.bf16.msra.mxu0 %v1004
    %1128 = vmatprep.subr.bf16.mxu0 %v1003
    %1129 = vmatpush1.bf16.msra.mxu0 %v1002
    %1130 = vmatprep.subr.bf16.mxu0 %v1001
    %1131 = vmatpush1.bf16.msra.mxu0 %v1000
    %1132 = vmatprep.subr.bf16.mxu0 %v999
    %1133 = vmatpush1.bf16.msra.mxu0 %v998
    %1134 = vmatprep.subr.bf16.mxu0 %v997
    %1135 = vmatpush1.bf16.msra.mxu0 %v996
    %1136 = vmatprep.subr.bf16.mxu0 0
    %1137 = vmatpush2.bf16.msra.mxu0 0
    %1138 = vmatprep.subr.bf16.mxu0 0
    %1139 = vmatpush2.bf16.msra.mxu0 0
    %1140 = vmatprep.subr.bf16.mxu0 0
    %1141 = vmatpush2.bf16.msra.mxu0 0
    %1142 = vmatprep.subr.bf16.mxu0 0
    %1143 = vmatpush2.bf16.msra.mxu0 0
    %1144 = vmatprep.subr.bf16.mxu0 %v1019
    %1145 = vmatpush2.bf16.msra.mxu0 %v1018
    %1146 = vmatprep.subr.bf16.mxu0 %v1017
    %1147 = vmatpush2.bf16.msra.mxu0 %v1016
    %1148 = vmatprep.subr.bf16.mxu0 %v1015
    %1149 = vmatpush2.bf16.msra.mxu0 %v1014
    %1150 = vmatprep.subr.bf16.mxu0 %v1013
    %1151 = vmatpush2.bf16.msra.mxu0 %v1012
    %1152 = vmatprep.mubr.bf16.mxu0 %v1077
    %1153 = vmatmul.mubr.bf16.gmra.mxu0 %v737
    %v1154 = vpop.f32.mrf.mxu0
    %v1155 = vadd.f32 %v1114, %v1154
    %v1156 = vpop.f32.mrf.mxu0
    %v1157 = vadd.f32 %v1116, %v1156
    %v1158 = vpop.f32.mrf.mxu0
    %v1159 = vpop.f32.mrf.mxu0
    %1160 = vdwg.mxu0
    %v1217 = vunpack.c.l.b16 %v567
    %v1218 = vunpack.c.h.b16 %v567
    %v1219 = vunpack.c.l.b16 %v568
    %v1220 = vunpack.c.h.b16 %v568
    %v1221 = vunpack.c.l.b16 %v569
    %v1222 = vunpack.c.h.b16 %v569
    %v1223 = vunpack.c.l.b16 %v570
    %v1224 = vunpack.c.h.b16 %v570
    %v1225 = vunpack.c.l.b16 %v571
    %v1226 = vunpack.c.h.b16 %v571
    %v1227 = vunpack.c.l.b16 %v572
    %v1228 = vunpack.c.h.b16 %v572
    %v1229 = vunpack.c.l.b16 %v573
    %v1230 = vunpack.c.h.b16 %v573
    %v1231 = vunpack.c.l.b16 %v574
    %v1232 = vunpack.c.h.b16 %v574
    %v1233 = vunpack.c.l.b16 %v575
    %v1234 = vunpack.c.h.b16 %v575
    %v1235 = vunpack.c.l.b16 %v576
    %v1236 = vunpack.c.h.b16 %v576
    %v1237 = vunpack.c.l.b16 %v577
    %v1238 = vunpack.c.h.b16 %v577
    %v1239 = vunpack.c.l.b16 %v578
    %v1240 = vunpack.c.h.b16 %v578
    %v1241 = vunpack.c.l.b16 %v579
    %v1242 = vunpack.c.h.b16 %v579
    %v1243 = vunpack.c.l.b16 %v580
    %v1244 = vunpack.c.h.b16 %v580
    %v1245 = vunpack.c.l.b16 %v581
    %v1246 = vunpack.c.h.b16 %v581
    %v1247 = vunpack.c.l.b16 %v582
    %v1248 = vunpack.c.h.b16 %v582
    %v1249 = vunpack.c.l.b16 %v583
    %v1250 = vunpack.c.h.b16 %v583
    %v1251 = vunpack.c.l.b16 %v584
    %v1252 = vunpack.c.h.b16 %v584
    %v1253 = vunpack.c.l.b16 %v585
    %v1254 = vunpack.c.h.b16 %v585
    %v1255 = vunpack.c.l.b16 %v586
    %v1256 = vunpack.c.h.b16 %v586
    %v1257 = vunpack.c.l.b16 %v587
    %v1258 = vunpack.c.h.b16 %v587
    %v1259 = vunpack.c.l.b16 %v588
    %v1260 = vunpack.c.h.b16 %v588
    %v1261 = vunpack.c.l.b16 %v589
    %v1262 = vunpack.c.h.b16 %v589
    %v1263 = vunpack.c.l.b16 %v590
    %v1264 = vunpack.c.h.b16 %v590
    %v1265 = vunpack.c.l.b16 %v591
    %v1266 = vunpack.c.h.b16 %v591
    %v1267 = vunpack.c.l.b16 %v592
    %v1268 = vunpack.c.h.b16 %v592
    %v1269 = vunpack.c.l.b16 %v593
    %v1270 = vunpack.c.h.b16 %v593
    %v1271 = vunpack.c.l.b16 %v594
    %v1272 = vunpack.c.h.b16 %v594
    %v1273 = vunpack.c.l.b16 %v595
    %v1274 = vunpack.c.h.b16 %v595
    %v1275 = vunpack.c.l.b16 %v596
    %v1276 = vunpack.c.h.b16 %v596
    %v1277 = vunpack.c.l.b16 %v597
    %v1278 = vunpack.c.h.b16 %v597
    %v1279 = vunpack.c.l.b16 %v598
    %v1280 = vunpack.c.h.b16 %v598
    %v1281 = vunpack.c.l.b16 %v599
    %v1282 = vunpack.c.h.b16 %v599
    %v1283 = vunpack.c.l.b16 %v600
    %v1284 = vunpack.c.h.b16 %v600
    %v1285 = vunpack.c.l.b16 %v601
    %v1286 = vunpack.c.h.b16 %v601
    %v1287 = vunpack.c.l.b16 %v602
    %v1288 = vunpack.c.h.b16 %v602
    %v1289 = vunpack.c.l.b16 %v603
    %v1290 = vunpack.c.h.b16 %v603
    %v1291 = vunpack.c.l.b16 %v604
    %v1292 = vunpack.c.h.b16 %v604
    %v1293 = vunpack.c.l.b16 %v605
    %v1294 = vunpack.c.h.b16 %v605
    %v1295 = vunpack.c.l.b16 %v606
    %v1296 = vunpack.c.h.b16 %v606
    %v1297 = vunpack.c.l.b16 %v607
    %v1298 = vunpack.c.h.b16 %v607
    %v1299 = vunpack.c.l.b16 %v608
    %v1300 = vunpack.c.h.b16 %v608
    %v1301 = vunpack.c.l.b16 %v609
    %v1302 = vunpack.c.h.b16 %v609
    %v1303 = vunpack.c.l.b16 %v610
    %v1304 = vunpack.c.h.b16 %v610
    %v1305 = vunpack.c.l.b16 %v611
    %v1306 = vunpack.c.h.b16 %v611
    %v1307 = vunpack.c.l.b16 %v612
    %v1308 = vunpack.c.h.b16 %v612
    %v1309 = vunpack.c.l.b16 %v613
    %v1310 = vunpack.c.h.b16 %v613
    %v1311 = vunpack.c.l.b16 %v614
    %v1312 = vunpack.c.h.b16 %v614
    %v1313 = vunpack.c.l.b16 %v615
    %v1314 = vunpack.c.h.b16 %v615
    %v1315 = vunpack.c.l.b16 %v616
    %v1316 = vunpack.c.h.b16 %v616
    %v1317 = vunpack.c.l.b16 %v617
    %v1318 = vunpack.c.h.b16 %v617
    %v1319 = vunpack.c.l.b16 %v618
    %v1320 = vunpack.c.h.b16 %v618
    %v1321 = vunpack.c.l.b16 %v619
    %v1322 = vunpack.c.h.b16 %v619
    %v1323 = vunpack.c.l.b16 %v620
    %v1324 = vunpack.c.h.b16 %v620
    %v1325 = vunpack.c.l.b16 %v621
    %v1326 = vunpack.c.h.b16 %v621
    %v1327 = vunpack.c.l.b16 %v622
    %v1328 = vunpack.c.h.b16 %v622
    %v1329 = vpack.c.b16 %v1219, %v1217
    %v1330 = vpack.c.b16 %v1220, %v1218
    %v1331 = vpack.c.b16 %v1223, %v1221
    %v1332 = vpack.c.b16 %v1224, %v1222
    %v1333 = vpack.c.b16 %v1227, %v1225
    %v1334 = vpack.c.b16 %v1228, %v1226
    %v1335 = vpack.c.b16 %v1231, %v1229
    %v1336 = vpack.c.b16 %v1232, %v1230
    %v1337 = vpack.c.b16 %v1235, %v1233
    %v1338 = vpack.c.b16 %v1236, %v1234
    %v1339 = vpack.c.b16 %v1239, %v1237
    %v1340 = vpack.c.b16 %v1240, %v1238
    %v1341 = vpack.c.b16 %v1243, %v1241
    %v1342 = vpack.c.b16 %v1244, %v1242
    %v1343 = vpack.c.b16 %v1247, %v1245
    %v1344 = vpack.c.b16 %v1248, %v1246
    %v1345 = vpack.c.b16 %v1251, %v1249
    %v1346 = vpack.c.b16 %v1252, %v1250
    %v1347 = vpack.c.b16 %v1255, %v1253
    %v1348 = vpack.c.b16 %v1256, %v1254
    %v1349 = vpack.c.b16 %v1259, %v1257
    %v1350 = vpack.c.b16 %v1260, %v1258
    %v1351 = vpack.c.b16 %v1263, %v1261
    %v1352 = vpack.c.b16 %v1264, %v1262
    %v1353 = vpack.c.b16 %v1267, %v1265
    %v1354 = vpack.c.b16 %v1268, %v1266
    %v1355 = vpack.c.b16 %v1271, %v1269
    %v1356 = vpack.c.b16 %v1272, %v1270
    %v1357 = vpack.c.b16 %v1275, %v1273
    %v1358 = vpack.c.b16 %v1276, %v1274
    %v1359 = vpack.c.b16 %v1279, %v1277
    %v1360 = vpack.c.b16 %v1280, %v1278
    %v1361 = vpack.c.b16 %v1283, %v1281
    %v1362 = vpack.c.b16 %v1284, %v1282
    %v1363 = vpack.c.b16 %v1287, %v1285
    %v1364 = vpack.c.b16 %v1288, %v1286
    %v1365 = vpack.c.b16 %v1291, %v1289
    %v1366 = vpack.c.b16 %v1292, %v1290
    %v1367 = vpack.c.b16 %v1295, %v1293
    %v1368 = vpack.c.b16 %v1296, %v1294
    %v1369 = vpack.c.b16 %v1299, %v1297
    %v1370 = vpack.c.b16 %v1300, %v1298
    %v1371 = vpack.c.b16 %v1303, %v1301
    %v1372 = vpack.c.b16 %v1304, %v1302
    %v1373 = vpack.c.b16 %v1307, %v1305
    %v1374 = vpack.c.b16 %v1308, %v1306
    %v1375 = vpack.c.b16 %v1311, %v1309
    %v1376 = vpack.c.b16 %v1312, %v1310
    %v1377 = vpack.c.b16 %v1315, %v1313
    %v1378 = vpack.c.b16 %v1316, %v1314
    %v1379 = vpack.c.b16 %v1319, %v1317
    %v1380 = vpack.c.b16 %v1320, %v1318
    %v1381 = vpack.c.b16 %v1323, %v1321
    %v1382 = vpack.c.b16 %v1324, %v1322
    %v1383 = vpack.c.b16 %v1327, %v1325
    %v1384 = vpack.c.b16 %v1328, %v1326
    %v1442 = vsel %vm208, %v566, 0
    %1444 = vmatprep.subr.bf16.mxu0 %v1344
    %1445 = vmatpush1.bf16.msra.mxu0 %v1343
    %1446 = vmatprep.subr.bf16.mxu0 %v1342
    %1447 = vmatpush1.bf16.msra.mxu0 %v1341
    %1448 = vmatprep.subr.bf16.mxu0 %v1340
    %1449 = vmatpush1.bf16.msra.mxu0 %v1339
    %1450 = vmatprep.subr.bf16.mxu0 %v1338
    %1451 = vmatpush1.bf16.msra.mxu0 %v1337
    %1452 = vmatprep.subr.bf16.mxu0 %v1336
    %1453 = vmatpush1.bf16.msra.mxu0 %v1335
    %1454 = vmatprep.subr.bf16.mxu0 %v1334
    %1455 = vmatpush1.bf16.msra.mxu0 %v1333
    %1456 = vmatprep.subr.bf16.mxu0 %v1332
    %1457 = vmatpush1.bf16.msra.mxu0 %v1331
    %1458 = vmatprep.subr.bf16.mxu0 %v1330
    %1459 = vmatpush1.bf16.msra.mxu0 %v1329
    %1460 = vmatprep.subr.bf16.mxu0 %v1360
    %1461 = vmatpush2.bf16.msra.mxu0 %v1359
    %1462 = vmatprep.subr.bf16.mxu0 %v1358
    %1463 = vmatpush2.bf16.msra.mxu0 %v1357
    %1464 = vmatprep.subr.bf16.mxu0 %v1356
    %1465 = vmatpush2.bf16.msra.mxu0 %v1355
    %1466 = vmatprep.subr.bf16.mxu0 %v1354
    %1467 = vmatpush2.bf16.msra.mxu0 %v1353
    %1468 = vmatprep.subr.bf16.mxu0 %v1352
    %1469 = vmatpush2.bf16.msra.mxu0 %v1351
    %1470 = vmatprep.subr.bf16.mxu0 %v1350
    %1471 = vmatpush2.bf16.msra.mxu0 %v1349
    %1472 = vmatprep.subr.bf16.mxu0 %v1348
    %1473 = vmatpush2.bf16.msra.mxu0 %v1347
    %1474 = vmatprep.subr.bf16.mxu0 %v1346
    %1475 = vmatpush2.bf16.msra.mxu0 %v1345
    %1476 = vmatprep.mubr.bf16.mxu0 %v564
    %1477 = vmatmul.mubr.bf16.gmra.mxu0 %v563
    %v1478 = vpop.f32.mrf.mxu0
    %v1479 = vadd.f32 %v1155, %v1478
    %v1480 = vpop.f32.mrf.mxu0
    %v1481 = vadd.f32 %v1157, %v1480
    %v1482 = vpop.f32.mrf.mxu0
    %v1483 = vpop.f32.mrf.mxu0
    %1484 = vdwg.mxu0
    %1485 = vmatprep.subr.bf16.mxu0 %v1376
    %1486 = vmatpush1.bf16.msra.mxu0 %v1375
    %1487 = vmatprep.subr.bf16.mxu0 %v1374
    %1488 = vmatpush1.bf16.msra.mxu0 %v1373
    %1489 = vmatprep.subr.bf16.mxu0 %v1372
    %1490 = vmatpush1.bf16.msra.mxu0 %v1371
    %1491 = vmatprep.subr.bf16.mxu0 %v1370
    %1492 = vmatpush1.bf16.msra.mxu0 %v1369
    %1493 = vmatprep.subr.bf16.mxu0 %v1368
    %1494 = vmatpush1.bf16.msra.mxu0 %v1367
    %1495 = vmatprep.subr.bf16.mxu0 %v1366
    %1496 = vmatpush1.bf16.msra.mxu0 %v1365
    %1497 = vmatprep.subr.bf16.mxu0 %v1364
    %1498 = vmatpush1.bf16.msra.mxu0 %v1363
    %1499 = vmatprep.subr.bf16.mxu0 %v1362
    %1500 = vmatpush1.bf16.msra.mxu0 %v1361
    %1501 = vmatprep.subr.bf16.mxu0 0
    %1502 = vmatpush2.bf16.msra.mxu0 0
    %1503 = vmatprep.subr.bf16.mxu0 0
    %1504 = vmatpush2.bf16.msra.mxu0 0
    %1505 = vmatprep.subr.bf16.mxu0 0
    %1506 = vmatpush2.bf16.msra.mxu0 0
    %1507 = vmatprep.subr.bf16.mxu0 0
    %1508 = vmatpush2.bf16.msra.mxu0 0
    %1509 = vmatprep.subr.bf16.mxu0 %v1384
    %1510 = vmatpush2.bf16.msra.mxu0 %v1383
    %1511 = vmatprep.subr.bf16.mxu0 %v1382
    %1512 = vmatpush2.bf16.msra.mxu0 %v1381
    %1513 = vmatprep.subr.bf16.mxu0 %v1380
    %1514 = vmatpush2.bf16.msra.mxu0 %v1379
    %1515 = vmatprep.subr.bf16.mxu0 %v1378
    %1516 = vmatpush2.bf16.msra.mxu0 %v1377
    %1517 = vmatprep.mubr.bf16.mxu0 %v1442
    %1518 = vmatmul.mubr.bf16.gmra.mxu0 %v565
    %v1519 = vpop.f32.mrf.mxu0
    %v1520 = vadd.f32 %v1479, %v1519
    %v1521 = vpop.f32.mrf.mxu0
    %v1522 = vadd.f32 %v1481, %v1521
    %v1523 = vpop.f32.mrf.mxu0
    %v1524 = vpop.f32.mrf.mxu0
    %1525 = vdwg.mxu0
    %s1526 = scalar_lea.vmem %s0, 4
    %v1527 = vld [vmem:[%s1526] sm:$0x1]
    %v1530 = vunpack.c.l.s4 1966171168
    %v1531 = vunpack.c.0.s8 %v1530
    %v1532 = vlaneseq
    %v1533 = vshrl.u32 %v1532, 7
    %v1534 = vsub.s32 %v1531, %v1533
    %v1535 = vrot.slane %v624, %v1534
    %v1537 = vunpack.c.l.s4 1966171168
    %v1538 = vunpack.c.0.s8 %v1537
    %v1539 = vlaneseq
    %v1540 = vshrl.u32 %v1539, 7
    %v1541 = vsub.s32 %v1538, %v1540
    %v1542 = vrot.slane %v1535, %v1541
    %1543 = vrot.lane.b32.xlu0 %v1542, 64
    %v1544 = vpop.permute.xlu0 %1543
    %v1546 = vsel %vm208, %v190, %v1544
    %v1549 = vsel %vm208, %v1527, 0
    %1551 = vmatprep.subr.bf16.mxu0 %v407
    %1552 = vmatpush1.bf16.msra.mxu0 %v406
    %1553 = vmatprep.subr.bf16.mxu0 %v403
    %1554 = vmatpush1.bf16.msra.mxu0 %v402
    %1555 = vmatprep.subr.bf16.mxu0 %v399
    %1556 = vmatpush1.bf16.msra.mxu0 %v398
    %1557 = vmatprep.subr.bf16.mxu0 %v395
    %1558 = vmatpush1.bf16.msra.mxu0 %v394
    %1559 = vmatprep.subr.bf16.mxu0 %v391
    %1560 = vmatpush1.bf16.msra.mxu0 %v390
    %1561 = vmatprep.subr.bf16.mxu0 %v387
    %1562 = vmatpush1.bf16.msra.mxu0 %v386
    %1563 = vmatprep.subr.bf16.mxu0 %v383
    %1564 = vmatpush1.bf16.msra.mxu0 %v382
    %1565 = vmatprep.subr.bf16.mxu0 %v379
    %1566 = vmatpush1.bf16.msra.mxu0 %v378
    %1567 = vmatprep.subr.bf16.mxu0 0
    %1568 = vmatpush2.bf16.msra.mxu0 0
    %1569 = vmatprep.subr.bf16.mxu0 0
    %1570 = vmatpush2.bf16.msra.mxu0 0
    %1571 = vmatprep.subr.bf16.mxu0 0
    %1572 = vmatpush2.bf16.msra.mxu0 0
    %1573 = vmatprep.subr.bf16.mxu0 0
    %1574 = vmatpush2.bf16.msra.mxu0 0
    %1575 = vmatprep.subr.bf16.mxu0 %v423
    %1576 = vmatpush2.bf16.msra.mxu0 %v422
    %1577 = vmatprep.subr.bf16.mxu0 %v419
    %1578 = vmatpush2.bf16.msra.mxu0 %v418
    %1579 = vmatprep.subr.bf16.mxu0 %v415
    %1580 = vmatpush2.bf16.msra.mxu0 %v414
    %1581 = vmatprep.subr.bf16.mxu0 %v411
    %1582 = vmatpush2.bf16.msra.mxu0 %v410
    %1583 = vmatprep.mubr.bf16.mxu0 %v1549
    %1584 = vmatmul.mubr.bf16.gmra.mxu0 %v1546
    %v1585 = vpop.f32.mrf.mxu0
    %v1586 = vadd.f32 %v217, %v1585
    %v1587 = vpop.f32.mrf.mxu0
    %v1588 = vadd.f32 %v221, %v1587
    %v1589 = vpop.f32.mrf.mxu0
    %v1590 = vpop.f32.mrf.mxu0
    %1591 = vdwg.mxu0
    %1592 = vmatprep.subr.bf16.mxu0 %v409
    %1593 = vmatpush1.bf16.msra.mxu0 %v408
    %1594 = vmatprep.subr.bf16.mxu0 %v405
    %1595 = vmatpush1.bf16.msra.mxu0 %v404
    %1596 = vmatprep.subr.bf16.mxu0 %v401
    %1597 = vmatpush1.bf16.msra.mxu0 %v400
    %1598 = vmatprep.subr.bf16.mxu0 %v397
    %1599 = vmatpush1.bf16.msra.mxu0 %v396
    %1600 = vmatprep.subr.bf16.mxu0 %v393
    %1601 = vmatpush1.bf16.msra.mxu0 %v392
    %1602 = vmatprep.subr.bf16.mxu0 %v389
    %1603 = vmatpush1.bf16.msra.mxu0 %v388
    %1604 = vmatprep.subr.bf16.mxu0 %v385
    %1605 = vmatpush1.bf16.msra.mxu0 %v384
    %1606 = vmatprep.subr.bf16.mxu0 %v381
    %1607 = vmatpush1.bf16.msra.mxu0 %v380
    %1608 = vmatprep.subr.bf16.mxu0 0
    %1609 = vmatpush2.bf16.msra.mxu0 0
    %1610 = vmatprep.subr.bf16.mxu0 0
    %1611 = vmatpush2.bf16.msra.mxu0 0
    %1612 = vmatprep.subr.bf16.mxu0 0
    %1613 = vmatpush2.bf16.msra.mxu0 0
    %1614 = vmatprep.subr.bf16.mxu0 0
    %1615 = vmatpush2.bf16.msra.mxu0 0
    %1616 = vmatprep.subr.bf16.mxu0 %v425
    %1617 = vmatpush2.bf16.msra.mxu0 %v424
    %1618 = vmatprep.subr.bf16.mxu0 %v421
    %1619 = vmatpush2.bf16.msra.mxu0 %v420
    %1620 = vmatprep.subr.bf16.mxu0 %v417
    %1621 = vmatpush2.bf16.msra.mxu0 %v416
    %1622 = vmatprep.subr.bf16.mxu0 %v413
    %1623 = vmatpush2.bf16.msra.mxu0 %v412
    %1624 = vmatprep.mubr.bf16.mxu0 %v1549
    %1625 = vmatmul.mubr.bf16.gmra.mxu0 %v1546
    %v1626 = vpop.f32.mrf.mxu0
    %v1627 = vadd.f32 %v225, %v1626
    %v1628 = vpop.f32.mrf.mxu0
    %v1629 = vadd.f32 %v229, %v1628
    %v1630 = vpop.f32.mrf.mxu0
    %v1631 = vpop.f32.mrf.mxu0
    %1632 = vdwg.mxu0
    %v1633 = vmax.f32 %v1586, 0.0
    %v1634 = vmax.f32 %v1588, 0.0
    %v1635 = vmax.f32 %v1627, 0.0
    %v1636 = vmax.f32 %v1629, 0.0
    %v1637 = vpack.c.bf16 %v1633, %v1633
    %v1638 = vpack.c.bf16 %v1634, %v1634
    %v1639 = vpack.c.bf16 %v1635, %v1635
    %v1640 = vpack.c.bf16 %v1636, %v1636
    %s1641 = scalar_lea.vmem [#allocation6], 896
    %v1642 = vld [vmem:[%s1641] sm:$0xff]
    %v1643 = vld [vmem:[%s1641 + $0x8] sm:$0xff]
    %v1644 = vld [vmem:[%s1641 + $0x10] sm:$0xff]
    %v1645 = vld [vmem:[%s1641 + $0x18] sm:$0xff]
    %v1646 = vld [vmem:[%s1641 + $0x20] sm:$0xff]
    %v1647 = vld [vmem:[%s1641 + $0x28] sm:$0xff]
    %v1648 = vld [vmem:[%s1641 + $0x30] sm:$0xff]
    %v1649 = vld [vmem:[%s1641 + $0x38] sm:$0xff]
    %v1650 = vld [vmem:[%s1641 + $0x40] sm:$0xff]
    %v1651 = vld [vmem:[%s1641 + $0x48] sm:$0xff]
    %v1652 = vld [vmem:[%s1641 + $0x50] sm:$0xff]
    %v1653 = vld [vmem:[%s1641 + $0x58] sm:$0xff]
    %v1654 = vld [vmem:[%s1641 + $0x60] sm:$0xff]
    %v1655 = vld [vmem:[%s1641 + $0x68] sm:$0xff]
    %v1656 = vld [vmem:[%s1641 + $0x70] sm:$0xff]
    %v1657 = vld [vmem:[%s1641 + $0x78] sm:$0xff]
    %v1658 = vld [vmem:[%s1641 + $0x80] sm:$0xff]
    %v1659 = vld [vmem:[%s1641 + $0x88] sm:$0xff]
    %v1660 = vld [vmem:[%s1641 + $0x90] sm:$0xff]
    %v1661 = vld [vmem:[%s1641 + $0x98] sm:$0xff]
    %v1662 = vld [vmem:[%s1641 + $0xa0] sm:$0xff]
    %v1663 = vld [vmem:[%s1641 + $0xa8] sm:$0xff]
    %v1664 = vld [vmem:[%s1641 + $0xb0] sm:$0xff]
    %v1665 = vld [vmem:[%s1641 + $0xb8] sm:$0xff]
    %v1666 = vld [vmem:[%s1641 + $0xc0] sm:$0xff]
    %v1667 = vld [vmem:[%s1641 + $0xc8] sm:$0xff]
    %v1668 = vld [vmem:[%s1641 + $0xd0] sm:$0xff]
    %v1669 = vld [vmem:[%s1641 + $0xd8] sm:$0xff]
    %v1670 = vld [vmem:[%s1641 + $0xe0] sm:$0xff]
    %v1671 = vld [vmem:[%s1641 + $0xe8] sm:$0xff]
    %v1672 = vld [vmem:[%s1641 + $0xf0] sm:$0xff]
    %v1673 = vld [vmem:[%s1641 + $0xf8] sm:$0xff]
    %v1674 = vld [vmem:[%s1641 + $0x100] sm:$0xff]
    %v1675 = vld [vmem:[%s1641 + $0x108] sm:$0xff]
    %v1676 = vld [vmem:[%s1641 + $0x110] sm:$0xff]
    %v1677 = vld [vmem:[%s1641 + $0x118] sm:$0xff]
    %v1678 = vld [vmem:[%s1641 + $0x120] sm:$0xff]
    %v1679 = vld [vmem:[%s1641 + $0x128] sm:$0xff]
    %v1680 = vld [vmem:[%s1641 + $0x130] sm:$0xff]
    %v1681 = vld [vmem:[%s1641 + $0x138] sm:$0xff]
    %v1682 = vld [vmem:[%s1641 + $0x140] sm:$0xff]
    %v1683 = vld [vmem:[%s1641 + $0x148] sm:$0xff]
    %v1684 = vld [vmem:[%s1641 + $0x150] sm:$0xff]
    %v1685 = vld [vmem:[%s1641 + $0x158] sm:$0xff]
    %v1686 = vld [vmem:[%s1641 + $0x160] sm:$0xff]
    %v1687 = vld [vmem:[%s1641 + $0x168] sm:$0xff]
    %v1688 = vld [vmem:[%s1641 + $0x170] sm:$0xff]
    %v1689 = vld [vmem:[%s1641 + $0x178] sm:$0xff]
    %v1690 = vld [vmem:[%s1641 + $0x180] sm:$0xff]
    %v1691 = vld [vmem:[%s1641 + $0x188] sm:$0xff]
    %v1692 = vld [vmem:[%s1641 + $0x190] sm:$0xff]
    %v1693 = vld [vmem:[%s1641 + $0x198] sm:$0xff]
    %v1694 = vld [vmem:[%s1641 + $0x1a0] sm:$0xff]
    %v1695 = vld [vmem:[%s1641 + $0x1a8] sm:$0xff]
    %v1696 = vld [vmem:[%s1641 + $0x1b0] sm:$0xff]
    %v1697 = vld [vmem:[%s1641 + $0x1b8] sm:$0xff]
    %v1754 = vunpack.c.l.b16 %v1642
    %v1755 = vunpack.c.h.b16 %v1642
    %v1756 = vunpack.c.l.b16 %v1643
    %v1757 = vunpack.c.h.b16 %v1643
    %v1758 = vunpack.c.l.b16 %v1644
    %v1759 = vunpack.c.h.b16 %v1644
    %v1760 = vunpack.c.l.b16 %v1645
    %v1761 = vunpack.c.h.b16 %v1645
    %v1762 = vunpack.c.l.b16 %v1646
    %v1763 = vunpack.c.h.b16 %v1646
    %v1764 = vunpack.c.l.b16 %v1647
    %v1765 = vunpack.c.h.b16 %v1647
    %v1766 = vunpack.c.l.b16 %v1648
    %v1767 = vunpack.c.h.b16 %v1648
    %v1768 = vunpack.c.l.b16 %v1649
    %v1769 = vunpack.c.h.b16 %v1649
    %v1770 = vunpack.c.l.b16 %v1650
    %v1771 = vunpack.c.h.b16 %v1650
    %v1772 = vunpack.c.l.b16 %v1651
    %v1773 = vunpack.c.h.b16 %v1651
    %v1774 = vunpack.c.l.b16 %v1652
    %v1775 = vunpack.c.h.b16 %v1652
    %v1776 = vunpack.c.l.b16 %v1653
    %v1777 = vunpack.c.h.b16 %v1653
    %v1778 = vunpack.c.l.b16 %v1654
    %v1779 = vunpack.c.h.b16 %v1654
    %v1780 = vunpack.c.l.b16 %v1655
    %v1781 = vunpack.c.h.b16 %v1655
    %v1782 = vunpack.c.l.b16 %v1656
    %v1783 = vunpack.c.h.b16 %v1656
    %v1784 = vunpack.c.l.b16 %v1657
    %v1785 = vunpack.c.h.b16 %v1657
    %v1786 = vunpack.c.l.b16 %v1658
    %v1787 = vunpack.c.h.b16 %v1658
    %v1788 = vunpack.c.l.b16 %v1659
    %v1789 = vunpack.c.h.b16 %v1659
    %v1790 = vunpack.c.l.b16 %v1660
    %v1791 = vunpack.c.h.b16 %v1660
    %v1792 = vunpack.c.l.b16 %v1661
    %v1793 = vunpack.c.h.b16 %v1661
    %v1794 = vunpack.c.l.b16 %v1662
    %v1795 = vunpack.c.h.b16 %v1662
    %v1796 = vunpack.c.l.b16 %v1663
    %v1797 = vunpack.c.h.b16 %v1663
    %v1798 = vunpack.c.l.b16 %v1664
    %v1799 = vunpack.c.h.b16 %v1664
    %v1800 = vunpack.c.l.b16 %v1665
    %v1801 = vunpack.c.h.b16 %v1665
    %v1802 = vunpack.c.l.b16 %v1666
    %v1803 = vunpack.c.h.b16 %v1666
    %v1804 = vunpack.c.l.b16 %v1667
    %v1805 = vunpack.c.h.b16 %v1667
    %v1806 = vunpack.c.l.b16 %v1668
    %v1807 = vunpack.c.h.b16 %v1668
    %v1808 = vunpack.c.l.b16 %v1669
    %v1809 = vunpack.c.h.b16 %v1669
    %v1810 = vunpack.c.l.b16 %v1670
    %v1811 = vunpack.c.h.b16 %v1670
    %v1812 = vunpack.c.l.b16 %v1671
    %v1813 = vunpack.c.h.b16 %v1671
    %v1814 = vunpack.c.l.b16 %v1672
    %v1815 = vunpack.c.h.b16 %v1672
    %v1816 = vunpack.c.l.b16 %v1673
    %v1817 = vunpack.c.h.b16 %v1673
    %v1818 = vunpack.c.l.b16 %v1674
    %v1819 = vunpack.c.h.b16 %v1674
    %v1820 = vunpack.c.l.b16 %v1675
    %v1821 = vunpack.c.h.b16 %v1675
    %v1822 = vunpack.c.l.b16 %v1676
    %v1823 = vunpack.c.h.b16 %v1676
    %v1824 = vunpack.c.l.b16 %v1677
    %v1825 = vunpack.c.h.b16 %v1677
    %v1826 = vunpack.c.l.b16 %v1678
    %v1827 = vunpack.c.h.b16 %v1678
    %v1828 = vunpack.c.l.b16 %v1679
    %v1829 = vunpack.c.h.b16 %v1679
    %v1830 = vunpack.c.l.b16 %v1680
    %v1831 = vunpack.c.h.b16 %v1680
    %v1832 = vunpack.c.l.b16 %v1681
    %v1833 = vunpack.c.h.b16 %v1681
    %v1834 = vunpack.c.l.b16 %v1682
    %v1835 = vunpack.c.h.b16 %v1682
    %v1836 = vunpack.c.l.b16 %v1683
    %v1837 = vunpack.c.h.b16 %v1683
    %v1838 = vunpack.c.l.b16 %v1684
    %v1839 = vunpack.c.h.b16 %v1684
    %v1840 = vunpack.c.l.b16 %v1685
    %v1841 = vunpack.c.h.b16 %v1685
    %v1842 = vunpack.c.l.b16 %v1686
    %v1843 = vunpack.c.h.b16 %v1686
    %v1844 = vunpack.c.l.b16 %v1687
    %v1845 = vunpack.c.h.b16 %v1687
    %v1846 = vunpack.c.l.b16 %v1688
    %v1847 = vunpack.c.h.b16 %v1688
    %v1848 = vunpack.c.l.b16 %v1689
    %v1849 = vunpack.c.h.b16 %v1689
    %v1850 = vunpack.c.l.b16 %v1690
    %v1851 = vunpack.c.h.b16 %v1690
    %v1852 = vunpack.c.l.b16 %v1691
    %v1853 = vunpack.c.h.b16 %v1691
    %v1854 = vunpack.c.l.b16 %v1692
    %v1855 = vunpack.c.h.b16 %v1692
    %v1856 = vunpack.c.l.b16 %v1693
    %v1857 = vunpack.c.h.b16 %v1693
    %v1858 = vunpack.c.l.b16 %v1694
    %v1859 = vunpack.c.h.b16 %v1694
    %v1860 = vunpack.c.l.b16 %v1695
    %v1861 = vunpack.c.h.b16 %v1695
    %v1862 = vunpack.c.l.b16 %v1696
    %v1863 = vunpack.c.h.b16 %v1696
    %v1864 = vunpack.c.l.b16 %v1697
    %v1865 = vunpack.c.h.b16 %v1697
    %v1866 = vpack.c.b16 %v1756, %v1754
    %v1867 = vpack.c.b16 %v1757, %v1755
    %v1868 = vpack.c.b16 %v1760, %v1758
    %v1869 = vpack.c.b16 %v1761, %v1759
    %v1870 = vpack.c.b16 %v1764, %v1762
    %v1871 = vpack.c.b16 %v1765, %v1763
    %v1872 = vpack.c.b16 %v1768, %v1766
    %v1873 = vpack.c.b16 %v1769, %v1767
    %v1874 = vpack.c.b16 %v1772, %v1770
    %v1875 = vpack.c.b16 %v1773, %v1771
    %v1876 = vpack.c.b16 %v1776, %v1774
    %v1877 = vpack.c.b16 %v1777, %v1775
    %v1878 = vpack.c.b16 %v1780, %v1778
    %v1879 = vpack.c.b16 %v1781, %v1779
    %v1880 = vpack.c.b16 %v1784, %v1782
    %v1881 = vpack.c.b16 %v1785, %v1783
    %v1882 = vpack.c.b16 %v1788, %v1786
    %v1883 = vpack.c.b16 %v1789, %v1787
    %v1884 = vpack.c.b16 %v1792, %v1790
    %v1885 = vpack.c.b16 %v1793, %v1791
    %v1886 = vpack.c.b16 %v1796, %v1794
    %v1887 = vpack.c.b16 %v1797, %v1795
    %v1888 = vpack.c.b16 %v1800, %v1798
    %v1889 = vpack.c.b16 %v1801, %v1799
    %v1890 = vpack.c.b16 %v1804, %v1802
    %v1891 = vpack.c.b16 %v1805, %v1803
    %v1892 = vpack.c.b16 %v1808, %v1806
    %v1893 = vpack.c.b16 %v1809, %v1807
    %v1894 = vpack.c.b16 %v1812, %v1810
    %v1895 = vpack.c.b16 %v1813, %v1811
    %v1896 = vpack.c.b16 %v1816, %v1814
    %v1897 = vpack.c.b16 %v1817, %v1815
    %v1898 = vpack.c.b16 %v1820, %v1818
    %v1899 = vpack.c.b16 %v1821, %v1819
    %v1900 = vpack.c.b16 %v1824, %v1822
    %v1901 = vpack.c.b16 %v1825, %v1823
    %v1902 = vpack.c.b16 %v1828, %v1826
    %v1903 = vpack.c.b16 %v1829, %v1827
    %v1904 = vpack.c.b16 %v1832, %v1830
    %v1905 = vpack.c.b16 %v1833, %v1831
    %v1906 = vpack.c.b16 %v1836, %v1834
    %v1907 = vpack.c.b16 %v1837, %v1835
    %v1908 = vpack.c.b16 %v1840, %v1838
    %v1909 = vpack.c.b16 %v1841, %v1839
    %v1910 = vpack.c.b16 %v1844, %v1842
    %v1911 = vpack.c.b16 %v1845, %v1843
    %v1912 = vpack.c.b16 %v1848, %v1846
    %v1913 = vpack.c.b16 %v1849, %v1847
    %v1914 = vpack.c.b16 %v1852, %v1850
    %v1915 = vpack.c.b16 %v1853, %v1851
    %v1916 = vpack.c.b16 %v1856, %v1854
    %v1917 = vpack.c.b16 %v1857, %v1855
    %v1918 = vpack.c.b16 %v1860, %v1858
    %v1919 = vpack.c.b16 %v1861, %v1859
    %v1920 = vpack.c.b16 %v1864, %v1862
    %v1921 = vpack.c.b16 %v1865, %v1863
    %v1979 = vsel %vm208, %v1640, 0
    %1981 = vmatprep.subr.bf16.mxu0 %v1881
    %1982 = vmatpush1.bf16.msra.mxu0 %v1880
    %1983 = vmatprep.subr.bf16.mxu0 %v1879
    %1984 = vmatpush1.bf16.msra.mxu0 %v1878
    %1985 = vmatprep.subr.bf16.mxu0 %v1877
    %1986 = vmatpush1.bf16.msra.mxu0 %v1876
    %1987 = vmatprep.subr.bf16.mxu0 %v1875
    %1988 = vmatpush1.bf16.msra.mxu0 %v1874
    %1989 = vmatprep.subr.bf16.mxu0 %v1873
    %1990 = vmatpush1.bf16.msra.mxu0 %v1872
    %1991 = vmatprep.subr.bf16.mxu0 %v1871
    %1992 = vmatpush1.bf16.msra.mxu0 %v1870
    %1993 = vmatprep.subr.bf16.mxu0 %v1869
    %1994 = vmatpush1.bf16.msra.mxu0 %v1868
    %1995 = vmatprep.subr.bf16.mxu0 %v1867
    %1996 = vmatpush1.bf16.msra.mxu0 %v1866
    %1997 = vmatprep.subr.bf16.mxu0 %v1897
    %1998 = vmatpush2.bf16.msra.mxu0 %v1896
    %1999 = vmatprep.subr.bf16.mxu0 %v1895
    %2000 = vmatpush2.bf16.msra.mxu0 %v1894
    %2001 = vmatprep.subr.bf16.mxu0 %v1893
    %2002 = vmatpush2.bf16.msra.mxu0 %v1892
    %2003 = vmatprep.subr.bf16.mxu0 %v1891
    %2004 = vmatpush2.bf16.msra.mxu0 %v1890
    %2005 = vmatprep.subr.bf16.mxu0 %v1889
    %2006 = vmatpush2.bf16.msra.mxu0 %v1888
    %2007 = vmatprep.subr.bf16.mxu0 %v1887
    %2008 = vmatpush2.bf16.msra.mxu0 %v1886
    %2009 = vmatprep.subr.bf16.mxu0 %v1885
    %2010 = vmatpush2.bf16.msra.mxu0 %v1884
    %2011 = vmatprep.subr.bf16.mxu0 %v1883
    %2012 = vmatpush2.bf16.msra.mxu0 %v1882
    %2013 = vmatprep.mubr.bf16.mxu0 %v1638
    %2014 = vmatmul.mubr.bf16.gmra.mxu0 %v1637
    %v2015 = vpop.f32.mrf.mxu0
    %v2016 = vadd.f32 0.0, %v2015
    %v2017 = vpop.f32.mrf.mxu0
    %v2018 = vadd.f32 0.0, %v2017
    %v2019 = vpop.f32.mrf.mxu0
    %v2020 = vpop.f32.mrf.mxu0
    %2021 = vdwg.mxu0
    %2022 = vmatprep.subr.bf16.mxu0 %v1913
    %2023 = vmatpush1.bf16.msra.mxu0 %v1912
    %2024 = vmatprep.subr.bf16.mxu0 %v1911
    %2025 = vmatpush1.bf16.msra.mxu0 %v1910
    %2026 = vmatprep.subr.bf16.mxu0 %v1909
    %2027 = vmatpush1.bf16.msra.mxu0 %v1908
    %2028 = vmatprep.subr.bf16.mxu0 %v1907
    %2029 = vmatpush1.bf16.msra.mxu0 %v1906
    %2030 = vmatprep.subr.bf16.mxu0 %v1905
    %2031 = vmatpush1.bf16.msra.mxu0 %v1904
    %2032 = vmatprep.subr.bf16.mxu0 %v1903
    %2033 = vmatpush1.bf16.msra.mxu0 %v1902
    %2034 = vmatprep.subr.bf16.mxu0 %v1901
    %2035 = vmatpush1.bf16.msra.mxu0 %v1900
    %2036 = vmatprep.subr.bf16.mxu0 %v1899
    %2037 = vmatpush1.bf16.msra.mxu0 %v1898
    %2038 = vmatprep.subr.bf16.mxu0 0
    %2039 = vmatpush2.bf16.msra.mxu0 0
    %2040 = vmatprep.subr.bf16.mxu0 0
    %2041 = vmatpush2.bf16.msra.mxu0 0
    %2042 = vmatprep.subr.bf16.mxu0 0
    %2043 = vmatpush2.bf16.msra.mxu0 0
    %2044 = vmatprep.subr.bf16.mxu0 0
    %2045 = vmatpush2.bf16.msra.mxu0 0
    %2046 = vmatprep.subr.bf16.mxu0 %v1921
    %2047 = vmatpush2.bf16.msra.mxu0 %v1920
    %2048 = vmatprep.subr.bf16.mxu0 %v1919
    %2049 = vmatpush2.bf16.msra.mxu0 %v1918
    %2050 = vmatprep.subr.bf16.mxu0 %v1917
    %2051 = vmatpush2.bf16.msra.mxu0 %v1916
    %2052 = vmatprep.subr.bf16.mxu0 %v1915
    %2053 = vmatpush2.bf16.msra.mxu0 %v1914
    %2054 = vmatprep.mubr.bf16.mxu0 %v1979
    %2055 = vmatmul.mubr.bf16.gmra.mxu0 %v1639
    %v2056 = vpop.f32.mrf.mxu0
    %v2057 = vadd.f32 %v2016, %v2056
    %v2058 = vpop.f32.mrf.mxu0
    %v2059 = vadd.f32 %v2018, %v2058
    %v2060 = vpop.f32.mrf.mxu0
    %v2061 = vpop.f32.mrf.mxu0
    %2062 = vdwg.mxu0
    %v2063 = vadd.f32 %v1520, %v2057
    %v2064 = vadd.f32 %v1522, %v2059
    %s2065 = scalar_lea.vmem %s0, 5
    %v2066 = vld [vmem:[%s2065] sm:$0x1]
    %v2069 = vunpack.c.l.s4 1966171168
    %v2070 = vunpack.c.0.s8 %v2069
    %v2071 = vlaneseq
    %v2072 = vshrl.u32 %v2071, 7
    %v2073 = vsub.s32 %v2070, %v2072
    %v2074 = vrot.slane %v1527, %v2073
    %v2076 = vunpack.c.l.s4 1966171168
    %v2077 = vunpack.c.0.s8 %v2076
    %v2078 = vlaneseq
    %v2079 = vshrl.u32 %v2078, 7
    %v2080 = vsub.s32 %v2077, %v2079
    %v2081 = vrot.slane %v2074, %v2080
    %2082 = vrot.lane.b32.xlu0 %v2081, 64
    %v2083 = vpop.permute.xlu0 %2082
    %v2085 = vsel %vm208, %v624, %v2083
    %v2088 = vsel %vm208, %v2066, 0
    %2090 = vmatprep.subr.bf16.mxu0 %v407
    %2091 = vmatpush1.bf16.msra.mxu0 %v406
    %2092 = vmatprep.subr.bf16.mxu0 %v403
    %2093 = vmatpush1.bf16.msra.mxu0 %v402
    %2094 = vmatprep.subr.bf16.mxu0 %v399
    %2095 = vmatpush1.bf16.msra.mxu0 %v398
    %2096 = vmatprep.subr.bf16.mxu0 %v395
    %2097 = vmatpush1.bf16.msra.mxu0 %v394
    %2098 = vmatprep.subr.bf16.mxu0 %v391
    %2099 = vmatpush1.bf16.msra.mxu0 %v390
    %2100 = vmatprep.subr.bf16.mxu0 %v387
    %2101 = vmatpush1.bf16.msra.mxu0 %v386
    %2102 = vmatprep.subr.bf16.mxu0 %v383
    %2103 = vmatpush1.bf16.msra.mxu0 %v382
    %2104 = vmatprep.subr.bf16.mxu0 %v379
    %2105 = vmatpush1.bf16.msra.mxu0 %v378
    %2106 = vmatprep.subr.bf16.mxu0 0
    %2107 = vmatpush2.bf16.msra.mxu0 0
    %2108 = vmatprep.subr.bf16.mxu0 0
    %2109 = vmatpush2.bf16.msra.mxu0 0
    %2110 = vmatprep.subr.bf16.mxu0 0
    %2111 = vmatpush2.bf16.msra.mxu0 0
    %2112 = vmatprep.subr.bf16.mxu0 0
    %2113 = vmatpush2.bf16.msra.mxu0 0
    %2114 = vmatprep.subr.bf16.mxu0 %v423
    %2115 = vmatpush2.bf16.msra.mxu0 %v422
    %2116 = vmatprep.subr.bf16.mxu0 %v419
    %2117 = vmatpush2.bf16.msra.mxu0 %v418
    %2118 = vmatprep.subr.bf16.mxu0 %v415
    %2119 = vmatpush2.bf16.msra.mxu0 %v414
    %2120 = vmatprep.subr.bf16.mxu0 %v411
    %2121 = vmatpush2.bf16.msra.mxu0 %v410
    %2122 = vmatprep.mubr.bf16.mxu0 %v2088
    %2123 = vmatmul.mubr.bf16.gmra.mxu0 %v2085
    %v2124 = vpop.f32.mrf.mxu0
    %v2125 = vadd.f32 %v217, %v2124
    %v2126 = vpop.f32.mrf.mxu0
    %v2127 = vadd.f32 %v221, %v2126
    %v2128 = vpop.f32.mrf.mxu0
    %v2129 = vpop.f32.mrf.mxu0
    %2130 = vdwg.mxu0
    %2131 = vmatprep.subr.bf16.mxu0 %v409
    %2132 = vmatpush1.bf16.msra.mxu0 %v408
    %2133 = vmatprep.subr.bf16.mxu0 %v405
    %2134 = vmatpush1.bf16.msra.mxu0 %v404
    %2135 = vmatprep.subr.bf16.mxu0 %v401
    %2136 = vmatpush1.bf16.msra.mxu0 %v400
    %2137 = vmatprep.subr.bf16.mxu0 %v397
    %2138 = vmatpush1.bf16.msra.mxu0 %v396
    %2139 = vmatprep.subr.bf16.mxu0 %v393
    %2140 = vmatpush1.bf16.msra.mxu0 %v392
    %2141 = vmatprep.subr.bf16.mxu0 %v389
    %2142 = vmatpush1.bf16.msra.mxu0 %v388
    %2143 = vmatprep.subr.bf16.mxu0 %v385
    %2144 = vmatpush1.bf16.msra.mxu0 %v384
    %2145 = vmatprep.subr.bf16.mxu0 %v381
    %2146 = vmatpush1.bf16.msra.mxu0 %v380
    %2147 = vmatprep.subr.bf16.mxu0 0
    %2148 = vmatpush2.bf16.msra.mxu0 0
    %2149 = vmatprep.subr.bf16.mxu0 0
    %2150 = vmatpush2.bf16.msra.mxu0 0
    %2151 = vmatprep.subr.bf16.mxu0 0
    %2152 = vmatpush2.bf16.msra.mxu0 0
    %2153 = vmatprep.subr.bf16.mxu0 0
    %2154 = vmatpush2.bf16.msra.mxu0 0
    %2155 = vmatprep.subr.bf16.mxu0 %v425
    %2156 = vmatpush2.bf16.msra.mxu0 %v424
    %2157 = vmatprep.subr.bf16.mxu0 %v421
    %2158 = vmatpush2.bf16.msra.mxu0 %v420
    %2159 = vmatprep.subr.bf16.mxu0 %v417
    %2160 = vmatpush2.bf16.msra.mxu0 %v416
    %2161 = vmatprep.subr.bf16.mxu0 %v413
    %2162 = vmatpush2.bf16.msra.mxu0 %v412
    %2163 = vmatprep.mubr.bf16.mxu0 %v2088
    %2164 = vmatmul.mubr.bf16.gmra.mxu0 %v2085
    %v2165 = vpop.f32.mrf.mxu0
    %v2166 = vadd.f32 %v225, %v2165
    %v2167 = vpop.f32.mrf.mxu0
    %v2168 = vadd.f32 %v229, %v2167
    %v2169 = vpop.f32.mrf.mxu0
    %v2170 = vpop.f32.mrf.mxu0
    %2171 = vdwg.mxu0
    %v2172 = vmax.f32 %v2125, 0.0
    %v2173 = vmax.f32 %v2127, 0.0
    %v2174 = vmax.f32 %v2166, 0.0
    %v2175 = vmax.f32 %v2168, 0.0
    %v2176 = vpack.c.bf16 %v2172, %v2172
    %v2177 = vpack.c.bf16 %v2173, %v2173
    %v2178 = vpack.c.bf16 %v2174, %v2174
    %v2179 = vpack.c.bf16 %v2175, %v2175
    %s2180 = scalar_lea.vmem [#allocation6], 1344
    %v2181 = vld [vmem:[%s2180] sm:$0xff]
    %v2182 = vld [vmem:[%s2180 + $0x8] sm:$0xff]
    %v2183 = vld [vmem:[%s2180 + $0x10] sm:$0xff]
    %v2184 = vld [vmem:[%s2180 + $0x18] sm:$0xff]
    %v2185 = vld [vmem:[%s2180 + $0x20] sm:$0xff]
    %v2186 = vld [vmem:[%s2180 + $0x28] sm:$0xff]
    %v2187 = vld [vmem:[%s2180 + $0x30] sm:$0xff]
    %v2188 = vld [vmem:[%s2180 + $0x38] sm:$0xff]
    %v2189 = vld [vmem:[%s2180 + $0x40] sm:$0xff]
    %v2190 = vld [vmem:[%s2180 + $0x48] sm:$0xff]
    %v2191 = vld [vmem:[%s2180 + $0x50] sm:$0xff]
    %v2192 = vld [vmem:[%s2180 + $0x58] sm:$0xff]
    %v2193 = vld [vmem:[%s2180 + $0x60] sm:$0xff]
    %v2194 = vld [vmem:[%s2180 + $0x68] sm:$0xff]
    %v2195 = vld [vmem:[%s2180 + $0x70] sm:$0xff]
    %v2196 = vld [vmem:[%s2180 + $0x78] sm:$0xff]
    %v2197 = vld [vmem:[%s2180 + $0x80] sm:$0xff]
    %v2198 = vld [vmem:[%s2180 + $0x88] sm:$0xff]
    %v2199 = vld [vmem:[%s2180 + $0x90] sm:$0xff]
    %v2200 = vld [vmem:[%s2180 + $0x98] sm:$0xff]
    %v2201 = vld [vmem:[%s2180 + $0xa0] sm:$0xff]
    %v2202 = vld [vmem:[%s2180 + $0xa8] sm:$0xff]
    %v2203 = vld [vmem:[%s2180 + $0xb0] sm:$0xff]
    %v2204 = vld [vmem:[%s2180 + $0xb8] sm:$0xff]
    %v2205 = vld [vmem:[%s2180 + $0xc0] sm:$0xff]
    %v2206 = vld [vmem:[%s2180 + $0xc8] sm:$0xff]
    %v2207 = vld [vmem:[%s2180 + $0xd0] sm:$0xff]
    %v2208 = vld [vmem:[%s2180 + $0xd8] sm:$0xff]
    %v2209 = vld [vmem:[%s2180 + $0xe0] sm:$0xff]
    %v2210 = vld [vmem:[%s2180 + $0xe8] sm:$0xff]
    %v2211 = vld [vmem:[%s2180 + $0xf0] sm:$0xff]
    %v2212 = vld [vmem:[%s2180 + $0xf8] sm:$0xff]
    %v2213 = vld [vmem:[%s2180 + $0x100] sm:$0xff]
    %v2214 = vld [vmem:[%s2180 + $0x108] sm:$0xff]
    %v2215 = vld [vmem:[%s2180 + $0x110] sm:$0xff]
    %v2216 = vld [vmem:[%s2180 + $0x118] sm:$0xff]
    %v2217 = vld [vmem:[%s2180 + $0x120] sm:$0xff]
    %v2218 = vld [vmem:[%s2180 + $0x128] sm:$0xff]
    %v2219 = vld [vmem:[%s2180 + $0x130] sm:$0xff]
    %v2220 = vld [vmem:[%s2180 + $0x138] sm:$0xff]
    %v2221 = vld [vmem:[%s2180 + $0x140] sm:$0xff]
    %v2222 = vld [vmem:[%s2180 + $0x148] sm:$0xff]
    %v2223 = vld [vmem:[%s2180 + $0x150] sm:$0xff]
    %v2224 = vld [vmem:[%s2180 + $0x158] sm:$0xff]
    %v2225 = vld [vmem:[%s2180 + $0x160] sm:$0xff]
    %v2226 = vld [vmem:[%s2180 + $0x168] sm:$0xff]
    %v2227 = vld [vmem:[%s2180 + $0x170] sm:$0xff]
    %v2228 = vld [vmem:[%s2180 + $0x178] sm:$0xff]
    %v2229 = vld [vmem:[%s2180 + $0x180] sm:$0xff]
    %v2230 = vld [vmem:[%s2180 + $0x188] sm:$0xff]
    %v2231 = vld [vmem:[%s2180 + $0x190] sm:$0xff]
    %v2232 = vld [vmem:[%s2180 + $0x198] sm:$0xff]
    %v2233 = vld [vmem:[%s2180 + $0x1a0] sm:$0xff]
    %v2234 = vld [vmem:[%s2180 + $0x1a8] sm:$0xff]
    %v2235 = vld [vmem:[%s2180 + $0x1b0] sm:$0xff]
    %v2236 = vld [vmem:[%s2180 + $0x1b8] sm:$0xff]
    %v2293 = vunpack.c.l.b16 %v2181
    %v2294 = vunpack.c.h.b16 %v2181
    %v2295 = vunpack.c.l.b16 %v2182
    %v2296 = vunpack.c.h.b16 %v2182
    %v2297 = vunpack.c.l.b16 %v2183
    %v2298 = vunpack.c.h.b16 %v2183
    %v2299 = vunpack.c.l.b16 %v2184
    %v2300 = vunpack.c.h.b16 %v2184
    %v2301 = vunpack.c.l.b16 %v2185
    %v2302 = vunpack.c.h.b16 %v2185
    %v2303 = vunpack.c.l.b16 %v2186
    %v2304 = vunpack.c.h.b16 %v2186
    %v2305 = vunpack.c.l.b16 %v2187
    %v2306 = vunpack.c.h.b16 %v2187
    %v2307 = vunpack.c.l.b16 %v2188
    %v2308 = vunpack.c.h.b16 %v2188
    %v2309 = vunpack.c.l.b16 %v2189
    %v2310 = vunpack.c.h.b16 %v2189
    %v2311 = vunpack.c.l.b16 %v2190
    %v2312 = vunpack.c.h.b16 %v2190
    %v2313 = vunpack.c.l.b16 %v2191
    %v2314 = vunpack.c.h.b16 %v2191
    %v2315 = vunpack.c.l.b16 %v2192
    %v2316 = vunpack.c.h.b16 %v2192
    %v2317 = vunpack.c.l.b16 %v2193
    %v2318 = vunpack.c.h.b16 %v2193
    %v2319 = vunpack.c.l.b16 %v2194
    %v2320 = vunpack.c.h.b16 %v2194
    %v2321 = vunpack.c.l.b16 %v2195
    %v2322 = vunpack.c.h.b16 %v2195
    %v2323 = vunpack.c.l.b16 %v2196
    %v2324 = vunpack.c.h.b16 %v2196
    %v2325 = vunpack.c.l.b16 %v2197
    %v2326 = vunpack.c.h.b16 %v2197
    %v2327 = vunpack.c.l.b16 %v2198
    %v2328 = vunpack.c.h.b16 %v2198
    %v2329 = vunpack.c.l.b16 %v2199
    %v2330 = vunpack.c.h.b16 %v2199
    %v2331 = vunpack.c.l.b16 %v2200
    %v2332 = vunpack.c.h.b16 %v2200
    %v2333 = vunpack.c.l.b16 %v2201
    %v2334 = vunpack.c.h.b16 %v2201
    %v2335 = vunpack.c.l.b16 %v2202
    %v2336 = vunpack.c.h.b16 %v2202
    %v2337 = vunpack.c.l.b16 %v2203
    %v2338 = vunpack.c.h.b16 %v2203
    %v2339 = vunpack.c.l.b16 %v2204
    %v2340 = vunpack.c.h.b16 %v2204
    %v2341 = vunpack.c.l.b16 %v2205
    %v2342 = vunpack.c.h.b16 %v2205
    %v2343 = vunpack.c.l.b16 %v2206
    %v2344 = vunpack.c.h.b16 %v2206
    %v2345 = vunpack.c.l.b16 %v2207
    %v2346 = vunpack.c.h.b16 %v2207
    %v2347 = vunpack.c.l.b16 %v2208
    %v2348 = vunpack.c.h.b16 %v2208
    %v2349 = vunpack.c.l.b16 %v2209
    %v2350 = vunpack.c.h.b16 %v2209
    %v2351 = vunpack.c.l.b16 %v2210
    %v2352 = vunpack.c.h.b16 %v2210
    %v2353 = vunpack.c.l.b16 %v2211
    %v2354 = vunpack.c.h.b16 %v2211
    %v2355 = vunpack.c.l.b16 %v2212
    %v2356 = vunpack.c.h.b16 %v2212
    %v2357 = vunpack.c.l.b16 %v2213
    %v2358 = vunpack.c.h.b16 %v2213
    %v2359 = vunpack.c.l.b16 %v2214
    %v2360 = vunpack.c.h.b16 %v2214
    %v2361 = vunpack.c.l.b16 %v2215
    %v2362 = vunpack.c.h.b16 %v2215
    %v2363 = vunpack.c.l.b16 %v2216
    %v2364 = vunpack.c.h.b16 %v2216
    %v2365 = vunpack.c.l.b16 %v2217
    %v2366 = vunpack.c.h.b16 %v2217
    %v2367 = vunpack.c.l.b16 %v2218
    %v2368 = vunpack.c.h.b16 %v2218
    %v2369 = vunpack.c.l.b16 %v2219
    %v2370 = vunpack.c.h.b16 %v2219
    %v2371 = vunpack.c.l.b16 %v2220
    %v2372 = vunpack.c.h.b16 %v2220
    %v2373 = vunpack.c.l.b16 %v2221
    %v2374 = vunpack.c.h.b16 %v2221
    %v2375 = vunpack.c.l.b16 %v2222
    %v2376 = vunpack.c.h.b16 %v2222
    %v2377 = vunpack.c.l.b16 %v2223
    %v2378 = vunpack.c.h.b16 %v2223
    %v2379 = vunpack.c.l.b16 %v2224
    %v2380 = vunpack.c.h.b16 %v2224
    %v2381 = vunpack.c.l.b16 %v2225
    %v2382 = vunpack.c.h.b16 %v2225
    %v2383 = vunpack.c.l.b16 %v2226
    %v2384 = vunpack.c.h.b16 %v2226
    %v2385 = vunpack.c.l.b16 %v2227
    %v2386 = vunpack.c.h.b16 %v2227
    %v2387 = vunpack.c.l.b16 %v2228
    %v2388 = vunpack.c.h.b16 %v2228
    %v2389 = vunpack.c.l.b16 %v2229
    %v2390 = vunpack.c.h.b16 %v2229
    %v2391 = vunpack.c.l.b16 %v2230
    %v2392 = vunpack.c.h.b16 %v2230
    %v2393 = vunpack.c.l.b16 %v2231
    %v2394 = vunpack.c.h.b16 %v2231
    %v2395 = vunpack.c.l.b16 %v2232
    %v2396 = vunpack.c.h.b16 %v2232
    %v2397 = vunpack.c.l.b16 %v2233
    %v2398 = vunpack.c.h.b16 %v2233
    %v2399 = vunpack.c.l.b16 %v2234
    %v2400 = vunpack.c.h.b16 %v2234
    %v2401 = vunpack.c.l.b16 %v2235
    %v2402 = vunpack.c.h.b16 %v2235
    %v2403 = vunpack.c.l.b16 %v2236
    %v2404 = vunpack.c.h.b16 %v2236
    %v2405 = vpack.c.b16 %v2295, %v2293
    %v2406 = vpack.c.b16 %v2296, %v2294
    %v2407 = vpack.c.b16 %v2299, %v2297
    %v2408 = vpack.c.b16 %v2300, %v2298
    %v2409 = vpack.c.b16 %v2303, %v2301
    %v2410 = vpack.c.b16 %v2304, %v2302
    %v2411 = vpack.c.b16 %v2307, %v2305
    %v2412 = vpack.c.b16 %v2308, %v2306
    %v2413 = vpack.c.b16 %v2311, %v2309
    %v2414 = vpack.c.b16 %v2312, %v2310
    %v2415 = vpack.c.b16 %v2315, %v2313
    %v2416 = vpack.c.b16 %v2316, %v2314
    %v2417 = vpack.c.b16 %v2319, %v2317
    %v2418 = vpack.c.b16 %v2320, %v2318
    %v2419 = vpack.c.b16 %v2323, %v2321
    %v2420 = vpack.c.b16 %v2324, %v2322
    %v2421 = vpack.c.b16 %v2327, %v2325
    %v2422 = vpack.c.b16 %v2328, %v2326
    %v2423 = vpack.c.b16 %v2331, %v2329
    %v2424 = vpack.c.b16 %v2332, %v2330
    %v2425 = vpack.c.b16 %v2335, %v2333
    %v2426 = vpack.c.b16 %v2336, %v2334
    %v2427 = vpack.c.b16 %v2339, %v2337
    %v2428 = vpack.c.b16 %v2340, %v2338
    %v2429 = vpack.c.b16 %v2343, %v2341
    %v2430 = vpack.c.b16 %v2344, %v2342
    %v2431 = vpack.c.b16 %v2347, %v2345
    %v2432 = vpack.c.b16 %v2348, %v2346
    %v2433 = vpack.c.b16 %v2351, %v2349
    %v2434 = vpack.c.b16 %v2352, %v2350
    %v2435 = vpack.c.b16 %v2355, %v2353
    %v2436 = vpack.c.b16 %v2356, %v2354
    %v2437 = vpack.c.b16 %v2359, %v2357
    %v2438 = vpack.c.b16 %v2360, %v2358
    %v2439 = vpack.c.b16 %v2363, %v2361
    %v2440 = vpack.c.b16 %v2364, %v2362
    %v2441 = vpack.c.b16 %v2367, %v2365
    %v2442 = vpack.c.b16 %v2368, %v2366
    %v2443 = vpack.c.b16 %v2371, %v2369
    %v2444 = vpack.c.b16 %v2372, %v2370
    %v2445 = vpack.c.b16 %v2375, %v2373
    %v2446 = vpack.c.b16 %v2376, %v2374
    %v2447 = vpack.c.b16 %v2379, %v2377
    %v2448 = vpack.c.b16 %v2380, %v2378
    %v2449 = vpack.c.b16 %v2383, %v2381
    %v2450 = vpack.c.b16 %v2384, %v2382
    %v2451 = vpack.c.b16 %v2387, %v2385
    %v2452 = vpack.c.b16 %v2388, %v2386
    %v2453 = vpack.c.b16 %v2391, %v2389
    %v2454 = vpack.c.b16 %v2392, %v2390
    %v2455 = vpack.c.b16 %v2395, %v2393
    %v2456 = vpack.c.b16 %v2396, %v2394
    %v2457 = vpack.c.b16 %v2399, %v2397
    %v2458 = vpack.c.b16 %v2400, %v2398
    %v2459 = vpack.c.b16 %v2403, %v2401
    %v2460 = vpack.c.b16 %v2404, %v2402
    %v2518 = vsel %vm208, %v2179, 0
    %2520 = vmatprep.subr.bf16.mxu0 %v2420
    %2521 = vmatpush1.bf16.msra.mxu0 %v2419
    %2522 = vmatprep.subr.bf16.mxu0 %v2418
    %2523 = vmatpush1.bf16.msra.mxu0 %v2417
    %2524 = vmatprep.subr.bf16.mxu0 %v2416
    %2525 = vmatpush1.bf16.msra.mxu0 %v2415
    %2526 = vmatprep.subr.bf16.mxu0 %v2414
    %2527 = vmatpush1.bf16.msra.mxu0 %v2413
    %2528 = vmatprep.subr.bf16.mxu0 %v2412
    %2529 = vmatpush1.bf16.msra.mxu0 %v2411
    %2530 = vmatprep.subr.bf16.mxu0 %v2410
    %2531 = vmatpush1.bf16.msra.mxu0 %v2409
    %2532 = vmatprep.subr.bf16.mxu0 %v2408
    %2533 = vmatpush1.bf16.msra.mxu0 %v2407
    %2534 = vmatprep.subr.bf16.mxu0 %v2406
    %2535 = vmatpush1.bf16.msra.mxu0 %v2405
    %2536 = vmatprep.subr.bf16.mxu0 %v2436
    %2537 = vmatpush2.bf16.msra.mxu0 %v2435
    %2538 = vmatprep.subr.bf16.mxu0 %v2434
    %2539 = vmatpush2.bf16.msra.mxu0 %v2433
    %2540 = vmatprep.subr.bf16.mxu0 %v2432
    %2541 = vmatpush2.bf16.msra.mxu0 %v2431
    %2542 = vmatprep.subr.bf16.mxu0 %v2430
    %2543 = vmatpush2.bf16.msra.mxu0 %v2429
    %2544 = vmatprep.subr.bf16.mxu0 %v2428
    %2545 = vmatpush2.bf16.msra.mxu0 %v2427
    %2546 = vmatprep.subr.bf16.mxu0 %v2426
    %2547 = vmatpush2.bf16.msra.mxu0 %v2425
    %2548 = vmatprep.subr.bf16.mxu0 %v2424
    %2549 = vmatpush2.bf16.msra.mxu0 %v2423
    %2550 = vmatprep.subr.bf16.mxu0 %v2422
    %2551 = vmatpush2.bf16.msra.mxu0 %v2421
    %2552 = vmatprep.mubr.bf16.mxu0 %v2177
    %2553 = vmatmul.mubr.bf16.gmra.mxu0 %v2176
    %v2554 = vpop.f32.mrf.mxu0
    %v2555 = vadd.f32 0.0, %v2554
    %v2556 = vpop.f32.mrf.mxu0
    %v2557 = vadd.f32 0.0, %v2556
    %v2558 = vpop.f32.mrf.mxu0
    %v2559 = vpop.f32.mrf.mxu0
    %2560 = vdwg.mxu0
    %2561 = vmatprep.subr.bf16.mxu0 %v2452
    %2562 = vmatpush1.bf16.msra.mxu0 %v2451
    %2563 = vmatprep.subr.bf16.mxu0 %v2450
    %2564 = vmatpush1.bf16.msra.mxu0 %v2449
    %2565 = vmatprep.subr.bf16.mxu0 %v2448
    %2566 = vmatpush1.bf16.msra.mxu0 %v2447
    %2567 = vmatprep.subr.bf16.mxu0 %v2446
    %2568 = vmatpush1.bf16.msra.mxu0 %v2445
    %2569 = vmatprep.subr.bf16.mxu0 %v2444
    %2570 = vmatpush1.bf16.msra.mxu0 %v2443
    %2571 = vmatprep.subr.bf16.mxu0 %v2442
    %2572 = vmatpush1.bf16.msra.mxu0 %v2441
    %2573 = vmatprep.subr.bf16.mxu0 %v2440
    %2574 = vmatpush1.bf16.msra.mxu0 %v2439
    %2575 = vmatprep.subr.bf16.mxu0 %v2438
    %2576 = vmatpush1.bf16.msra.mxu0 %v2437
    %2577 = vmatprep.subr.bf16.mxu0 0
    %2578 = vmatpush2.bf16.msra.mxu0 0
    %2579 = vmatprep.subr.bf16.mxu0 0
    %2580 = vmatpush2.bf16.msra.mxu0 0
    %2581 = vmatprep.subr.bf16.mxu0 0
    %2582 = vmatpush2.bf16.msra.mxu0 0
    %2583 = vmatprep.subr.bf16.mxu0 0
    %2584 = vmatpush2.bf16.msra.mxu0 0
    %2585 = vmatprep.subr.bf16.mxu0 %v2460
    %2586 = vmatpush2.bf16.msra.mxu0 %v2459
    %2587 = vmatprep.subr.bf16.mxu0 %v2458
    %2588 = vmatpush2.bf16.msra.mxu0 %v2457
    %2589 = vmatprep.subr.bf16.mxu0 %v2456
    %2590 = vmatpush2.bf16.msra.mxu0 %v2455
    %2591 = vmatprep.subr.bf16.mxu0 %v2454
    %2592 = vmatpush2.bf16.msra.mxu0 %v2453
    %2593 = vmatprep.mubr.bf16.mxu0 %v2518
    %2594 = vmatmul.mubr.bf16.gmra.mxu0 %v2178
    %v2595 = vpop.f32.mrf.mxu0
    %v2596 = vadd.f32 %v2555, %v2595
    %v2597 = vpop.f32.mrf.mxu0
    %v2598 = vadd.f32 %v2557, %v2597
    %v2599 = vpop.f32.mrf.mxu0
    %v2600 = vpop.f32.mrf.mxu0
    %2601 = vdwg.mxu0
    %v2602 = vadd.f32 %v2063, %v2596
    %v2603 = vadd.f32 %v2064, %v2598
    %s2604 = scalar_lea.vmem %s0, 6
    %v2605 = vld [vmem:[%s2604] sm:$0x1]
    %v2608 = vunpack.c.l.s4 1966171168
    %v2609 = vunpack.c.0.s8 %v2608
    %v2610 = vlaneseq
    %v2611 = vshrl.u32 %v2610, 7
    %v2612 = vsub.s32 %v2609, %v2611
    %v2613 = vrot.slane %v2066, %v2612
    %v2615 = vunpack.c.l.s4 1966171168
    %v2616 = vunpack.c.0.s8 %v2615
    %v2617 = vlaneseq
    %v2618 = vshrl.u32 %v2617, 7
    %v2619 = vsub.s32 %v2616, %v2618
    %v2620 = vrot.slane %v2613, %v2619
    %2621 = vrot.lane.b32.xlu0 %v2620, 64
    %v2622 = vpop.permute.xlu0 %2621
    %v2624 = vsel %vm208, %v1527, %v2622
    %v2627 = vsel %vm208, %v2605, 0
    %2629 = vmatprep.subr.bf16.mxu0 %v407
    %2630 = vmatpush1.bf16.msra.mxu0 %v406
    %2631 = vmatprep.subr.bf16.mxu0 %v403
    %2632 = vmatpush1.bf16.msra.mxu0 %v402
    %2633 = vmatprep.subr.bf16.mxu0 %v399
    %2634 = vmatpush1.bf16.msra.mxu0 %v398
    %2635 = vmatprep.subr.bf16.mxu0 %v395
    %2636 = vmatpush1.bf16.msra.mxu0 %v394
    %2637 = vmatprep.subr.bf16.mxu0 %v391
    %2638 = vmatpush1.bf16.msra.mxu0 %v390
    %2639 = vmatprep.subr.bf16.mxu0 %v387
    %2640 = vmatpush1.bf16.msra.mxu0 %v386
    %2641 = vmatprep.subr.bf16.mxu0 %v383
    %2642 = vmatpush1.bf16.msra.mxu0 %v382
    %2643 = vmatprep.subr.bf16.mxu0 %v379
    %2644 = vmatpush1.bf16.msra.mxu0 %v378
    %2645 = vmatprep.subr.bf16.mxu0 0
    %2646 = vmatpush2.bf16.msra.mxu0 0
    %2647 = vmatprep.subr.bf16.mxu0 0
    %2648 = vmatpush2.bf16.msra.mxu0 0
    %2649 = vmatprep.subr.bf16.mxu0 0
    %2650 = vmatpush2.bf16.msra.mxu0 0
    %2651 = vmatprep.subr.bf16.mxu0 0
    %2652 = vmatpush2.bf16.msra.mxu0 0
    %2653 = vmatprep.subr.bf16.mxu0 %v423
    %2654 = vmatpush2.bf16.msra.mxu0 %v422
    %2655 = vmatprep.subr.bf16.mxu0 %v419
    %2656 = vmatpush2.bf16.msra.mxu0 %v418
    %2657 = vmatprep.subr.bf16.mxu0 %v415
    %2658 = vmatpush2.bf16.msra.mxu0 %v414
    %2659 = vmatprep.subr.bf16.mxu0 %v411
    %2660 = vmatpush2.bf16.msra.mxu0 %v410
    %2661 = vmatprep.mubr.bf16.mxu0 %v2627
    %2662 = vmatmul.mubr.bf16.gmra.mxu0 %v2624
    %v2663 = vpop.f32.mrf.mxu0
    %v2664 = vadd.f32 %v217, %v2663
    %v2665 = vpop.f32.mrf.mxu0
    %v2666 = vadd.f32 %v221, %v2665
    %v2667 = vpop.f32.mrf.mxu0
    %v2668 = vpop.f32.mrf.mxu0
    %2669 = vdwg.mxu0
    %2670 = vmatprep.subr.bf16.mxu0 %v409
    %2671 = vmatpush1.bf16.msra.mxu0 %v408
    %2672 = vmatprep.subr.bf16.mxu0 %v405
    %2673 = vmatpush1.bf16.msra.mxu0 %v404
    %2674 = vmatprep.subr.bf16.mxu0 %v401
    %2675 = vmatpush1.bf16.msra.mxu0 %v400
    %2676 = vmatprep.subr.bf16.mxu0 %v397
    %2677 = vmatpush1.bf16.msra.mxu0 %v396
    %2678 = vmatprep.subr.bf16.mxu0 %v393
    %2679 = vmatpush1.bf16.msra.mxu0 %v392
    %2680 = vmatprep.subr.bf16.mxu0 %v389
    %2681 = vmatpush1.bf16.msra.mxu0 %v388
    %2682 = vmatprep.subr.bf16.mxu0 %v385
    %2683 = vmatpush1.bf16.msra.mxu0 %v384
    %2684 = vmatprep.subr.bf16.mxu0 %v381
    %2685 = vmatpush1.bf16.msra.mxu0 %v380
    %2686 = vmatprep.subr.bf16.mxu0 0
    %2687 = vmatpush2.bf16.msra.mxu0 0
    %2688 = vmatprep.subr.bf16.mxu0 0
    %2689 = vmatpush2.bf16.msra.mxu0 0
    %2690 = vmatprep.subr.bf16.mxu0 0
    %2691 = vmatpush2.bf16.msra.mxu0 0
    %2692 = vmatprep.subr.bf16.mxu0 0
    %2693 = vmatpush2.bf16.msra.mxu0 0
    %2694 = vmatprep.subr.bf16.mxu0 %v425
    %2695 = vmatpush2.bf16.msra.mxu0 %v424
    %2696 = vmatprep.subr.bf16.mxu0 %v421
    %2697 = vmatpush2.bf16.msra.mxu0 %v420
    %2698 = vmatprep.subr.bf16.mxu0 %v417
    %2699 = vmatpush2.bf16.msra.mxu0 %v416
    %2700 = vmatprep.subr.bf16.mxu0 %v413
    %2701 = vmatpush2.bf16.msra.mxu0 %v412
    %2702 = vmatprep.mubr.bf16.mxu0 %v2627
    %2703 = vmatmul.mubr.bf16.gmra.mxu0 %v2624
    %v2704 = vpop.f32.mrf.mxu0
    %v2705 = vadd.f32 %v225, %v2704
    %v2706 = vpop.f32.mrf.mxu0
    %v2707 = vadd.f32 %v229, %v2706
    %v2708 = vpop.f32.mrf.mxu0
    %v2709 = vpop.f32.mrf.mxu0
    %2710 = vdwg.mxu0
    %v2711 = vmax.f32 %v2664, 0.0
    %v2712 = vmax.f32 %v2666, 0.0
    %v2713 = vmax.f32 %v2705, 0.0
    %v2714 = vmax.f32 %v2707, 0.0
    %v2715 = vpack.c.bf16 %v2711, %v2711
    %v2716 = vpack.c.bf16 %v2712, %v2712
    %v2717 = vpack.c.bf16 %v2713, %v2713
    %v2718 = vpack.c.bf16 %v2714, %v2714
    %s2719 = scalar_lea.vmem [#allocation6], 1792
    %v2720 = vld [vmem:[%s2719] sm:$0xff]
    %v2721 = vld [vmem:[%s2719 + $0x8] sm:$0xff]
    %v2722 = vld [vmem:[%s2719 + $0x10] sm:$0xff]
    %v2723 = vld [vmem:[%s2719 + $0x18] sm:$0xff]
    %v2724 = vld [vmem:[%s2719 + $0x20] sm:$0xff]
    %v2725 = vld [vmem:[%s2719 + $0x28] sm:$0xff]
    %v2726 = vld [vmem:[%s2719 + $0x30] sm:$0xff]
    %v2727 = vld [vmem:[%s2719 + $0x38] sm:$0xff]
    %v2728 = vld [vmem:[%s2719 + $0x40] sm:$0xff]
    %v2729 = vld [vmem:[%s2719 + $0x48] sm:$0xff]
    %v2730 = vld [vmem:[%s2719 + $0x50] sm:$0xff]
    %v2731 = vld [vmem:[%s2719 + $0x58] sm:$0xff]
    %v2732 = vld [vmem:[%s2719 + $0x60] sm:$0xff]
    %v2733 = vld [vmem:[%s2719 + $0x68] sm:$0xff]
    %v2734 = vld [vmem:[%s2719 + $0x70] sm:$0xff]
    %v2735 = vld [vmem:[%s2719 + $0x78] sm:$0xff]
    %v2736 = vld [vmem:[%s2719 + $0x80] sm:$0xff]
    %v2737 = vld [vmem:[%s2719 + $0x88] sm:$0xff]
    %v2738 = vld [vmem:[%s2719 + $0x90] sm:$0xff]
    %v2739 = vld [vmem:[%s2719 + $0x98] sm:$0xff]
    %v2740 = vld [vmem:[%s2719 + $0xa0] sm:$0xff]
    %v2741 = vld [vmem:[%s2719 + $0xa8] sm:$0xff]
    %v2742 = vld [vmem:[%s2719 + $0xb0] sm:$0xff]
    %v2743 = vld [vmem:[%s2719 + $0xb8] sm:$0xff]
    %v2744 = vld [vmem:[%s2719 + $0xc0] sm:$0xff]
    %v2745 = vld [vmem:[%s2719 + $0xc8] sm:$0xff]
    %v2746 = vld [vmem:[%s2719 + $0xd0] sm:$0xff]
    %v2747 = vld [vmem:[%s2719 + $0xd8] sm:$0xff]
    %v2748 = vld [vmem:[%s2719 + $0xe0] sm:$0xff]
    %v2749 = vld [vmem:[%s2719 + $0xe8] sm:$0xff]
    %v2750 = vld [vmem:[%s2719 + $0xf0] sm:$0xff]
    %v2751 = vld [vmem:[%s2719 + $0xf8] sm:$0xff]
    %v2752 = vld [vmem:[%s2719 + $0x100] sm:$0xff]
    %v2753 = vld [vmem:[%s2719 + $0x108] sm:$0xff]
    %v2754 = vld [vmem:[%s2719 + $0x110] sm:$0xff]
    %v2755 = vld [vmem:[%s2719 + $0x118] sm:$0xff]
    %v2756 = vld [vmem:[%s2719 + $0x120] sm:$0xff]
    %v2757 = vld [vmem:[%s2719 + $0x128] sm:$0xff]
    %v2758 = vld [vmem:[%s2719 + $0x130] sm:$0xff]
    %v2759 = vld [vmem:[%s2719 + $0x138] sm:$0xff]
    %v2760 = vld [vmem:[%s2719 + $0x140] sm:$0xff]
    %v2761 = vld [vmem:[%s2719 + $0x148] sm:$0xff]
    %v2762 = vld [vmem:[%s2719 + $0x150] sm:$0xff]
    %v2763 = vld [vmem:[%s2719 + $0x158] sm:$0xff]
    %v2764 = vld [vmem:[%s2719 + $0x160] sm:$0xff]
    %v2765 = vld [vmem:[%s2719 + $0x168] sm:$0xff]
    %v2766 = vld [vmem:[%s2719 + $0x170] sm:$0xff]
    %v2767 = vld [vmem:[%s2719 + $0x178] sm:$0xff]
    %v2768 = vld [vmem:[%s2719 + $0x180] sm:$0xff]
    %v2769 = vld [vmem:[%s2719 + $0x188] sm:$0xff]
    %v2770 = vld [vmem:[%s2719 + $0x190] sm:$0xff]
    %v2771 = vld [vmem:[%s2719 + $0x198] sm:$0xff]
    %v2772 = vld [vmem:[%s2719 + $0x1a0] sm:$0xff]
    %v2773 = vld [vmem:[%s2719 + $0x1a8] sm:$0xff]
    %v2774 = vld [vmem:[%s2719 + $0x1b0] sm:$0xff]
    %v2775 = vld [vmem:[%s2719 + $0x1b8] sm:$0xff]
    %v2832 = vunpack.c.l.b16 %v2720
    %v2833 = vunpack.c.h.b16 %v2720
    %v2834 = vunpack.c.l.b16 %v2721
    %v2835 = vunpack.c.h.b16 %v2721
    %v2836 = vunpack.c.l.b16 %v2722
    %v2837 = vunpack.c.h.b16 %v2722
    %v2838 = vunpack.c.l.b16 %v2723
    %v2839 = vunpack.c.h.b16 %v2723
    %v2840 = vunpack.c.l.b16 %v2724
    %v2841 = vunpack.c.h.b16 %v2724
    %v2842 = vunpack.c.l.b16 %v2725
    %v2843 = vunpack.c.h.b16 %v2725
    %v2844 = vunpack.c.l.b16 %v2726
    %v2845 = vunpack.c.h.b16 %v2726
    %v2846 = vunpack.c.l.b16 %v2727
    %v2847 = vunpack.c.h.b16 %v2727
    %v2848 = vunpack.c.l.b16 %v2728
    %v2849 = vunpack.c.h.b16 %v2728
    %v2850 = vunpack.c.l.b16 %v2729
    %v2851 = vunpack.c.h.b16 %v2729
    %v2852 = vunpack.c.l.b16 %v2730
    %v2853 = vunpack.c.h.b16 %v2730
    %v2854 = vunpack.c.l.b16 %v2731
    %v2855 = vunpack.c.h.b16 %v2731
    %v2856 = vunpack.c.l.b16 %v2732
    %v2857 = vunpack.c.h.b16 %v2732
    %v2858 = vunpack.c.l.b16 %v2733
    %v2859 = vunpack.c.h.b16 %v2733
    %v2860 = vunpack.c.l.b16 %v2734
    %v2861 = vunpack.c.h.b16 %v2734
    %v2862 = vunpack.c.l.b16 %v2735
    %v2863 = vunpack.c.h.b16 %v2735
    %v2864 = vunpack.c.l.b16 %v2736
    %v2865 = vunpack.c.h.b16 %v2736
    %v2866 = vunpack.c.l.b16 %v2737
    %v2867 = vunpack.c.h.b16 %v2737
    %v2868 = vunpack.c.l.b16 %v2738
    %v2869 = vunpack.c.h.b16 %v2738
    %v2870 = vunpack.c.l.b16 %v2739
    %v2871 = vunpack.c.h.b16 %v2739
    %v2872 = vunpack.c.l.b16 %v2740
    %v2873 = vunpack.c.h.b16 %v2740
    %v2874 = vunpack.c.l.b16 %v2741
    %v2875 = vunpack.c.h.b16 %v2741
    %v2876 = vunpack.c.l.b16 %v2742
    %v2877 = vunpack.c.h.b16 %v2742
    %v2878 = vunpack.c.l.b16 %v2743
    %v2879 = vunpack.c.h.b16 %v2743
    %v2880 = vunpack.c.l.b16 %v2744
    %v2881 = vunpack.c.h.b16 %v2744
    %v2882 = vunpack.c.l.b16 %v2745
    %v2883 = vunpack.c.h.b16 %v2745
    %v2884 = vunpack.c.l.b16 %v2746
    %v2885 = vunpack.c.h.b16 %v2746
    %v2886 = vunpack.c.l.b16 %v2747
    %v2887 = vunpack.c.h.b16 %v2747
    %v2888 = vunpack.c.l.b16 %v2748
    %v2889 = vunpack.c.h.b16 %v2748
    %v2890 = vunpack.c.l.b16 %v2749
    %v2891 = vunpack.c.h.b16 %v2749
    %v2892 = vunpack.c.l.b16 %v2750
    %v2893 = vunpack.c.h.b16 %v2750
    %v2894 = vunpack.c.l.b16 %v2751
    %v2895 = vunpack.c.h.b16 %v2751
    %v2896 = vunpack.c.l.b16 %v2752
    %v2897 = vunpack.c.h.b16 %v2752
    %v2898 = vunpack.c.l.b16 %v2753
    %v2899 = vunpack.c.h.b16 %v2753
    %v2900 = vunpack.c.l.b16 %v2754
    %v2901 = vunpack.c.h.b16 %v2754
    %v2902 = vunpack.c.l.b16 %v2755
    %v2903 = vunpack.c.h.b16 %v2755
    %v2904 = vunpack.c.l.b16 %v2756
    %v2905 = vunpack.c.h.b16 %v2756
    %v2906 = vunpack.c.l.b16 %v2757
    %v2907 = vunpack.c.h.b16 %v2757
    %v2908 = vunpack.c.l.b16 %v2758
    %v2909 = vunpack.c.h.b16 %v2758
    %v2910 = vunpack.c.l.b16 %v2759
    %v2911 = vunpack.c.h.b16 %v2759
    %v2912 = vunpack.c.l.b16 %v2760
    %v2913 = vunpack.c.h.b16 %v2760
    %v2914 = vunpack.c.l.b16 %v2761
    %v2915 = vunpack.c.h.b16 %v2761
    %v2916 = vunpack.c.l.b16 %v2762
    %v2917 = vunpack.c.h.b16 %v2762
    %v2918 = vunpack.c.l.b16 %v2763
    %v2919 = vunpack.c.h.b16 %v2763
    %v2920 = vunpack.c.l.b16 %v2764
    %v2921 = vunpack.c.h.b16 %v2764
    %v2922 = vunpack.c.l.b16 %v2765
    %v2923 = vunpack.c.h.b16 %v2765
    %v2924 = vunpack.c.l.b16 %v2766
    %v2925 = vunpack.c.h.b16 %v2766
    %v2926 = vunpack.c.l.b16 %v2767
    %v2927 = vunpack.c.h.b16 %v2767
    %v2928 = vunpack.c.l.b16 %v2768
    %v2929 = vunpack.c.h.b16 %v2768
    %v2930 = vunpack.c.l.b16 %v2769
    %v2931 = vunpack.c.h.b16 %v2769
    %v2932 = vunpack.c.l.b16 %v2770
    %v2933 = vunpack.c.h.b16 %v2770
    %v2934 = vunpack.c.l.b16 %v2771
    %v2935 = vunpack.c.h.b16 %v2771
    %v2936 = vunpack.c.l.b16 %v2772
    %v2937 = vunpack.c.h.b16 %v2772
    %v2938 = vunpack.c.l.b16 %v2773
    %v2939 = vunpack.c.h.b16 %v2773
    %v2940 = vunpack.c.l.b16 %v2774
    %v2941 = vunpack.c.h.b16 %v2774
    %v2942 = vunpack.c.l.b16 %v2775
    %v2943 = vunpack.c.h.b16 %v2775
    %v2944 = vpack.c.b16 %v2834, %v2832
    %v2945 = vpack.c.b16 %v2835, %v2833
    %v2946 = vpack.c.b16 %v2838, %v2836
    %v2947 = vpack.c.b16 %v2839, %v2837
    %v2948 = vpack.c.b16 %v2842, %v2840
    %v2949 = vpack.c.b16 %v2843, %v2841
    %v2950 = vpack.c.b16 %v2846, %v2844
    %v2951 = vpack.c.b16 %v2847, %v2845
    %v2952 = vpack.c.b16 %v2850, %v2848
    %v2953 = vpack.c.b16 %v2851, %v2849
    %v2954 = vpack.c.b16 %v2854, %v2852
    %v2955 = vpack.c.b16 %v2855, %v2853
    %v2956 = vpack.c.b16 %v2858, %v2856
    %v2957 = vpack.c.b16 %v2859, %v2857
    %v2958 = vpack.c.b16 %v2862, %v2860
    %v2959 = vpack.c.b16 %v2863, %v2861
    %v2960 = vpack.c.b16 %v2866, %v2864
    %v2961 = vpack.c.b16 %v2867, %v2865
    %v2962 = vpack.c.b16 %v2870, %v2868
    %v2963 = vpack.c.b16 %v2871, %v2869
    %v2964 = vpack.c.b16 %v2874, %v2872
    %v2965 = vpack.c.b16 %v2875, %v2873
    %v2966 = vpack.c.b16 %v2878, %v2876
    %v2967 = vpack.c.b16 %v2879, %v2877
    %v2968 = vpack.c.b16 %v2882, %v2880
    %v2969 = vpack.c.b16 %v2883, %v2881
    %v2970 = vpack.c.b16 %v2886, %v2884
    %v2971 = vpack.c.b16 %v2887, %v2885
    %v2972 = vpack.c.b16 %v2890, %v2888
    %v2973 = vpack.c.b16 %v2891, %v2889
    %v2974 = vpack.c.b16 %v2894, %v2892
    %v2975 = vpack.c.b16 %v2895, %v2893
    %v2976 = vpack.c.b16 %v2898, %v2896
    %v2977 = vpack.c.b16 %v2899, %v2897
    %v2978 = vpack.c.b16 %v2902, %v2900
    %v2979 = vpack.c.b16 %v2903, %v2901
    %v2980 = vpack.c.b16 %v2906, %v2904
    %v2981 = vpack.c.b16 %v2907, %v2905
    %v2982 = vpack.c.b16 %v2910, %v2908
    %v2983 = vpack.c.b16 %v2911, %v2909
    %v2984 = vpack.c.b16 %v2914, %v2912
    %v2985 = vpack.c.b16 %v2915, %v2913
    %v2986 = vpack.c.b16 %v2918, %v2916
    %v2987 = vpack.c.b16 %v2919, %v2917
    %v2988 = vpack.c.b16 %v2922, %v2920
    %v2989 = vpack.c.b16 %v2923, %v2921
    %v2990 = vpack.c.b16 %v2926, %v2924
    %v2991 = vpack.c.b16 %v2927, %v2925
    %v2992 = vpack.c.b16 %v2930, %v2928
    %v2993 = vpack.c.b16 %v2931, %v2929
    %v2994 = vpack.c.b16 %v2934, %v2932
    %v2995 = vpack.c.b16 %v2935, %v2933
    %v2996 = vpack.c.b16 %v2938, %v2936
    %v2997 = vpack.c.b16 %v2939, %v2937
    %v2998 = vpack.c.b16 %v2942, %v2940
    %v2999 = vpack.c.b16 %v2943, %v2941
    %v3057 = vsel %vm208, %v2718, 0
    %3059 = vmatprep.subr.bf16.mxu0 %v2959
    %3060 = vmatpush1.bf16.msra.mxu0 %v2958
    %3061 = vmatprep.subr.bf16.mxu0 %v2957
    %3062 = vmatpush1.bf16.msra.mxu0 %v2956
    %3063 = vmatprep.subr.bf16.mxu0 %v2955
    %3064 = vmatpush1.bf16.msra.mxu0 %v2954
    %3065 = vmatprep.subr.bf16.mxu0 %v2953
    %3066 = vmatpush1.bf16.msra.mxu0 %v2952
    %3067 = vmatprep.subr.bf16.mxu0 %v2951
    %3068 = vmatpush1.bf16.msra.mxu0 %v2950
    %3069 = vmatprep.subr.bf16.mxu0 %v2949
    %3070 = vmatpush1.bf16.msra.mxu0 %v2948
    %3071 = vmatprep.subr.bf16.mxu0 %v2947
    %3072 = vmatpush1.bf16.msra.mxu0 %v2946
    %3073 = vmatprep.subr.bf16.mxu0 %v2945
    %3074 = vmatpush1.bf16.msra.mxu0 %v2944
    %3075 = vmatprep.subr.bf16.mxu0 %v2975
    %3076 = vmatpush2.bf16.msra.mxu0 %v2974
    %3077 = vmatprep.subr.bf16.mxu0 %v2973
    %3078 = vmatpush2.bf16.msra.mxu0 %v2972
    %3079 = vmatprep.subr.bf16.mxu0 %v2971
    %3080 = vmatpush2.bf16.msra.mxu0 %v2970
    %3081 = vmatprep.subr.bf16.mxu0 %v2969
    %3082 = vmatpush2.bf16.msra.mxu0 %v2968
    %3083 = vmatprep.subr.bf16.mxu0 %v2967
    %3084 = vmatpush2.bf16.msra.mxu0 %v2966
    %3085 = vmatprep.subr.bf16.mxu0 %v2965
    %3086 = vmatpush2.bf16.msra.mxu0 %v2964
    %3087 = vmatprep.subr.bf16.mxu0 %v2963
    %3088 = vmatpush2.bf16.msra.mxu0 %v2962
    %3089 = vmatprep.subr.bf16.mxu0 %v2961
    %3090 = vmatpush2.bf16.msra.mxu0 %v2960
    %3091 = vmatprep.mubr.bf16.mxu0 %v2716
    %3092 = vmatmul.mubr.bf16.gmra.mxu0 %v2715
    %v3093 = vpop.f32.mrf.mxu0
    %v3094 = vadd.f32 0.0, %v3093
    %v3095 = vpop.f32.mrf.mxu0
    %v3096 = vadd.f32 0.0, %v3095
    %v3097 = vpop.f32.mrf.mxu0
    %v3098 = vpop.f32.mrf.mxu0
    %3099 = vdwg.mxu0
    %3100 = vmatprep.subr.bf16.mxu0 %v2991
    %3101 = vmatpush1.bf16.msra.mxu0 %v2990
    %3102 = vmatprep.subr.bf16.mxu0 %v2989
    %3103 = vmatpush1.bf16.msra.mxu0 %v2988
    %3104 = vmatprep.subr.bf16.mxu0 %v2987
    %3105 = vmatpush1.bf16.msra.mxu0 %v2986
    %3106 = vmatprep.subr.bf16.mxu0 %v2985
    %3107 = vmatpush1.bf16.msra.mxu0 %v2984
    %3108 = vmatprep.subr.bf16.mxu0 %v2983
    %3109 = vmatpush1.bf16.msra.mxu0 %v2982
    %3110 = vmatprep.subr.bf16.mxu0 %v2981
    %3111 = vmatpush1.bf16.msra.mxu0 %v2980
    %3112 = vmatprep.subr.bf16.mxu0 %v2979
    %3113 = vmatpush1.bf16.msra.mxu0 %v2978
    %3114 = vmatprep.subr.bf16.mxu0 %v2977
    %3115 = vmatpush1.bf16.msra.mxu0 %v2976
    %3116 = vmatprep.subr.bf16.mxu0 0
    %3117 = vmatpush2.bf16.msra.mxu0 0
    %3118 = vmatprep.subr.bf16.mxu0 0
    %3119 = vmatpush2.bf16.msra.mxu0 0
    %3120 = vmatprep.subr.bf16.mxu0 0
    %3121 = vmatpush2.bf16.msra.mxu0 0
    %3122 = vmatprep.subr.bf16.mxu0 0
    %3123 = vmatpush2.bf16.msra.mxu0 0
    %3124 = vmatprep.subr.bf16.mxu0 %v2999
    %3125 = vmatpush2.bf16.msra.mxu0 %v2998
    %3126 = vmatprep.subr.bf16.mxu0 %v2997
    %3127 = vmatpush2.bf16.msra.mxu0 %v2996
    %3128 = vmatprep.subr.bf16.mxu0 %v2995
    %3129 = vmatpush2.bf16.msra.mxu0 %v2994
    %3130 = vmatprep.subr.bf16.mxu0 %v2993
    %3131 = vmatpush2.bf16.msra.mxu0 %v2992
    %3132 = vmatprep.mubr.bf16.mxu0 %v3057
    %3133 = vmatmul.mubr.bf16.gmra.mxu0 %v2717
    %v3134 = vpop.f32.mrf.mxu0
    %v3135 = vadd.f32 %v3094, %v3134
    %v3136 = vpop.f32.mrf.mxu0
    %v3137 = vadd.f32 %v3096, %v3136
    %v3138 = vpop.f32.mrf.mxu0
    %v3139 = vpop.f32.mrf.mxu0
    %3140 = vdwg.mxu0
    %v3141 = vadd.f32 %v2602, %v3135
    %v3142 = vadd.f32 %v2603, %v3137
    %s3143 = scalar_lea.vmem %s0, 7
    %v3144 = vld [vmem:[%s3143] sm:$0x1]
    %v3147 = vunpack.c.l.s4 1966171168
    %v3148 = vunpack.c.0.s8 %v3147
    %v3149 = vlaneseq
    %v3150 = vshrl.u32 %v3149, 7
    %v3151 = vsub.s32 %v3148, %v3150
    %v3152 = vrot.slane %v2605, %v3151
    %v3154 = vunpack.c.l.s4 1966171168
    %v3155 = vunpack.c.0.s8 %v3154
    %v3156 = vlaneseq
    %v3157 = vshrl.u32 %v3156, 7
    %v3158 = vsub.s32 %v3155, %v3157
    %v3159 = vrot.slane %v3152, %v3158
    %3160 = vrot.lane.b32.xlu0 %v3159, 64
    %v3161 = vpop.permute.xlu0 %3160
    %v3163 = vsel %vm208, %v2066, %v3161
    %v3166 = vsel %vm208, %v3144, 0
    %3168 = vmatprep.subr.bf16.mxu0 %v407
    %3169 = vmatpush1.bf16.msra.mxu0 %v406
    %3170 = vmatprep.subr.bf16.mxu0 %v403
    %3171 = vmatpush1.bf16.msra.mxu0 %v402
    %3172 = vmatprep.subr.bf16.mxu0 %v399
    %3173 = vmatpush1.bf16.msra.mxu0 %v398
    %3174 = vmatprep.subr.bf16.mxu0 %v395
    %3175 = vmatpush1.bf16.msra.mxu0 %v394
    %3176 = vmatprep.subr.bf16.mxu0 %v391
    %3177 = vmatpush1.bf16.msra.mxu0 %v390
    %3178 = vmatprep.subr.bf16.mxu0 %v387
    %3179 = vmatpush1.bf16.msra.mxu0 %v386
    %3180 = vmatprep.subr.bf16.mxu0 %v383
    %3181 = vmatpush1.bf16.msra.mxu0 %v382
    %3182 = vmatprep.subr.bf16.mxu0 %v379
    %3183 = vmatpush1.bf16.msra.mxu0 %v378
    %3184 = vmatprep.subr.bf16.mxu0 0
    %3185 = vmatpush2.bf16.msra.mxu0 0
    %3186 = vmatprep.subr.bf16.mxu0 0
    %3187 = vmatpush2.bf16.msra.mxu0 0
    %3188 = vmatprep.subr.bf16.mxu0 0
    %3189 = vmatpush2.bf16.msra.mxu0 0
    %3190 = vmatprep.subr.bf16.mxu0 0
    %3191 = vmatpush2.bf16.msra.mxu0 0
    %3192 = vmatprep.subr.bf16.mxu0 %v423
    %3193 = vmatpush2.bf16.msra.mxu0 %v422
    %3194 = vmatprep.subr.bf16.mxu0 %v419
    %3195 = vmatpush2.bf16.msra.mxu0 %v418
    %3196 = vmatprep.subr.bf16.mxu0 %v415
    %3197 = vmatpush2.bf16.msra.mxu0 %v414
    %3198 = vmatprep.subr.bf16.mxu0 %v411
    %3199 = vmatpush2.bf16.msra.mxu0 %v410
    %3200 = vmatprep.mubr.bf16.mxu0 %v3166
    %3201 = vmatmul.mubr.bf16.gmra.mxu0 %v3163
    %v3202 = vpop.f32.mrf.mxu0
    %v3203 = vadd.f32 %v217, %v3202
    %v3204 = vpop.f32.mrf.mxu0
    %v3205 = vadd.f32 %v221, %v3204
    %v3206 = vpop.f32.mrf.mxu0
    %v3207 = vpop.f32.mrf.mxu0
    %3208 = vdwg.mxu0
    %3209 = vmatprep.subr.bf16.mxu0 %v409
    %3210 = vmatpush1.bf16.msra.mxu0 %v408
    %3211 = vmatprep.subr.bf16.mxu0 %v405
    %3212 = vmatpush1.bf16.msra.mxu0 %v404
    %3213 = vmatprep.subr.bf16.mxu0 %v401
    %3214 = vmatpush1.bf16.msra.mxu0 %v400
    %3215 = vmatprep.subr.bf16.mxu0 %v397
    %3216 = vmatpush1.bf16.msra.mxu0 %v396
    %3217 = vmatprep.subr.bf16.mxu0 %v393
    %3218 = vmatpush1.bf16.msra.mxu0 %v392
    %3219 = vmatprep.subr.bf16.mxu0 %v389
    %3220 = vmatpush1.bf16.msra.mxu0 %v388
    %3221 = vmatprep.subr.bf16.mxu0 %v385
    %3222 = vmatpush1.bf16.msra.mxu0 %v384
    %3223 = vmatprep.subr.bf16.mxu0 %v381
    %3224 = vmatpush1.bf16.msra.mxu0 %v380
    %3225 = vmatprep.subr.bf16.mxu0 0
    %3226 = vmatpush2.bf16.msra.mxu0 0
    %3227 = vmatprep.subr.bf16.mxu0 0
    %3228 = vmatpush2.bf16.msra.mxu0 0
    %3229 = vmatprep.subr.bf16.mxu0 0
    %3230 = vmatpush2.bf16.msra.mxu0 0
    %3231 = vmatprep.subr.bf16.mxu0 0
    %3232 = vmatpush2.bf16.msra.mxu0 0
    %3233 = vmatprep.subr.bf16.mxu0 %v425
    %3234 = vmatpush2.bf16.msra.mxu0 %v424
    %3235 = vmatprep.subr.bf16.mxu0 %v421
    %3236 = vmatpush2.bf16.msra.mxu0 %v420
    %3237 = vmatprep.subr.bf16.mxu0 %v417
    %3238 = vmatpush2.bf16.msra.mxu0 %v416
    %3239 = vmatprep.subr.bf16.mxu0 %v413
    %3240 = vmatpush2.bf16.msra.mxu0 %v412
    %3241 = vmatprep.mubr.bf16.mxu0 %v3166
    %3242 = vmatmul.mubr.bf16.gmra.mxu0 %v3163
    %v3243 = vpop.f32.mrf.mxu0
    %v3244 = vadd.f32 %v225, %v3243
    %v3245 = vpop.f32.mrf.mxu0
    %v3246 = vadd.f32 %v229, %v3245
    %v3247 = vpop.f32.mrf.mxu0
    %v3248 = vpop.f32.mrf.mxu0
    %3249 = vdwg.mxu0
    %v3250 = vmax.f32 %v3203, 0.0
    %v3251 = vmax.f32 %v3205, 0.0
    %v3252 = vmax.f32 %v3244, 0.0
    %v3253 = vmax.f32 %v3246, 0.0
    %v3254 = vpack.c.bf16 %v3250, %v3250
    %v3255 = vpack.c.bf16 %v3251, %v3251
    %v3256 = vpack.c.bf16 %v3252, %v3252
    %v3257 = vpack.c.bf16 %v3253, %v3253
    %s3258 = scalar_lea.vmem [#allocation6], 2240
    %v3259 = vld [vmem:[%s3258] sm:$0xff]
    %v3260 = vld [vmem:[%s3258 + $0x8] sm:$0xff]
    %v3261 = vld [vmem:[%s3258 + $0x10] sm:$0xff]
    %v3262 = vld [vmem:[%s3258 + $0x18] sm:$0xff]
    %v3263 = vld [vmem:[%s3258 + $0x20] sm:$0xff]
    %v3264 = vld [vmem:[%s3258 + $0x28] sm:$0xff]
    %v3265 = vld [vmem:[%s3258 + $0x30] sm:$0xff]
    %v3266 = vld [vmem:[%s3258 + $0x38] sm:$0xff]
    %v3267 = vld [vmem:[%s3258 + $0x40] sm:$0xff]
    %v3268 = vld [vmem:[%s3258 + $0x48] sm:$0xff]
    %v3269 = vld [vmem:[%s3258 + $0x50] sm:$0xff]
    %v3270 = vld [vmem:[%s3258 + $0x58] sm:$0xff]
    %v3271 = vld [vmem:[%s3258 + $0x60] sm:$0xff]
    %v3272 = vld [vmem:[%s3258 + $0x68] sm:$0xff]
    %v3273 = vld [vmem:[%s3258 + $0x70] sm:$0xff]
    %v3274 = vld [vmem:[%s3258 + $0x78] sm:$0xff]
    %v3275 = vld [vmem:[%s3258 + $0x80] sm:$0xff]
    %v3276 = vld [vmem:[%s3258 + $0x88] sm:$0xff]
    %v3277 = vld [vmem:[%s3258 + $0x90] sm:$0xff]
    %v3278 = vld [vmem:[%s3258 + $0x98] sm:$0xff]
    %v3279 = vld [vmem:[%s3258 + $0xa0] sm:$0xff]
    %v3280 = vld [vmem:[%s3258 + $0xa8] sm:$0xff]
    %v3281 = vld [vmem:[%s3258 + $0xb0] sm:$0xff]
    %v3282 = vld [vmem:[%s3258 + $0xb8] sm:$0xff]
    %v3283 = vld [vmem:[%s3258 + $0xc0] sm:$0xff]
    %v3284 = vld [vmem:[%s3258 + $0xc8] sm:$0xff]
    %v3285 = vld [vmem:[%s3258 + $0xd0] sm:$0xff]
    %v3286 = vld [vmem:[%s3258 + $0xd8] sm:$0xff]
    %v3287 = vld [vmem:[%s3258 + $0xe0] sm:$0xff]
    %v3288 = vld [vmem:[%s3258 + $0xe8] sm:$0xff]
    %v3289 = vld [vmem:[%s3258 + $0xf0] sm:$0xff]
    %v3290 = vld [vmem:[%s3258 + $0xf8] sm:$0xff]
    %v3291 = vld [vmem:[%s3258 + $0x100] sm:$0xff]
    %v3292 = vld [vmem:[%s3258 + $0x108] sm:$0xff]
    %v3293 = vld [vmem:[%s3258 + $0x110] sm:$0xff]
    %v3294 = vld [vmem:[%s3258 + $0x118] sm:$0xff]
    %v3295 = vld [vmem:[%s3258 + $0x120] sm:$0xff]
    %v3296 = vld [vmem:[%s3258 + $0x128] sm:$0xff]
    %v3297 = vld [vmem:[%s3258 + $0x130] sm:$0xff]
    %v3298 = vld [vmem:[%s3258 + $0x138] sm:$0xff]
    %v3299 = vld [vmem:[%s3258 + $0x140] sm:$0xff]
    %v3300 = vld [vmem:[%s3258 + $0x148] sm:$0xff]
    %v3301 = vld [vmem:[%s3258 + $0x150] sm:$0xff]
    %v3302 = vld [vmem:[%s3258 + $0x158] sm:$0xff]
    %v3303 = vld [vmem:[%s3258 + $0x160] sm:$0xff]
    %v3304 = vld [vmem:[%s3258 + $0x168] sm:$0xff]
    %v3305 = vld [vmem:[%s3258 + $0x170] sm:$0xff]
    %v3306 = vld [vmem:[%s3258 + $0x178] sm:$0xff]
    %v3307 = vld [vmem:[%s3258 + $0x180] sm:$0xff]
    %v3308 = vld [vmem:[%s3258 + $0x188] sm:$0xff]
    %v3309 = vld [vmem:[%s3258 + $0x190] sm:$0xff]
    %v3310 = vld [vmem:[%s3258 + $0x198] sm:$0xff]
    %v3311 = vld [vmem:[%s3258 + $0x1a0] sm:$0xff]
    %v3312 = vld [vmem:[%s3258 + $0x1a8] sm:$0xff]
    %v3313 = vld [vmem:[%s3258 + $0x1b0] sm:$0xff]
    %v3314 = vld [vmem:[%s3258 + $0x1b8] sm:$0xff]
    %v3371 = vunpack.c.l.b16 %v3259
    %v3372 = vunpack.c.h.b16 %v3259
    %v3373 = vunpack.c.l.b16 %v3260
    %v3374 = vunpack.c.h.b16 %v3260
    %v3375 = vunpack.c.l.b16 %v3261
    %v3376 = vunpack.c.h.b16 %v3261
    %v3377 = vunpack.c.l.b16 %v3262
    %v3378 = vunpack.c.h.b16 %v3262
    %v3379 = vunpack.c.l.b16 %v3263
    %v3380 = vunpack.c.h.b16 %v3263
    %v3381 = vunpack.c.l.b16 %v3264
    %v3382 = vunpack.c.h.b16 %v3264
    %v3383 = vunpack.c.l.b16 %v3265
    %v3384 = vunpack.c.h.b16 %v3265
    %v3385 = vunpack.c.l.b16 %v3266
    %v3386 = vunpack.c.h.b16 %v3266
    %v3387 = vunpack.c.l.b16 %v3267
    %v3388 = vunpack.c.h.b16 %v3267
    %v3389 = vunpack.c.l.b16 %v3268
    %v3390 = vunpack.c.h.b16 %v3268
    %v3391 = vunpack.c.l.b16 %v3269
    %v3392 = vunpack.c.h.b16 %v3269
    %v3393 = vunpack.c.l.b16 %v3270
    %v3394 = vunpack.c.h.b16 %v3270
    %v3395 = vunpack.c.l.b16 %v3271
    %v3396 = vunpack.c.h.b16 %v3271
    %v3397 = vunpack.c.l.b16 %v3272
    %v3398 = vunpack.c.h.b16 %v3272
    %v3399 = vunpack.c.l.b16 %v3273
    %v3400 = vunpack.c.h.b16 %v3273
    %v3401 = vunpack.c.l.b16 %v3274
    %v3402 = vunpack.c.h.b16 %v3274
    %v3403 = vunpack.c.l.b16 %v3275
    %v3404 = vunpack.c.h.b16 %v3275
    %v3405 = vunpack.c.l.b16 %v3276
    %v3406 = vunpack.c.h.b16 %v3276
    %v3407 = vunpack.c.l.b16 %v3277
    %v3408 = vunpack.c.h.b16 %v3277
    %v3409 = vunpack.c.l.b16 %v3278
    %v3410 = vunpack.c.h.b16 %v3278
    %v3411 = vunpack.c.l.b16 %v3279
    %v3412 = vunpack.c.h.b16 %v3279
    %v3413 = vunpack.c.l.b16 %v3280
    %v3414 = vunpack.c.h.b16 %v3280
    %v3415 = vunpack.c.l.b16 %v3281
    %v3416 = vunpack.c.h.b16 %v3281
    %v3417 = vunpack.c.l.b16 %v3282
    %v3418 = vunpack.c.h.b16 %v3282
    %v3419 = vunpack.c.l.b16 %v3283
    %v3420 = vunpack.c.h.b16 %v3283
    %v3421 = vunpack.c.l.b16 %v3284
    %v3422 = vunpack.c.h.b16 %v3284
    %v3423 = vunpack.c.l.b16 %v3285
    %v3424 = vunpack.c.h.b16 %v3285
    %v3425 = vunpack.c.l.b16 %v3286
    %v3426 = vunpack.c.h.b16 %v3286
    %v3427 = vunpack.c.l.b16 %v3287
    %v3428 = vunpack.c.h.b16 %v3287
    %v3429 = vunpack.c.l.b16 %v3288
    %v3430 = vunpack.c.h.b16 %v3288
    %v3431 = vunpack.c.l.b16 %v3289
    %v3432 = vunpack.c.h.b16 %v3289
    %v3433 = vunpack.c.l.b16 %v3290
    %v3434 = vunpack.c.h.b16 %v3290
    %v3435 = vunpack.c.l.b16 %v3291
    %v3436 = vunpack.c.h.b16 %v3291
    %v3437 = vunpack.c.l.b16 %v3292
    %v3438 = vunpack.c.h.b16 %v3292
    %v3439 = vunpack.c.l.b16 %v3293
    %v3440 = vunpack.c.h.b16 %v3293
    %v3441 = vunpack.c.l.b16 %v3294
    %v3442 = vunpack.c.h.b16 %v3294
    %v3443 = vunpack.c.l.b16 %v3295
    %v3444 = vunpack.c.h.b16 %v3295
    %v3445 = vunpack.c.l.b16 %v3296
    %v3446 = vunpack.c.h.b16 %v3296
    %v3447 = vunpack.c.l.b16 %v3297
    %v3448 = vunpack.c.h.b16 %v3297
    %v3449 = vunpack.c.l.b16 %v3298
    %v3450 = vunpack.c.h.b16 %v3298
    %v3451 = vunpack.c.l.b16 %v3299
    %v3452 = vunpack.c.h.b16 %v3299
    %v3453 = vunpack.c.l.b16 %v3300
    %v3454 = vunpack.c.h.b16 %v3300
    %v3455 = vunpack.c.l.b16 %v3301
    %v3456 = vunpack.c.h.b16 %v3301
    %v3457 = vunpack.c.l.b16 %v3302
    %v3458 = vunpack.c.h.b16 %v3302
    %v3459 = vunpack.c.l.b16 %v3303
    %v3460 = vunpack.c.h.b16 %v3303
    %v3461 = vunpack.c.l.b16 %v3304
    %v3462 = vunpack.c.h.b16 %v3304
    %v3463 = vunpack.c.l.b16 %v3305
    %v3464 = vunpack.c.h.b16 %v3305
    %v3465 = vunpack.c.l.b16 %v3306
    %v3466 = vunpack.c.h.b16 %v3306
    %v3467 = vunpack.c.l.b16 %v3307
    %v3468 = vunpack.c.h.b16 %v3307
    %v3469 = vunpack.c.l.b16 %v3308
    %v3470 = vunpack.c.h.b16 %v3308
    %v3471 = vunpack.c.l.b16 %v3309
    %v3472 = vunpack.c.h.b16 %v3309
    %v3473 = vunpack.c.l.b16 %v3310
    %v3474 = vunpack.c.h.b16 %v3310
    %v3475 = vunpack.c.l.b16 %v3311
    %v3476 = vunpack.c.h.b16 %v3311
    %v3477 = vunpack.c.l.b16 %v3312
    %v3478 = vunpack.c.h.b16 %v3312
    %v3479 = vunpack.c.l.b16 %v3313
    %v3480 = vunpack.c.h.b16 %v3313
    %v3481 = vunpack.c.l.b16 %v3314
    %v3482 = vunpack.c.h.b16 %v3314
    %v3483 = vpack.c.b16 %v3373, %v3371
    %v3484 = vpack.c.b16 %v3374, %v3372
    %v3485 = vpack.c.b16 %v3377, %v3375
    %v3486 = vpack.c.b16 %v3378, %v3376
    %v3487 = vpack.c.b16 %v3381, %v3379
    %v3488 = vpack.c.b16 %v3382, %v3380
    %v3489 = vpack.c.b16 %v3385, %v3383
    %v3490 = vpack.c.b16 %v3386, %v3384
    %v3491 = vpack.c.b16 %v3389, %v3387
    %v3492 = vpack.c.b16 %v3390, %v3388
    %v3493 = vpack.c.b16 %v3393, %v3391
    %v3494 = vpack.c.b16 %v3394, %v3392
    %v3495 = vpack.c.b16 %v3397, %v3395
    %v3496 = vpack.c.b16 %v3398, %v3396
    %v3497 = vpack.c.b16 %v3401, %v3399
    %v3498 = vpack.c.b16 %v3402, %v3400
    %v3499 = vpack.c.b16 %v3405, %v3403
    %v3500 = vpack.c.b16 %v3406, %v3404
    %v3501 = vpack.c.b16 %v3409, %v3407
    %v3502 = vpack.c.b16 %v3410, %v3408
    %v3503 = vpack.c.b16 %v3413, %v3411
    %v3504 = vpack.c.b16 %v3414, %v3412
    %v3505 = vpack.c.b16 %v3417, %v3415
    %v3506 = vpack.c.b16 %v3418, %v3416
    %v3507 = vpack.c.b16 %v3421, %v3419
    %v3508 = vpack.c.b16 %v3422, %v3420
    %v3509 = vpack.c.b16 %v3425, %v3423
    %v3510 = vpack.c.b16 %v3426, %v3424
    %v3511 = vpack.c.b16 %v3429, %v3427
    %v3512 = vpack.c.b16 %v3430, %v3428
    %v3513 = vpack.c.b16 %v3433, %v3431
    %v3514 = vpack.c.b16 %v3434, %v3432
    %v3515 = vpack.c.b16 %v3437, %v3435
    %v3516 = vpack.c.b16 %v3438, %v3436
    %v3517 = vpack.c.b16 %v3441, %v3439
    %v3518 = vpack.c.b16 %v3442, %v3440
    %v3519 = vpack.c.b16 %v3445, %v3443
    %v3520 = vpack.c.b16 %v3446, %v3444
    %v3521 = vpack.c.b16 %v3449, %v3447
    %v3522 = vpack.c.b16 %v3450, %v3448
    %v3523 = vpack.c.b16 %v3453, %v3451
    %v3524 = vpack.c.b16 %v3454, %v3452
    %v3525 = vpack.c.b16 %v3457, %v3455
    %v3526 = vpack.c.b16 %v3458, %v3456
    %v3527 = vpack.c.b16 %v3461, %v3459
    %v3528 = vpack.c.b16 %v3462, %v3460
    %v3529 = vpack.c.b16 %v3465, %v3463
    %v3530 = vpack.c.b16 %v3466, %v3464
    %v3531 = vpack.c.b16 %v3469, %v3467
    %v3532 = vpack.c.b16 %v3470, %v3468
    %v3533 = vpack.c.b16 %v3473, %v3471
    %v3534 = vpack.c.b16 %v3474, %v3472
    %v3535 = vpack.c.b16 %v3477, %v3475
    %v3536 = vpack.c.b16 %v3478, %v3476
    %v3537 = vpack.c.b16 %v3481, %v3479
    %v3538 = vpack.c.b16 %v3482, %v3480
    %v3596 = vsel %vm208, %v3257, 0
    %3598 = vmatprep.subr.bf16.mxu0 %v3498
    %3599 = vmatpush1.bf16.msra.mxu0 %v3497
    %3600 = vmatprep.subr.bf16.mxu0 %v3496
    %3601 = vmatpush1.bf16.msra.mxu0 %v3495
    %3602 = vmatprep.subr.bf16.mxu0 %v3494
    %3603 = vmatpush1.bf16.msra.mxu0 %v3493
    %3604 = vmatprep.subr.bf16.mxu0 %v3492
    %3605 = vmatpush1.bf16.msra.mxu0 %v3491
    %3606 = vmatprep.subr.bf16.mxu0 %v3490
    %3607 = vmatpush1.bf16.msra.mxu0 %v3489
    %3608 = vmatprep.subr.bf16.mxu0 %v3488
    %3609 = vmatpush1.bf16.msra.mxu0 %v3487
    %3610 = vmatprep.subr.bf16.mxu0 %v3486
    %3611 = vmatpush1.bf16.msra.mxu0 %v3485
    %3612 = vmatprep.subr.bf16.mxu0 %v3484
    %3613 = vmatpush1.bf16.msra.mxu0 %v3483
    %3614 = vmatprep.subr.bf16.mxu0 %v3514
    %3615 = vmatpush2.bf16.msra.mxu0 %v3513
    %3616 = vmatprep.subr.bf16.mxu0 %v3512
    %3617 = vmatpush2.bf16.msra.mxu0 %v3511
    %3618 = vmatprep.subr.bf16.mxu0 %v3510
    %3619 = vmatpush2.bf16.msra.mxu0 %v3509
    %3620 = vmatprep.subr.bf16.mxu0 %v3508
    %3621 = vmatpush2.bf16.msra.mxu0 %v3507
    %3622 = vmatprep.subr.bf16.mxu0 %v3506
    %3623 = vmatpush2.bf16.msra.mxu0 %v3505
    %3624 = vmatprep.subr.bf16.mxu0 %v3504
    %3625 = vmatpush2.bf16.msra.mxu0 %v3503
    %3626 = vmatprep.subr.bf16.mxu0 %v3502
    %3627 = vmatpush2.bf16.msra.mxu0 %v3501
    %3628 = vmatprep.subr.bf16.mxu0 %v3500
    %3629 = vmatpush2.bf16.msra.mxu0 %v3499
    %3630 = vmatprep.mubr.bf16.mxu0 %v3255
    %3631 = vmatmul.mubr.bf16.gmra.mxu0 %v3254
    %v3632 = vpop.f32.mrf.mxu0
    %v3633 = vadd.f32 0.0, %v3632
    %v3634 = vpop.f32.mrf.mxu0
    %v3635 = vadd.f32 0.0, %v3634
    %v3636 = vpop.f32.mrf.mxu0
    %v3637 = vpop.f32.mrf.mxu0
    %3638 = vdwg.mxu0
    %3639 = vmatprep.subr.bf16.mxu0 %v3530
    %3640 = vmatpush1.bf16.msra.mxu0 %v3529
    %3641 = vmatprep.subr.bf16.mxu0 %v3528
    %3642 = vmatpush1.bf16.msra.mxu0 %v3527
    %3643 = vmatprep.subr.bf16.mxu0 %v3526
    %3644 = vmatpush1.bf16.msra.mxu0 %v3525
    %3645 = vmatprep.subr.bf16.mxu0 %v3524
    %3646 = vmatpush1.bf16.msra.mxu0 %v3523
    %3647 = vmatprep.subr.bf16.mxu0 %v3522
    %3648 = vmatpush1.bf16.msra.mxu0 %v3521
    %3649 = vmatprep.subr.bf16.mxu0 %v3520
    %3650 = vmatpush1.bf16.msra.mxu0 %v3519
    %3651 = vmatprep.subr.bf16.mxu0 %v3518
    %3652 = vmatpush1.bf16.msra.mxu0 %v3517
    %3653 = vmatprep.subr.bf16.mxu0 %v3516
    %3654 = vmatpush1.bf16.msra.mxu0 %v3515
    %3655 = vmatprep.subr.bf16.mxu0 0
    %3656 = vmatpush2.bf16.msra.mxu0 0
    %3657 = vmatprep.subr.bf16.mxu0 0
    %3658 = vmatpush2.bf16.msra.mxu0 0
    %3659 = vmatprep.subr.bf16.mxu0 0
    %3660 = vmatpush2.bf16.msra.mxu0 0
    %3661 = vmatprep.subr.bf16.mxu0 0
    %3662 = vmatpush2.bf16.msra.mxu0 0
    %3663 = vmatprep.subr.bf16.mxu0 %v3538
    %3664 = vmatpush2.bf16.msra.mxu0 %v3537
    %3665 = vmatprep.subr.bf16.mxu0 %v3536
    %3666 = vmatpush2.bf16.msra.mxu0 %v3535
    %3667 = vmatprep.subr.bf16.mxu0 %v3534
    %3668 = vmatpush2.bf16.msra.mxu0 %v3533
    %3669 = vmatprep.subr.bf16.mxu0 %v3532
    %3670 = vmatpush2.bf16.msra.mxu0 %v3531
    %3671 = vmatprep.mubr.bf16.mxu0 %v3596
    %3672 = vmatmul.mubr.bf16.gmra.mxu0 %v3256
    %v3673 = vpop.f32.mrf.mxu0
    %v3674 = vadd.f32 %v3633, %v3673
    %v3675 = vpop.f32.mrf.mxu0
    %v3676 = vadd.f32 %v3635, %v3675
    %v3677 = vpop.f32.mrf.mxu0
    %v3678 = vpop.f32.mrf.mxu0
    %3679 = vdwg.mxu0
    %v3680 = vadd.f32 %v3141, %v3674
    %v3681 = vadd.f32 %v3142, %v3676
    %s3682 = scalar_lea.vmem %s0, 8
    %v3683 = vld [vmem:[%s3682] sm:$0x1]
    %v3686 = vunpack.c.l.s4 1966171168
    %v3687 = vunpack.c.0.s8 %v3686
    %v3688 = vlaneseq
    %v3689 = vshrl.u32 %v3688, 7
    %v3690 = vsub.s32 %v3687, %v3689
    %v3691 = vrot.slane %v3144, %v3690
    %v3693 = vunpack.c.l.s4 1966171168
    %v3694 = vunpack.c.0.s8 %v3693
    %v3695 = vlaneseq
    %v3696 = vshrl.u32 %v3695, 7
    %v3697 = vsub.s32 %v3694, %v3696
    %v3698 = vrot.slane %v3691, %v3697
    %3699 = vrot.lane.b32.xlu0 %v3698, 64
    %v3700 = vpop.permute.xlu0 %3699
    %v3702 = vsel %vm208, %v2605, %v3700
    %v3705 = vsel %vm208, %v3683, 0
    %3707 = vmatprep.subr.bf16.mxu0 %v407
    %3708 = vmatpush1.bf16.msra.mxu0 %v406
    %3709 = vmatprep.subr.bf16.mxu0 %v403
    %3710 = vmatpush1.bf16.msra.mxu0 %v402
    %3711 = vmatprep.subr.bf16.mxu0 %v399
    %3712 = vmatpush1.bf16.msra.mxu0 %v398
    %3713 = vmatprep.subr.bf16.mxu0 %v395
    %3714 = vmatpush1.bf16.msra.mxu0 %v394
    %3715 = vmatprep.subr.bf16.mxu0 %v391
    %3716 = vmatpush1.bf16.msra.mxu0 %v390
    %3717 = vmatprep.subr.bf16.mxu0 %v387
    %3718 = vmatpush1.bf16.msra.mxu0 %v386
    %3719 = vmatprep.subr.bf16.mxu0 %v383
    %3720 = vmatpush1.bf16.msra.mxu0 %v382
    %3721 = vmatprep.subr.bf16.mxu0 %v379
    %3722 = vmatpush1.bf16.msra.mxu0 %v378
    %3723 = vmatprep.subr.bf16.mxu0 0
    %3724 = vmatpush2.bf16.msra.mxu0 0
    %3725 = vmatprep.subr.bf16.mxu0 0
    %3726 = vmatpush2.bf16.msra.mxu0 0
    %3727 = vmatprep.subr.bf16.mxu0 0
    %3728 = vmatpush2.bf16.msra.mxu0 0
    %3729 = vmatprep.subr.bf16.mxu0 0
    %3730 = vmatpush2.bf16.msra.mxu0 0
    %3731 = vmatprep.subr.bf16.mxu0 %v423
    %3732 = vmatpush2.bf16.msra.mxu0 %v422
    %3733 = vmatprep.subr.bf16.mxu0 %v419
    %3734 = vmatpush2.bf16.msra.mxu0 %v418
    %3735 = vmatprep.subr.bf16.mxu0 %v415
    %3736 = vmatpush2.bf16.msra.mxu0 %v414
    %3737 = vmatprep.subr.bf16.mxu0 %v411
    %3738 = vmatpush2.bf16.msra.mxu0 %v410
    %3739 = vmatprep.mubr.bf16.mxu0 %v3705
    %3740 = vmatmul.mubr.bf16.gmra.mxu0 %v3702
    %v3741 = vpop.f32.mrf.mxu0
    %v3742 = vadd.f32 %v217, %v3741
    %v3743 = vpop.f32.mrf.mxu0
    %v3744 = vadd.f32 %v221, %v3743
    %v3745 = vpop.f32.mrf.mxu0
    %v3746 = vpop.f32.mrf.mxu0
    %3747 = vdwg.mxu0
    %3748 = vmatprep.subr.bf16.mxu0 %v409
    %3749 = vmatpush1.bf16.msra.mxu0 %v408
    %3750 = vmatprep.subr.bf16.mxu0 %v405
    %3751 = vmatpush1.bf16.msra.mxu0 %v404
    %3752 = vmatprep.subr.bf16.mxu0 %v401
    %3753 = vmatpush1.bf16.msra.mxu0 %v400
    %3754 = vmatprep.subr.bf16.mxu0 %v397
    %3755 = vmatpush1.bf16.msra.mxu0 %v396
    %3756 = vmatprep.subr.bf16.mxu0 %v393
    %3757 = vmatpush1.bf16.msra.mxu0 %v392
    %3758 = vmatprep.subr.bf16.mxu0 %v389
    %3759 = vmatpush1.bf16.msra.mxu0 %v388
    %3760 = vmatprep.subr.bf16.mxu0 %v385
    %3761 = vmatpush1.bf16.msra.mxu0 %v384
    %3762 = vmatprep.subr.bf16.mxu0 %v381
    %3763 = vmatpush1.bf16.msra.mxu0 %v380
    %3764 = vmatprep.subr.bf16.mxu0 0
    %3765 = vmatpush2.bf16.msra.mxu0 0
    %3766 = vmatprep.subr.bf16.mxu0 0
    %3767 = vmatpush2.bf16.msra.mxu0 0
    %3768 = vmatprep.subr.bf16.mxu0 0
    %3769 = vmatpush2.bf16.msra.mxu0 0
    %3770 = vmatprep.subr.bf16.mxu0 0
    %3771 = vmatpush2.bf16.msra.mxu0 0
    %3772 = vmatprep.subr.bf16.mxu0 %v425
    %3773 = vmatpush2.bf16.msra.mxu0 %v424
    %3774 = vmatprep.subr.bf16.mxu0 %v421
    %3775 = vmatpush2.bf16.msra.mxu0 %v420
    %3776 = vmatprep.subr.bf16.mxu0 %v417
    %3777 = vmatpush2.bf16.msra.mxu0 %v416
    %3778 = vmatprep.subr.bf16.mxu0 %v413
    %3779 = vmatpush2.bf16.msra.mxu0 %v412
    %3780 = vmatprep.mubr.bf16.mxu0 %v3705
    %3781 = vmatmul.mubr.bf16.gmra.mxu0 %v3702
    %v3782 = vpop.f32.mrf.mxu0
    %v3783 = vadd.f32 %v225, %v3782
    %v3784 = vpop.f32.mrf.mxu0
    %v3785 = vadd.f32 %v229, %v3784
    %v3786 = vpop.f32.mrf.mxu0
    %v3787 = vpop.f32.mrf.mxu0
    %3788 = vdwg.mxu0
    %v3789 = vmax.f32 %v3742, 0.0
    %v3790 = vmax.f32 %v3744, 0.0
    %v3791 = vmax.f32 %v3783, 0.0
    %v3792 = vmax.f32 %v3785, 0.0
    %v3793 = vpack.c.bf16 %v3789, %v3789
    %v3794 = vpack.c.bf16 %v3790, %v3790
    %v3795 = vpack.c.bf16 %v3791, %v3791
    %v3796 = vpack.c.bf16 %v3792, %v3792
    %s3797 = scalar_lea.vmem [#allocation6], 2688
    %v3798 = vld [vmem:[%s3797] sm:$0xff]
    %v3799 = vld [vmem:[%s3797 + $0x8] sm:$0xff]
    %v3800 = vld [vmem:[%s3797 + $0x10] sm:$0xff]
    %v3801 = vld [vmem:[%s3797 + $0x18] sm:$0xff]
    %v3802 = vld [vmem:[%s3797 + $0x20] sm:$0xff]
    %v3803 = vld [vmem:[%s3797 + $0x28] sm:$0xff]
    %v3804 = vld [vmem:[%s3797 + $0x30] sm:$0xff]
    %v3805 = vld [vmem:[%s3797 + $0x38] sm:$0xff]
    %v3806 = vld [vmem:[%s3797 + $0x40] sm:$0xff]
    %v3807 = vld [vmem:[%s3797 + $0x48] sm:$0xff]
    %v3808 = vld [vmem:[%s3797 + $0x50] sm:$0xff]
    %v3809 = vld [vmem:[%s3797 + $0x58] sm:$0xff]
    %v3810 = vld [vmem:[%s3797 + $0x60] sm:$0xff]
    %v3811 = vld [vmem:[%s3797 + $0x68] sm:$0xff]
    %v3812 = vld [vmem:[%s3797 + $0x70] sm:$0xff]
    %v3813 = vld [vmem:[%s3797 + $0x78] sm:$0xff]
    %v3814 = vld [vmem:[%s3797 + $0x80] sm:$0xff]
    %v3815 = vld [vmem:[%s3797 + $0x88] sm:$0xff]
    %v3816 = vld [vmem:[%s3797 + $0x90] sm:$0xff]
    %v3817 = vld [vmem:[%s3797 + $0x98] sm:$0xff]
    %v3818 = vld [vmem:[%s3797 + $0xa0] sm:$0xff]
    %v3819 = vld [vmem:[%s3797 + $0xa8] sm:$0xff]
    %v3820 = vld [vmem:[%s3797 + $0xb0] sm:$0xff]
    %v3821 = vld [vmem:[%s3797 + $0xb8] sm:$0xff]
    %v3822 = vld [vmem:[%s3797 + $0xc0] sm:$0xff]
    %v3823 = vld [vmem:[%s3797 + $0xc8] sm:$0xff]
    %v3824 = vld [vmem:[%s3797 + $0xd0] sm:$0xff]
    %v3825 = vld [vmem:[%s3797 + $0xd8] sm:$0xff]
    %v3826 = vld [vmem:[%s3797 + $0xe0] sm:$0xff]
    %v3827 = vld [vmem:[%s3797 + $0xe8] sm:$0xff]
    %v3828 = vld [vmem:[%s3797 + $0xf0] sm:$0xff]
    %v3829 = vld [vmem:[%s3797 + $0xf8] sm:$0xff]
    %v3830 = vld [vmem:[%s3797 + $0x100] sm:$0xff]
    %v3831 = vld [vmem:[%s3797 + $0x108] sm:$0xff]
    %v3832 = vld [vmem:[%s3797 + $0x110] sm:$0xff]
    %v3833 = vld [vmem:[%s3797 + $0x118] sm:$0xff]
    %v3834 = vld [vmem:[%s3797 + $0x120] sm:$0xff]
    %v3835 = vld [vmem:[%s3797 + $0x128] sm:$0xff]
    %v3836 = vld [vmem:[%s3797 + $0x130] sm:$0xff]
    %v3837 = vld [vmem:[%s3797 + $0x138] sm:$0xff]
    %v3838 = vld [vmem:[%s3797 + $0x140] sm:$0xff]
    %v3839 = vld [vmem:[%s3797 + $0x148] sm:$0xff]
    %v3840 = vld [vmem:[%s3797 + $0x150] sm:$0xff]
    %v3841 = vld [vmem:[%s3797 + $0x158] sm:$0xff]
    %v3842 = vld [vmem:[%s3797 + $0x160] sm:$0xff]
    %v3843 = vld [vmem:[%s3797 + $0x168] sm:$0xff]
    %v3844 = vld [vmem:[%s3797 + $0x170] sm:$0xff]
    %v3845 = vld [vmem:[%s3797 + $0x178] sm:$0xff]
    %v3846 = vld [vmem:[%s3797 + $0x180] sm:$0xff]
    %v3847 = vld [vmem:[%s3797 + $0x188] sm:$0xff]
    %v3848 = vld [vmem:[%s3797 + $0x190] sm:$0xff]
    %v3849 = vld [vmem:[%s3797 + $0x198] sm:$0xff]
    %v3850 = vld [vmem:[%s3797 + $0x1a0] sm:$0xff]
    %v3851 = vld [vmem:[%s3797 + $0x1a8] sm:$0xff]
    %v3852 = vld [vmem:[%s3797 + $0x1b0] sm:$0xff]
    %v3853 = vld [vmem:[%s3797 + $0x1b8] sm:$0xff]
    %v3910 = vunpack.c.l.b16 %v3798
    %v3911 = vunpack.c.h.b16 %v3798
    %v3912 = vunpack.c.l.b16 %v3799
    %v3913 = vunpack.c.h.b16 %v3799
    %v3914 = vunpack.c.l.b16 %v3800
    %v3915 = vunpack.c.h.b16 %v3800
    %v3916 = vunpack.c.l.b16 %v3801
    %v3917 = vunpack.c.h.b16 %v3801
    %v3918 = vunpack.c.l.b16 %v3802
    %v3919 = vunpack.c.h.b16 %v3802
    %v3920 = vunpack.c.l.b16 %v3803
    %v3921 = vunpack.c.h.b16 %v3803
    %v3922 = vunpack.c.l.b16 %v3804
    %v3923 = vunpack.c.h.b16 %v3804
    %v3924 = vunpack.c.l.b16 %v3805
    %v3925 = vunpack.c.h.b16 %v3805
    %v3926 = vunpack.c.l.b16 %v3806
    %v3927 = vunpack.c.h.b16 %v3806
    %v3928 = vunpack.c.l.b16 %v3807
    %v3929 = vunpack.c.h.b16 %v3807
    %v3930 = vunpack.c.l.b16 %v3808
    %v3931 = vunpack.c.h.b16 %v3808
    %v3932 = vunpack.c.l.b16 %v3809
    %v3933 = vunpack.c.h.b16 %v3809
    %v3934 = vunpack.c.l.b16 %v3810
    %v3935 = vunpack.c.h.b16 %v3810
    %v3936 = vunpack.c.l.b16 %v3811
    %v3937 = vunpack.c.h.b16 %v3811
    %v3938 = vunpack.c.l.b16 %v3812
    %v3939 = vunpack.c.h.b16 %v3812
    %v3940 = vunpack.c.l.b16 %v3813
    %v3941 = vunpack.c.h.b16 %v3813
    %v3942 = vunpack.c.l.b16 %v3814
    %v3943 = vunpack.c.h.b16 %v3814
    %v3944 = vunpack.c.l.b16 %v3815
    %v3945 = vunpack.c.h.b16 %v3815
    %v3946 = vunpack.c.l.b16 %v3816
    %v3947 = vunpack.c.h.b16 %v3816
    %v3948 = vunpack.c.l.b16 %v3817
    %v3949 = vunpack.c.h.b16 %v3817
    %v3950 = vunpack.c.l.b16 %v3818
    %v3951 = vunpack.c.h.b16 %v3818
    %v3952 = vunpack.c.l.b16 %v3819
    %v3953 = vunpack.c.h.b16 %v3819
    %v3954 = vunpack.c.l.b16 %v3820
    %v3955 = vunpack.c.h.b16 %v3820
    %v3956 = vunpack.c.l.b16 %v3821
    %v3957 = vunpack.c.h.b16 %v3821
    %v3958 = vunpack.c.l.b16 %v3822
    %v3959 = vunpack.c.h.b16 %v3822
    %v3960 = vunpack.c.l.b16 %v3823
    %v3961 = vunpack.c.h.b16 %v3823
    %v3962 = vunpack.c.l.b16 %v3824
    %v3963 = vunpack.c.h.b16 %v3824
    %v3964 = vunpack.c.l.b16 %v3825
    %v3965 = vunpack.c.h.b16 %v3825
    %v3966 = vunpack.c.l.b16 %v3826
    %v3967 = vunpack.c.h.b16 %v3826
    %v3968 = vunpack.c.l.b16 %v3827
    %v3969 = vunpack.c.h.b16 %v3827
    %v3970 = vunpack.c.l.b16 %v3828
    %v3971 = vunpack.c.h.b16 %v3828
    %v3972 = vunpack.c.l.b16 %v3829
    %v3973 = vunpack.c.h.b16 %v3829
    %v3974 = vunpack.c.l.b16 %v3830
    %v3975 = vunpack.c.h.b16 %v3830
    %v3976 = vunpack.c.l.b16 %v3831
    %v3977 = vunpack.c.h.b16 %v3831
    %v3978 = vunpack.c.l.b16 %v3832
    %v3979 = vunpack.c.h.b16 %v3832
    %v3980 = vunpack.c.l.b16 %v3833
    %v3981 = vunpack.c.h.b16 %v3833
    %v3982 = vunpack.c.l.b16 %v3834
    %v3983 = vunpack.c.h.b16 %v3834
    %v3984 = vunpack.c.l.b16 %v3835
    %v3985 = vunpack.c.h.b16 %v3835
    %v3986 = vunpack.c.l.b16 %v3836
    %v3987 = vunpack.c.h.b16 %v3836
    %v3988 = vunpack.c.l.b16 %v3837
    %v3989 = vunpack.c.h.b16 %v3837
    %v3990 = vunpack.c.l.b16 %v3838
    %v3991 = vunpack.c.h.b16 %v3838
    %v3992 = vunpack.c.l.b16 %v3839
    %v3993 = vunpack.c.h.b16 %v3839
    %v3994 = vunpack.c.l.b16 %v3840
    %v3995 = vunpack.c.h.b16 %v3840
    %v3996 = vunpack.c.l.b16 %v3841
    %v3997 = vunpack.c.h.b16 %v3841
    %v3998 = vunpack.c.l.b16 %v3842
    %v3999 = vunpack.c.h.b16 %v3842
    %v4000 = vunpack.c.l.b16 %v3843
    %v4001 = vunpack.c.h.b16 %v3843
    %v4002 = vunpack.c.l.b16 %v3844
    %v4003 = vunpack.c.h.b16 %v3844
    %v4004 = vunpack.c.l.b16 %v3845
    %v4005 = vunpack.c.h.b16 %v3845
    %v4006 = vunpack.c.l.b16 %v3846
    %v4007 = vunpack.c.h.b16 %v3846
    %v4008 = vunpack.c.l.b16 %v3847
    %v4009 = vunpack.c.h.b16 %v3847
    %v4010 = vunpack.c.l.b16 %v3848
    %v4011 = vunpack.c.h.b16 %v3848
    %v4012 = vunpack.c.l.b16 %v3849
    %v4013 = vunpack.c.h.b16 %v3849
    %v4014 = vunpack.c.l.b16 %v3850
    %v4015 = vunpack.c.h.b16 %v3850
    %v4016 = vunpack.c.l.b16 %v3851
    %v4017 = vunpack.c.h.b16 %v3851
    %v4018 = vunpack.c.l.b16 %v3852
    %v4019 = vunpack.c.h.b16 %v3852
    %v4020 = vunpack.c.l.b16 %v3853
    %v4021 = vunpack.c.h.b16 %v3853
    %v4022 = vpack.c.b16 %v3912, %v3910
    %v4023 = vpack.c.b16 %v3913, %v3911
    %v4024 = vpack.c.b16 %v3916, %v3914
    %v4025 = vpack.c.b16 %v3917, %v3915
    %v4026 = vpack.c.b16 %v3920, %v3918
    %v4027 = vpack.c.b16 %v3921, %v3919
    %v4028 = vpack.c.b16 %v3924, %v3922
    %v4029 = vpack.c.b16 %v3925, %v3923
    %v4030 = vpack.c.b16 %v3928, %v3926
    %v4031 = vpack.c.b16 %v3929, %v3927
    %v4032 = vpack.c.b16 %v3932, %v3930
    %v4033 = vpack.c.b16 %v3933, %v3931
    %v4034 = vpack.c.b16 %v3936, %v3934
    %v4035 = vpack.c.b16 %v3937, %v3935
    %v4036 = vpack.c.b16 %v3940, %v3938
    %v4037 = vpack.c.b16 %v3941, %v3939
    %v4038 = vpack.c.b16 %v3944, %v3942
    %v4039 = vpack.c.b16 %v3945, %v3943
    %v4040 = vpack.c.b16 %v3948, %v3946
    %v4041 = vpack.c.b16 %v3949, %v3947
    %v4042 = vpack.c.b16 %v3952, %v3950
    %v4043 = vpack.c.b16 %v3953, %v3951
    %v4044 = vpack.c.b16 %v3956, %v3954
    %v4045 = vpack.c.b16 %v3957, %v3955
    %v4046 = vpack.c.b16 %v3960, %v3958
    %v4047 = vpack.c.b16 %v3961, %v3959
    %v4048 = vpack.c.b16 %v3964, %v3962
    %v4049 = vpack.c.b16 %v3965, %v3963
    %v4050 = vpack.c.b16 %v3968, %v3966
    %v4051 = vpack.c.b16 %v3969, %v3967
    %v4052 = vpack.c.b16 %v3972, %v3970
    %v4053 = vpack.c.b16 %v3973, %v3971
    %v4054 = vpack.c.b16 %v3976, %v3974
    %v4055 = vpack.c.b16 %v3977, %v3975
    %v4056 = vpack.c.b16 %v3980, %v3978
    %v4057 = vpack.c.b16 %v3981, %v3979
    %v4058 = vpack.c.b16 %v3984, %v3982
    %v4059 = vpack.c.b16 %v3985, %v3983
    %v4060 = vpack.c.b16 %v3988, %v3986
    %v4061 = vpack.c.b16 %v3989, %v3987
    %v4062 = vpack.c.b16 %v3992, %v3990
    %v4063 = vpack.c.b16 %v3993, %v3991
    %v4064 = vpack.c.b16 %v3996, %v3994
    %v4065 = vpack.c.b16 %v3997, %v3995
    %v4066 = vpack.c.b16 %v4000, %v3998
    %v4067 = vpack.c.b16 %v4001, %v3999
    %v4068 = vpack.c.b16 %v4004, %v4002
    %v4069 = vpack.c.b16 %v4005, %v4003
    %v4070 = vpack.c.b16 %v4008, %v4006
    %v4071 = vpack.c.b16 %v4009, %v4007
    %v4072 = vpack.c.b16 %v4012, %v4010
    %v4073 = vpack.c.b16 %v4013, %v4011
    %v4074 = vpack.c.b16 %v4016, %v4014
    %v4075 = vpack.c.b16 %v4017, %v4015
    %v4076 = vpack.c.b16 %v4020, %v4018
    %v4077 = vpack.c.b16 %v4021, %v4019
    %v4135 = vsel %vm208, %v3796, 0
    %4137 = vmatprep.subr.bf16.mxu0 %v4037
    %4138 = vmatpush1.bf16.msra.mxu0 %v4036
    %4139 = vmatprep.subr.bf16.mxu0 %v4035
    %4140 = vmatpush1.bf16.msra.mxu0 %v4034
    %4141 = vmatprep.subr.bf16.mxu0 %v4033
    %4142 = vmatpush1.bf16.msra.mxu0 %v4032
    %4143 = vmatprep.subr.bf16.mxu0 %v4031
    %4144 = vmatpush1.bf16.msra.mxu0 %v4030
    %4145 = vmatprep.subr.bf16.mxu0 %v4029
    %4146 = vmatpush1.bf16.msra.mxu0 %v4028
    %4147 = vmatprep.subr.bf16.mxu0 %v4027
    %4148 = vmatpush1.bf16.msra.mxu0 %v4026
    %4149 = vmatprep.subr.bf16.mxu0 %v4025
    %4150 = vmatpush1.bf16.msra.mxu0 %v4024
    %4151 = vmatprep.subr.bf16.mxu0 %v4023
    %4152 = vmatpush1.bf16.msra.mxu0 %v4022
    %4153 = vmatprep.subr.bf16.mxu0 %v4053
    %4154 = vmatpush2.bf16.msra.mxu0 %v4052
    %4155 = vmatprep.subr.bf16.mxu0 %v4051
    %4156 = vmatpush2.bf16.msra.mxu0 %v4050
    %4157 = vmatprep.subr.bf16.mxu0 %v4049
    %4158 = vmatpush2.bf16.msra.mxu0 %v4048
    %4159 = vmatprep.subr.bf16.mxu0 %v4047
    %4160 = vmatpush2.bf16.msra.mxu0 %v4046
    %4161 = vmatprep.subr.bf16.mxu0 %v4045
    %4162 = vmatpush2.bf16.msra.mxu0 %v4044
    %4163 = vmatprep.subr.bf16.mxu0 %v4043
    %4164 = vmatpush2.bf16.msra.mxu0 %v4042
    %4165 = vmatprep.subr.bf16.mxu0 %v4041
    %4166 = vmatpush2.bf16.msra.mxu0 %v4040
    %4167 = vmatprep.subr.bf16.mxu0 %v4039
    %4168 = vmatpush2.bf16.msra.mxu0 %v4038
    %4169 = vmatprep.mubr.bf16.mxu0 %v3794
    %4170 = vmatmul.mubr.bf16.gmra.mxu0 %v3793
    %v4171 = vpop.f32.mrf.mxu0
    %v4172 = vadd.f32 0.0, %v4171
    %v4173 = vpop.f32.mrf.mxu0
    %v4174 = vadd.f32 0.0, %v4173
    %v4175 = vpop.f32.mrf.mxu0
    %v4176 = vpop.f32.mrf.mxu0
    %4177 = vdwg.mxu0
    %4178 = vmatprep.subr.bf16.mxu0 %v4069
    %4179 = vmatpush1.bf16.msra.mxu0 %v4068
    %4180 = vmatprep.subr.bf16.mxu0 %v4067
    %4181 = vmatpush1.bf16.msra.mxu0 %v4066
    %4182 = vmatprep.subr.bf16.mxu0 %v4065
    %4183 = vmatpush1.bf16.msra.mxu0 %v4064
    %4184 = vmatprep.subr.bf16.mxu0 %v4063
    %4185 = vmatpush1.bf16.msra.mxu0 %v4062
    %4186 = vmatprep.subr.bf16.mxu0 %v4061
    %4187 = vmatpush1.bf16.msra.mxu0 %v4060
    %4188 = vmatprep.subr.bf16.mxu0 %v4059
    %4189 = vmatpush1.bf16.msra.mxu0 %v4058
    %4190 = vmatprep.subr.bf16.mxu0 %v4057
    %4191 = vmatpush1.bf16.msra.mxu0 %v4056
    %4192 = vmatprep.subr.bf16.mxu0 %v4055
    %4193 = vmatpush1.bf16.msra.mxu0 %v4054
    %4194 = vmatprep.subr.bf16.mxu0 0
    %4195 = vmatpush2.bf16.msra.mxu0 0
    %4196 = vmatprep.subr.bf16.mxu0 0
    %4197 = vmatpush2.bf16.msra.mxu0 0
    %4198 = vmatprep.subr.bf16.mxu0 0
    %4199 = vmatpush2.bf16.msra.mxu0 0
    %4200 = vmatprep.subr.bf16.mxu0 0
    %4201 = vmatpush2.bf16.msra.mxu0 0
    %4202 = vmatprep.subr.bf16.mxu0 %v4077
    %4203 = vmatpush2.bf16.msra.mxu0 %v4076
    %4204 = vmatprep.subr.bf16.mxu0 %v4075
    %4205 = vmatpush2.bf16.msra.mxu0 %v4074
    %4206 = vmatprep.subr.bf16.mxu0 %v4073
    %4207 = vmatpush2.bf16.msra.mxu0 %v4072
    %4208 = vmatprep.subr.bf16.mxu0 %v4071
    %4209 = vmatpush2.bf16.msra.mxu0 %v4070
    %4210 = vmatprep.mubr.bf16.mxu0 %v4135
    %4211 = vmatmul.mubr.bf16.gmra.mxu0 %v3795
    %v4212 = vpop.f32.mrf.mxu0
    %v4213 = vadd.f32 %v4172, %v4212
    %v4214 = vpop.f32.mrf.mxu0
    %v4215 = vadd.f32 %v4174, %v4214
    %v4216 = vpop.f32.mrf.mxu0
    %v4217 = vpop.f32.mrf.mxu0
    %4218 = vdwg.mxu0
    %v4219 = vadd.f32 %v3680, %v4213
    %v4220 = vadd.f32 %v3681, %v4215
    %s4221 = scalar_lea.vmem %s0, 9
    %v4222 = vld [vmem:[%s4221] sm:$0x1]
    %v4225 = vunpack.c.l.s4 1966171168
    %v4226 = vunpack.c.0.s8 %v4225
    %v4227 = vlaneseq
    %v4228 = vshrl.u32 %v4227, 7
    %v4229 = vsub.s32 %v4226, %v4228
    %v4230 = vrot.slane %v3683, %v4229
    %v4232 = vunpack.c.l.s4 1966171168
    %v4233 = vunpack.c.0.s8 %v4232
    %v4234 = vlaneseq
    %v4235 = vshrl.u32 %v4234, 7
    %v4236 = vsub.s32 %v4233, %v4235
    %v4237 = vrot.slane %v4230, %v4236
    %4238 = vrot.lane.b32.xlu0 %v4237, 64
    %v4239 = vpop.permute.xlu0 %4238
    %v4241 = vsel %vm208, %v3144, %v4239
    %v4244 = vsel %vm208, %v4222, 0
    %4246 = vmatprep.subr.bf16.mxu0 %v407
    %4247 = vmatpush1.bf16.msra.mxu0 %v406
    %4248 = vmatprep.subr.bf16.mxu0 %v403
    %4249 = vmatpush1.bf16.msra.mxu0 %v402
    %4250 = vmatprep.subr.bf16.mxu0 %v399
    %4251 = vmatpush1.bf16.msra.mxu0 %v398
    %4252 = vmatprep.subr.bf16.mxu0 %v395
    %4253 = vmatpush1.bf16.msra.mxu0 %v394
    %4254 = vmatprep.subr.bf16.mxu0 %v391
    %4255 = vmatpush1.bf16.msra.mxu0 %v390
    %4256 = vmatprep.subr.bf16.mxu0 %v387
    %4257 = vmatpush1.bf16.msra.mxu0 %v386
    %4258 = vmatprep.subr.bf16.mxu0 %v383
    %4259 = vmatpush1.bf16.msra.mxu0 %v382
    %4260 = vmatprep.subr.bf16.mxu0 %v379
    %4261 = vmatpush1.bf16.msra.mxu0 %v378
    %4262 = vmatprep.subr.bf16.mxu0 0
    %4263 = vmatpush2.bf16.msra.mxu0 0
    %4264 = vmatprep.subr.bf16.mxu0 0
    %4265 = vmatpush2.bf16.msra.mxu0 0
    %4266 = vmatprep.subr.bf16.mxu0 0
    %4267 = vmatpush2.bf16.msra.mxu0 0
    %4268 = vmatprep.subr.bf16.mxu0 0
    %4269 = vmatpush2.bf16.msra.mxu0 0
    %4270 = vmatprep.subr.bf16.mxu0 %v423
    %4271 = vmatpush2.bf16.msra.mxu0 %v422
    %4272 = vmatprep.subr.bf16.mxu0 %v419
    %4273 = vmatpush2.bf16.msra.mxu0 %v418
    %4274 = vmatprep.subr.bf16.mxu0 %v415
    %4275 = vmatpush2.bf16.msra.mxu0 %v414
    %4276 = vmatprep.subr.bf16.mxu0 %v411
    %4277 = vmatpush2.bf16.msra.mxu0 %v410
    %4278 = vmatprep.mubr.bf16.mxu0 %v4244
    %4279 = vmatmul.mubr.bf16.gmra.mxu0 %v4241
    %v4280 = vpop.f32.mrf.mxu0
    %v4281 = vadd.f32 %v217, %v4280
    %v4282 = vpop.f32.mrf.mxu0
    %v4283 = vadd.f32 %v221, %v4282
    %v4284 = vpop.f32.mrf.mxu0
    %v4285 = vpop.f32.mrf.mxu0
    %4286 = vdwg.mxu0
    %4287 = vmatprep.subr.bf16.mxu0 %v409
    %4288 = vmatpush1.bf16.msra.mxu0 %v408
    %4289 = vmatprep.subr.bf16.mxu0 %v405
    %4290 = vmatpush1.bf16.msra.mxu0 %v404
    %4291 = vmatprep.subr.bf16.mxu0 %v401
    %4292 = vmatpush1.bf16.msra.mxu0 %v400
    %4293 = vmatprep.subr.bf16.mxu0 %v397
    %4294 = vmatpush1.bf16.msra.mxu0 %v396
    %4295 = vmatprep.subr.bf16.mxu0 %v393
    %4296 = vmatpush1.bf16.msra.mxu0 %v392
    %4297 = vmatprep.subr.bf16.mxu0 %v389
    %4298 = vmatpush1.bf16.msra.mxu0 %v388
    %4299 = vmatprep.subr.bf16.mxu0 %v385
    %4300 = vmatpush1.bf16.msra.mxu0 %v384
    %4301 = vmatprep.subr.bf16.mxu0 %v381
    %4302 = vmatpush1.bf16.msra.mxu0 %v380
    %4303 = vmatprep.subr.bf16.mxu0 0
    %4304 = vmatpush2.bf16.msra.mxu0 0
    %4305 = vmatprep.subr.bf16.mxu0 0
    %4306 = vmatpush2.bf16.msra.mxu0 0
    %4307 = vmatprep.subr.bf16.mxu0 0
    %4308 = vmatpush2.bf16.msra.mxu0 0
    %4309 = vmatprep.subr.bf16.mxu0 0
    %4310 = vmatpush2.bf16.msra.mxu0 0
    %4311 = vmatprep.subr.bf16.mxu0 %v425
    %4312 = vmatpush2.bf16.msra.mxu0 %v424
    %4313 = vmatprep.subr.bf16.mxu0 %v421
    %4314 = vmatpush2.bf16.msra.mxu0 %v420
    %4315 = vmatprep.subr.bf16.mxu0 %v417
    %4316 = vmatpush2.bf16.msra.mxu0 %v416
    %4317 = vmatprep.subr.bf16.mxu0 %v413
    %4318 = vmatpush2.bf16.msra.mxu0 %v412
    %4319 = vmatprep.mubr.bf16.mxu0 %v4244
    %4320 = vmatmul.mubr.bf16.gmra.mxu0 %v4241
    %v4321 = vpop.f32.mrf.mxu0
    %v4322 = vadd.f32 %v225, %v4321
    %v4323 = vpop.f32.mrf.mxu0
    %v4324 = vadd.f32 %v229, %v4323
    %v4325 = vpop.f32.mrf.mxu0
    %v4326 = vpop.f32.mrf.mxu0
    %4327 = vdwg.mxu0
    %v4328 = vmax.f32 %v4281, 0.0
    %v4329 = vmax.f32 %v4283, 0.0
    %v4330 = vmax.f32 %v4322, 0.0
    %v4331 = vmax.f32 %v4324, 0.0
    %v4332 = vpack.c.bf16 %v4328, %v4328
    %v4333 = vpack.c.bf16 %v4329, %v4329
    %v4334 = vpack.c.bf16 %v4330, %v4330
    %v4335 = vpack.c.bf16 %v4331, %v4331
    %s4336 = scalar_lea.vmem [#allocation6], 3136
    %v4337 = vld [vmem:[%s4336] sm:$0xff]
    %v4338 = vld [vmem:[%s4336 + $0x8] sm:$0xff]
    %v4339 = vld [vmem:[%s4336 + $0x10] sm:$0xff]
    %v4340 = vld [vmem:[%s4336 + $0x18] sm:$0xff]
    %v4341 = vld [vmem:[%s4336 + $0x20] sm:$0xff]
    %v4342 = vld [vmem:[%s4336 + $0x28] sm:$0xff]
    %v4343 = vld [vmem:[%s4336 + $0x30] sm:$0xff]
    %v4344 = vld [vmem:[%s4336 + $0x38] sm:$0xff]
    %v4345 = vld [vmem:[%s4336 + $0x40] sm:$0xff]
    %v4346 = vld [vmem:[%s4336 + $0x48] sm:$0xff]
    %v4347 = vld [vmem:[%s4336 + $0x50] sm:$0xff]
    %v4348 = vld [vmem:[%s4336 + $0x58] sm:$0xff]
    %v4349 = vld [vmem:[%s4336 + $0x60] sm:$0xff]
    %v4350 = vld [vmem:[%s4336 + $0x68] sm:$0xff]
    %v4351 = vld [vmem:[%s4336 + $0x70] sm:$0xff]
    %v4352 = vld [vmem:[%s4336 + $0x78] sm:$0xff]
    %v4353 = vld [vmem:[%s4336 + $0x80] sm:$0xff]
    %v4354 = vld [vmem:[%s4336 + $0x88] sm:$0xff]
    %v4355 = vld [vmem:[%s4336 + $0x90] sm:$0xff]
    %v4356 = vld [vmem:[%s4336 + $0x98] sm:$0xff]
    %v4357 = vld [vmem:[%s4336 + $0xa0] sm:$0xff]
    %v4358 = vld [vmem:[%s4336 + $0xa8] sm:$0xff]
    %v4359 = vld [vmem:[%s4336 + $0xb0] sm:$0xff]
    %v4360 = vld [vmem:[%s4336 + $0xb8] sm:$0xff]
    %v4361 = vld [vmem:[%s4336 + $0xc0] sm:$0xff]
    %v4362 = vld [vmem:[%s4336 + $0xc8] sm:$0xff]
    %v4363 = vld [vmem:[%s4336 + $0xd0] sm:$0xff]
    %v4364 = vld [vmem:[%s4336 + $0xd8] sm:$0xff]
    %v4365 = vld [vmem:[%s4336 + $0xe0] sm:$0xff]
    %v4366 = vld [vmem:[%s4336 + $0xe8] sm:$0xff]
    %v4367 = vld [vmem:[%s4336 + $0xf0] sm:$0xff]
    %v4368 = vld [vmem:[%s4336 + $0xf8] sm:$0xff]
    %v4369 = vld [vmem:[%s4336 + $0x100] sm:$0xff]
    %v4370 = vld [vmem:[%s4336 + $0x108] sm:$0xff]
    %v4371 = vld [vmem:[%s4336 + $0x110] sm:$0xff]
    %v4372 = vld [vmem:[%s4336 + $0x118] sm:$0xff]
    %v4373 = vld [vmem:[%s4336 + $0x120] sm:$0xff]
    %v4374 = vld [vmem:[%s4336 + $0x128] sm:$0xff]
    %v4375 = vld [vmem:[%s4336 + $0x130] sm:$0xff]
    %v4376 = vld [vmem:[%s4336 + $0x138] sm:$0xff]
    %v4377 = vld [vmem:[%s4336 + $0x140] sm:$0xff]
    %v4378 = vld [vmem:[%s4336 + $0x148] sm:$0xff]
    %v4379 = vld [vmem:[%s4336 + $0x150] sm:$0xff]
    %v4380 = vld [vmem:[%s4336 + $0x158] sm:$0xff]
    %v4381 = vld [vmem:[%s4336 + $0x160] sm:$0xff]
    %v4382 = vld [vmem:[%s4336 + $0x168] sm:$0xff]
    %v4383 = vld [vmem:[%s4336 + $0x170] sm:$0xff]
    %v4384 = vld [vmem:[%s4336 + $0x178] sm:$0xff]
    %v4385 = vld [vmem:[%s4336 + $0x180] sm:$0xff]
    %v4386 = vld [vmem:[%s4336 + $0x188] sm:$0xff]
    %v4387 = vld [vmem:[%s4336 + $0x190] sm:$0xff]
    %v4388 = vld [vmem:[%s4336 + $0x198] sm:$0xff]
    %v4389 = vld [vmem:[%s4336 + $0x1a0] sm:$0xff]
    %v4390 = vld [vmem:[%s4336 + $0x1a8] sm:$0xff]
    %v4391 = vld [vmem:[%s4336 + $0x1b0] sm:$0xff]
    %v4392 = vld [vmem:[%s4336 + $0x1b8] sm:$0xff]
    %v4449 = vunpack.c.l.b16 %v4337
    %v4450 = vunpack.c.h.b16 %v4337
    %v4451 = vunpack.c.l.b16 %v4338
    %v4452 = vunpack.c.h.b16 %v4338
    %v4453 = vunpack.c.l.b16 %v4339
    %v4454 = vunpack.c.h.b16 %v4339
    %v4455 = vunpack.c.l.b16 %v4340
    %v4456 = vunpack.c.h.b16 %v4340
    %v4457 = vunpack.c.l.b16 %v4341
    %v4458 = vunpack.c.h.b16 %v4341
    %v4459 = vunpack.c.l.b16 %v4342
    %v4460 = vunpack.c.h.b16 %v4342
    %v4461 = vunpack.c.l.b16 %v4343
    %v4462 = vunpack.c.h.b16 %v4343
    %v4463 = vunpack.c.l.b16 %v4344
    %v4464 = vunpack.c.h.b16 %v4344
    %v4465 = vunpack.c.l.b16 %v4345
    %v4466 = vunpack.c.h.b16 %v4345
    %v4467 = vunpack.c.l.b16 %v4346
    %v4468 = vunpack.c.h.b16 %v4346
    %v4469 = vunpack.c.l.b16 %v4347
    %v4470 = vunpack.c.h.b16 %v4347
    %v4471 = vunpack.c.l.b16 %v4348
    %v4472 = vunpack.c.h.b16 %v4348
    %v4473 = vunpack.c.l.b16 %v4349
    %v4474 = vunpack.c.h.b16 %v4349
    %v4475 = vunpack.c.l.b16 %v4350
    %v4476 = vunpack.c.h.b16 %v4350
    %v4477 = vunpack.c.l.b16 %v4351
    %v4478 = vunpack.c.h.b16 %v4351
    %v4479 = vunpack.c.l.b16 %v4352
    %v4480 = vunpack.c.h.b16 %v4352
    %v4481 = vunpack.c.l.b16 %v4353
    %v4482 = vunpack.c.h.b16 %v4353
    %v4483 = vunpack.c.l.b16 %v4354
    %v4484 = vunpack.c.h.b16 %v4354
    %v4485 = vunpack.c.l.b16 %v4355
    %v4486 = vunpack.c.h.b16 %v4355
    %v4487 = vunpack.c.l.b16 %v4356
    %v4488 = vunpack.c.h.b16 %v4356
    %v4489 = vunpack.c.l.b16 %v4357
    %v4490 = vunpack.c.h.b16 %v4357
    %v4491 = vunpack.c.l.b16 %v4358
    %v4492 = vunpack.c.h.b16 %v4358
    %v4493 = vunpack.c.l.b16 %v4359
    %v4494 = vunpack.c.h.b16 %v4359
    %v4495 = vunpack.c.l.b16 %v4360
    %v4496 = vunpack.c.h.b16 %v4360
    %v4497 = vunpack.c.l.b16 %v4361
    %v4498 = vunpack.c.h.b16 %v4361
    %v4499 = vunpack.c.l.b16 %v4362
    %v4500 = vunpack.c.h.b16 %v4362
    %v4501 = vunpack.c.l.b16 %v4363
    %v4502 = vunpack.c.h.b16 %v4363
    %v4503 = vunpack.c.l.b16 %v4364
    %v4504 = vunpack.c.h.b16 %v4364
    %v4505 = vunpack.c.l.b16 %v4365
    %v4506 = vunpack.c.h.b16 %v4365
    %v4507 = vunpack.c.l.b16 %v4366
    %v4508 = vunpack.c.h.b16 %v4366
    %v4509 = vunpack.c.l.b16 %v4367
    %v4510 = vunpack.c.h.b16 %v4367
    %v4511 = vunpack.c.l.b16 %v4368
    %v4512 = vunpack.c.h.b16 %v4368
    %v4513 = vunpack.c.l.b16 %v4369
    %v4514 = vunpack.c.h.b16 %v4369
    %v4515 = vunpack.c.l.b16 %v4370
    %v4516 = vunpack.c.h.b16 %v4370
    %v4517 = vunpack.c.l.b16 %v4371
    %v4518 = vunpack.c.h.b16 %v4371
    %v4519 = vunpack.c.l.b16 %v4372
    %v4520 = vunpack.c.h.b16 %v4372
    %v4521 = vunpack.c.l.b16 %v4373
    %v4522 = vunpack.c.h.b16 %v4373
    %v4523 = vunpack.c.l.b16 %v4374
    %v4524 = vunpack.c.h.b16 %v4374
    %v4525 = vunpack.c.l.b16 %v4375
    %v4526 = vunpack.c.h.b16 %v4375
    %v4527 = vunpack.c.l.b16 %v4376
    %v4528 = vunpack.c.h.b16 %v4376
    %v4529 = vunpack.c.l.b16 %v4377
    %v4530 = vunpack.c.h.b16 %v4377
    %v4531 = vunpack.c.l.b16 %v4378
    %v4532 = vunpack.c.h.b16 %v4378
    %v4533 = vunpack.c.l.b16 %v4379
    %v4534 = vunpack.c.h.b16 %v4379
    %v4535 = vunpack.c.l.b16 %v4380
    %v4536 = vunpack.c.h.b16 %v4380
    %v4537 = vunpack.c.l.b16 %v4381
    %v4538 = vunpack.c.h.b16 %v4381
    %v4539 = vunpack.c.l.b16 %v4382
    %v4540 = vunpack.c.h.b16 %v4382
    %v4541 = vunpack.c.l.b16 %v4383
    %v4542 = vunpack.c.h.b16 %v4383
    %v4543 = vunpack.c.l.b16 %v4384
    %v4544 = vunpack.c.h.b16 %v4384
    %v4545 = vunpack.c.l.b16 %v4385
    %v4546 = vunpack.c.h.b16 %v4385
    %v4547 = vunpack.c.l.b16 %v4386
    %v4548 = vunpack.c.h.b16 %v4386
    %v4549 = vunpack.c.l.b16 %v4387
    %v4550 = vunpack.c.h.b16 %v4387
    %v4551 = vunpack.c.l.b16 %v4388
    %v4552 = vunpack.c.h.b16 %v4388
    %v4553 = vunpack.c.l.b16 %v4389
    %v4554 = vunpack.c.h.b16 %v4389
    %v4555 = vunpack.c.l.b16 %v4390
    %v4556 = vunpack.c.h.b16 %v4390
    %v4557 = vunpack.c.l.b16 %v4391
    %v4558 = vunpack.c.h.b16 %v4391
    %v4559 = vunpack.c.l.b16 %v4392
    %v4560 = vunpack.c.h.b16 %v4392
    %v4561 = vpack.c.b16 %v4451, %v4449
    %v4562 = vpack.c.b16 %v4452, %v4450
    %v4563 = vpack.c.b16 %v4455, %v4453
    %v4564 = vpack.c.b16 %v4456, %v4454
    %v4565 = vpack.c.b16 %v4459, %v4457
    %v4566 = vpack.c.b16 %v4460, %v4458
    %v4567 = vpack.c.b16 %v4463, %v4461
    %v4568 = vpack.c.b16 %v4464, %v4462
    %v4569 = vpack.c.b16 %v4467, %v4465
    %v4570 = vpack.c.b16 %v4468, %v4466
    %v4571 = vpack.c.b16 %v4471, %v4469
    %v4572 = vpack.c.b16 %v4472, %v4470
    %v4573 = vpack.c.b16 %v4475, %v4473
    %v4574 = vpack.c.b16 %v4476, %v4474
    %v4575 = vpack.c.b16 %v4479, %v4477
    %v4576 = vpack.c.b16 %v4480, %v4478
    %v4577 = vpack.c.b16 %v4483, %v4481
    %v4578 = vpack.c.b16 %v4484, %v4482
    %v4579 = vpack.c.b16 %v4487, %v4485
    %v4580 = vpack.c.b16 %v4488, %v4486
    %v4581 = vpack.c.b16 %v4491, %v4489
    %v4582 = vpack.c.b16 %v4492, %v4490
    %v4583 = vpack.c.b16 %v4495, %v4493
    %v4584 = vpack.c.b16 %v4496, %v4494
    %v4585 = vpack.c.b16 %v4499, %v4497
    %v4586 = vpack.c.b16 %v4500, %v4498
    %v4587 = vpack.c.b16 %v4503, %v4501
    %v4588 = vpack.c.b16 %v4504, %v4502
    %v4589 = vpack.c.b16 %v4507, %v4505
    %v4590 = vpack.c.b16 %v4508, %v4506
    %v4591 = vpack.c.b16 %v4511, %v4509
    %v4592 = vpack.c.b16 %v4512, %v4510
    %v4593 = vpack.c.b16 %v4515, %v4513
    %v4594 = vpack.c.b16 %v4516, %v4514
    %v4595 = vpack.c.b16 %v4519, %v4517
    %v4596 = vpack.c.b16 %v4520, %v4518
    %v4597 = vpack.c.b16 %v4523, %v4521
    %v4598 = vpack.c.b16 %v4524, %v4522
    %v4599 = vpack.c.b16 %v4527, %v4525
    %v4600 = vpack.c.b16 %v4528, %v4526
    %v4601 = vpack.c.b16 %v4531, %v4529
    %v4602 = vpack.c.b16 %v4532, %v4530
    %v4603 = vpack.c.b16 %v4535, %v4533
    %v4604 = vpack.c.b16 %v4536, %v4534
    %v4605 = vpack.c.b16 %v4539, %v4537
    %v4606 = vpack.c.b16 %v4540, %v4538
    %v4607 = vpack.c.b16 %v4543, %v4541
    %v4608 = vpack.c.b16 %v4544, %v4542
    %v4609 = vpack.c.b16 %v4547, %v4545
    %v4610 = vpack.c.b16 %v4548, %v4546
    %v4611 = vpack.c.b16 %v4551, %v4549
    %v4612 = vpack.c.b16 %v4552, %v4550
    %v4613 = vpack.c.b16 %v4555, %v4553
    %v4614 = vpack.c.b16 %v4556, %v4554
    %v4615 = vpack.c.b16 %v4559, %v4557
    %v4616 = vpack.c.b16 %v4560, %v4558
    %v4674 = vsel %vm208, %v4335, 0
    %4676 = vmatprep.subr.bf16.mxu0 %v4576
    %4677 = vmatpush1.bf16.msra.mxu0 %v4575
    %4678 = vmatprep.subr.bf16.mxu0 %v4574
    %4679 = vmatpush1.bf16.msra.mxu0 %v4573
    %4680 = vmatprep.subr.bf16.mxu0 %v4572
    %4681 = vmatpush1.bf16.msra.mxu0 %v4571
    %4682 = vmatprep.subr.bf16.mxu0 %v4570
    %4683 = vmatpush1.bf16.msra.mxu0 %v4569
    %4684 = vmatprep.subr.bf16.mxu0 %v4568
    %4685 = vmatpush1.bf16.msra.mxu0 %v4567
    %4686 = vmatprep.subr.bf16.mxu0 %v4566
    %4687 = vmatpush1.bf16.msra.mxu0 %v4565
    %4688 = vmatprep.subr.bf16.mxu0 %v4564
    %4689 = vmatpush1.bf16.msra.mxu0 %v4563
    %4690 = vmatprep.subr.bf16.mxu0 %v4562
    %4691 = vmatpush1.bf16.msra.mxu0 %v4561
    %4692 = vmatprep.subr.bf16.mxu0 %v4592
    %4693 = vmatpush2.bf16.msra.mxu0 %v4591
    %4694 = vmatprep.subr.bf16.mxu0 %v4590
    %4695 = vmatpush2.bf16.msra.mxu0 %v4589
    %4696 = vmatprep.subr.bf16.mxu0 %v4588
    %4697 = vmatpush2.bf16.msra.mxu0 %v4587
    %4698 = vmatprep.subr.bf16.mxu0 %v4586
    %4699 = vmatpush2.bf16.msra.mxu0 %v4585
    %4700 = vmatprep.subr.bf16.mxu0 %v4584
    %4701 = vmatpush2.bf16.msra.mxu0 %v4583
    %4702 = vmatprep.subr.bf16.mxu0 %v4582
    %4703 = vmatpush2.bf16.msra.mxu0 %v4581
    %4704 = vmatprep.subr.bf16.mxu0 %v4580
    %4705 = vmatpush2.bf16.msra.mxu0 %v4579
    %4706 = vmatprep.subr.bf16.mxu0 %v4578
    %4707 = vmatpush2.bf16.msra.mxu0 %v4577
    %4708 = vmatprep.mubr.bf16.mxu0 %v4333
    %4709 = vmatmul.mubr.bf16.gmra.mxu0 %v4332
    %v4710 = vpop.f32.mrf.mxu0
    %v4711 = vadd.f32 0.0, %v4710
    %v4712 = vpop.f32.mrf.mxu0
    %v4713 = vadd.f32 0.0, %v4712
    %v4714 = vpop.f32.mrf.mxu0
    %v4715 = vpop.f32.mrf.mxu0
    %4716 = vdwg.mxu0
    %4717 = vmatprep.subr.bf16.mxu0 %v4608
    %4718 = vmatpush1.bf16.msra.mxu0 %v4607
    %4719 = vmatprep.subr.bf16.mxu0 %v4606
    %4720 = vmatpush1.bf16.msra.mxu0 %v4605
    %4721 = vmatprep.subr.bf16.mxu0 %v4604
    %4722 = vmatpush1.bf16.msra.mxu0 %v4603
    %4723 = vmatprep.subr.bf16.mxu0 %v4602
    %4724 = vmatpush1.bf16.msra.mxu0 %v4601
    %4725 = vmatprep.subr.bf16.mxu0 %v4600
    %4726 = vmatpush1.bf16.msra.mxu0 %v4599
    %4727 = vmatprep.subr.bf16.mxu0 %v4598
    %4728 = vmatpush1.bf16.msra.mxu0 %v4597
    %4729 = vmatprep.subr.bf16.mxu0 %v4596
    %4730 = vmatpush1.bf16.msra.mxu0 %v4595
    %4731 = vmatprep.subr.bf16.mxu0 %v4594
    %4732 = vmatpush1.bf16.msra.mxu0 %v4593
    %4733 = vmatprep.subr.bf16.mxu0 0
    %4734 = vmatpush2.bf16.msra.mxu0 0
    %4735 = vmatprep.subr.bf16.mxu0 0
    %4736 = vmatpush2.bf16.msra.mxu0 0
    %4737 = vmatprep.subr.bf16.mxu0 0
    %4738 = vmatpush2.bf16.msra.mxu0 0
    %4739 = vmatprep.subr.bf16.mxu0 0
    %4740 = vmatpush2.bf16.msra.mxu0 0
    %4741 = vmatprep.subr.bf16.mxu0 %v4616
    %4742 = vmatpush2.bf16.msra.mxu0 %v4615
    %4743 = vmatprep.subr.bf16.mxu0 %v4614
    %4744 = vmatpush2.bf16.msra.mxu0 %v4613
    %4745 = vmatprep.subr.bf16.mxu0 %v4612
    %4746 = vmatpush2.bf16.msra.mxu0 %v4611
    %4747 = vmatprep.subr.bf16.mxu0 %v4610
    %4748 = vmatpush2.bf16.msra.mxu0 %v4609
    %4749 = vmatprep.mubr.bf16.mxu0 %v4674
    %4750 = vmatmul.mubr.bf16.gmra.mxu0 %v4334
    %v4751 = vpop.f32.mrf.mxu0
    %v4752 = vadd.f32 %v4711, %v4751
    %v4753 = vpop.f32.mrf.mxu0
    %v4754 = vadd.f32 %v4713, %v4753
    %v4755 = vpop.f32.mrf.mxu0
    %v4756 = vpop.f32.mrf.mxu0
    %4757 = vdwg.mxu0
    %v4758 = vadd.f32 %v4219, %v4752
    %v4759 = vadd.f32 %v4220, %v4754
    %s4760 = scalar_lea.vmem %s0, 10
    %v4761 = vld [vmem:[%s4760] sm:$0x1]
    %v4764 = vunpack.c.l.s4 1966171168
    %v4765 = vunpack.c.0.s8 %v4764
    %v4766 = vlaneseq
    %v4767 = vshrl.u32 %v4766, 7
    %v4768 = vsub.s32 %v4765, %v4767
    %v4769 = vrot.slane %v4222, %v4768
    %v4771 = vunpack.c.l.s4 1966171168
    %v4772 = vunpack.c.0.s8 %v4771
    %v4773 = vlaneseq
    %v4774 = vshrl.u32 %v4773, 7
    %v4775 = vsub.s32 %v4772, %v4774
    %v4776 = vrot.slane %v4769, %v4775
    %4777 = vrot.lane.b32.xlu0 %v4776, 64
    %v4778 = vpop.permute.xlu0 %4777
    %v4780 = vsel %vm208, %v3683, %v4778
    %v4783 = vsel %vm208, %v4761, 0
    %4785 = vmatprep.subr.bf16.mxu0 %v407
    %4786 = vmatpush1.bf16.msra.mxu0 %v406
    %4787 = vmatprep.subr.bf16.mxu0 %v403
    %4788 = vmatpush1.bf16.msra.mxu0 %v402
    %4789 = vmatprep.subr.bf16.mxu0 %v399
    %4790 = vmatpush1.bf16.msra.mxu0 %v398
    %4791 = vmatprep.subr.bf16.mxu0 %v395
    %4792 = vmatpush1.bf16.msra.mxu0 %v394
    %4793 = vmatprep.subr.bf16.mxu0 %v391
    %4794 = vmatpush1.bf16.msra.mxu0 %v390
    %4795 = vmatprep.subr.bf16.mxu0 %v387
    %4796 = vmatpush1.bf16.msra.mxu0 %v386
    %4797 = vmatprep.subr.bf16.mxu0 %v383
    %4798 = vmatpush1.bf16.msra.mxu0 %v382
    %4799 = vmatprep.subr.bf16.mxu0 %v379
    %4800 = vmatpush1.bf16.msra.mxu0 %v378
    %4801 = vmatprep.subr.bf16.mxu0 0
    %4802 = vmatpush2.bf16.msra.mxu0 0
    %4803 = vmatprep.subr.bf16.mxu0 0
    %4804 = vmatpush2.bf16.msra.mxu0 0
    %4805 = vmatprep.subr.bf16.mxu0 0
    %4806 = vmatpush2.bf16.msra.mxu0 0
    %4807 = vmatprep.subr.bf16.mxu0 0
    %4808 = vmatpush2.bf16.msra.mxu0 0
    %4809 = vmatprep.subr.bf16.mxu0 %v423
    %4810 = vmatpush2.bf16.msra.mxu0 %v422
    %4811 = vmatprep.subr.bf16.mxu0 %v419
    %4812 = vmatpush2.bf16.msra.mxu0 %v418
    %4813 = vmatprep.subr.bf16.mxu0 %v415
    %4814 = vmatpush2.bf16.msra.mxu0 %v414
    %4815 = vmatprep.subr.bf16.mxu0 %v411
    %4816 = vmatpush2.bf16.msra.mxu0 %v410
    %4817 = vmatprep.mubr.bf16.mxu0 %v4783
    %4818 = vmatmul.mubr.bf16.gmra.mxu0 %v4780
    %v4819 = vpop.f32.mrf.mxu0
    %v4820 = vadd.f32 %v217, %v4819
    %v4821 = vpop.f32.mrf.mxu0
    %v4822 = vadd.f32 %v221, %v4821
    %v4823 = vpop.f32.mrf.mxu0
    %v4824 = vpop.f32.mrf.mxu0
    %4825 = vdwg.mxu0
    %4826 = vmatprep.subr.bf16.mxu0 %v409
    %4827 = vmatpush1.bf16.msra.mxu0 %v408
    %4828 = vmatprep.subr.bf16.mxu0 %v405
    %4829 = vmatpush1.bf16.msra.mxu0 %v404
    %4830 = vmatprep.subr.bf16.mxu0 %v401
    %4831 = vmatpush1.bf16.msra.mxu0 %v400
    %4832 = vmatprep.subr.bf16.mxu0 %v397
    %4833 = vmatpush1.bf16.msra.mxu0 %v396
    %4834 = vmatprep.subr.bf16.mxu0 %v393
    %4835 = vmatpush1.bf16.msra.mxu0 %v392
    %4836 = vmatprep.subr.bf16.mxu0 %v389
    %4837 = vmatpush1.bf16.msra.mxu0 %v388
    %4838 = vmatprep.subr.bf16.mxu0 %v385
    %4839 = vmatpush1.bf16.msra.mxu0 %v384
    %4840 = vmatprep.subr.bf16.mxu0 %v381
    %4841 = vmatpush1.bf16.msra.mxu0 %v380
    %4842 = vmatprep.subr.bf16.mxu0 0
    %4843 = vmatpush2.bf16.msra.mxu0 0
    %4844 = vmatprep.subr.bf16.mxu0 0
    %4845 = vmatpush2.bf16.msra.mxu0 0
    %4846 = vmatprep.subr.bf16.mxu0 0
    %4847 = vmatpush2.bf16.msra.mxu0 0
    %4848 = vmatprep.subr.bf16.mxu0 0
    %4849 = vmatpush2.bf16.msra.mxu0 0
    %4850 = vmatprep.subr.bf16.mxu0 %v425
    %4851 = vmatpush2.bf16.msra.mxu0 %v424
    %4852 = vmatprep.subr.bf16.mxu0 %v421
    %4853 = vmatpush2.bf16.msra.mxu0 %v420
    %4854 = vmatprep.subr.bf16.mxu0 %v417
    %4855 = vmatpush2.bf16.msra.mxu0 %v416
    %4856 = vmatprep.subr.bf16.mxu0 %v413
    %4857 = vmatpush2.bf16.msra.mxu0 %v412
    %4858 = vmatprep.mubr.bf16.mxu0 %v4783
    %4859 = vmatmul.mubr.bf16.gmra.mxu0 %v4780
    %v4860 = vpop.f32.mrf.mxu0
    %v4861 = vadd.f32 %v225, %v4860
    %v4862 = vpop.f32.mrf.mxu0
    %v4863 = vadd.f32 %v229, %v4862
    %v4864 = vpop.f32.mrf.mxu0
    %v4865 = vpop.f32.mrf.mxu0
    %4866 = vdwg.mxu0
    %v4867 = vmax.f32 %v4820, 0.0
    %v4868 = vmax.f32 %v4822, 0.0
    %v4869 = vmax.f32 %v4861, 0.0
    %v4870 = vmax.f32 %v4863, 0.0
    %v4871 = vpack.c.bf16 %v4867, %v4867
    %v4872 = vpack.c.bf16 %v4868, %v4868
    %v4873 = vpack.c.bf16 %v4869, %v4869
    %v4874 = vpack.c.bf16 %v4870, %v4870
    %s4875 = scalar_lea.vmem [#allocation6], 3584
    %v4876 = vld [vmem:[%s4875] sm:$0xff]
    %v4877 = vld [vmem:[%s4875 + $0x8] sm:$0xff]
    %v4878 = vld [vmem:[%s4875 + $0x10] sm:$0xff]
    %v4879 = vld [vmem:[%s4875 + $0x18] sm:$0xff]
    %v4880 = vld [vmem:[%s4875 + $0x20] sm:$0xff]
    %v4881 = vld [vmem:[%s4875 + $0x28] sm:$0xff]
    %v4882 = vld [vmem:[%s4875 + $0x30] sm:$0xff]
    %v4883 = vld [vmem:[%s4875 + $0x38] sm:$0xff]
    %v4884 = vld [vmem:[%s4875 + $0x40] sm:$0xff]
    %v4885 = vld [vmem:[%s4875 + $0x48] sm:$0xff]
    %v4886 = vld [vmem:[%s4875 + $0x50] sm:$0xff]
    %v4887 = vld [vmem:[%s4875 + $0x58] sm:$0xff]
    %v4888 = vld [vmem:[%s4875 + $0x60] sm:$0xff]
    %v4889 = vld [vmem:[%s4875 + $0x68] sm:$0xff]
    %v4890 = vld [vmem:[%s4875 + $0x70] sm:$0xff]
    %v4891 = vld [vmem:[%s4875 + $0x78] sm:$0xff]
    %v4892 = vld [vmem:[%s4875 + $0x80] sm:$0xff]
    %v4893 = vld [vmem:[%s4875 + $0x88] sm:$0xff]
    %v4894 = vld [vmem:[%s4875 + $0x90] sm:$0xff]
    %v4895 = vld [vmem:[%s4875 + $0x98] sm:$0xff]
    %v4896 = vld [vmem:[%s4875 + $0xa0] sm:$0xff]
    %v4897 = vld [vmem:[%s4875 + $0xa8] sm:$0xff]
    %v4898 = vld [vmem:[%s4875 + $0xb0] sm:$0xff]
    %v4899 = vld [vmem:[%s4875 + $0xb8] sm:$0xff]
    %v4900 = vld [vmem:[%s4875 + $0xc0] sm:$0xff]
    %v4901 = vld [vmem:[%s4875 + $0xc8] sm:$0xff]
    %v4902 = vld [vmem:[%s4875 + $0xd0] sm:$0xff]
    %v4903 = vld [vmem:[%s4875 + $0xd8] sm:$0xff]
    %v4904 = vld [vmem:[%s4875 + $0xe0] sm:$0xff]
    %v4905 = vld [vmem:[%s4875 + $0xe8] sm:$0xff]
    %v4906 = vld [vmem:[%s4875 + $0xf0] sm:$0xff]
    %v4907 = vld [vmem:[%s4875 + $0xf8] sm:$0xff]
    %v4908 = vld [vmem:[%s4875 + $0x100] sm:$0xff]
    %v4909 = vld [vmem:[%s4875 + $0x108] sm:$0xff]
    %v4910 = vld [vmem:[%s4875 + $0x110] sm:$0xff]
    %v4911 = vld [vmem:[%s4875 + $0x118] sm:$0xff]
    %v4912 = vld [vmem:[%s4875 + $0x120] sm:$0xff]
    %v4913 = vld [vmem:[%s4875 + $0x128] sm:$0xff]
    %v4914 = vld [vmem:[%s4875 + $0x130] sm:$0xff]
    %v4915 = vld [vmem:[%s4875 + $0x138] sm:$0xff]
    %v4916 = vld [vmem:[%s4875 + $0x140] sm:$0xff]
    %v4917 = vld [vmem:[%s4875 + $0x148] sm:$0xff]
    %v4918 = vld [vmem:[%s4875 + $0x150] sm:$0xff]
    %v4919 = vld [vmem:[%s4875 + $0x158] sm:$0xff]
    %v4920 = vld [vmem:[%s4875 + $0x160] sm:$0xff]
    %v4921 = vld [vmem:[%s4875 + $0x168] sm:$0xff]
    %v4922 = vld [vmem:[%s4875 + $0x170] sm:$0xff]
    %v4923 = vld [vmem:[%s4875 + $0x178] sm:$0xff]
    %v4924 = vld [vmem:[%s4875 + $0x180] sm:$0xff]
    %v4925 = vld [vmem:[%s4875 + $0x188] sm:$0xff]
    %v4926 = vld [vmem:[%s4875 + $0x190] sm:$0xff]
    %v4927 = vld [vmem:[%s4875 + $0x198] sm:$0xff]
    %v4928 = vld [vmem:[%s4875 + $0x1a0] sm:$0xff]
    %v4929 = vld [vmem:[%s4875 + $0x1a8] sm:$0xff]
    %v4930 = vld [vmem:[%s4875 + $0x1b0] sm:$0xff]
    %v4931 = vld [vmem:[%s4875 + $0x1b8] sm:$0xff]
    %v4988 = vunpack.c.l.b16 %v4876
    %v4989 = vunpack.c.h.b16 %v4876
    %v4990 = vunpack.c.l.b16 %v4877
    %v4991 = vunpack.c.h.b16 %v4877
    %v4992 = vunpack.c.l.b16 %v4878
    %v4993 = vunpack.c.h.b16 %v4878
    %v4994 = vunpack.c.l.b16 %v4879
    %v4995 = vunpack.c.h.b16 %v4879
    %v4996 = vunpack.c.l.b16 %v4880
    %v4997 = vunpack.c.h.b16 %v4880
    %v4998 = vunpack.c.l.b16 %v4881
    %v4999 = vunpack.c.h.b16 %v4881
    %v5000 = vunpack.c.l.b16 %v4882
    %v5001 = vunpack.c.h.b16 %v4882
    %v5002 = vunpack.c.l.b16 %v4883
    %v5003 = vunpack.c.h.b16 %v4883
    %v5004 = vunpack.c.l.b16 %v4884
    %v5005 = vunpack.c.h.b16 %v4884
    %v5006 = vunpack.c.l.b16 %v4885
    %v5007 = vunpack.c.h.b16 %v4885
    %v5008 = vunpack.c.l.b16 %v4886
    %v5009 = vunpack.c.h.b16 %v4886
    %v5010 = vunpack.c.l.b16 %v4887
    %v5011 = vunpack.c.h.b16 %v4887
    %v5012 = vunpack.c.l.b16 %v4888
    %v5013 = vunpack.c.h.b16 %v4888
    %v5014 = vunpack.c.l.b16 %v4889
    %v5015 = vunpack.c.h.b16 %v4889
    %v5016 = vunpack.c.l.b16 %v4890
    %v5017 = vunpack.c.h.b16 %v4890
    %v5018 = vunpack.c.l.b16 %v4891
    %v5019 = vunpack.c.h.b16 %v4891
    %v5020 = vunpack.c.l.b16 %v4892
    %v5021 = vunpack.c.h.b16 %v4892
    %v5022 = vunpack.c.l.b16 %v4893
    %v5023 = vunpack.c.h.b16 %v4893
    %v5024 = vunpack.c.l.b16 %v4894
    %v5025 = vunpack.c.h.b16 %v4894
    %v5026 = vunpack.c.l.b16 %v4895
    %v5027 = vunpack.c.h.b16 %v4895
    %v5028 = vunpack.c.l.b16 %v4896
    %v5029 = vunpack.c.h.b16 %v4896
    %v5030 = vunpack.c.l.b16 %v4897
    %v5031 = vunpack.c.h.b16 %v4897
    %v5032 = vunpack.c.l.b16 %v4898
    %v5033 = vunpack.c.h.b16 %v4898
    %v5034 = vunpack.c.l.b16 %v4899
    %v5035 = vunpack.c.h.b16 %v4899
    %v5036 = vunpack.c.l.b16 %v4900
    %v5037 = vunpack.c.h.b16 %v4900
    %v5038 = vunpack.c.l.b16 %v4901
    %v5039 = vunpack.c.h.b16 %v4901
    %v5040 = vunpack.c.l.b16 %v4902
    %v5041 = vunpack.c.h.b16 %v4902
    %v5042 = vunpack.c.l.b16 %v4903
    %v5043 = vunpack.c.h.b16 %v4903
    %v5044 = vunpack.c.l.b16 %v4904
    %v5045 = vunpack.c.h.b16 %v4904
    %v5046 = vunpack.c.l.b16 %v4905
    %v5047 = vunpack.c.h.b16 %v4905
    %v5048 = vunpack.c.l.b16 %v4906
    %v5049 = vunpack.c.h.b16 %v4906
    %v5050 = vunpack.c.l.b16 %v4907
    %v5051 = vunpack.c.h.b16 %v4907
    %v5052 = vunpack.c.l.b16 %v4908
    %v5053 = vunpack.c.h.b16 %v4908
    %v5054 = vunpack.c.l.b16 %v4909
    %v5055 = vunpack.c.h.b16 %v4909
    %v5056 = vunpack.c.l.b16 %v4910
    %v5057 = vunpack.c.h.b16 %v4910
    %v5058 = vunpack.c.l.b16 %v4911
    %v5059 = vunpack.c.h.b16 %v4911
    %v5060 = vunpack.c.l.b16 %v4912
    %v5061 = vunpack.c.h.b16 %v4912
    %v5062 = vunpack.c.l.b16 %v4913
    %v5063 = vunpack.c.h.b16 %v4913
    %v5064 = vunpack.c.l.b16 %v4914
    %v5065 = vunpack.c.h.b16 %v4914
    %v5066 = vunpack.c.l.b16 %v4915
    %v5067 = vunpack.c.h.b16 %v4915
    %v5068 = vunpack.c.l.b16 %v4916
    %v5069 = vunpack.c.h.b16 %v4916
    %v5070 = vunpack.c.l.b16 %v4917
    %v5071 = vunpack.c.h.b16 %v4917
    %v5072 = vunpack.c.l.b16 %v4918
    %v5073 = vunpack.c.h.b16 %v4918
    %v5074 = vunpack.c.l.b16 %v4919
    %v5075 = vunpack.c.h.b16 %v4919
    %v5076 = vunpack.c.l.b16 %v4920
    %v5077 = vunpack.c.h.b16 %v4920
    %v5078 = vunpack.c.l.b16 %v4921
    %v5079 = vunpack.c.h.b16 %v4921
    %v5080 = vunpack.c.l.b16 %v4922
    %v5081 = vunpack.c.h.b16 %v4922
    %v5082 = vunpack.c.l.b16 %v4923
    %v5083 = vunpack.c.h.b16 %v4923
    %v5084 = vunpack.c.l.b16 %v4924
    %v5085 = vunpack.c.h.b16 %v4924
    %v5086 = vunpack.c.l.b16 %v4925
    %v5087 = vunpack.c.h.b16 %v4925
    %v5088 = vunpack.c.l.b16 %v4926
    %v5089 = vunpack.c.h.b16 %v4926
    %v5090 = vunpack.c.l.b16 %v4927
    %v5091 = vunpack.c.h.b16 %v4927
    %v5092 = vunpack.c.l.b16 %v4928
    %v5093 = vunpack.c.h.b16 %v4928
    %v5094 = vunpack.c.l.b16 %v4929
    %v5095 = vunpack.c.h.b16 %v4929
    %v5096 = vunpack.c.l.b16 %v4930
    %v5097 = vunpack.c.h.b16 %v4930
    %v5098 = vunpack.c.l.b16 %v4931
    %v5099 = vunpack.c.h.b16 %v4931
    %v5100 = vpack.c.b16 %v4990, %v4988
    %v5101 = vpack.c.b16 %v4991, %v4989
    %v5102 = vpack.c.b16 %v4994, %v4992
    %v5103 = vpack.c.b16 %v4995, %v4993
    %v5104 = vpack.c.b16 %v4998, %v4996
    %v5105 = vpack.c.b16 %v4999, %v4997
    %v5106 = vpack.c.b16 %v5002, %v5000
    %v5107 = vpack.c.b16 %v5003, %v5001
    %v5108 = vpack.c.b16 %v5006, %v5004
    %v5109 = vpack.c.b16 %v5007, %v5005
    %v5110 = vpack.c.b16 %v5010, %v5008
    %v5111 = vpack.c.b16 %v5011, %v5009
    %v5112 = vpack.c.b16 %v5014, %v5012
    %v5113 = vpack.c.b16 %v5015, %v5013
    %v5114 = vpack.c.b16 %v5018, %v5016
    %v5115 = vpack.c.b16 %v5019, %v5017
    %v5116 = vpack.c.b16 %v5022, %v5020
    %v5117 = vpack.c.b16 %v5023, %v5021
    %v5118 = vpack.c.b16 %v5026, %v5024
    %v5119 = vpack.c.b16 %v5027, %v5025
    %v5120 = vpack.c.b16 %v5030, %v5028
    %v5121 = vpack.c.b16 %v5031, %v5029
    %v5122 = vpack.c.b16 %v5034, %v5032
    %v5123 = vpack.c.b16 %v5035, %v5033
    %v5124 = vpack.c.b16 %v5038, %v5036
    %v5125 = vpack.c.b16 %v5039, %v5037
    %v5126 = vpack.c.b16 %v5042, %v5040
    %v5127 = vpack.c.b16 %v5043, %v5041
    %v5128 = vpack.c.b16 %v5046, %v5044
    %v5129 = vpack.c.b16 %v5047, %v5045
    %v5130 = vpack.c.b16 %v5050, %v5048
    %v5131 = vpack.c.b16 %v5051, %v5049
    %v5132 = vpack.c.b16 %v5054, %v5052
    %v5133 = vpack.c.b16 %v5055, %v5053
    %v5134 = vpack.c.b16 %v5058, %v5056
    %v5135 = vpack.c.b16 %v5059, %v5057
    %v5136 = vpack.c.b16 %v5062, %v5060
    %v5137 = vpack.c.b16 %v5063, %v5061
    %v5138 = vpack.c.b16 %v5066, %v5064
    %v5139 = vpack.c.b16 %v5067, %v5065
    %v5140 = vpack.c.b16 %v5070, %v5068
    %v5141 = vpack.c.b16 %v5071, %v5069
    %v5142 = vpack.c.b16 %v5074, %v5072
    %v5143 = vpack.c.b16 %v5075, %v5073
    %v5144 = vpack.c.b16 %v5078, %v5076
    %v5145 = vpack.c.b16 %v5079, %v5077
    %v5146 = vpack.c.b16 %v5082, %v5080
    %v5147 = vpack.c.b16 %v5083, %v5081
    %v5148 = vpack.c.b16 %v5086, %v5084
    %v5149 = vpack.c.b16 %v5087, %v5085
    %v5150 = vpack.c.b16 %v5090, %v5088
    %v5151 = vpack.c.b16 %v5091, %v5089
    %v5152 = vpack.c.b16 %v5094, %v5092
    %v5153 = vpack.c.b16 %v5095, %v5093
    %v5154 = vpack.c.b16 %v5098, %v5096
    %v5155 = vpack.c.b16 %v5099, %v5097
    %v5213 = vsel %vm208, %v4874, 0
    %5215 = vmatprep.subr.bf16.mxu0 %v5115
    %5216 = vmatpush1.bf16.msra.mxu0 %v5114
    %5217 = vmatprep.subr.bf16.mxu0 %v5113
    %5218 = vmatpush1.bf16.msra.mxu0 %v5112
    %5219 = vmatprep.subr.bf16.mxu0 %v5111
    %5220 = vmatpush1.bf16.msra.mxu0 %v5110
    %5221 = vmatprep.subr.bf16.mxu0 %v5109
    %5222 = vmatpush1.bf16.msra.mxu0 %v5108
    %5223 = vmatprep.subr.bf16.mxu0 %v5107
    %5224 = vmatpush1.bf16.msra.mxu0 %v5106
    %5225 = vmatprep.subr.bf16.mxu0 %v5105
    %5226 = vmatpush1.bf16.msra.mxu0 %v5104
    %5227 = vmatprep.subr.bf16.mxu0 %v5103
    %5228 = vmatpush1.bf16.msra.mxu0 %v5102
    %5229 = vmatprep.subr.bf16.mxu0 %v5101
    %5230 = vmatpush1.bf16.msra.mxu0 %v5100
    %5231 = vmatprep.subr.bf16.mxu0 %v5131
    %5232 = vmatpush2.bf16.msra.mxu0 %v5130
    %5233 = vmatprep.subr.bf16.mxu0 %v5129
    %5234 = vmatpush2.bf16.msra.mxu0 %v5128
    %5235 = vmatprep.subr.bf16.mxu0 %v5127
    %5236 = vmatpush2.bf16.msra.mxu0 %v5126
    %5237 = vmatprep.subr.bf16.mxu0 %v5125
    %5238 = vmatpush2.bf16.msra.mxu0 %v5124
    %5239 = vmatprep.subr.bf16.mxu0 %v5123
    %5240 = vmatpush2.bf16.msra.mxu0 %v5122
    %5241 = vmatprep.subr.bf16.mxu0 %v5121
    %5242 = vmatpush2.bf16.msra.mxu0 %v5120
    %5243 = vmatprep.subr.bf16.mxu0 %v5119
    %5244 = vmatpush2.bf16.msra.mxu0 %v5118
    %5245 = vmatprep.subr.bf16.mxu0 %v5117
    %5246 = vmatpush2.bf16.msra.mxu0 %v5116
    %5247 = vmatprep.mubr.bf16.mxu0 %v4872
    %5248 = vmatmul.mubr.bf16.gmra.mxu0 %v4871
    %v5249 = vpop.f32.mrf.mxu0
    %v5250 = vadd.f32 0.0, %v5249
    %v5251 = vpop.f32.mrf.mxu0
    %v5252 = vadd.f32 0.0, %v5251
    %v5253 = vpop.f32.mrf.mxu0
    %v5254 = vpop.f32.mrf.mxu0
    %5255 = vdwg.mxu0
    %5256 = vmatprep.subr.bf16.mxu0 %v5147
    %5257 = vmatpush1.bf16.msra.mxu0 %v5146
    %5258 = vmatprep.subr.bf16.mxu0 %v5145
    %5259 = vmatpush1.bf16.msra.mxu0 %v5144
    %5260 = vmatprep.subr.bf16.mxu0 %v5143
    %5261 = vmatpush1.bf16.msra.mxu0 %v5142
    %5262 = vmatprep.subr.bf16.mxu0 %v5141
    %5263 = vmatpush1.bf16.msra.mxu0 %v5140
    %5264 = vmatprep.subr.bf16.mxu0 %v5139
    %5265 = vmatpush1.bf16.msra.mxu0 %v5138
    %5266 = vmatprep.subr.bf16.mxu0 %v5137
    %5267 = vmatpush1.bf16.msra.mxu0 %v5136
    %5268 = vmatprep.subr.bf16.mxu0 %v5135
    %5269 = vmatpush1.bf16.msra.mxu0 %v5134
    %5270 = vmatprep.subr.bf16.mxu0 %v5133
    %5271 = vmatpush1.bf16.msra.mxu0 %v5132
    %5272 = vmatprep.subr.bf16.mxu0 0
    %5273 = vmatpush2.bf16.msra.mxu0 0
    %5274 = vmatprep.subr.bf16.mxu0 0
    %5275 = vmatpush2.bf16.msra.mxu0 0
    %5276 = vmatprep.subr.bf16.mxu0 0
    %5277 = vmatpush2.bf16.msra.mxu0 0
    %5278 = vmatprep.subr.bf16.mxu0 0
    %5279 = vmatpush2.bf16.msra.mxu0 0
    %5280 = vmatprep.subr.bf16.mxu0 %v5155
    %5281 = vmatpush2.bf16.msra.mxu0 %v5154
    %5282 = vmatprep.subr.bf16.mxu0 %v5153
    %5283 = vmatpush2.bf16.msra.mxu0 %v5152
    %5284 = vmatprep.subr.bf16.mxu0 %v5151
    %5285 = vmatpush2.bf16.msra.mxu0 %v5150
    %5286 = vmatprep.subr.bf16.mxu0 %v5149
    %5287 = vmatpush2.bf16.msra.mxu0 %v5148
    %5288 = vmatprep.mubr.bf16.mxu0 %v5213
    %5289 = vmatmul.mubr.bf16.gmra.mxu0 %v4873
    %v5290 = vpop.f32.mrf.mxu0
    %v5291 = vadd.f32 %v5250, %v5290
    %v5292 = vpop.f32.mrf.mxu0
    %v5293 = vadd.f32 %v5252, %v5292
    %v5294 = vpop.f32.mrf.mxu0
    %v5295 = vpop.f32.mrf.mxu0
    %5296 = vdwg.mxu0
    %v5297 = vadd.f32 %v4758, %v5291
    %v5298 = vadd.f32 %v4759, %v5293
    %s5299 = scalar_lea.vmem %s0, 11
    %v5300 = vld [vmem:[%s5299] sm:$0x1]
    %v5303 = vunpack.c.l.s4 1966171168
    %v5304 = vunpack.c.0.s8 %v5303
    %v5305 = vlaneseq
    %v5306 = vshrl.u32 %v5305, 7
    %v5307 = vsub.s32 %v5304, %v5306
    %v5308 = vrot.slane %v4761, %v5307
    %v5310 = vunpack.c.l.s4 1966171168
    %v5311 = vunpack.c.0.s8 %v5310
    %v5312 = vlaneseq
    %v5313 = vshrl.u32 %v5312, 7
    %v5314 = vsub.s32 %v5311, %v5313
    %v5315 = vrot.slane %v5308, %v5314
    %5316 = vrot.lane.b32.xlu0 %v5315, 64
    %v5317 = vpop.permute.xlu0 %5316
    %v5319 = vsel %vm208, %v4222, %v5317
    %v5322 = vsel %vm208, %v5300, 0
    %5324 = vmatprep.subr.bf16.mxu0 %v407
    %5325 = vmatpush1.bf16.msra.mxu0 %v406
    %5326 = vmatprep.subr.bf16.mxu0 %v403
    %5327 = vmatpush1.bf16.msra.mxu0 %v402
    %5328 = vmatprep.subr.bf16.mxu0 %v399
    %5329 = vmatpush1.bf16.msra.mxu0 %v398
    %5330 = vmatprep.subr.bf16.mxu0 %v395
    %5331 = vmatpush1.bf16.msra.mxu0 %v394
    %5332 = vmatprep.subr.bf16.mxu0 %v391
    %5333 = vmatpush1.bf16.msra.mxu0 %v390
    %5334 = vmatprep.subr.bf16.mxu0 %v387
    %5335 = vmatpush1.bf16.msra.mxu0 %v386
    %5336 = vmatprep.subr.bf16.mxu0 %v383
    %5337 = vmatpush1.bf16.msra.mxu0 %v382
    %5338 = vmatprep.subr.bf16.mxu0 %v379
    %5339 = vmatpush1.bf16.msra.mxu0 %v378
    %5340 = vmatprep.subr.bf16.mxu0 0
    %5341 = vmatpush2.bf16.msra.mxu0 0
    %5342 = vmatprep.subr.bf16.mxu0 0
    %5343 = vmatpush2.bf16.msra.mxu0 0
    %5344 = vmatprep.subr.bf16.mxu0 0
    %5345 = vmatpush2.bf16.msra.mxu0 0
    %5346 = vmatprep.subr.bf16.mxu0 0
    %5347 = vmatpush2.bf16.msra.mxu0 0
    %5348 = vmatprep.subr.bf16.mxu0 %v423
    %5349 = vmatpush2.bf16.msra.mxu0 %v422
    %5350 = vmatprep.subr.bf16.mxu0 %v419
    %5351 = vmatpush2.bf16.msra.mxu0 %v418
    %5352 = vmatprep.subr.bf16.mxu0 %v415
    %5353 = vmatpush2.bf16.msra.mxu0 %v414
    %5354 = vmatprep.subr.bf16.mxu0 %v411
    %5355 = vmatpush2.bf16.msra.mxu0 %v410
    %5356 = vmatprep.mubr.bf16.mxu0 %v5322
    %5357 = vmatmul.mubr.bf16.gmra.mxu0 %v5319
    %v5358 = vpop.f32.mrf.mxu0
    %v5359 = vadd.f32 %v217, %v5358
    %v5360 = vpop.f32.mrf.mxu0
    %v5361 = vadd.f32 %v221, %v5360
    %v5362 = vpop.f32.mrf.mxu0
    %v5363 = vpop.f32.mrf.mxu0
    %5364 = vdwg.mxu0
    %5365 = vmatprep.subr.bf16.mxu0 %v409
    %5366 = vmatpush1.bf16.msra.mxu0 %v408
    %5367 = vmatprep.subr.bf16.mxu0 %v405
    %5368 = vmatpush1.bf16.msra.mxu0 %v404
    %5369 = vmatprep.subr.bf16.mxu0 %v401
    %5370 = vmatpush1.bf16.msra.mxu0 %v400
    %5371 = vmatprep.subr.bf16.mxu0 %v397
    %5372 = vmatpush1.bf16.msra.mxu0 %v396
    %5373 = vmatprep.subr.bf16.mxu0 %v393
    %5374 = vmatpush1.bf16.msra.mxu0 %v392
    %5375 = vmatprep.subr.bf16.mxu0 %v389
    %5376 = vmatpush1.bf16.msra.mxu0 %v388
    %5377 = vmatprep.subr.bf16.mxu0 %v385
    %5378 = vmatpush1.bf16.msra.mxu0 %v384
    %5379 = vmatprep.subr.bf16.mxu0 %v381
    %5380 = vmatpush1.bf16.msra.mxu0 %v380
    %5381 = vmatprep.subr.bf16.mxu0 0
    %5382 = vmatpush2.bf16.msra.mxu0 0
    %5383 = vmatprep.subr.bf16.mxu0 0
    %5384 = vmatpush2.bf16.msra.mxu0 0
    %5385 = vmatprep.subr.bf16.mxu0 0
    %5386 = vmatpush2.bf16.msra.mxu0 0
    %5387 = vmatprep.subr.bf16.mxu0 0
    %5388 = vmatpush2.bf16.msra.mxu0 0
    %5389 = vmatprep.subr.bf16.mxu0 %v425
    %5390 = vmatpush2.bf16.msra.mxu0 %v424
    %5391 = vmatprep.subr.bf16.mxu0 %v421
    %5392 = vmatpush2.bf16.msra.mxu0 %v420
    %5393 = vmatprep.subr.bf16.mxu0 %v417
    %5394 = vmatpush2.bf16.msra.mxu0 %v416
    %5395 = vmatprep.subr.bf16.mxu0 %v413
    %5396 = vmatpush2.bf16.msra.mxu0 %v412
    %5397 = vmatprep.mubr.bf16.mxu0 %v5322
    %5398 = vmatmul.mubr.bf16.gmra.mxu0 %v5319
    %v5399 = vpop.f32.mrf.mxu0
    %v5400 = vadd.f32 %v225, %v5399
    %v5401 = vpop.f32.mrf.mxu0
    %v5402 = vadd.f32 %v229, %v5401
    %v5403 = vpop.f32.mrf.mxu0
    %v5404 = vpop.f32.mrf.mxu0
    %5405 = vdwg.mxu0
    %v5406 = vmax.f32 %v5359, 0.0
    %v5407 = vmax.f32 %v5361, 0.0
    %v5408 = vmax.f32 %v5400, 0.0
    %v5409 = vmax.f32 %v5402, 0.0
    %v5410 = vpack.c.bf16 %v5406, %v5406
    %v5411 = vpack.c.bf16 %v5407, %v5407
    %v5412 = vpack.c.bf16 %v5408, %v5408
    %v5413 = vpack.c.bf16 %v5409, %v5409
    %s5414 = scalar_lea.vmem [#allocation6], 4032
    %v5415 = vld [vmem:[%s5414] sm:$0xff]
    %v5416 = vld [vmem:[%s5414 + $0x8] sm:$0xff]
    %v5417 = vld [vmem:[%s5414 + $0x10] sm:$0xff]
    %v5418 = vld [vmem:[%s5414 + $0x18] sm:$0xff]
    %v5419 = vld [vmem:[%s5414 + $0x20] sm:$0xff]
    %v5420 = vld [vmem:[%s5414 + $0x28] sm:$0xff]
    %v5421 = vld [vmem:[%s5414 + $0x30] sm:$0xff]
    %v5422 = vld [vmem:[%s5414 + $0x38] sm:$0xff]
    %v5423 = vld [vmem:[%s5414 + $0x40] sm:$0xff]
    %v5424 = vld [vmem:[%s5414 + $0x48] sm:$0xff]
    %v5425 = vld [vmem:[%s5414 + $0x50] sm:$0xff]
    %v5426 = vld [vmem:[%s5414 + $0x58] sm:$0xff]
    %v5427 = vld [vmem:[%s5414 + $0x60] sm:$0xff]
    %v5428 = vld [vmem:[%s5414 + $0x68] sm:$0xff]
    %v5429 = vld [vmem:[%s5414 + $0x70] sm:$0xff]
    %v5430 = vld [vmem:[%s5414 + $0x78] sm:$0xff]
    %v5431 = vld [vmem:[%s5414 + $0x80] sm:$0xff]
    %v5432 = vld [vmem:[%s5414 + $0x88] sm:$0xff]
    %v5433 = vld [vmem:[%s5414 + $0x90] sm:$0xff]
    %v5434 = vld [vmem:[%s5414 + $0x98] sm:$0xff]
    %v5435 = vld [vmem:[%s5414 + $0xa0] sm:$0xff]
    %v5436 = vld [vmem:[%s5414 + $0xa8] sm:$0xff]
    %v5437 = vld [vmem:[%s5414 + $0xb0] sm:$0xff]
    %v5438 = vld [vmem:[%s5414 + $0xb8] sm:$0xff]
    %v5439 = vld [vmem:[%s5414 + $0xc0] sm:$0xff]
    %v5440 = vld [vmem:[%s5414 + $0xc8] sm:$0xff]
    %v5441 = vld [vmem:[%s5414 + $0xd0] sm:$0xff]
    %v5442 = vld [vmem:[%s5414 + $0xd8] sm:$0xff]
    %v5443 = vld [vmem:[%s5414 + $0xe0] sm:$0xff]
    %v5444 = vld [vmem:[%s5414 + $0xe8] sm:$0xff]
    %v5445 = vld [vmem:[%s5414 + $0xf0] sm:$0xff]
    %v5446 = vld [vmem:[%s5414 + $0xf8] sm:$0xff]
    %v5447 = vld [vmem:[%s5414 + $0x100] sm:$0xff]
    %v5448 = vld [vmem:[%s5414 + $0x108] sm:$0xff]
    %v5449 = vld [vmem:[%s5414 + $0x110] sm:$0xff]
    %v5450 = vld [vmem:[%s5414 + $0x118] sm:$0xff]
    %v5451 = vld [vmem:[%s5414 + $0x120] sm:$0xff]
    %v5452 = vld [vmem:[%s5414 + $0x128] sm:$0xff]
    %v5453 = vld [vmem:[%s5414 + $0x130] sm:$0xff]
    %v5454 = vld [vmem:[%s5414 + $0x138] sm:$0xff]
    %v5455 = vld [vmem:[%s5414 + $0x140] sm:$0xff]
    %v5456 = vld [vmem:[%s5414 + $0x148] sm:$0xff]
    %v5457 = vld [vmem:[%s5414 + $0x150] sm:$0xff]
    %v5458 = vld [vmem:[%s5414 + $0x158] sm:$0xff]
    %v5459 = vld [vmem:[%s5414 + $0x160] sm:$0xff]
    %v5460 = vld [vmem:[%s5414 + $0x168] sm:$0xff]
    %v5461 = vld [vmem:[%s5414 + $0x170] sm:$0xff]
    %v5462 = vld [vmem:[%s5414 + $0x178] sm:$0xff]
    %v5463 = vld [vmem:[%s5414 + $0x180] sm:$0xff]
    %v5464 = vld [vmem:[%s5414 + $0x188] sm:$0xff]
    %v5465 = vld [vmem:[%s5414 + $0x190] sm:$0xff]
    %v5466 = vld [vmem:[%s5414 + $0x198] sm:$0xff]
    %v5467 = vld [vmem:[%s5414 + $0x1a0] sm:$0xff]
    %v5468 = vld [vmem:[%s5414 + $0x1a8] sm:$0xff]
    %v5469 = vld [vmem:[%s5414 + $0x1b0] sm:$0xff]
    %v5470 = vld [vmem:[%s5414 + $0x1b8] sm:$0xff]
    %v5527 = vunpack.c.l.b16 %v5415
    %v5528 = vunpack.c.h.b16 %v5415
    %v5529 = vunpack.c.l.b16 %v5416
    %v5530 = vunpack.c.h.b16 %v5416
    %v5531 = vunpack.c.l.b16 %v5417
    %v5532 = vunpack.c.h.b16 %v5417
    %v5533 = vunpack.c.l.b16 %v5418
    %v5534 = vunpack.c.h.b16 %v5418
    %v5535 = vunpack.c.l.b16 %v5419
    %v5536 = vunpack.c.h.b16 %v5419
    %v5537 = vunpack.c.l.b16 %v5420
    %v5538 = vunpack.c.h.b16 %v5420
    %v5539 = vunpack.c.l.b16 %v5421
    %v5540 = vunpack.c.h.b16 %v5421
    %v5541 = vunpack.c.l.b16 %v5422
    %v5542 = vunpack.c.h.b16 %v5422
    %v5543 = vunpack.c.l.b16 %v5423
    %v5544 = vunpack.c.h.b16 %v5423
    %v5545 = vunpack.c.l.b16 %v5424
    %v5546 = vunpack.c.h.b16 %v5424
    %v5547 = vunpack.c.l.b16 %v5425
    %v5548 = vunpack.c.h.b16 %v5425
    %v5549 = vunpack.c.l.b16 %v5426
    %v5550 = vunpack.c.h.b16 %v5426
    %v5551 = vunpack.c.l.b16 %v5427
    %v5552 = vunpack.c.h.b16 %v5427
    %v5553 = vunpack.c.l.b16 %v5428
    %v5554 = vunpack.c.h.b16 %v5428
    %v5555 = vunpack.c.l.b16 %v5429
    %v5556 = vunpack.c.h.b16 %v5429
    %v5557 = vunpack.c.l.b16 %v5430
    %v5558 = vunpack.c.h.b16 %v5430
    %v5559 = vunpack.c.l.b16 %v5431
    %v5560 = vunpack.c.h.b16 %v5431
    %v5561 = vunpack.c.l.b16 %v5432
    %v5562 = vunpack.c.h.b16 %v5432
    %v5563 = vunpack.c.l.b16 %v5433
    %v5564 = vunpack.c.h.b16 %v5433
    %v5565 = vunpack.c.l.b16 %v5434
    %v5566 = vunpack.c.h.b16 %v5434
    %v5567 = vunpack.c.l.b16 %v5435
    %v5568 = vunpack.c.h.b16 %v5435
    %v5569 = vunpack.c.l.b16 %v5436
    %v5570 = vunpack.c.h.b16 %v5436
    %v5571 = vunpack.c.l.b16 %v5437
    %v5572 = vunpack.c.h.b16 %v5437
    %v5573 = vunpack.c.l.b16 %v5438
    %v5574 = vunpack.c.h.b16 %v5438
    %v5575 = vunpack.c.l.b16 %v5439
    %v5576 = vunpack.c.h.b16 %v5439
    %v5577 = vunpack.c.l.b16 %v5440
    %v5578 = vunpack.c.h.b16 %v5440
    %v5579 = vunpack.c.l.b16 %v5441
    %v5580 = vunpack.c.h.b16 %v5441
    %v5581 = vunpack.c.l.b16 %v5442
    %v5582 = vunpack.c.h.b16 %v5442
    %v5583 = vunpack.c.l.b16 %v5443
    %v5584 = vunpack.c.h.b16 %v5443
    %v5585 = vunpack.c.l.b16 %v5444
    %v5586 = vunpack.c.h.b16 %v5444
    %v5587 = vunpack.c.l.b16 %v5445
    %v5588 = vunpack.c.h.b16 %v5445
    %v5589 = vunpack.c.l.b16 %v5446
    %v5590 = vunpack.c.h.b16 %v5446
    %v5591 = vunpack.c.l.b16 %v5447
    %v5592 = vunpack.c.h.b16 %v5447
    %v5593 = vunpack.c.l.b16 %v5448
    %v5594 = vunpack.c.h.b16 %v5448
    %v5595 = vunpack.c.l.b16 %v5449
    %v5596 = vunpack.c.h.b16 %v5449
    %v5597 = vunpack.c.l.b16 %v5450
    %v5598 = vunpack.c.h.b16 %v5450
    %v5599 = vunpack.c.l.b16 %v5451
    %v5600 = vunpack.c.h.b16 %v5451
    %v5601 = vunpack.c.l.b16 %v5452
    %v5602 = vunpack.c.h.b16 %v5452
    %v5603 = vunpack.c.l.b16 %v5453
    %v5604 = vunpack.c.h.b16 %v5453
    %v5605 = vunpack.c.l.b16 %v5454
    %v5606 = vunpack.c.h.b16 %v5454
    %v5607 = vunpack.c.l.b16 %v5455
    %v5608 = vunpack.c.h.b16 %v5455
    %v5609 = vunpack.c.l.b16 %v5456
    %v5610 = vunpack.c.h.b16 %v5456
    %v5611 = vunpack.c.l.b16 %v5457
    %v5612 = vunpack.c.h.b16 %v5457
    %v5613 = vunpack.c.l.b16 %v5458
    %v5614 = vunpack.c.h.b16 %v5458
    %v5615 = vunpack.c.l.b16 %v5459
    %v5616 = vunpack.c.h.b16 %v5459
    %v5617 = vunpack.c.l.b16 %v5460
    %v5618 = vunpack.c.h.b16 %v5460
    %v5619 = vunpack.c.l.b16 %v5461
    %v5620 = vunpack.c.h.b16 %v5461
    %v5621 = vunpack.c.l.b16 %v5462
    %v5622 = vunpack.c.h.b16 %v5462
    %v5623 = vunpack.c.l.b16 %v5463
    %v5624 = vunpack.c.h.b16 %v5463
    %v5625 = vunpack.c.l.b16 %v5464
    %v5626 = vunpack.c.h.b16 %v5464
    %v5627 = vunpack.c.l.b16 %v5465
    %v5628 = vunpack.c.h.b16 %v5465
    %v5629 = vunpack.c.l.b16 %v5466
    %v5630 = vunpack.c.h.b16 %v5466
    %v5631 = vunpack.c.l.b16 %v5467
    %v5632 = vunpack.c.h.b16 %v5467
    %v5633 = vunpack.c.l.b16 %v5468
    %v5634 = vunpack.c.h.b16 %v5468
    %v5635 = vunpack.c.l.b16 %v5469
    %v5636 = vunpack.c.h.b16 %v5469
    %v5637 = vunpack.c.l.b16 %v5470
    %v5638 = vunpack.c.h.b16 %v5470
    %v5639 = vpack.c.b16 %v5529, %v5527
    %v5640 = vpack.c.b16 %v5530, %v5528
    %v5641 = vpack.c.b16 %v5533, %v5531
    %v5642 = vpack.c.b16 %v5534, %v5532
    %v5643 = vpack.c.b16 %v5537, %v5535
    %v5644 = vpack.c.b16 %v5538, %v5536
    %v5645 = vpack.c.b16 %v5541, %v5539
    %v5646 = vpack.c.b16 %v5542, %v5540
    %v5647 = vpack.c.b16 %v5545, %v5543
    %v5648 = vpack.c.b16 %v5546, %v5544
    %v5649 = vpack.c.b16 %v5549, %v5547
    %v5650 = vpack.c.b16 %v5550, %v5548
    %v5651 = vpack.c.b16 %v5553, %v5551
    %v5652 = vpack.c.b16 %v5554, %v5552
    %v5653 = vpack.c.b16 %v5557, %v5555
    %v5654 = vpack.c.b16 %v5558, %v5556
    %v5655 = vpack.c.b16 %v5561, %v5559
    %v5656 = vpack.c.b16 %v5562, %v5560
    %v5657 = vpack.c.b16 %v5565, %v5563
    %v5658 = vpack.c.b16 %v5566, %v5564
    %v5659 = vpack.c.b16 %v5569, %v5567
    %v5660 = vpack.c.b16 %v5570, %v5568
    %v5661 = vpack.c.b16 %v5573, %v5571
    %v5662 = vpack.c.b16 %v5574, %v5572
    %v5663 = vpack.c.b16 %v5577, %v5575
    %v5664 = vpack.c.b16 %v5578, %v5576
    %v5665 = vpack.c.b16 %v5581, %v5579
    %v5666 = vpack.c.b16 %v5582, %v5580
    %v5667 = vpack.c.b16 %v5585, %v5583
    %v5668 = vpack.c.b16 %v5586, %v5584
    %v5669 = vpack.c.b16 %v5589, %v5587
    %v5670 = vpack.c.b16 %v5590, %v5588
    %v5671 = vpack.c.b16 %v5593, %v5591
    %v5672 = vpack.c.b16 %v5594, %v5592
    %v5673 = vpack.c.b16 %v5597, %v5595
    %v5674 = vpack.c.b16 %v5598, %v5596
    %v5675 = vpack.c.b16 %v5601, %v5599
    %v5676 = vpack.c.b16 %v5602, %v5600
    %v5677 = vpack.c.b16 %v5605, %v5603
    %v5678 = vpack.c.b16 %v5606, %v5604
    %v5679 = vpack.c.b16 %v5609, %v5607
    %v5680 = vpack.c.b16 %v5610, %v5608
    %v5681 = vpack.c.b16 %v5613, %v5611
    %v5682 = vpack.c.b16 %v5614, %v5612
    %v5683 = vpack.c.b16 %v5617, %v5615
    %v5684 = vpack.c.b16 %v5618, %v5616
    %v5685 = vpack.c.b16 %v5621, %v5619
    %v5686 = vpack.c.b16 %v5622, %v5620
    %v5687 = vpack.c.b16 %v5625, %v5623
    %v5688 = vpack.c.b16 %v5626, %v5624
    %v5689 = vpack.c.b16 %v5629, %v5627
    %v5690 = vpack.c.b16 %v5630, %v5628
    %v5691 = vpack.c.b16 %v5633, %v5631
    %v5692 = vpack.c.b16 %v5634, %v5632
    %v5693 = vpack.c.b16 %v5637, %v5635
    %v5694 = vpack.c.b16 %v5638, %v5636
    %v5752 = vsel %vm208, %v5413, 0
    %5754 = vmatprep.subr.bf16.mxu0 %v5654
    %5755 = vmatpush1.bf16.msra.mxu0 %v5653
    %5756 = vmatprep.subr.bf16.mxu0 %v5652
    %5757 = vmatpush1.bf16.msra.mxu0 %v5651
    %5758 = vmatprep.subr.bf16.mxu0 %v5650
    %5759 = vmatpush1.bf16.msra.mxu0 %v5649
    %5760 = vmatprep.subr.bf16.mxu0 %v5648
    %5761 = vmatpush1.bf16.msra.mxu0 %v5647
    %5762 = vmatprep.subr.bf16.mxu0 %v5646
    %5763 = vmatpush1.bf16.msra.mxu0 %v5645
    %5764 = vmatprep.subr.bf16.mxu0 %v5644
    %5765 = vmatpush1.bf16.msra.mxu0 %v5643
    %5766 = vmatprep.subr.bf16.mxu0 %v5642
    %5767 = vmatpush1.bf16.msra.mxu0 %v5641
    %5768 = vmatprep.subr.bf16.mxu0 %v5640
    %5769 = vmatpush1.bf16.msra.mxu0 %v5639
    %5770 = vmatprep.subr.bf16.mxu0 %v5670
    %5771 = vmatpush2.bf16.msra.mxu0 %v5669
    %5772 = vmatprep.subr.bf16.mxu0 %v5668
    %5773 = vmatpush2.bf16.msra.mxu0 %v5667
    %5774 = vmatprep.subr.bf16.mxu0 %v5666
    %5775 = vmatpush2.bf16.msra.mxu0 %v5665
    %5776 = vmatprep.subr.bf16.mxu0 %v5664
    %5777 = vmatpush2.bf16.msra.mxu0 %v5663
    %5778 = vmatprep.subr.bf16.mxu0 %v5662
    %5779 = vmatpush2.bf16.msra.mxu0 %v5661
    %5780 = vmatprep.subr.bf16.mxu0 %v5660
    %5781 = vmatpush2.bf16.msra.mxu0 %v5659
    %5782 = vmatprep.subr.bf16.mxu0 %v5658
    %5783 = vmatpush2.bf16.msra.mxu0 %v5657
    %5784 = vmatprep.subr.bf16.mxu0 %v5656
    %5785 = vmatpush2.bf16.msra.mxu0 %v5655
    %5786 = vmatprep.mubr.bf16.mxu0 %v5411
    %5787 = vmatmul.mubr.bf16.gmra.mxu0 %v5410
    %v5788 = vpop.f32.mrf.mxu0
    %v5789 = vadd.f32 0.0, %v5788
    %v5790 = vpop.f32.mrf.mxu0
    %v5791 = vadd.f32 0.0, %v5790
    %v5792 = vpop.f32.mrf.mxu0
    %v5793 = vpop.f32.mrf.mxu0
    %5794 = vdwg.mxu0
    %5795 = vmatprep.subr.bf16.mxu0 %v5686
    %5796 = vmatpush1.bf16.msra.mxu0 %v5685
    %5797 = vmatprep.subr.bf16.mxu0 %v5684
    %5798 = vmatpush1.bf16.msra.mxu0 %v5683
    %5799 = vmatprep.subr.bf16.mxu0 %v5682
    %5800 = vmatpush1.bf16.msra.mxu0 %v5681
    %5801 = vmatprep.subr.bf16.mxu0 %v5680
    %5802 = vmatpush1.bf16.msra.mxu0 %v5679
    %5803 = vmatprep.subr.bf16.mxu0 %v5678
    %5804 = vmatpush1.bf16.msra.mxu0 %v5677
    %5805 = vmatprep.subr.bf16.mxu0 %v5676
    %5806 = vmatpush1.bf16.msra.mxu0 %v5675
    %5807 = vmatprep.subr.bf16.mxu0 %v5674
    %5808 = vmatpush1.bf16.msra.mxu0 %v5673
    %5809 = vmatprep.subr.bf16.mxu0 %v5672
    %5810 = vmatpush1.bf16.msra.mxu0 %v5671
    %5811 = vmatprep.subr.bf16.mxu0 0
    %5812 = vmatpush2.bf16.msra.mxu0 0
    %5813 = vmatprep.subr.bf16.mxu0 0
    %5814 = vmatpush2.bf16.msra.mxu0 0
    %5815 = vmatprep.subr.bf16.mxu0 0
    %5816 = vmatpush2.bf16.msra.mxu0 0
    %5817 = vmatprep.subr.bf16.mxu0 0
    %5818 = vmatpush2.bf16.msra.mxu0 0
    %5819 = vmatprep.subr.bf16.mxu0 %v5694
    %5820 = vmatpush2.bf16.msra.mxu0 %v5693
    %5821 = vmatprep.subr.bf16.mxu0 %v5692
    %5822 = vmatpush2.bf16.msra.mxu0 %v5691
    %5823 = vmatprep.subr.bf16.mxu0 %v5690
    %5824 = vmatpush2.bf16.msra.mxu0 %v5689
    %5825 = vmatprep.subr.bf16.mxu0 %v5688
    %5826 = vmatpush2.bf16.msra.mxu0 %v5687
    %5827 = vmatprep.mubr.bf16.mxu0 %v5752
    %5828 = vmatmul.mubr.bf16.gmra.mxu0 %v5412
    %v5829 = vpop.f32.mrf.mxu0
    %v5830 = vadd.f32 %v5789, %v5829
    %v5831 = vpop.f32.mrf.mxu0
    %v5832 = vadd.f32 %v5791, %v5831
    %v5833 = vpop.f32.mrf.mxu0
    %v5834 = vpop.f32.mrf.mxu0
    %5835 = vdwg.mxu0
    %v5836 = vadd.f32 %v5297, %v5830
    %v5837 = vadd.f32 %v5298, %v5832
    %s5838 = scalar_lea.vmem %s0, 12
    %v5839 = vld [vmem:[%s5838] sm:$0x1]
    %v5842 = vunpack.c.l.s4 1966171168
    %v5843 = vunpack.c.0.s8 %v5842
    %v5844 = vlaneseq
    %v5845 = vshrl.u32 %v5844, 7
    %v5846 = vsub.s32 %v5843, %v5845
    %v5847 = vrot.slane %v5300, %v5846
    %v5849 = vunpack.c.l.s4 1966171168
    %v5850 = vunpack.c.0.s8 %v5849
    %v5851 = vlaneseq
    %v5852 = vshrl.u32 %v5851, 7
    %v5853 = vsub.s32 %v5850, %v5852
    %v5854 = vrot.slane %v5847, %v5853
    %5855 = vrot.lane.b32.xlu0 %v5854, 64
    %v5856 = vpop.permute.xlu0 %5855
    %v5858 = vsel %vm208, %v4761, %v5856
    %v5861 = vsel %vm208, %v5839, 0
    %5863 = vmatprep.subr.bf16.mxu0 %v407
    %5864 = vmatpush1.bf16.msra.mxu0 %v406
    %5865 = vmatprep.subr.bf16.mxu0 %v403
    %5866 = vmatpush1.bf16.msra.mxu0 %v402
    %5867 = vmatprep.subr.bf16.mxu0 %v399
    %5868 = vmatpush1.bf16.msra.mxu0 %v398
    %5869 = vmatprep.subr.bf16.mxu0 %v395
    %5870 = vmatpush1.bf16.msra.mxu0 %v394
    %5871 = vmatprep.subr.bf16.mxu0 %v391
    %5872 = vmatpush1.bf16.msra.mxu0 %v390
    %5873 = vmatprep.subr.bf16.mxu0 %v387
    %5874 = vmatpush1.bf16.msra.mxu0 %v386
    %5875 = vmatprep.subr.bf16.mxu0 %v383
    %5876 = vmatpush1.bf16.msra.mxu0 %v382
    %5877 = vmatprep.subr.bf16.mxu0 %v379
    %5878 = vmatpush1.bf16.msra.mxu0 %v378
    %5879 = vmatprep.subr.bf16.mxu0 0
    %5880 = vmatpush2.bf16.msra.mxu0 0
    %5881 = vmatprep.subr.bf16.mxu0 0
    %5882 = vmatpush2.bf16.msra.mxu0 0
    %5883 = vmatprep.subr.bf16.mxu0 0
    %5884 = vmatpush2.bf16.msra.mxu0 0
    %5885 = vmatprep.subr.bf16.mxu0 0
    %5886 = vmatpush2.bf16.msra.mxu0 0
    %5887 = vmatprep.subr.bf16.mxu0 %v423
    %5888 = vmatpush2.bf16.msra.mxu0 %v422
    %5889 = vmatprep.subr.bf16.mxu0 %v419
    %5890 = vmatpush2.bf16.msra.mxu0 %v418
    %5891 = vmatprep.subr.bf16.mxu0 %v415
    %5892 = vmatpush2.bf16.msra.mxu0 %v414
    %5893 = vmatprep.subr.bf16.mxu0 %v411
    %5894 = vmatpush2.bf16.msra.mxu0 %v410
    %5895 = vmatprep.mubr.bf16.mxu0 %v5861
    %5896 = vmatmul.mubr.bf16.gmra.mxu0 %v5858
    %v5897 = vpop.f32.mrf.mxu0
    %v5898 = vadd.f32 %v217, %v5897
    %v5899 = vpop.f32.mrf.mxu0
    %v5900 = vadd.f32 %v221, %v5899
    %v5901 = vpop.f32.mrf.mxu0
    %v5902 = vpop.f32.mrf.mxu0
    %5903 = vdwg.mxu0
    %5904 = vmatprep.subr.bf16.mxu0 %v409
    %5905 = vmatpush1.bf16.msra.mxu0 %v408
    %5906 = vmatprep.subr.bf16.mxu0 %v405
    %5907 = vmatpush1.bf16.msra.mxu0 %v404
    %5908 = vmatprep.subr.bf16.mxu0 %v401
    %5909 = vmatpush1.bf16.msra.mxu0 %v400
    %5910 = vmatprep.subr.bf16.mxu0 %v397
    %5911 = vmatpush1.bf16.msra.mxu0 %v396
    %5912 = vmatprep.subr.bf16.mxu0 %v393
    %5913 = vmatpush1.bf16.msra.mxu0 %v392
    %5914 = vmatprep.subr.bf16.mxu0 %v389
    %5915 = vmatpush1.bf16.msra.mxu0 %v388
    %5916 = vmatprep.subr.bf16.mxu0 %v385
    %5917 = vmatpush1.bf16.msra.mxu0 %v384
    %5918 = vmatprep.subr.bf16.mxu0 %v381
    %5919 = vmatpush1.bf16.msra.mxu0 %v380
    %5920 = vmatprep.subr.bf16.mxu0 0
    %5921 = vmatpush2.bf16.msra.mxu0 0
    %5922 = vmatprep.subr.bf16.mxu0 0
    %5923 = vmatpush2.bf16.msra.mxu0 0
    %5924 = vmatprep.subr.bf16.mxu0 0
    %5925 = vmatpush2.bf16.msra.mxu0 0
    %5926 = vmatprep.subr.bf16.mxu0 0
    %5927 = vmatpush2.bf16.msra.mxu0 0
    %5928 = vmatprep.subr.bf16.mxu0 %v425
    %5929 = vmatpush2.bf16.msra.mxu0 %v424
    %5930 = vmatprep.subr.bf16.mxu0 %v421
    %5931 = vmatpush2.bf16.msra.mxu0 %v420
    %5932 = vmatprep.subr.bf16.mxu0 %v417
    %5933 = vmatpush2.bf16.msra.mxu0 %v416
    %5934 = vmatprep.subr.bf16.mxu0 %v413
    %5935 = vmatpush2.bf16.msra.mxu0 %v412
    %5936 = vmatprep.mubr.bf16.mxu0 %v5861
    %5937 = vmatmul.mubr.bf16.gmra.mxu0 %v5858
    %v5938 = vpop.f32.mrf.mxu0
    %v5939 = vadd.f32 %v225, %v5938
    %v5940 = vpop.f32.mrf.mxu0
    %v5941 = vadd.f32 %v229, %v5940
    %v5942 = vpop.f32.mrf.mxu0
    %v5943 = vpop.f32.mrf.mxu0
    %5944 = vdwg.mxu0
    %v5945 = vmax.f32 %v5898, 0.0
    %v5946 = vmax.f32 %v5900, 0.0
    %v5947 = vmax.f32 %v5939, 0.0
    %v5948 = vmax.f32 %v5941, 0.0
    %v5949 = vpack.c.bf16 %v5945, %v5945
    %v5950 = vpack.c.bf16 %v5946, %v5946
    %v5951 = vpack.c.bf16 %v5947, %v5947
    %v5952 = vpack.c.bf16 %v5948, %v5948
    %s5953 = scalar_lea.vmem [#allocation6], 4480
    %v5954 = vld [vmem:[%s5953] sm:$0xff]
    %v5955 = vld [vmem:[%s5953 + $0x8] sm:$0xff]
    %v5956 = vld [vmem:[%s5953 + $0x10] sm:$0xff]
    %v5957 = vld [vmem:[%s5953 + $0x18] sm:$0xff]
    %v5958 = vld [vmem:[%s5953 + $0x20] sm:$0xff]
    %v5959 = vld [vmem:[%s5953 + $0x28] sm:$0xff]
    %v5960 = vld [vmem:[%s5953 + $0x30] sm:$0xff]
    %v5961 = vld [vmem:[%s5953 + $0x38] sm:$0xff]
    %v5962 = vld [vmem:[%s5953 + $0x40] sm:$0xff]
    %v5963 = vld [vmem:[%s5953 + $0x48] sm:$0xff]
    %v5964 = vld [vmem:[%s5953 + $0x50] sm:$0xff]
    %v5965 = vld [vmem:[%s5953 + $0x58] sm:$0xff]
    %v5966 = vld [vmem:[%s5953 + $0x60] sm:$0xff]
    %v5967 = vld [vmem:[%s5953 + $0x68] sm:$0xff]
    %v5968 = vld [vmem:[%s5953 + $0x70] sm:$0xff]
    %v5969 = vld [vmem:[%s5953 + $0x78] sm:$0xff]
    %v5970 = vld [vmem:[%s5953 + $0x80] sm:$0xff]
    %v5971 = vld [vmem:[%s5953 + $0x88] sm:$0xff]
    %v5972 = vld [vmem:[%s5953 + $0x90] sm:$0xff]
    %v5973 = vld [vmem:[%s5953 + $0x98] sm:$0xff]
    %v5974 = vld [vmem:[%s5953 + $0xa0] sm:$0xff]
    %v5975 = vld [vmem:[%s5953 + $0xa8] sm:$0xff]
    %v5976 = vld [vmem:[%s5953 + $0xb0] sm:$0xff]
    %v5977 = vld [vmem:[%s5953 + $0xb8] sm:$0xff]
    %v5978 = vld [vmem:[%s5953 + $0xc0] sm:$0xff]
    %v5979 = vld [vmem:[%s5953 + $0xc8] sm:$0xff]
    %v5980 = vld [vmem:[%s5953 + $0xd0] sm:$0xff]
    %v5981 = vld [vmem:[%s5953 + $0xd8] sm:$0xff]
    %v5982 = vld [vmem:[%s5953 + $0xe0] sm:$0xff]
    %v5983 = vld [vmem:[%s5953 + $0xe8] sm:$0xff]
    %v5984 = vld [vmem:[%s5953 + $0xf0] sm:$0xff]
    %v5985 = vld [vmem:[%s5953 + $0xf8] sm:$0xff]
    %v5986 = vld [vmem:[%s5953 + $0x100] sm:$0xff]
    %v5987 = vld [vmem:[%s5953 + $0x108] sm:$0xff]
    %v5988 = vld [vmem:[%s5953 + $0x110] sm:$0xff]
    %v5989 = vld [vmem:[%s5953 + $0x118] sm:$0xff]
    %v5990 = vld [vmem:[%s5953 + $0x120] sm:$0xff]
    %v5991 = vld [vmem:[%s5953 + $0x128] sm:$0xff]
    %v5992 = vld [vmem:[%s5953 + $0x130] sm:$0xff]
    %v5993 = vld [vmem:[%s5953 + $0x138] sm:$0xff]
    %v5994 = vld [vmem:[%s5953 + $0x140] sm:$0xff]
    %v5995 = vld [vmem:[%s5953 + $0x148] sm:$0xff]
    %v5996 = vld [vmem:[%s5953 + $0x150] sm:$0xff]
    %v5997 = vld [vmem:[%s5953 + $0x158] sm:$0xff]
    %v5998 = vld [vmem:[%s5953 + $0x160] sm:$0xff]
    %v5999 = vld [vmem:[%s5953 + $0x168] sm:$0xff]
    %v6000 = vld [vmem:[%s5953 + $0x170] sm:$0xff]
    %v6001 = vld [vmem:[%s5953 + $0x178] sm:$0xff]
    %v6002 = vld [vmem:[%s5953 + $0x180] sm:$0xff]
    %v6003 = vld [vmem:[%s5953 + $0x188] sm:$0xff]
    %v6004 = vld [vmem:[%s5953 + $0x190] sm:$0xff]
    %v6005 = vld [vmem:[%s5953 + $0x198] sm:$0xff]
    %v6006 = vld [vmem:[%s5953 + $0x1a0] sm:$0xff]
    %v6007 = vld [vmem:[%s5953 + $0x1a8] sm:$0xff]
    %v6008 = vld [vmem:[%s5953 + $0x1b0] sm:$0xff]
    %v6009 = vld [vmem:[%s5953 + $0x1b8] sm:$0xff]
    %v6066 = vunpack.c.l.b16 %v5954
    %v6067 = vunpack.c.h.b16 %v5954
    %v6068 = vunpack.c.l.b16 %v5955
    %v6069 = vunpack.c.h.b16 %v5955
    %v6070 = vunpack.c.l.b16 %v5956
    %v6071 = vunpack.c.h.b16 %v5956
    %v6072 = vunpack.c.l.b16 %v5957
    %v6073 = vunpack.c.h.b16 %v5957
    %v6074 = vunpack.c.l.b16 %v5958
    %v6075 = vunpack.c.h.b16 %v5958
    %v6076 = vunpack.c.l.b16 %v5959
    %v6077 = vunpack.c.h.b16 %v5959
    %v6078 = vunpack.c.l.b16 %v5960
    %v6079 = vunpack.c.h.b16 %v5960
    %v6080 = vunpack.c.l.b16 %v5961
    %v6081 = vunpack.c.h.b16 %v5961
    %v6082 = vunpack.c.l.b16 %v5962
    %v6083 = vunpack.c.h.b16 %v5962
    %v6084 = vunpack.c.l.b16 %v5963
    %v6085 = vunpack.c.h.b16 %v5963
    %v6086 = vunpack.c.l.b16 %v5964
    %v6087 = vunpack.c.h.b16 %v5964
    %v6088 = vunpack.c.l.b16 %v5965
    %v6089 = vunpack.c.h.b16 %v5965
    %v6090 = vunpack.c.l.b16 %v5966
    %v6091 = vunpack.c.h.b16 %v5966
    %v6092 = vunpack.c.l.b16 %v5967
    %v6093 = vunpack.c.h.b16 %v5967
    %v6094 = vunpack.c.l.b16 %v5968
    %v6095 = vunpack.c.h.b16 %v5968
    %v6096 = vunpack.c.l.b16 %v5969
    %v6097 = vunpack.c.h.b16 %v5969
    %v6098 = vunpack.c.l.b16 %v5970
    %v6099 = vunpack.c.h.b16 %v5970
    %v6100 = vunpack.c.l.b16 %v5971
    %v6101 = vunpack.c.h.b16 %v5971
    %v6102 = vunpack.c.l.b16 %v5972
    %v6103 = vunpack.c.h.b16 %v5972
    %v6104 = vunpack.c.l.b16 %v5973
    %v6105 = vunpack.c.h.b16 %v5973
    %v6106 = vunpack.c.l.b16 %v5974
    %v6107 = vunpack.c.h.b16 %v5974
    %v6108 = vunpack.c.l.b16 %v5975
    %v6109 = vunpack.c.h.b16 %v5975
    %v6110 = vunpack.c.l.b16 %v5976
    %v6111 = vunpack.c.h.b16 %v5976
    %v6112 = vunpack.c.l.b16 %v5977
    %v6113 = vunpack.c.h.b16 %v5977
    %v6114 = vunpack.c.l.b16 %v5978
    %v6115 = vunpack.c.h.b16 %v5978
    %v6116 = vunpack.c.l.b16 %v5979
    %v6117 = vunpack.c.h.b16 %v5979
    %v6118 = vunpack.c.l.b16 %v5980
    %v6119 = vunpack.c.h.b16 %v5980
    %v6120 = vunpack.c.l.b16 %v5981
    %v6121 = vunpack.c.h.b16 %v5981
    %v6122 = vunpack.c.l.b16 %v5982
    %v6123 = vunpack.c.h.b16 %v5982
    %v6124 = vunpack.c.l.b16 %v5983
    %v6125 = vunpack.c.h.b16 %v5983
    %v6126 = vunpack.c.l.b16 %v5984
    %v6127 = vunpack.c.h.b16 %v5984
    %v6128 = vunpack.c.l.b16 %v5985
    %v6129 = vunpack.c.h.b16 %v5985
    %v6130 = vunpack.c.l.b16 %v5986
    %v6131 = vunpack.c.h.b16 %v5986
    %v6132 = vunpack.c.l.b16 %v5987
    %v6133 = vunpack.c.h.b16 %v5987
    %v6134 = vunpack.c.l.b16 %v5988
    %v6135 = vunpack.c.h.b16 %v5988
    %v6136 = vunpack.c.l.b16 %v5989
    %v6137 = vunpack.c.h.b16 %v5989
    %v6138 = vunpack.c.l.b16 %v5990
    %v6139 = vunpack.c.h.b16 %v5990
    %v6140 = vunpack.c.l.b16 %v5991
    %v6141 = vunpack.c.h.b16 %v5991
    %v6142 = vunpack.c.l.b16 %v5992
    %v6143 = vunpack.c.h.b16 %v5992
    %v6144 = vunpack.c.l.b16 %v5993
    %v6145 = vunpack.c.h.b16 %v5993
    %v6146 = vunpack.c.l.b16 %v5994
    %v6147 = vunpack.c.h.b16 %v5994
    %v6148 = vunpack.c.l.b16 %v5995
    %v6149 = vunpack.c.h.b16 %v5995
    %v6150 = vunpack.c.l.b16 %v5996
    %v6151 = vunpack.c.h.b16 %v5996
    %v6152 = vunpack.c.l.b16 %v5997
    %v6153 = vunpack.c.h.b16 %v5997
    %v6154 = vunpack.c.l.b16 %v5998
    %v6155 = vunpack.c.h.b16 %v5998
    %v6156 = vunpack.c.l.b16 %v5999
    %v6157 = vunpack.c.h.b16 %v5999
    %v6158 = vunpack.c.l.b16 %v6000
    %v6159 = vunpack.c.h.b16 %v6000
    %v6160 = vunpack.c.l.b16 %v6001
    %v6161 = vunpack.c.h.b16 %v6001
    %v6162 = vunpack.c.l.b16 %v6002
    %v6163 = vunpack.c.h.b16 %v6002
    %v6164 = vunpack.c.l.b16 %v6003
    %v6165 = vunpack.c.h.b16 %v6003
    %v6166 = vunpack.c.l.b16 %v6004
    %v6167 = vunpack.c.h.b16 %v6004
    %v6168 = vunpack.c.l.b16 %v6005
    %v6169 = vunpack.c.h.b16 %v6005
    %v6170 = vunpack.c.l.b16 %v6006
    %v6171 = vunpack.c.h.b16 %v6006
    %v6172 = vunpack.c.l.b16 %v6007
    %v6173 = vunpack.c.h.b16 %v6007
    %v6174 = vunpack.c.l.b16 %v6008
    %v6175 = vunpack.c.h.b16 %v6008
    %v6176 = vunpack.c.l.b16 %v6009
    %v6177 = vunpack.c.h.b16 %v6009
    %v6178 = vpack.c.b16 %v6068, %v6066
    %v6179 = vpack.c.b16 %v6069, %v6067
    %v6180 = vpack.c.b16 %v6072, %v6070
    %v6181 = vpack.c.b16 %v6073, %v6071
    %v6182 = vpack.c.b16 %v6076, %v6074
    %v6183 = vpack.c.b16 %v6077, %v6075
    %v6184 = vpack.c.b16 %v6080, %v6078
    %v6185 = vpack.c.b16 %v6081, %v6079
    %v6186 = vpack.c.b16 %v6084, %v6082
    %v6187 = vpack.c.b16 %v6085, %v6083
    %v6188 = vpack.c.b16 %v6088, %v6086
    %v6189 = vpack.c.b16 %v6089, %v6087
    %v6190 = vpack.c.b16 %v6092, %v6090
    %v6191 = vpack.c.b16 %v6093, %v6091
    %v6192 = vpack.c.b16 %v6096, %v6094
    %v6193 = vpack.c.b16 %v6097, %v6095
    %v6194 = vpack.c.b16 %v6100, %v6098
    %v6195 = vpack.c.b16 %v6101, %v6099
    %v6196 = vpack.c.b16 %v6104, %v6102
    %v6197 = vpack.c.b16 %v6105, %v6103
    %v6198 = vpack.c.b16 %v6108, %v6106
    %v6199 = vpack.c.b16 %v6109, %v6107
    %v6200 = vpack.c.b16 %v6112, %v6110
    %v6201 = vpack.c.b16 %v6113, %v6111
    %v6202 = vpack.c.b16 %v6116, %v6114
    %v6203 = vpack.c.b16 %v6117, %v6115
    %v6204 = vpack.c.b16 %v6120, %v6118
    %v6205 = vpack.c.b16 %v6121, %v6119
    %v6206 = vpack.c.b16 %v6124, %v6122
    %v6207 = vpack.c.b16 %v6125, %v6123
    %v6208 = vpack.c.b16 %v6128, %v6126
    %v6209 = vpack.c.b16 %v6129, %v6127
    %v6210 = vpack.c.b16 %v6132, %v6130
    %v6211 = vpack.c.b16 %v6133, %v6131
    %v6212 = vpack.c.b16 %v6136, %v6134
    %v6213 = vpack.c.b16 %v6137, %v6135
    %v6214 = vpack.c.b16 %v6140, %v6138
    %v6215 = vpack.c.b16 %v6141, %v6139
    %v6216 = vpack.c.b16 %v6144, %v6142
    %v6217 = vpack.c.b16 %v6145, %v6143
    %v6218 = vpack.c.b16 %v6148, %v6146
    %v6219 = vpack.c.b16 %v6149, %v6147
    %v6220 = vpack.c.b16 %v6152, %v6150
    %v6221 = vpack.c.b16 %v6153, %v6151
    %v6222 = vpack.c.b16 %v6156, %v6154
    %v6223 = vpack.c.b16 %v6157, %v6155
    %v6224 = vpack.c.b16 %v6160, %v6158
    %v6225 = vpack.c.b16 %v6161, %v6159
    %v6226 = vpack.c.b16 %v6164, %v6162
    %v6227 = vpack.c.b16 %v6165, %v6163
    %v6228 = vpack.c.b16 %v6168, %v6166
    %v6229 = vpack.c.b16 %v6169, %v6167
    %v6230 = vpack.c.b16 %v6172, %v6170
    %v6231 = vpack.c.b16 %v6173, %v6171
    %v6232 = vpack.c.b16 %v6176, %v6174
    %v6233 = vpack.c.b16 %v6177, %v6175
    %v6291 = vsel %vm208, %v5952, 0
    %6293 = vmatprep.subr.bf16.mxu0 %v6193
    %6294 = vmatpush1.bf16.msra.mxu0 %v6192
    %6295 = vmatprep.subr.bf16.mxu0 %v6191
    %6296 = vmatpush1.bf16.msra.mxu0 %v6190
    %6297 = vmatprep.subr.bf16.mxu0 %v6189
    %6298 = vmatpush1.bf16.msra.mxu0 %v6188
    %6299 = vmatprep.subr.bf16.mxu0 %v6187
    %6300 = vmatpush1.bf16.msra.mxu0 %v6186
    %6301 = vmatprep.subr.bf16.mxu0 %v6185
    %6302 = vmatpush1.bf16.msra.mxu0 %v6184
    %6303 = vmatprep.subr.bf16.mxu0 %v6183
    %6304 = vmatpush1.bf16.msra.mxu0 %v6182
    %6305 = vmatprep.subr.bf16.mxu0 %v6181
    %6306 = vmatpush1.bf16.msra.mxu0 %v6180
    %6307 = vmatprep.subr.bf16.mxu0 %v6179
    %6308 = vmatpush1.bf16.msra.mxu0 %v6178
    %6309 = vmatprep.subr.bf16.mxu0 %v6209
    %6310 = vmatpush2.bf16.msra.mxu0 %v6208
    %6311 = vmatprep.subr.bf16.mxu0 %v6207
    %6312 = vmatpush2.bf16.msra.mxu0 %v6206
    %6313 = vmatprep.subr.bf16.mxu0 %v6205
    %6314 = vmatpush2.bf16.msra.mxu0 %v6204
    %6315 = vmatprep.subr.bf16.mxu0 %v6203
    %6316 = vmatpush2.bf16.msra.mxu0 %v6202
    %6317 = vmatprep.subr.bf16.mxu0 %v6201
    %6318 = vmatpush2.bf16.msra.mxu0 %v6200
    %6319 = vmatprep.subr.bf16.mxu0 %v6199
    %6320 = vmatpush2.bf16.msra.mxu0 %v6198
    %6321 = vmatprep.subr.bf16.mxu0 %v6197
    %6322 = vmatpush2.bf16.msra.mxu0 %v6196
    %6323 = vmatprep.subr.bf16.mxu0 %v6195
    %6324 = vmatpush2.bf16.msra.mxu0 %v6194
    %6325 = vmatprep.mubr.bf16.mxu0 %v5950
    %6326 = vmatmul.mubr.bf16.gmra.mxu0 %v5949
    %v6327 = vpop.f32.mrf.mxu0
    %v6328 = vadd.f32 0.0, %v6327
    %v6329 = vpop.f32.mrf.mxu0
    %v6330 = vadd.f32 0.0, %v6329
    %v6331 = vpop.f32.mrf.mxu0
    %v6332 = vpop.f32.mrf.mxu0
    %6333 = vdwg.mxu0
    %6334 = vmatprep.subr.bf16.mxu0 %v6225
    %6335 = vmatpush1.bf16.msra.mxu0 %v6224
    %6336 = vmatprep.subr.bf16.mxu0 %v6223
    %6337 = vmatpush1.bf16.msra.mxu0 %v6222
    %6338 = vmatprep.subr.bf16.mxu0 %v6221
    %6339 = vmatpush1.bf16.msra.mxu0 %v6220
    %6340 = vmatprep.subr.bf16.mxu0 %v6219
    %6341 = vmatpush1.bf16.msra.mxu0 %v6218
    %6342 = vmatprep.subr.bf16.mxu0 %v6217
    %6343 = vmatpush1.bf16.msra.mxu0 %v6216
    %6344 = vmatprep.subr.bf16.mxu0 %v6215
    %6345 = vmatpush1.bf16.msra.mxu0 %v6214
    %6346 = vmatprep.subr.bf16.mxu0 %v6213
    %6347 = vmatpush1.bf16.msra.mxu0 %v6212
    %6348 = vmatprep.subr.bf16.mxu0 %v6211
    %6349 = vmatpush1.bf16.msra.mxu0 %v6210
    %6350 = vmatprep.subr.bf16.mxu0 0
    %6351 = vmatpush2.bf16.msra.mxu0 0
    %6352 = vmatprep.subr.bf16.mxu0 0
    %6353 = vmatpush2.bf16.msra.mxu0 0
    %6354 = vmatprep.subr.bf16.mxu0 0
    %6355 = vmatpush2.bf16.msra.mxu0 0
    %6356 = vmatprep.subr.bf16.mxu0 0
    %6357 = vmatpush2.bf16.msra.mxu0 0
    %6358 = vmatprep.subr.bf16.mxu0 %v6233
    %6359 = vmatpush2.bf16.msra.mxu0 %v6232
    %6360 = vmatprep.subr.bf16.mxu0 %v6231
    %6361 = vmatpush2.bf16.msra.mxu0 %v6230
    %6362 = vmatprep.subr.bf16.mxu0 %v6229
    %6363 = vmatpush2.bf16.msra.mxu0 %v6228
    %6364 = vmatprep.subr.bf16.mxu0 %v6227
    %6365 = vmatpush2.bf16.msra.mxu0 %v6226
    %6366 = vmatprep.mubr.bf16.mxu0 %v6291
    %6367 = vmatmul.mubr.bf16.gmra.mxu0 %v5951
    %v6368 = vpop.f32.mrf.mxu0
    %v6369 = vadd.f32 %v6328, %v6368
    %v6370 = vpop.f32.mrf.mxu0
    %v6371 = vadd.f32 %v6330, %v6370
    %v6372 = vpop.f32.mrf.mxu0
    %v6373 = vpop.f32.mrf.mxu0
    %6374 = vdwg.mxu0
    %v6375 = vadd.f32 %v5836, %v6369
    %v6376 = vadd.f32 %v5837, %v6371
    %s6377 = scalar_lea.vmem %s0, 13
    %v6378 = vld [vmem:[%s6377] sm:$0x1]
    %v6381 = vunpack.c.l.s4 1966171168
    %v6382 = vunpack.c.0.s8 %v6381
    %v6383 = vlaneseq
    %v6384 = vshrl.u32 %v6383, 7
    %v6385 = vsub.s32 %v6382, %v6384
    %v6386 = vrot.slane %v5839, %v6385
    %v6388 = vunpack.c.l.s4 1966171168
    %v6389 = vunpack.c.0.s8 %v6388
    %v6390 = vlaneseq
    %v6391 = vshrl.u32 %v6390, 7
    %v6392 = vsub.s32 %v6389, %v6391
    %v6393 = vrot.slane %v6386, %v6392
    %6394 = vrot.lane.b32.xlu0 %v6393, 64
    %v6395 = vpop.permute.xlu0 %6394
    %v6397 = vsel %vm208, %v5300, %v6395
    %v6400 = vsel %vm208, %v6378, 0
    %6402 = vmatprep.subr.bf16.mxu0 %v407
    %6403 = vmatpush1.bf16.msra.mxu0 %v406
    %6404 = vmatprep.subr.bf16.mxu0 %v403
    %6405 = vmatpush1.bf16.msra.mxu0 %v402
    %6406 = vmatprep.subr.bf16.mxu0 %v399
    %6407 = vmatpush1.bf16.msra.mxu0 %v398
    %6408 = vmatprep.subr.bf16.mxu0 %v395
    %6409 = vmatpush1.bf16.msra.mxu0 %v394
    %6410 = vmatprep.subr.bf16.mxu0 %v391
    %6411 = vmatpush1.bf16.msra.mxu0 %v390
    %6412 = vmatprep.subr.bf16.mxu0 %v387
    %6413 = vmatpush1.bf16.msra.mxu0 %v386
    %6414 = vmatprep.subr.bf16.mxu0 %v383
    %6415 = vmatpush1.bf16.msra.mxu0 %v382
    %6416 = vmatprep.subr.bf16.mxu0 %v379
    %6417 = vmatpush1.bf16.msra.mxu0 %v378
    %6418 = vmatprep.subr.bf16.mxu0 0
    %6419 = vmatpush2.bf16.msra.mxu0 0
    %6420 = vmatprep.subr.bf16.mxu0 0
    %6421 = vmatpush2.bf16.msra.mxu0 0
    %6422 = vmatprep.subr.bf16.mxu0 0
    %6423 = vmatpush2.bf16.msra.mxu0 0
    %6424 = vmatprep.subr.bf16.mxu0 0
    %6425 = vmatpush2.bf16.msra.mxu0 0
    %6426 = vmatprep.subr.bf16.mxu0 %v423
    %6427 = vmatpush2.bf16.msra.mxu0 %v422
    %6428 = vmatprep.subr.bf16.mxu0 %v419
    %6429 = vmatpush2.bf16.msra.mxu0 %v418
    %6430 = vmatprep.subr.bf16.mxu0 %v415
    %6431 = vmatpush2.bf16.msra.mxu0 %v414
    %6432 = vmatprep.subr.bf16.mxu0 %v411
    %6433 = vmatpush2.bf16.msra.mxu0 %v410
    %6434 = vmatprep.mubr.bf16.mxu0 %v6400
    %6435 = vmatmul.mubr.bf16.gmra.mxu0 %v6397
    %v6436 = vpop.f32.mrf.mxu0
    %v6437 = vadd.f32 %v217, %v6436
    %v6438 = vpop.f32.mrf.mxu0
    %v6439 = vadd.f32 %v221, %v6438
    %v6440 = vpop.f32.mrf.mxu0
    %v6441 = vpop.f32.mrf.mxu0
    %6442 = vdwg.mxu0
    %6443 = vmatprep.subr.bf16.mxu0 %v409
    %6444 = vmatpush1.bf16.msra.mxu0 %v408
    %6445 = vmatprep.subr.bf16.mxu0 %v405
    %6446 = vmatpush1.bf16.msra.mxu0 %v404
    %6447 = vmatprep.subr.bf16.mxu0 %v401
    %6448 = vmatpush1.bf16.msra.mxu0 %v400
    %6449 = vmatprep.subr.bf16.mxu0 %v397
    %6450 = vmatpush1.bf16.msra.mxu0 %v396
    %6451 = vmatprep.subr.bf16.mxu0 %v393
    %6452 = vmatpush1.bf16.msra.mxu0 %v392
    %6453 = vmatprep.subr.bf16.mxu0 %v389
    %6454 = vmatpush1.bf16.msra.mxu0 %v388
    %6455 = vmatprep.subr.bf16.mxu0 %v385
    %6456 = vmatpush1.bf16.msra.mxu0 %v384
    %6457 = vmatprep.subr.bf16.mxu0 %v381
    %6458 = vmatpush1.bf16.msra.mxu0 %v380
    %6459 = vmatprep.subr.bf16.mxu0 0
    %6460 = vmatpush2.bf16.msra.mxu0 0
    %6461 = vmatprep.subr.bf16.mxu0 0
    %6462 = vmatpush2.bf16.msra.mxu0 0
    %6463 = vmatprep.subr.bf16.mxu0 0
    %6464 = vmatpush2.bf16.msra.mxu0 0
    %6465 = vmatprep.subr.bf16.mxu0 0
    %6466 = vmatpush2.bf16.msra.mxu0 0
    %6467 = vmatprep.subr.bf16.mxu0 %v425
    %6468 = vmatpush2.bf16.msra.mxu0 %v424
    %6469 = vmatprep.subr.bf16.mxu0 %v421
    %6470 = vmatpush2.bf16.msra.mxu0 %v420
    %6471 = vmatprep.subr.bf16.mxu0 %v417
    %6472 = vmatpush2.bf16.msra.mxu0 %v416
    %6473 = vmatprep.subr.bf16.mxu0 %v413
    %6474 = vmatpush2.bf16.msra.mxu0 %v412
    %6475 = vmatprep.mubr.bf16.mxu0 %v6400
    %6476 = vmatmul.mubr.bf16.gmra.mxu0 %v6397
    %v6477 = vpop.f32.mrf.mxu0
    %v6478 = vadd.f32 %v225, %v6477
    %v6479 = vpop.f32.mrf.mxu0
    %v6480 = vadd.f32 %v229, %v6479
    %v6481 = vpop.f32.mrf.mxu0
    %v6482 = vpop.f32.mrf.mxu0
    %6483 = vdwg.mxu0
    %v6484 = vmax.f32 %v6437, 0.0
    %v6485 = vmax.f32 %v6439, 0.0
    %v6486 = vmax.f32 %v6478, 0.0
    %v6487 = vmax.f32 %v6480, 0.0
    %v6488 = vpack.c.bf16 %v6484, %v6484
    %v6489 = vpack.c.bf16 %v6485, %v6485
    %v6490 = vpack.c.bf16 %v6486, %v6486
    %v6491 = vpack.c.bf16 %v6487, %v6487
    %s6492 = scalar_lea.vmem [#allocation6], 4928
    %v6493 = vld [vmem:[%s6492] sm:$0xff]
    %v6494 = vld [vmem:[%s6492 + $0x8] sm:$0xff]
    %v6495 = vld [vmem:[%s6492 + $0x10] sm:$0xff]
    %v6496 = vld [vmem:[%s6492 + $0x18] sm:$0xff]
    %v6497 = vld [vmem:[%s6492 + $0x20] sm:$0xff]
    %v6498 = vld [vmem:[%s6492 + $0x28] sm:$0xff]
    %v6499 = vld [vmem:[%s6492 + $0x30] sm:$0xff]
    %v6500 = vld [vmem:[%s6492 + $0x38] sm:$0xff]
    %v6501 = vld [vmem:[%s6492 + $0x40] sm:$0xff]
    %v6502 = vld [vmem:[%s6492 + $0x48] sm:$0xff]
    %v6503 = vld [vmem:[%s6492 + $0x50] sm:$0xff]
    %v6504 = vld [vmem:[%s6492 + $0x58] sm:$0xff]
    %v6505 = vld [vmem:[%s6492 + $0x60] sm:$0xff]
    %v6506 = vld [vmem:[%s6492 + $0x68] sm:$0xff]
    %v6507 = vld [vmem:[%s6492 + $0x70] sm:$0xff]
    %v6508 = vld [vmem:[%s6492 + $0x78] sm:$0xff]
    %v6509 = vld [vmem:[%s6492 + $0x80] sm:$0xff]
    %v6510 = vld [vmem:[%s6492 + $0x88] sm:$0xff]
    %v6511 = vld [vmem:[%s6492 + $0x90] sm:$0xff]
    %v6512 = vld [vmem:[%s6492 + $0x98] sm:$0xff]
    %v6513 = vld [vmem:[%s6492 + $0xa0] sm:$0xff]
    %v6514 = vld [vmem:[%s6492 + $0xa8] sm:$0xff]
    %v6515 = vld [vmem:[%s6492 + $0xb0] sm:$0xff]
    %v6516 = vld [vmem:[%s6492 + $0xb8] sm:$0xff]
    %v6517 = vld [vmem:[%s6492 + $0xc0] sm:$0xff]
    %v6518 = vld [vmem:[%s6492 + $0xc8] sm:$0xff]
    %v6519 = vld [vmem:[%s6492 + $0xd0] sm:$0xff]
    %v6520 = vld [vmem:[%s6492 + $0xd8] sm:$0xff]
    %v6521 = vld [vmem:[%s6492 + $0xe0] sm:$0xff]
    %v6522 = vld [vmem:[%s6492 + $0xe8] sm:$0xff]
    %v6523 = vld [vmem:[%s6492 + $0xf0] sm:$0xff]
    %v6524 = vld [vmem:[%s6492 + $0xf8] sm:$0xff]
    %v6525 = vld [vmem:[%s6492 + $0x100] sm:$0xff]
    %v6526 = vld [vmem:[%s6492 + $0x108] sm:$0xff]
    %v6527 = vld [vmem:[%s6492 + $0x110] sm:$0xff]
    %v6528 = vld [vmem:[%s6492 + $0x118] sm:$0xff]
    %v6529 = vld [vmem:[%s6492 + $0x120] sm:$0xff]
    %v6530 = vld [vmem:[%s6492 + $0x128] sm:$0xff]
    %v6531 = vld [vmem:[%s6492 + $0x130] sm:$0xff]
    %v6532 = vld [vmem:[%s6492 + $0x138] sm:$0xff]
    %v6533 = vld [vmem:[%s6492 + $0x140] sm:$0xff]
    %v6534 = vld [vmem:[%s6492 + $0x148] sm:$0xff]
    %v6535 = vld [vmem:[%s6492 + $0x150] sm:$0xff]
    %v6536 = vld [vmem:[%s6492 + $0x158] sm:$0xff]
    %v6537 = vld [vmem:[%s6492 + $0x160] sm:$0xff]
    %v6538 = vld [vmem:[%s6492 + $0x168] sm:$0xff]
    %v6539 = vld [vmem:[%s6492 + $0x170] sm:$0xff]
    %v6540 = vld [vmem:[%s6492 + $0x178] sm:$0xff]
    %v6541 = vld [vmem:[%s6492 + $0x180] sm:$0xff]
    %v6542 = vld [vmem:[%s6492 + $0x188] sm:$0xff]
    %v6543 = vld [vmem:[%s6492 + $0x190] sm:$0xff]
    %v6544 = vld [vmem:[%s6492 + $0x198] sm:$0xff]
    %v6545 = vld [vmem:[%s6492 + $0x1a0] sm:$0xff]
    %v6546 = vld [vmem:[%s6492 + $0x1a8] sm:$0xff]
    %v6547 = vld [vmem:[%s6492 + $0x1b0] sm:$0xff]
    %v6548 = vld [vmem:[%s6492 + $0x1b8] sm:$0xff]
    %v6605 = vunpack.c.l.b16 %v6493
    %v6606 = vunpack.c.h.b16 %v6493
    %v6607 = vunpack.c.l.b16 %v6494
    %v6608 = vunpack.c.h.b16 %v6494
    %v6609 = vunpack.c.l.b16 %v6495
    %v6610 = vunpack.c.h.b16 %v6495
    %v6611 = vunpack.c.l.b16 %v6496
    %v6612 = vunpack.c.h.b16 %v6496
    %v6613 = vunpack.c.l.b16 %v6497
    %v6614 = vunpack.c.h.b16 %v6497
    %v6615 = vunpack.c.l.b16 %v6498
    %v6616 = vunpack.c.h.b16 %v6498
    %v6617 = vunpack.c.l.b16 %v6499
    %v6618 = vunpack.c.h.b16 %v6499
    %v6619 = vunpack.c.l.b16 %v6500
    %v6620 = vunpack.c.h.b16 %v6500
    %v6621 = vunpack.c.l.b16 %v6501
    %v6622 = vunpack.c.h.b16 %v6501
    %v6623 = vunpack.c.l.b16 %v6502
    %v6624 = vunpack.c.h.b16 %v6502
    %v6625 = vunpack.c.l.b16 %v6503
    %v6626 = vunpack.c.h.b16 %v6503
    %v6627 = vunpack.c.l.b16 %v6504
    %v6628 = vunpack.c.h.b16 %v6504
    %v6629 = vunpack.c.l.b16 %v6505
    %v6630 = vunpack.c.h.b16 %v6505
    %v6631 = vunpack.c.l.b16 %v6506
    %v6632 = vunpack.c.h.b16 %v6506
    %v6633 = vunpack.c.l.b16 %v6507
    %v6634 = vunpack.c.h.b16 %v6507
    %v6635 = vunpack.c.l.b16 %v6508
    %v6636 = vunpack.c.h.b16 %v6508
    %v6637 = vunpack.c.l.b16 %v6509
    %v6638 = vunpack.c.h.b16 %v6509
    %v6639 = vunpack.c.l.b16 %v6510
    %v6640 = vunpack.c.h.b16 %v6510
    %v6641 = vunpack.c.l.b16 %v6511
    %v6642 = vunpack.c.h.b16 %v6511
    %v6643 = vunpack.c.l.b16 %v6512
    %v6644 = vunpack.c.h.b16 %v6512
    %v6645 = vunpack.c.l.b16 %v6513
    %v6646 = vunpack.c.h.b16 %v6513
    %v6647 = vunpack.c.l.b16 %v6514
    %v6648 = vunpack.c.h.b16 %v6514
    %v6649 = vunpack.c.l.b16 %v6515
    %v6650 = vunpack.c.h.b16 %v6515
    %v6651 = vunpack.c.l.b16 %v6516
    %v6652 = vunpack.c.h.b16 %v6516
    %v6653 = vunpack.c.l.b16 %v6517
    %v6654 = vunpack.c.h.b16 %v6517
    %v6655 = vunpack.c.l.b16 %v6518
    %v6656 = vunpack.c.h.b16 %v6518
    %v6657 = vunpack.c.l.b16 %v6519
    %v6658 = vunpack.c.h.b16 %v6519
    %v6659 = vunpack.c.l.b16 %v6520
    %v6660 = vunpack.c.h.b16 %v6520
    %v6661 = vunpack.c.l.b16 %v6521
    %v6662 = vunpack.c.h.b16 %v6521
    %v6663 = vunpack.c.l.b16 %v6522
    %v6664 = vunpack.c.h.b16 %v6522
    %v6665 = vunpack.c.l.b16 %v6523
    %v6666 = vunpack.c.h.b16 %v6523
    %v6667 = vunpack.c.l.b16 %v6524
    %v6668 = vunpack.c.h.b16 %v6524
    %v6669 = vunpack.c.l.b16 %v6525
    %v6670 = vunpack.c.h.b16 %v6525
    %v6671 = vunpack.c.l.b16 %v6526
    %v6672 = vunpack.c.h.b16 %v6526
    %v6673 = vunpack.c.l.b16 %v6527
    %v6674 = vunpack.c.h.b16 %v6527
    %v6675 = vunpack.c.l.b16 %v6528
    %v6676 = vunpack.c.h.b16 %v6528
    %v6677 = vunpack.c.l.b16 %v6529
    %v6678 = vunpack.c.h.b16 %v6529
    %v6679 = vunpack.c.l.b16 %v6530
    %v6680 = vunpack.c.h.b16 %v6530
    %v6681 = vunpack.c.l.b16 %v6531
    %v6682 = vunpack.c.h.b16 %v6531
    %v6683 = vunpack.c.l.b16 %v6532
    %v6684 = vunpack.c.h.b16 %v6532
    %v6685 = vunpack.c.l.b16 %v6533
    %v6686 = vunpack.c.h.b16 %v6533
    %v6687 = vunpack.c.l.b16 %v6534
    %v6688 = vunpack.c.h.b16 %v6534
    %v6689 = vunpack.c.l.b16 %v6535
    %v6690 = vunpack.c.h.b16 %v6535
    %v6691 = vunpack.c.l.b16 %v6536
    %v6692 = vunpack.c.h.b16 %v6536
    %v6693 = vunpack.c.l.b16 %v6537
    %v6694 = vunpack.c.h.b16 %v6537
    %v6695 = vunpack.c.l.b16 %v6538
    %v6696 = vunpack.c.h.b16 %v6538
    %v6697 = vunpack.c.l.b16 %v6539
    %v6698 = vunpack.c.h.b16 %v6539
    %v6699 = vunpack.c.l.b16 %v6540
    %v6700 = vunpack.c.h.b16 %v6540
    %v6701 = vunpack.c.l.b16 %v6541
    %v6702 = vunpack.c.h.b16 %v6541
    %v6703 = vunpack.c.l.b16 %v6542
    %v6704 = vunpack.c.h.b16 %v6542
    %v6705 = vunpack.c.l.b16 %v6543
    %v6706 = vunpack.c.h.b16 %v6543
    %v6707 = vunpack.c.l.b16 %v6544
    %v6708 = vunpack.c.h.b16 %v6544
    %v6709 = vunpack.c.l.b16 %v6545
    %v6710 = vunpack.c.h.b16 %v6545
    %v6711 = vunpack.c.l.b16 %v6546
    %v6712 = vunpack.c.h.b16 %v6546
    %v6713 = vunpack.c.l.b16 %v6547
    %v6714 = vunpack.c.h.b16 %v6547
    %v6715 = vunpack.c.l.b16 %v6548
    %v6716 = vunpack.c.h.b16 %v6548
    %v6717 = vpack.c.b16 %v6607, %v6605
    %v6718 = vpack.c.b16 %v6608, %v6606
    %v6719 = vpack.c.b16 %v6611, %v6609
    %v6720 = vpack.c.b16 %v6612, %v6610
    %v6721 = vpack.c.b16 %v6615, %v6613
    %v6722 = vpack.c.b16 %v6616, %v6614
    %v6723 = vpack.c.b16 %v6619, %v6617
    %v6724 = vpack.c.b16 %v6620, %v6618
    %v6725 = vpack.c.b16 %v6623, %v6621
    %v6726 = vpack.c.b16 %v6624, %v6622
    %v6727 = vpack.c.b16 %v6627, %v6625
    %v6728 = vpack.c.b16 %v6628, %v6626
    %v6729 = vpack.c.b16 %v6631, %v6629
    %v6730 = vpack.c.b16 %v6632, %v6630
    %v6731 = vpack.c.b16 %v6635, %v6633
    %v6732 = vpack.c.b16 %v6636, %v6634
    %v6733 = vpack.c.b16 %v6639, %v6637
    %v6734 = vpack.c.b16 %v6640, %v6638
    %v6735 = vpack.c.b16 %v6643, %v6641
    %v6736 = vpack.c.b16 %v6644, %v6642
    %v6737 = vpack.c.b16 %v6647, %v6645
    %v6738 = vpack.c.b16 %v6648, %v6646
    %v6739 = vpack.c.b16 %v6651, %v6649
    %v6740 = vpack.c.b16 %v6652, %v6650
    %v6741 = vpack.c.b16 %v6655, %v6653
    %v6742 = vpack.c.b16 %v6656, %v6654
    %v6743 = vpack.c.b16 %v6659, %v6657
    %v6744 = vpack.c.b16 %v6660, %v6658
    %v6745 = vpack.c.b16 %v6663, %v6661
    %v6746 = vpack.c.b16 %v6664, %v6662
    %v6747 = vpack.c.b16 %v6667, %v6665
    %v6748 = vpack.c.b16 %v6668, %v6666
    %v6749 = vpack.c.b16 %v6671, %v6669
    %v6750 = vpack.c.b16 %v6672, %v6670
    %v6751 = vpack.c.b16 %v6675, %v6673
    %v6752 = vpack.c.b16 %v6676, %v6674
    %v6753 = vpack.c.b16 %v6679, %v6677
    %v6754 = vpack.c.b16 %v6680, %v6678
    %v6755 = vpack.c.b16 %v6683, %v6681
    %v6756 = vpack.c.b16 %v6684, %v6682
    %v6757 = vpack.c.b16 %v6687, %v6685
    %v6758 = vpack.c.b16 %v6688, %v6686
    %v6759 = vpack.c.b16 %v6691, %v6689
    %v6760 = vpack.c.b16 %v6692, %v6690
    %v6761 = vpack.c.b16 %v6695, %v6693
    %v6762 = vpack.c.b16 %v6696, %v6694
    %v6763 = vpack.c.b16 %v6699, %v6697
    %v6764 = vpack.c.b16 %v6700, %v6698
    %v6765 = vpack.c.b16 %v6703, %v6701
    %v6766 = vpack.c.b16 %v6704, %v6702
    %v6767 = vpack.c.b16 %v6707, %v6705
    %v6768 = vpack.c.b16 %v6708, %v6706
    %v6769 = vpack.c.b16 %v6711, %v6709
    %v6770 = vpack.c.b16 %v6712, %v6710
    %v6771 = vpack.c.b16 %v6715, %v6713
    %v6772 = vpack.c.b16 %v6716, %v6714
    %v6830 = vsel %vm208, %v6491, 0
    %6832 = vmatprep.subr.bf16.mxu0 %v6732
    %6833 = vmatpush1.bf16.msra.mxu0 %v6731
    %6834 = vmatprep.subr.bf16.mxu0 %v6730
    %6835 = vmatpush1.bf16.msra.mxu0 %v6729
    %6836 = vmatprep.subr.bf16.mxu0 %v6728
    %6837 = vmatpush1.bf16.msra.mxu0 %v6727
    %6838 = vmatprep.subr.bf16.mxu0 %v6726
    %6839 = vmatpush1.bf16.msra.mxu0 %v6725
    %6840 = vmatprep.subr.bf16.mxu0 %v6724
    %6841 = vmatpush1.bf16.msra.mxu0 %v6723
    %6842 = vmatprep.subr.bf16.mxu0 %v6722
    %6843 = vmatpush1.bf16.msra.mxu0 %v6721
    %6844 = vmatprep.subr.bf16.mxu0 %v6720
    %6845 = vmatpush1.bf16.msra.mxu0 %v6719
    %6846 = vmatprep.subr.bf16.mxu0 %v6718
    %6847 = vmatpush1.bf16.msra.mxu0 %v6717
    %6848 = vmatprep.subr.bf16.mxu0 %v6748
    %6849 = vmatpush2.bf16.msra.mxu0 %v6747
    %6850 = vmatprep.subr.bf16.mxu0 %v6746
    %6851 = vmatpush2.bf16.msra.mxu0 %v6745
    %6852 = vmatprep.subr.bf16.mxu0 %v6744
    %6853 = vmatpush2.bf16.msra.mxu0 %v6743
    %6854 = vmatprep.subr.bf16.mxu0 %v6742
    %6855 = vmatpush2.bf16.msra.mxu0 %v6741
    %6856 = vmatprep.subr.bf16.mxu0 %v6740
    %6857 = vmatpush2.bf16.msra.mxu0 %v6739
    %6858 = vmatprep.subr.bf16.mxu0 %v6738
    %6859 = vmatpush2.bf16.msra.mxu0 %v6737
    %6860 = vmatprep.subr.bf16.mxu0 %v6736
    %6861 = vmatpush2.bf16.msra.mxu0 %v6735
    %6862 = vmatprep.subr.bf16.mxu0 %v6734
    %6863 = vmatpush2.bf16.msra.mxu0 %v6733
    %6864 = vmatprep.mubr.bf16.mxu0 %v6489
    %6865 = vmatmul.mubr.bf16.gmra.mxu0 %v6488
    %v6866 = vpop.f32.mrf.mxu0
    %v6867 = vadd.f32 0.0, %v6866
    %v6868 = vpop.f32.mrf.mxu0
    %v6869 = vadd.f32 0.0, %v6868
    %v6870 = vpop.f32.mrf.mxu0
    %v6871 = vpop.f32.mrf.mxu0
    %6872 = vdwg.mxu0
    %6873 = vmatprep.subr.bf16.mxu0 %v6764
    %6874 = vmatpush1.bf16.msra.mxu0 %v6763
    %6875 = vmatprep.subr.bf16.mxu0 %v6762
    %6876 = vmatpush1.bf16.msra.mxu0 %v6761
    %6877 = vmatprep.subr.bf16.mxu0 %v6760
    %6878 = vmatpush1.bf16.msra.mxu0 %v6759
    %6879 = vmatprep.subr.bf16.mxu0 %v6758
    %6880 = vmatpush1.bf16.msra.mxu0 %v6757
    %6881 = vmatprep.subr.bf16.mxu0 %v6756
    %6882 = vmatpush1.bf16.msra.mxu0 %v6755
    %6883 = vmatprep.subr.bf16.mxu0 %v6754
    %6884 = vmatpush1.bf16.msra.mxu0 %v6753
    %6885 = vmatprep.subr.bf16.mxu0 %v6752
    %6886 = vmatpush1.bf16.msra.mxu0 %v6751
    %6887 = vmatprep.subr.bf16.mxu0 %v6750
    %6888 = vmatpush1.bf16.msra.mxu0 %v6749
    %6889 = vmatprep.subr.bf16.mxu0 0
    %6890 = vmatpush2.bf16.msra.mxu0 0
    %6891 = vmatprep.subr.bf16.mxu0 0
    %6892 = vmatpush2.bf16.msra.mxu0 0
    %6893 = vmatprep.subr.bf16.mxu0 0
    %6894 = vmatpush2.bf16.msra.mxu0 0
    %6895 = vmatprep.subr.bf16.mxu0 0
    %6896 = vmatpush2.bf16.msra.mxu0 0
    %6897 = vmatprep.subr.bf16.mxu0 %v6772
    %6898 = vmatpush2.bf16.msra.mxu0 %v6771
    %6899 = vmatprep.subr.bf16.mxu0 %v6770
    %6900 = vmatpush2.bf16.msra.mxu0 %v6769
    %6901 = vmatprep.subr.bf16.mxu0 %v6768
    %6902 = vmatpush2.bf16.msra.mxu0 %v6767
    %6903 = vmatprep.subr.bf16.mxu0 %v6766
    %6904 = vmatpush2.bf16.msra.mxu0 %v6765
    %6905 = vmatprep.mubr.bf16.mxu0 %v6830
    %6906 = vmatmul.mubr.bf16.gmra.mxu0 %v6490
    %v6907 = vpop.f32.mrf.mxu0
    %v6908 = vadd.f32 %v6867, %v6907
    %v6909 = vpop.f32.mrf.mxu0
    %v6910 = vadd.f32 %v6869, %v6909
    %v6911 = vpop.f32.mrf.mxu0
    %v6912 = vpop.f32.mrf.mxu0
    %6913 = vdwg.mxu0
    %v6914 = vadd.f32 %v6375, %v6908
    %v6915 = vadd.f32 %v6376, %v6910
    %s6916 = scalar_lea.vmem %s0, 14
    %v6917 = vld [vmem:[%s6916] sm:$0x1]
    %v6920 = vunpack.c.l.s4 1966171168
    %v6921 = vunpack.c.0.s8 %v6920
    %v6922 = vlaneseq
    %v6923 = vshrl.u32 %v6922, 7
    %v6924 = vsub.s32 %v6921, %v6923
    %v6925 = vrot.slane %v6378, %v6924
    %v6927 = vunpack.c.l.s4 1966171168
    %v6928 = vunpack.c.0.s8 %v6927
    %v6929 = vlaneseq
    %v6930 = vshrl.u32 %v6929, 7
    %v6931 = vsub.s32 %v6928, %v6930
    %v6932 = vrot.slane %v6925, %v6931
    %6933 = vrot.lane.b32.xlu0 %v6932, 64
    %v6934 = vpop.permute.xlu0 %6933
    %v6936 = vsel %vm208, %v5839, %v6934
    %v6939 = vsel %vm208, %v6917, 0
    %6941 = vmatprep.subr.bf16.mxu0 %v407
    %6942 = vmatpush1.bf16.msra.mxu0 %v406
    %6943 = vmatprep.subr.bf16.mxu0 %v403
    %6944 = vmatpush1.bf16.msra.mxu0 %v402
    %6945 = vmatprep.subr.bf16.mxu0 %v399
    %6946 = vmatpush1.bf16.msra.mxu0 %v398
    %6947 = vmatprep.subr.bf16.mxu0 %v395
    %6948 = vmatpush1.bf16.msra.mxu0 %v394
    %6949 = vmatprep.subr.bf16.mxu0 %v391
    %6950 = vmatpush1.bf16.msra.mxu0 %v390
    %6951 = vmatprep.subr.bf16.mxu0 %v387
    %6952 = vmatpush1.bf16.msra.mxu0 %v386
    %6953 = vmatprep.subr.bf16.mxu0 %v383
    %6954 = vmatpush1.bf16.msra.mxu0 %v382
    %6955 = vmatprep.subr.bf16.mxu0 %v379
    %6956 = vmatpush1.bf16.msra.mxu0 %v378
    %6957 = vmatprep.subr.bf16.mxu0 0
    %6958 = vmatpush2.bf16.msra.mxu0 0
    %6959 = vmatprep.subr.bf16.mxu0 0
    %6960 = vmatpush2.bf16.msra.mxu0 0
    %6961 = vmatprep.subr.bf16.mxu0 0
    %6962 = vmatpush2.bf16.msra.mxu0 0
    %6963 = vmatprep.subr.bf16.mxu0 0
    %6964 = vmatpush2.bf16.msra.mxu0 0
    %6965 = vmatprep.subr.bf16.mxu0 %v423
    %6966 = vmatpush2.bf16.msra.mxu0 %v422
    %6967 = vmatprep.subr.bf16.mxu0 %v419
    %6968 = vmatpush2.bf16.msra.mxu0 %v418
    %6969 = vmatprep.subr.bf16.mxu0 %v415
    %6970 = vmatpush2.bf16.msra.mxu0 %v414
    %6971 = vmatprep.subr.bf16.mxu0 %v411
    %6972 = vmatpush2.bf16.msra.mxu0 %v410
    %6973 = vmatprep.mubr.bf16.mxu0 %v6939
    %6974 = vmatmul.mubr.bf16.gmra.mxu0 %v6936
    %v6975 = vpop.f32.mrf.mxu0
    %v6976 = vadd.f32 %v217, %v6975
    %v6977 = vpop.f32.mrf.mxu0
    %v6978 = vadd.f32 %v221, %v6977
    %v6979 = vpop.f32.mrf.mxu0
    %v6980 = vpop.f32.mrf.mxu0
    %6981 = vdwg.mxu0
    %6982 = vmatprep.subr.bf16.mxu0 %v409
    %6983 = vmatpush1.bf16.msra.mxu0 %v408
    %6984 = vmatprep.subr.bf16.mxu0 %v405
    %6985 = vmatpush1.bf16.msra.mxu0 %v404
    %6986 = vmatprep.subr.bf16.mxu0 %v401
    %6987 = vmatpush1.bf16.msra.mxu0 %v400
    %6988 = vmatprep.subr.bf16.mxu0 %v397
    %6989 = vmatpush1.bf16.msra.mxu0 %v396
    %6990 = vmatprep.subr.bf16.mxu0 %v393
    %6991 = vmatpush1.bf16.msra.mxu0 %v392
    %6992 = vmatprep.subr.bf16.mxu0 %v389
    %6993 = vmatpush1.bf16.msra.mxu0 %v388
    %6994 = vmatprep.subr.bf16.mxu0 %v385
    %6995 = vmatpush1.bf16.msra.mxu0 %v384
    %6996 = vmatprep.subr.bf16.mxu0 %v381
    %6997 = vmatpush1.bf16.msra.mxu0 %v380
    %6998 = vmatprep.subr.bf16.mxu0 0
    %6999 = vmatpush2.bf16.msra.mxu0 0
    %7000 = vmatprep.subr.bf16.mxu0 0
    %7001 = vmatpush2.bf16.msra.mxu0 0
    %7002 = vmatprep.subr.bf16.mxu0 0
    %7003 = vmatpush2.bf16.msra.mxu0 0
    %7004 = vmatprep.subr.bf16.mxu0 0
    %7005 = vmatpush2.bf16.msra.mxu0 0
    %7006 = vmatprep.subr.bf16.mxu0 %v425
    %7007 = vmatpush2.bf16.msra.mxu0 %v424
    %7008 = vmatprep.subr.bf16.mxu0 %v421
    %7009 = vmatpush2.bf16.msra.mxu0 %v420
    %7010 = vmatprep.subr.bf16.mxu0 %v417
    %7011 = vmatpush2.bf16.msra.mxu0 %v416
    %7012 = vmatprep.subr.bf16.mxu0 %v413
    %7013 = vmatpush2.bf16.msra.mxu0 %v412
    %7014 = vmatprep.mubr.bf16.mxu0 %v6939
    %7015 = vmatmul.mubr.bf16.gmra.mxu0 %v6936
    %v7016 = vpop.f32.mrf.mxu0
    %v7017 = vadd.f32 %v225, %v7016
    %v7018 = vpop.f32.mrf.mxu0
    %v7019 = vadd.f32 %v229, %v7018
    %v7020 = vpop.f32.mrf.mxu0
    %v7021 = vpop.f32.mrf.mxu0
    %7022 = vdwg.mxu0
    %v7023 = vmax.f32 %v6976, 0.0
    %v7024 = vmax.f32 %v6978, 0.0
    %v7025 = vmax.f32 %v7017, 0.0
    %v7026 = vmax.f32 %v7019, 0.0
    %v7027 = vpack.c.bf16 %v7023, %v7023
    %v7028 = vpack.c.bf16 %v7024, %v7024
    %v7029 = vpack.c.bf16 %v7025, %v7025
    %v7030 = vpack.c.bf16 %v7026, %v7026
    %s7031 = scalar_lea.vmem [#allocation6], 5376
    %v7032 = vld [vmem:[%s7031] sm:$0xff]
    %v7033 = vld [vmem:[%s7031 + $0x8] sm:$0xff]
    %v7034 = vld [vmem:[%s7031 + $0x10] sm:$0xff]
    %v7035 = vld [vmem:[%s7031 + $0x18] sm:$0xff]
    %v7036 = vld [vmem:[%s7031 + $0x20] sm:$0xff]
    %v7037 = vld [vmem:[%s7031 + $0x28] sm:$0xff]
    %v7038 = vld [vmem:[%s7031 + $0x30] sm:$0xff]
    %v7039 = vld [vmem:[%s7031 + $0x38] sm:$0xff]
    %v7040 = vld [vmem:[%s7031 + $0x40] sm:$0xff]
    %v7041 = vld [vmem:[%s7031 + $0x48] sm:$0xff]
    %v7042 = vld [vmem:[%s7031 + $0x50] sm:$0xff]
    %v7043 = vld [vmem:[%s7031 + $0x58] sm:$0xff]
    %v7044 = vld [vmem:[%s7031 + $0x60] sm:$0xff]
    %v7045 = vld [vmem:[%s7031 + $0x68] sm:$0xff]
    %v7046 = vld [vmem:[%s7031 + $0x70] sm:$0xff]
    %v7047 = vld [vmem:[%s7031 + $0x78] sm:$0xff]
    %v7048 = vld [vmem:[%s7031 + $0x80] sm:$0xff]
    %v7049 = vld [vmem:[%s7031 + $0x88] sm:$0xff]
    %v7050 = vld [vmem:[%s7031 + $0x90] sm:$0xff]
    %v7051 = vld [vmem:[%s7031 + $0x98] sm:$0xff]
    %v7052 = vld [vmem:[%s7031 + $0xa0] sm:$0xff]
    %v7053 = vld [vmem:[%s7031 + $0xa8] sm:$0xff]
    %v7054 = vld [vmem:[%s7031 + $0xb0] sm:$0xff]
    %v7055 = vld [vmem:[%s7031 + $0xb8] sm:$0xff]
    %v7056 = vld [vmem:[%s7031 + $0xc0] sm:$0xff]
    %v7057 = vld [vmem:[%s7031 + $0xc8] sm:$0xff]
    %v7058 = vld [vmem:[%s7031 + $0xd0] sm:$0xff]
    %v7059 = vld [vmem:[%s7031 + $0xd8] sm:$0xff]
    %v7060 = vld [vmem:[%s7031 + $0xe0] sm:$0xff]
    %v7061 = vld [vmem:[%s7031 + $0xe8] sm:$0xff]
    %v7062 = vld [vmem:[%s7031 + $0xf0] sm:$0xff]
    %v7063 = vld [vmem:[%s7031 + $0xf8] sm:$0xff]
    %v7064 = vld [vmem:[%s7031 + $0x100] sm:$0xff]
    %v7065 = vld [vmem:[%s7031 + $0x108] sm:$0xff]
    %v7066 = vld [vmem:[%s7031 + $0x110] sm:$0xff]
    %v7067 = vld [vmem:[%s7031 + $0x118] sm:$0xff]
    %v7068 = vld [vmem:[%s7031 + $0x120] sm:$0xff]
    %v7069 = vld [vmem:[%s7031 + $0x128] sm:$0xff]
    %v7070 = vld [vmem:[%s7031 + $0x130] sm:$0xff]
    %v7071 = vld [vmem:[%s7031 + $0x138] sm:$0xff]
    %v7072 = vld [vmem:[%s7031 + $0x140] sm:$0xff]
    %v7073 = vld [vmem:[%s7031 + $0x148] sm:$0xff]
    %v7074 = vld [vmem:[%s7031 + $0x150] sm:$0xff]
    %v7075 = vld [vmem:[%s7031 + $0x158] sm:$0xff]
    %v7076 = vld [vmem:[%s7031 + $0x160] sm:$0xff]
    %v7077 = vld [vmem:[%s7031 + $0x168] sm:$0xff]
    %v7078 = vld [vmem:[%s7031 + $0x170] sm:$0xff]
    %v7079 = vld [vmem:[%s7031 + $0x178] sm:$0xff]
    %v7080 = vld [vmem:[%s7031 + $0x180] sm:$0xff]
    %v7081 = vld [vmem:[%s7031 + $0x188] sm:$0xff]
    %v7082 = vld [vmem:[%s7031 + $0x190] sm:$0xff]
    %v7083 = vld [vmem:[%s7031 + $0x198] sm:$0xff]
    %v7084 = vld [vmem:[%s7031 + $0x1a0] sm:$0xff]
    %v7085 = vld [vmem:[%s7031 + $0x1a8] sm:$0xff]
    %v7086 = vld [vmem:[%s7031 + $0x1b0] sm:$0xff]
    %v7087 = vld [vmem:[%s7031 + $0x1b8] sm:$0xff]
    %v7144 = vunpack.c.l.b16 %v7032
    %v7145 = vunpack.c.h.b16 %v7032
    %v7146 = vunpack.c.l.b16 %v7033
    %v7147 = vunpack.c.h.b16 %v7033
    %v7148 = vunpack.c.l.b16 %v7034
    %v7149 = vunpack.c.h.b16 %v7034
    %v7150 = vunpack.c.l.b16 %v7035
    %v7151 = vunpack.c.h.b16 %v7035
    %v7152 = vunpack.c.l.b16 %v7036
    %v7153 = vunpack.c.h.b16 %v7036
    %v7154 = vunpack.c.l.b16 %v7037
    %v7155 = vunpack.c.h.b16 %v7037
    %v7156 = vunpack.c.l.b16 %v7038
    %v7157 = vunpack.c.h.b16 %v7038
    %v7158 = vunpack.c.l.b16 %v7039
    %v7159 = vunpack.c.h.b16 %v7039
    %v7160 = vunpack.c.l.b16 %v7040
    %v7161 = vunpack.c.h.b16 %v7040
    %v7162 = vunpack.c.l.b16 %v7041
    %v7163 = vunpack.c.h.b16 %v7041
    %v7164 = vunpack.c.l.b16 %v7042
    %v7165 = vunpack.c.h.b16 %v7042
    %v7166 = vunpack.c.l.b16 %v7043
    %v7167 = vunpack.c.h.b16 %v7043
    %v7168 = vunpack.c.l.b16 %v7044
    %v7169 = vunpack.c.h.b16 %v7044
    %v7170 = vunpack.c.l.b16 %v7045
    %v7171 = vunpack.c.h.b16 %v7045
    %v7172 = vunpack.c.l.b16 %v7046
    %v7173 = vunpack.c.h.b16 %v7046
    %v7174 = vunpack.c.l.b16 %v7047
    %v7175 = vunpack.c.h.b16 %v7047
    %v7176 = vunpack.c.l.b16 %v7048
    %v7177 = vunpack.c.h.b16 %v7048
    %v7178 = vunpack.c.l.b16 %v7049
    %v7179 = vunpack.c.h.b16 %v7049
    %v7180 = vunpack.c.l.b16 %v7050
    %v7181 = vunpack.c.h.b16 %v7050
    %v7182 = vunpack.c.l.b16 %v7051
    %v7183 = vunpack.c.h.b16 %v7051
    %v7184 = vunpack.c.l.b16 %v7052
    %v7185 = vunpack.c.h.b16 %v7052
    %v7186 = vunpack.c.l.b16 %v7053
    %v7187 = vunpack.c.h.b16 %v7053
    %v7188 = vunpack.c.l.b16 %v7054
    %v7189 = vunpack.c.h.b16 %v7054
    %v7190 = vunpack.c.l.b16 %v7055
    %v7191 = vunpack.c.h.b16 %v7055
    %v7192 = vunpack.c.l.b16 %v7056
    %v7193 = vunpack.c.h.b16 %v7056
    %v7194 = vunpack.c.l.b16 %v7057
    %v7195 = vunpack.c.h.b16 %v7057
    %v7196 = vunpack.c.l.b16 %v7058
    %v7197 = vunpack.c.h.b16 %v7058
    %v7198 = vunpack.c.l.b16 %v7059
    %v7199 = vunpack.c.h.b16 %v7059
    %v7200 = vunpack.c.l.b16 %v7060
    %v7201 = vunpack.c.h.b16 %v7060
    %v7202 = vunpack.c.l.b16 %v7061
    %v7203 = vunpack.c.h.b16 %v7061
    %v7204 = vunpack.c.l.b16 %v7062
    %v7205 = vunpack.c.h.b16 %v7062
    %v7206 = vunpack.c.l.b16 %v7063
    %v7207 = vunpack.c.h.b16 %v7063
    %v7208 = vunpack.c.l.b16 %v7064
    %v7209 = vunpack.c.h.b16 %v7064
    %v7210 = vunpack.c.l.b16 %v7065
    %v7211 = vunpack.c.h.b16 %v7065
    %v7212 = vunpack.c.l.b16 %v7066
    %v7213 = vunpack.c.h.b16 %v7066
    %v7214 = vunpack.c.l.b16 %v7067
    %v7215 = vunpack.c.h.b16 %v7067
    %v7216 = vunpack.c.l.b16 %v7068
    %v7217 = vunpack.c.h.b16 %v7068
    %v7218 = vunpack.c.l.b16 %v7069
    %v7219 = vunpack.c.h.b16 %v7069
    %v7220 = vunpack.c.l.b16 %v7070
    %v7221 = vunpack.c.h.b16 %v7070
    %v7222 = vunpack.c.l.b16 %v7071
    %v7223 = vunpack.c.h.b16 %v7071
    %v7224 = vunpack.c.l.b16 %v7072
    %v7225 = vunpack.c.h.b16 %v7072
    %v7226 = vunpack.c.l.b16 %v7073
    %v7227 = vunpack.c.h.b16 %v7073
    %v7228 = vunpack.c.l.b16 %v7074
    %v7229 = vunpack.c.h.b16 %v7074
    %v7230 = vunpack.c.l.b16 %v7075
    %v7231 = vunpack.c.h.b16 %v7075
    %v7232 = vunpack.c.l.b16 %v7076
    %v7233 = vunpack.c.h.b16 %v7076
    %v7234 = vunpack.c.l.b16 %v7077
    %v7235 = vunpack.c.h.b16 %v7077
    %v7236 = vunpack.c.l.b16 %v7078
    %v7237 = vunpack.c.h.b16 %v7078
    %v7238 = vunpack.c.l.b16 %v7079
    %v7239 = vunpack.c.h.b16 %v7079
    %v7240 = vunpack.c.l.b16 %v7080
    %v7241 = vunpack.c.h.b16 %v7080
    %v7242 = vunpack.c.l.b16 %v7081
    %v7243 = vunpack.c.h.b16 %v7081
    %v7244 = vunpack.c.l.b16 %v7082
    %v7245 = vunpack.c.h.b16 %v7082
    %v7246 = vunpack.c.l.b16 %v7083
    %v7247 = vunpack.c.h.b16 %v7083
    %v7248 = vunpack.c.l.b16 %v7084
    %v7249 = vunpack.c.h.b16 %v7084
    %v7250 = vunpack.c.l.b16 %v7085
    %v7251 = vunpack.c.h.b16 %v7085
    %v7252 = vunpack.c.l.b16 %v7086
    %v7253 = vunpack.c.h.b16 %v7086
    %v7254 = vunpack.c.l.b16 %v7087
    %v7255 = vunpack.c.h.b16 %v7087
    %v7256 = vpack.c.b16 %v7146, %v7144
    %v7257 = vpack.c.b16 %v7147, %v7145
    %v7258 = vpack.c.b16 %v7150, %v7148
    %v7259 = vpack.c.b16 %v7151, %v7149
    %v7260 = vpack.c.b16 %v7154, %v7152
    %v7261 = vpack.c.b16 %v7155, %v7153
    %v7262 = vpack.c.b16 %v7158, %v7156
    %v7263 = vpack.c.b16 %v7159, %v7157
    %v7264 = vpack.c.b16 %v7162, %v7160
    %v7265 = vpack.c.b16 %v7163, %v7161
    %v7266 = vpack.c.b16 %v7166, %v7164
    %v7267 = vpack.c.b16 %v7167, %v7165
    %v7268 = vpack.c.b16 %v7170, %v7168
    %v7269 = vpack.c.b16 %v7171, %v7169
    %v7270 = vpack.c.b16 %v7174, %v7172
    %v7271 = vpack.c.b16 %v7175, %v7173
    %v7272 = vpack.c.b16 %v7178, %v7176
    %v7273 = vpack.c.b16 %v7179, %v7177
    %v7274 = vpack.c.b16 %v7182, %v7180
    %v7275 = vpack.c.b16 %v7183, %v7181
    %v7276 = vpack.c.b16 %v7186, %v7184
    %v7277 = vpack.c.b16 %v7187, %v7185
    %v7278 = vpack.c.b16 %v7190, %v7188
    %v7279 = vpack.c.b16 %v7191, %v7189
    %v7280 = vpack.c.b16 %v7194, %v7192
    %v7281 = vpack.c.b16 %v7195, %v7193
    %v7282 = vpack.c.b16 %v7198, %v7196
    %v7283 = vpack.c.b16 %v7199, %v7197
    %v7284 = vpack.c.b16 %v7202, %v7200
    %v7285 = vpack.c.b16 %v7203, %v7201
    %v7286 = vpack.c.b16 %v7206, %v7204
    %v7287 = vpack.c.b16 %v7207, %v7205
    %v7288 = vpack.c.b16 %v7210, %v7208
    %v7289 = vpack.c.b16 %v7211, %v7209
    %v7290 = vpack.c.b16 %v7214, %v7212
    %v7291 = vpack.c.b16 %v7215, %v7213
    %v7292 = vpack.c.b16 %v7218, %v7216
    %v7293 = vpack.c.b16 %v7219, %v7217
    %v7294 = vpack.c.b16 %v7222, %v7220
    %v7295 = vpack.c.b16 %v7223, %v7221
    %v7296 = vpack.c.b16 %v7226, %v7224
    %v7297 = vpack.c.b16 %v7227, %v7225
    %v7298 = vpack.c.b16 %v7230, %v7228
    %v7299 = vpack.c.b16 %v7231, %v7229
    %v7300 = vpack.c.b16 %v7234, %v7232
    %v7301 = vpack.c.b16 %v7235, %v7233
    %v7302 = vpack.c.b16 %v7238, %v7236
    %v7303 = vpack.c.b16 %v7239, %v7237
    %v7304 = vpack.c.b16 %v7242, %v7240
    %v7305 = vpack.c.b16 %v7243, %v7241
    %v7306 = vpack.c.b16 %v7246, %v7244
    %v7307 = vpack.c.b16 %v7247, %v7245
    %v7308 = vpack.c.b16 %v7250, %v7248
    %v7309 = vpack.c.b16 %v7251, %v7249
    %v7310 = vpack.c.b16 %v7254, %v7252
    %v7311 = vpack.c.b16 %v7255, %v7253
    %v7369 = vsel %vm208, %v7030, 0
    %7371 = vmatprep.subr.bf16.mxu0 %v7271
    %7372 = vmatpush1.bf16.msra.mxu0 %v7270
    %7373 = vmatprep.subr.bf16.mxu0 %v7269
    %7374 = vmatpush1.bf16.msra.mxu0 %v7268
    %7375 = vmatprep.subr.bf16.mxu0 %v7267
    %7376 = vmatpush1.bf16.msra.mxu0 %v7266
    %7377 = vmatprep.subr.bf16.mxu0 %v7265
    %7378 = vmatpush1.bf16.msra.mxu0 %v7264
    %7379 = vmatprep.subr.bf16.mxu0 %v7263
    %7380 = vmatpush1.bf16.msra.mxu0 %v7262
    %7381 = vmatprep.subr.bf16.mxu0 %v7261
    %7382 = vmatpush1.bf16.msra.mxu0 %v7260
    %7383 = vmatprep.subr.bf16.mxu0 %v7259
    %7384 = vmatpush1.bf16.msra.mxu0 %v7258
    %7385 = vmatprep.subr.bf16.mxu0 %v7257
    %7386 = vmatpush1.bf16.msra.mxu0 %v7256
    %7387 = vmatprep.subr.bf16.mxu0 %v7287
    %7388 = vmatpush2.bf16.msra.mxu0 %v7286
    %7389 = vmatprep.subr.bf16.mxu0 %v7285
    %7390 = vmatpush2.bf16.msra.mxu0 %v7284
    %7391 = vmatprep.subr.bf16.mxu0 %v7283
    %7392 = vmatpush2.bf16.msra.mxu0 %v7282
    %7393 = vmatprep.subr.bf16.mxu0 %v7281
    %7394 = vmatpush2.bf16.msra.mxu0 %v7280
    %7395 = vmatprep.subr.bf16.mxu0 %v7279
    %7396 = vmatpush2.bf16.msra.mxu0 %v7278
    %7397 = vmatprep.subr.bf16.mxu0 %v7277
    %7398 = vmatpush2.bf16.msra.mxu0 %v7276
    %7399 = vmatprep.subr.bf16.mxu0 %v7275
    %7400 = vmatpush2.bf16.msra.mxu0 %v7274
    %7401 = vmatprep.subr.bf16.mxu0 %v7273
    %7402 = vmatpush2.bf16.msra.mxu0 %v7272
    %7403 = vmatprep.mubr.bf16.mxu0 %v7028
    %7404 = vmatmul.mubr.bf16.gmra.mxu0 %v7027
    %v7405 = vpop.f32.mrf.mxu0
    %v7406 = vadd.f32 0.0, %v7405
    %v7407 = vpop.f32.mrf.mxu0
    %v7408 = vadd.f32 0.0, %v7407
    %v7409 = vpop.f32.mrf.mxu0
    %v7410 = vpop.f32.mrf.mxu0
    %7411 = vdwg.mxu0
    %7412 = vmatprep.subr.bf16.mxu0 %v7303
    %7413 = vmatpush1.bf16.msra.mxu0 %v7302
    %7414 = vmatprep.subr.bf16.mxu0 %v7301
    %7415 = vmatpush1.bf16.msra.mxu0 %v7300
    %7416 = vmatprep.subr.bf16.mxu0 %v7299
    %7417 = vmatpush1.bf16.msra.mxu0 %v7298
    %7418 = vmatprep.subr.bf16.mxu0 %v7297
    %7419 = vmatpush1.bf16.msra.mxu0 %v7296
    %7420 = vmatprep.subr.bf16.mxu0 %v7295
    %7421 = vmatpush1.bf16.msra.mxu0 %v7294
    %7422 = vmatprep.subr.bf16.mxu0 %v7293
    %7423 = vmatpush1.bf16.msra.mxu0 %v7292
    %7424 = vmatprep.subr.bf16.mxu0 %v7291
    %7425 = vmatpush1.bf16.msra.mxu0 %v7290
    %7426 = vmatprep.subr.bf16.mxu0 %v7289
    %7427 = vmatpush1.bf16.msra.mxu0 %v7288
    %7428 = vmatprep.subr.bf16.mxu0 0
    %7429 = vmatpush2.bf16.msra.mxu0 0
    %7430 = vmatprep.subr.bf16.mxu0 0
    %7431 = vmatpush2.bf16.msra.mxu0 0
    %7432 = vmatprep.subr.bf16.mxu0 0
    %7433 = vmatpush2.bf16.msra.mxu0 0
    %7434 = vmatprep.subr.bf16.mxu0 0
    %7435 = vmatpush2.bf16.msra.mxu0 0
    %7436 = vmatprep.subr.bf16.mxu0 %v7311
    %7437 = vmatpush2.bf16.msra.mxu0 %v7310
    %7438 = vmatprep.subr.bf16.mxu0 %v7309
    %7439 = vmatpush2.bf16.msra.mxu0 %v7308
    %7440 = vmatprep.subr.bf16.mxu0 %v7307
    %7441 = vmatpush2.bf16.msra.mxu0 %v7306
    %7442 = vmatprep.subr.bf16.mxu0 %v7305
    %7443 = vmatpush2.bf16.msra.mxu0 %v7304
    %7444 = vmatprep.mubr.bf16.mxu0 %v7369
    %7445 = vmatmul.mubr.bf16.gmra.mxu0 %v7029
    %v7446 = vpop.f32.mrf.mxu0
    %v7447 = vadd.f32 %v7406, %v7446
    %v7448 = vpop.f32.mrf.mxu0
    %v7449 = vadd.f32 %v7408, %v7448
    %v7450 = vpop.f32.mrf.mxu0
    %v7451 = vpop.f32.mrf.mxu0
    %7452 = vdwg.mxu0
    %v7453 = vadd.f32 %v6914, %v7447
    %v7454 = vadd.f32 %v6915, %v7449
    %s7455 = scalar_lea.vmem %s0, 15
    %v7456 = vld [vmem:[%s7455] sm:$0x1]
    %v7459 = vunpack.c.l.s4 1966171168
    %v7460 = vunpack.c.0.s8 %v7459
    %v7461 = vlaneseq
    %v7462 = vshrl.u32 %v7461, 7
    %v7463 = vsub.s32 %v7460, %v7462
    %v7464 = vrot.slane %v6917, %v7463
    %v7466 = vunpack.c.l.s4 1966171168
    %v7467 = vunpack.c.0.s8 %v7466
    %v7468 = vlaneseq
    %v7469 = vshrl.u32 %v7468, 7
    %v7470 = vsub.s32 %v7467, %v7469
    %v7471 = vrot.slane %v7464, %v7470
    %7472 = vrot.lane.b32.xlu0 %v7471, 64
    %v7473 = vpop.permute.xlu0 %7472
    %v7475 = vsel %vm208, %v6378, %v7473
    %v7478 = vsel %vm208, %v7456, 0
    %7480 = vmatprep.subr.bf16.mxu0 %v407
    %7481 = vmatpush1.bf16.msra.mxu0 %v406
    %7482 = vmatprep.subr.bf16.mxu0 %v403
    %7483 = vmatpush1.bf16.msra.mxu0 %v402
    %7484 = vmatprep.subr.bf16.mxu0 %v399
    %7485 = vmatpush1.bf16.msra.mxu0 %v398
    %7486 = vmatprep.subr.bf16.mxu0 %v395
    %7487 = vmatpush1.bf16.msra.mxu0 %v394
    %7488 = vmatprep.subr.bf16.mxu0 %v391
    %7489 = vmatpush1.bf16.msra.mxu0 %v390
    %7490 = vmatprep.subr.bf16.mxu0 %v387
    %7491 = vmatpush1.bf16.msra.mxu0 %v386
    %7492 = vmatprep.subr.bf16.mxu0 %v383
    %7493 = vmatpush1.bf16.msra.mxu0 %v382
    %7494 = vmatprep.subr.bf16.mxu0 %v379
    %7495 = vmatpush1.bf16.msra.mxu0 %v378
    %7496 = vmatprep.subr.bf16.mxu0 0
    %7497 = vmatpush2.bf16.msra.mxu0 0
    %7498 = vmatprep.subr.bf16.mxu0 0
    %7499 = vmatpush2.bf16.msra.mxu0 0
    %7500 = vmatprep.subr.bf16.mxu0 0
    %7501 = vmatpush2.bf16.msra.mxu0 0
    %7502 = vmatprep.subr.bf16.mxu0 0
    %7503 = vmatpush2.bf16.msra.mxu0 0
    %7504 = vmatprep.subr.bf16.mxu0 %v423
    %7505 = vmatpush2.bf16.msra.mxu0 %v422
    %7506 = vmatprep.subr.bf16.mxu0 %v419
    %7507 = vmatpush2.bf16.msra.mxu0 %v418
    %7508 = vmatprep.subr.bf16.mxu0 %v415
    %7509 = vmatpush2.bf16.msra.mxu0 %v414
    %7510 = vmatprep.subr.bf16.mxu0 %v411
    %7511 = vmatpush2.bf16.msra.mxu0 %v410
    %7512 = vmatprep.mubr.bf16.mxu0 %v7478
    %7513 = vmatmul.mubr.bf16.gmra.mxu0 %v7475
    %v7514 = vpop.f32.mrf.mxu0
    %v7515 = vadd.f32 %v217, %v7514
    %v7516 = vpop.f32.mrf.mxu0
    %v7517 = vadd.f32 %v221, %v7516
    %v7518 = vpop.f32.mrf.mxu0
    %v7519 = vpop.f32.mrf.mxu0
    %7520 = vdwg.mxu0
    %7521 = vmatprep.subr.bf16.mxu0 %v409
    %7522 = vmatpush1.bf16.msra.mxu0 %v408
    %7523 = vmatprep.subr.bf16.mxu0 %v405
    %7524 = vmatpush1.bf16.msra.mxu0 %v404
    %7525 = vmatprep.subr.bf16.mxu0 %v401
    %7526 = vmatpush1.bf16.msra.mxu0 %v400
    %7527 = vmatprep.subr.bf16.mxu0 %v397
    %7528 = vmatpush1.bf16.msra.mxu0 %v396
    %7529 = vmatprep.subr.bf16.mxu0 %v393
    %7530 = vmatpush1.bf16.msra.mxu0 %v392
    %7531 = vmatprep.subr.bf16.mxu0 %v389
    %7532 = vmatpush1.bf16.msra.mxu0 %v388
    %7533 = vmatprep.subr.bf16.mxu0 %v385
    %7534 = vmatpush1.bf16.msra.mxu0 %v384
    %7535 = vmatprep.subr.bf16.mxu0 %v381
    %7536 = vmatpush1.bf16.msra.mxu0 %v380
    %7537 = vmatprep.subr.bf16.mxu0 0
    %7538 = vmatpush2.bf16.msra.mxu0 0
    %7539 = vmatprep.subr.bf16.mxu0 0
    %7540 = vmatpush2.bf16.msra.mxu0 0
    %7541 = vmatprep.subr.bf16.mxu0 0
    %7542 = vmatpush2.bf16.msra.mxu0 0
    %7543 = vmatprep.subr.bf16.mxu0 0
    %7544 = vmatpush2.bf16.msra.mxu0 0
    %7545 = vmatprep.subr.bf16.mxu0 %v425
    %7546 = vmatpush2.bf16.msra.mxu0 %v424
    %7547 = vmatprep.subr.bf16.mxu0 %v421
    %7548 = vmatpush2.bf16.msra.mxu0 %v420
    %7549 = vmatprep.subr.bf16.mxu0 %v417
    %7550 = vmatpush2.bf16.msra.mxu0 %v416
    %7551 = vmatprep.subr.bf16.mxu0 %v413
    %7552 = vmatpush2.bf16.msra.mxu0 %v412
    %7553 = vmatprep.mubr.bf16.mxu0 %v7478
    %7554 = vmatmul.mubr.bf16.gmra.mxu0 %v7475
    %v7555 = vpop.f32.mrf.mxu0
    %v7556 = vadd.f32 %v225, %v7555
    %v7557 = vpop.f32.mrf.mxu0
    %v7558 = vadd.f32 %v229, %v7557
    %v7559 = vpop.f32.mrf.mxu0
    %v7560 = vpop.f32.mrf.mxu0
    %7561 = vdwg.mxu0
    %v7562 = vmax.f32 %v7515, 0.0
    %v7563 = vmax.f32 %v7517, 0.0
    %v7564 = vmax.f32 %v7556, 0.0
    %v7565 = vmax.f32 %v7558, 0.0
    %v7566 = vpack.c.bf16 %v7562, %v7562
    %v7567 = vpack.c.bf16 %v7563, %v7563
    %v7568 = vpack.c.bf16 %v7564, %v7564
    %v7569 = vpack.c.bf16 %v7565, %v7565
    %s7570 = scalar_lea.vmem [#allocation6], 5824
    %v7571 = vld [vmem:[%s7570] sm:$0xff]
    %v7572 = vld [vmem:[%s7570 + $0x8] sm:$0xff]
    %v7573 = vld [vmem:[%s7570 + $0x10] sm:$0xff]
    %v7574 = vld [vmem:[%s7570 + $0x18] sm:$0xff]
    %v7575 = vld [vmem:[%s7570 + $0x20] sm:$0xff]
    %v7576 = vld [vmem:[%s7570 + $0x28] sm:$0xff]
    %v7577 = vld [vmem:[%s7570 + $0x30] sm:$0xff]
    %v7578 = vld [vmem:[%s7570 + $0x38] sm:$0xff]
    %v7579 = vld [vmem:[%s7570 + $0x40] sm:$0xff]
    %v7580 = vld [vmem:[%s7570 + $0x48] sm:$0xff]
    %v7581 = vld [vmem:[%s7570 + $0x50] sm:$0xff]
    %v7582 = vld [vmem:[%s7570 + $0x58] sm:$0xff]
    %v7583 = vld [vmem:[%s7570 + $0x60] sm:$0xff]
    %v7584 = vld [vmem:[%s7570 + $0x68] sm:$0xff]
    %v7585 = vld [vmem:[%s7570 + $0x70] sm:$0xff]
    %v7586 = vld [vmem:[%s7570 + $0x78] sm:$0xff]
    %v7587 = vld [vmem:[%s7570 + $0x80] sm:$0xff]
    %v7588 = vld [vmem:[%s7570 + $0x88] sm:$0xff]
    %v7589 = vld [vmem:[%s7570 + $0x90] sm:$0xff]
    %v7590 = vld [vmem:[%s7570 + $0x98] sm:$0xff]
    %v7591 = vld [vmem:[%s7570 + $0xa0] sm:$0xff]
    %v7592 = vld [vmem:[%s7570 + $0xa8] sm:$0xff]
    %v7593 = vld [vmem:[%s7570 + $0xb0] sm:$0xff]
    %v7594 = vld [vmem:[%s7570 + $0xb8] sm:$0xff]
    %v7595 = vld [vmem:[%s7570 + $0xc0] sm:$0xff]
    %v7596 = vld [vmem:[%s7570 + $0xc8] sm:$0xff]
    %v7597 = vld [vmem:[%s7570 + $0xd0] sm:$0xff]
    %v7598 = vld [vmem:[%s7570 + $0xd8] sm:$0xff]
    %v7599 = vld [vmem:[%s7570 + $0xe0] sm:$0xff]
    %v7600 = vld [vmem:[%s7570 + $0xe8] sm:$0xff]
    %v7601 = vld [vmem:[%s7570 + $0xf0] sm:$0xff]
    %v7602 = vld [vmem:[%s7570 + $0xf8] sm:$0xff]
    %v7603 = vld [vmem:[%s7570 + $0x100] sm:$0xff]
    %v7604 = vld [vmem:[%s7570 + $0x108] sm:$0xff]
    %v7605 = vld [vmem:[%s7570 + $0x110] sm:$0xff]
    %v7606 = vld [vmem:[%s7570 + $0x118] sm:$0xff]
    %v7607 = vld [vmem:[%s7570 + $0x120] sm:$0xff]
    %v7608 = vld [vmem:[%s7570 + $0x128] sm:$0xff]
    %v7609 = vld [vmem:[%s7570 + $0x130] sm:$0xff]
    %v7610 = vld [vmem:[%s7570 + $0x138] sm:$0xff]
    %v7611 = vld [vmem:[%s7570 + $0x140] sm:$0xff]
    %v7612 = vld [vmem:[%s7570 + $0x148] sm:$0xff]
    %v7613 = vld [vmem:[%s7570 + $0x150] sm:$0xff]
    %v7614 = vld [vmem:[%s7570 + $0x158] sm:$0xff]
    %v7615 = vld [vmem:[%s7570 + $0x160] sm:$0xff]
    %v7616 = vld [vmem:[%s7570 + $0x168] sm:$0xff]
    %v7617 = vld [vmem:[%s7570 + $0x170] sm:$0xff]
    %v7618 = vld [vmem:[%s7570 + $0x178] sm:$0xff]
    %v7619 = vld [vmem:[%s7570 + $0x180] sm:$0xff]
    %v7620 = vld [vmem:[%s7570 + $0x188] sm:$0xff]
    %v7621 = vld [vmem:[%s7570 + $0x190] sm:$0xff]
    %v7622 = vld [vmem:[%s7570 + $0x198] sm:$0xff]
    %v7623 = vld [vmem:[%s7570 + $0x1a0] sm:$0xff]
    %v7624 = vld [vmem:[%s7570 + $0x1a8] sm:$0xff]
    %v7625 = vld [vmem:[%s7570 + $0x1b0] sm:$0xff]
    %v7626 = vld [vmem:[%s7570 + $0x1b8] sm:$0xff]
    %v7683 = vunpack.c.l.b16 %v7571
    %v7684 = vunpack.c.h.b16 %v7571
    %v7685 = vunpack.c.l.b16 %v7572
    %v7686 = vunpack.c.h.b16 %v7572
    %v7687 = vunpack.c.l.b16 %v7573
    %v7688 = vunpack.c.h.b16 %v7573
    %v7689 = vunpack.c.l.b16 %v7574
    %v7690 = vunpack.c.h.b16 %v7574
    %v7691 = vunpack.c.l.b16 %v7575
    %v7692 = vunpack.c.h.b16 %v7575
    %v7693 = vunpack.c.l.b16 %v7576
    %v7694 = vunpack.c.h.b16 %v7576
    %v7695 = vunpack.c.l.b16 %v7577
    %v7696 = vunpack.c.h.b16 %v7577
    %v7697 = vunpack.c.l.b16 %v7578
    %v7698 = vunpack.c.h.b16 %v7578
    %v7699 = vunpack.c.l.b16 %v7579
    %v7700 = vunpack.c.h.b16 %v7579
    %v7701 = vunpack.c.l.b16 %v7580
    %v7702 = vunpack.c.h.b16 %v7580
    %v7703 = vunpack.c.l.b16 %v7581
    %v7704 = vunpack.c.h.b16 %v7581
    %v7705 = vunpack.c.l.b16 %v7582
    %v7706 = vunpack.c.h.b16 %v7582
    %v7707 = vunpack.c.l.b16 %v7583
    %v7708 = vunpack.c.h.b16 %v7583
    %v7709 = vunpack.c.l.b16 %v7584
    %v7710 = vunpack.c.h.b16 %v7584
    %v7711 = vunpack.c.l.b16 %v7585
    %v7712 = vunpack.c.h.b16 %v7585
    %v7713 = vunpack.c.l.b16 %v7586
    %v7714 = vunpack.c.h.b16 %v7586
    %v7715 = vunpack.c.l.b16 %v7587
    %v7716 = vunpack.c.h.b16 %v7587
    %v7717 = vunpack.c.l.b16 %v7588
    %v7718 = vunpack.c.h.b16 %v7588
    %v7719 = vunpack.c.l.b16 %v7589
    %v7720 = vunpack.c.h.b16 %v7589
    %v7721 = vunpack.c.l.b16 %v7590
    %v7722 = vunpack.c.h.b16 %v7590
    %v7723 = vunpack.c.l.b16 %v7591
    %v7724 = vunpack.c.h.b16 %v7591
    %v7725 = vunpack.c.l.b16 %v7592
    %v7726 = vunpack.c.h.b16 %v7592
    %v7727 = vunpack.c.l.b16 %v7593
    %v7728 = vunpack.c.h.b16 %v7593
    %v7729 = vunpack.c.l.b16 %v7594
    %v7730 = vunpack.c.h.b16 %v7594
    %v7731 = vunpack.c.l.b16 %v7595
    %v7732 = vunpack.c.h.b16 %v7595
    %v7733 = vunpack.c.l.b16 %v7596
    %v7734 = vunpack.c.h.b16 %v7596
    %v7735 = vunpack.c.l.b16 %v7597
    %v7736 = vunpack.c.h.b16 %v7597
    %v7737 = vunpack.c.l.b16 %v7598
    %v7738 = vunpack.c.h.b16 %v7598
    %v7739 = vunpack.c.l.b16 %v7599
    %v7740 = vunpack.c.h.b16 %v7599
    %v7741 = vunpack.c.l.b16 %v7600
    %v7742 = vunpack.c.h.b16 %v7600
    %v7743 = vunpack.c.l.b16 %v7601
    %v7744 = vunpack.c.h.b16 %v7601
    %v7745 = vunpack.c.l.b16 %v7602
    %v7746 = vunpack.c.h.b16 %v7602
    %v7747 = vunpack.c.l.b16 %v7603
    %v7748 = vunpack.c.h.b16 %v7603
    %v7749 = vunpack.c.l.b16 %v7604
    %v7750 = vunpack.c.h.b16 %v7604
    %v7751 = vunpack.c.l.b16 %v7605
    %v7752 = vunpack.c.h.b16 %v7605
    %v7753 = vunpack.c.l.b16 %v7606
    %v7754 = vunpack.c.h.b16 %v7606
    %v7755 = vunpack.c.l.b16 %v7607
    %v7756 = vunpack.c.h.b16 %v7607
    %v7757 = vunpack.c.l.b16 %v7608
    %v7758 = vunpack.c.h.b16 %v7608
    %v7759 = vunpack.c.l.b16 %v7609
    %v7760 = vunpack.c.h.b16 %v7609
    %v7761 = vunpack.c.l.b16 %v7610
    %v7762 = vunpack.c.h.b16 %v7610
    %v7763 = vunpack.c.l.b16 %v7611
    %v7764 = vunpack.c.h.b16 %v7611
    %v7765 = vunpack.c.l.b16 %v7612
    %v7766 = vunpack.c.h.b16 %v7612
    %v7767 = vunpack.c.l.b16 %v7613
    %v7768 = vunpack.c.h.b16 %v7613
    %v7769 = vunpack.c.l.b16 %v7614
    %v7770 = vunpack.c.h.b16 %v7614
    %v7771 = vunpack.c.l.b16 %v7615
    %v7772 = vunpack.c.h.b16 %v7615
    %v7773 = vunpack.c.l.b16 %v7616
    %v7774 = vunpack.c.h.b16 %v7616
    %v7775 = vunpack.c.l.b16 %v7617
    %v7776 = vunpack.c.h.b16 %v7617
    %v7777 = vunpack.c.l.b16 %v7618
    %v7778 = vunpack.c.h.b16 %v7618
    %v7779 = vunpack.c.l.b16 %v7619
    %v7780 = vunpack.c.h.b16 %v7619
    %v7781 = vunpack.c.l.b16 %v7620
    %v7782 = vunpack.c.h.b16 %v7620
    %v7783 = vunpack.c.l.b16 %v7621
    %v7784 = vunpack.c.h.b16 %v7621
    %v7785 = vunpack.c.l.b16 %v7622
    %v7786 = vunpack.c.h.b16 %v7622
    %v7787 = vunpack.c.l.b16 %v7623
    %v7788 = vunpack.c.h.b16 %v7623
    %v7789 = vunpack.c.l.b16 %v7624
    %v7790 = vunpack.c.h.b16 %v7624
    %v7791 = vunpack.c.l.b16 %v7625
    %v7792 = vunpack.c.h.b16 %v7625
    %v7793 = vunpack.c.l.b16 %v7626
    %v7794 = vunpack.c.h.b16 %v7626
    %v7795 = vpack.c.b16 %v7685, %v7683
    %v7796 = vpack.c.b16 %v7686, %v7684
    %v7797 = vpack.c.b16 %v7689, %v7687
    %v7798 = vpack.c.b16 %v7690, %v7688
    %v7799 = vpack.c.b16 %v7693, %v7691
    %v7800 = vpack.c.b16 %v7694, %v7692
    %v7801 = vpack.c.b16 %v7697, %v7695
    %v7802 = vpack.c.b16 %v7698, %v7696
    %v7803 = vpack.c.b16 %v7701, %v7699
    %v7804 = vpack.c.b16 %v7702, %v7700
    %v7805 = vpack.c.b16 %v7705, %v7703
    %v7806 = vpack.c.b16 %v7706, %v7704
    %v7807 = vpack.c.b16 %v7709, %v7707
    %v7808 = vpack.c.b16 %v7710, %v7708
    %v7809 = vpack.c.b16 %v7713, %v7711
    %v7810 = vpack.c.b16 %v7714, %v7712
    %v7811 = vpack.c.b16 %v7717, %v7715
    %v7812 = vpack.c.b16 %v7718, %v7716
    %v7813 = vpack.c.b16 %v7721, %v7719
    %v7814 = vpack.c.b16 %v7722, %v7720
    %v7815 = vpack.c.b16 %v7725, %v7723
    %v7816 = vpack.c.b16 %v7726, %v7724
    %v7817 = vpack.c.b16 %v7729, %v7727
    %v7818 = vpack.c.b16 %v7730, %v7728
    %v7819 = vpack.c.b16 %v7733, %v7731
    %v7820 = vpack.c.b16 %v7734, %v7732
    %v7821 = vpack.c.b16 %v7737, %v7735
    %v7822 = vpack.c.b16 %v7738, %v7736
    %v7823 = vpack.c.b16 %v7741, %v7739
    %v7824 = vpack.c.b16 %v7742, %v7740
    %v7825 = vpack.c.b16 %v7745, %v7743
    %v7826 = vpack.c.b16 %v7746, %v7744
    %v7827 = vpack.c.b16 %v7749, %v7747
    %v7828 = vpack.c.b16 %v7750, %v7748
    %v7829 = vpack.c.b16 %v7753, %v7751
    %v7830 = vpack.c.b16 %v7754, %v7752
    %v7831 = vpack.c.b16 %v7757, %v7755
    %v7832 = vpack.c.b16 %v7758, %v7756
    %v7833 = vpack.c.b16 %v7761, %v7759
    %v7834 = vpack.c.b16 %v7762, %v7760
    %v7835 = vpack.c.b16 %v7765, %v7763
    %v7836 = vpack.c.b16 %v7766, %v7764
    %v7837 = vpack.c.b16 %v7769, %v7767
    %v7838 = vpack.c.b16 %v7770, %v7768
    %v7839 = vpack.c.b16 %v7773, %v7771
    %v7840 = vpack.c.b16 %v7774, %v7772
    %v7841 = vpack.c.b16 %v7777, %v7775
    %v7842 = vpack.c.b16 %v7778, %v7776
    %v7843 = vpack.c.b16 %v7781, %v7779
    %v7844 = vpack.c.b16 %v7782, %v7780
    %v7845 = vpack.c.b16 %v7785, %v7783
    %v7846 = vpack.c.b16 %v7786, %v7784
    %v7847 = vpack.c.b16 %v7789, %v7787
    %v7848 = vpack.c.b16 %v7790, %v7788
    %v7849 = vpack.c.b16 %v7793, %v7791
    %v7850 = vpack.c.b16 %v7794, %v7792
    %v7908 = vsel %vm208, %v7569, 0
    %7910 = vmatprep.subr.bf16.mxu0 %v7810
    %7911 = vmatpush1.bf16.msra.mxu0 %v7809
    %7912 = vmatprep.subr.bf16.mxu0 %v7808
    %7913 = vmatpush1.bf16.msra.mxu0 %v7807
    %7914 = vmatprep.subr.bf16.mxu0 %v7806
    %7915 = vmatpush1.bf16.msra.mxu0 %v7805
    %7916 = vmatprep.subr.bf16.mxu0 %v7804
    %7917 = vmatpush1.bf16.msra.mxu0 %v7803
    %7918 = vmatprep.subr.bf16.mxu0 %v7802
    %7919 = vmatpush1.bf16.msra.mxu0 %v7801
    %7920 = vmatprep.subr.bf16.mxu0 %v7800
    %7921 = vmatpush1.bf16.msra.mxu0 %v7799
    %7922 = vmatprep.subr.bf16.mxu0 %v7798
    %7923 = vmatpush1.bf16.msra.mxu0 %v7797
    %7924 = vmatprep.subr.bf16.mxu0 %v7796
    %7925 = vmatpush1.bf16.msra.mxu0 %v7795
    %7926 = vmatprep.subr.bf16.mxu0 %v7826
    %7927 = vmatpush2.bf16.msra.mxu0 %v7825
    %7928 = vmatprep.subr.bf16.mxu0 %v7824
    %7929 = vmatpush2.bf16.msra.mxu0 %v7823
    %7930 = vmatprep.subr.bf16.mxu0 %v7822
    %7931 = vmatpush2.bf16.msra.mxu0 %v7821
    %7932 = vmatprep.subr.bf16.mxu0 %v7820
    %7933 = vmatpush2.bf16.msra.mxu0 %v7819
    %7934 = vmatprep.subr.bf16.mxu0 %v7818
    %7935 = vmatpush2.bf16.msra.mxu0 %v7817
    %7936 = vmatprep.subr.bf16.mxu0 %v7816
    %7937 = vmatpush2.bf16.msra.mxu0 %v7815
    %7938 = vmatprep.subr.bf16.mxu0 %v7814
    %7939 = vmatpush2.bf16.msra.mxu0 %v7813
    %7940 = vmatprep.subr.bf16.mxu0 %v7812
    %7941 = vmatpush2.bf16.msra.mxu0 %v7811
    %7942 = vmatprep.mubr.bf16.mxu0 %v7567
    %7943 = vmatmul.mubr.bf16.gmra.mxu0 %v7566
    %v7944 = vpop.f32.mrf.mxu0
    %v7945 = vadd.f32 0.0, %v7944
    %v7946 = vpop.f32.mrf.mxu0
    %v7947 = vadd.f32 0.0, %v7946
    %v7948 = vpop.f32.mrf.mxu0
    %v7949 = vpop.f32.mrf.mxu0
    %7950 = vdwg.mxu0
    %7951 = vmatprep.subr.bf16.mxu0 %v7842
    %7952 = vmatpush1.bf16.msra.mxu0 %v7841
    %7953 = vmatprep.subr.bf16.mxu0 %v7840
    %7954 = vmatpush1.bf16.msra.mxu0 %v7839
    %7955 = vmatprep.subr.bf16.mxu0 %v7838
    %7956 = vmatpush1.bf16.msra.mxu0 %v7837
    %7957 = vmatprep.subr.bf16.mxu0 %v7836
    %7958 = vmatpush1.bf16.msra.mxu0 %v7835
    %7959 = vmatprep.subr.bf16.mxu0 %v7834
    %7960 = vmatpush1.bf16.msra.mxu0 %v7833
    %7961 = vmatprep.subr.bf16.mxu0 %v7832
    %7962 = vmatpush1.bf16.msra.mxu0 %v7831
    %7963 = vmatprep.subr.bf16.mxu0 %v7830
    %7964 = vmatpush1.bf16.msra.mxu0 %v7829
    %7965 = vmatprep.subr.bf16.mxu0 %v7828
    %7966 = vmatpush1.bf16.msra.mxu0 %v7827
    %7967 = vmatprep.subr.bf16.mxu0 0
    %7968 = vmatpush2.bf16.msra.mxu0 0
    %7969 = vmatprep.subr.bf16.mxu0 0
    %7970 = vmatpush2.bf16.msra.mxu0 0
    %7971 = vmatprep.subr.bf16.mxu0 0
    %7972 = vmatpush2.bf16.msra.mxu0 0
    %7973 = vmatprep.subr.bf16.mxu0 0
    %7974 = vmatpush2.bf16.msra.mxu0 0
    %7975 = vmatprep.subr.bf16.mxu0 %v7850
    %7976 = vmatpush2.bf16.msra.mxu0 %v7849
    %7977 = vmatprep.subr.bf16.mxu0 %v7848
    %7978 = vmatpush2.bf16.msra.mxu0 %v7847
    %7979 = vmatprep.subr.bf16.mxu0 %v7846
    %7980 = vmatpush2.bf16.msra.mxu0 %v7845
    %7981 = vmatprep.subr.bf16.mxu0 %v7844
    %7982 = vmatpush2.bf16.msra.mxu0 %v7843
    %7983 = vmatprep.mubr.bf16.mxu0 %v7908
    %7984 = vmatmul.mubr.bf16.gmra.mxu0 %v7568
    %v7985 = vpop.f32.mrf.mxu0
    %v7986 = vadd.f32 %v7945, %v7985
    %v7987 = vpop.f32.mrf.mxu0
    %v7988 = vadd.f32 %v7947, %v7987
    %v7989 = vpop.f32.mrf.mxu0
    %v7990 = vpop.f32.mrf.mxu0
    %7991 = vdwg.mxu0
    %v7992 = vadd.f32 %v7453, %v7986
    %v7993 = vadd.f32 %v7454, %v7988
    %v7994 = vld [vmem:[#allocation7] sm:$0x3]
    %v7996 = vlaneseq
    %v7997 = vshrl.u32 %v7996, 7
    %v7998 = vsub.s32 0, %v7997
    %v7999 = vrot.slane %v7994, %v7998
    %v8000 = vlaneseq
    %v8001 = vshrl.u32 %v8000, 7
    %v8002 = vsub.s32 1, %v8001
    %v8003 = vrot.slane %v7994, %v8002
    %v8006 = vadd.f32 %v7992, %v7999
    %v8007 = vadd.f32 %v7993, %v8003
    %v8008 = vmax.f32 %v8006, 0.0
    %v8009 = vmax.f32 %v8007, 0.0
    %v8010 = vpack.c.bf16 %v8008, %v8008
    %v8011 = vpack.c.bf16 %v8009, %v8009
    %v8012 = vld [vmem:[#allocation9] sm:$0xff]
    %v8013 = vld [vmem:[#allocation9 + $0x8] sm:$0xff]
    %v8014 = vld [vmem:[#allocation9 + $0x10] sm:$0xff]
    %v8015 = vld [vmem:[#allocation9 + $0x18] sm:$0xff]
    %v8016 = vld [vmem:[#allocation9 + $0x20] sm:$0xff]
    %v8017 = vld [vmem:[#allocation9 + $0x28] sm:$0xff]
    %v8018 = vld [vmem:[#allocation9 + $0x30] sm:$0xff]
    %v8019 = vld [vmem:[#allocation9 + $0x38] sm:$0xff]
    %v8020 = vld [vmem:[#allocation9 + $0x40] sm:$0xff]
    %v8021 = vld [vmem:[#allocation9 + $0x48] sm:$0xff]
    %v8022 = vld [vmem:[#allocation9 + $0x50] sm:$0xff]
    %v8023 = vld [vmem:[#allocation9 + $0x58] sm:$0xff]
    %v8024 = vld [vmem:[#allocation9 + $0x60] sm:$0xff]
    %v8025 = vld [vmem:[#allocation9 + $0x68] sm:$0xff]
    %v8026 = vld [vmem:[#allocation9 + $0x70] sm:$0xff]
    %v8027 = vld [vmem:[#allocation9 + $0x78] sm:$0xff]
    %v8028 = vld [vmem:[#allocation9 + $0x80] sm:$0xff]
    %v8029 = vld [vmem:[#allocation9 + $0x88] sm:$0xff]
    %v8030 = vld [vmem:[#allocation9 + $0x90] sm:$0xff]
    %v8031 = vld [vmem:[#allocation9 + $0x98] sm:$0xff]
    %v8032 = vld [vmem:[#allocation9 + $0xa0] sm:$0xff]
    %v8033 = vld [vmem:[#allocation9 + $0xa8] sm:$0xff]
    %v8034 = vld [vmem:[#allocation9 + $0xb0] sm:$0xff]
    %v8035 = vld [vmem:[#allocation9 + $0xb8] sm:$0xff]
    %v8036 = vld [vmem:[#allocation9 + $0xc0] sm:$0xff]
    %v8037 = vld [vmem:[#allocation9 + $0xc8] sm:$0xff]
    %v8038 = vld [vmem:[#allocation9 + $0xd0] sm:$0xff]
    %v8039 = vld [vmem:[#allocation9 + $0xd8] sm:$0xff]
    %v8040 = vld [vmem:[#allocation9 + $0xe0] sm:$0xff]
    %v8041 = vld [vmem:[#allocation9 + $0xe8] sm:$0xff]
    %v8042 = vld [vmem:[#allocation9 + $0xf0] sm:$0xff]
    %v8043 = vld [vmem:[#allocation9 + $0xf8] sm:$0xff]
    %v8044 = vld [vmem:[#allocation10] sm:$0x3]
    %v8046 = vlaneseq
    %v8047 = vshrl.u32 %v8046, 7
    %v8048 = vsub.s32 0, %v8047
    %v8049 = vrot.slane %v8044, %v8048
    %v8050 = vlaneseq
    %v8051 = vshrl.u32 %v8050, 7
    %v8052 = vsub.s32 1, %v8051
    %v8053 = vrot.slane %v8044, %v8052
    %v8088 = vunpack.c.l.b16 %v8012
    %v8089 = vunpack.c.h.b16 %v8012
    %v8090 = vunpack.c.l.b16 %v8013
    %v8091 = vunpack.c.h.b16 %v8013
    %v8092 = vunpack.c.l.b16 %v8014
    %v8093 = vunpack.c.h.b16 %v8014
    %v8094 = vunpack.c.l.b16 %v8015
    %v8095 = vunpack.c.h.b16 %v8015
    %v8096 = vunpack.c.l.b16 %v8016
    %v8097 = vunpack.c.h.b16 %v8016
    %v8098 = vunpack.c.l.b16 %v8017
    %v8099 = vunpack.c.h.b16 %v8017
    %v8100 = vunpack.c.l.b16 %v8018
    %v8101 = vunpack.c.h.b16 %v8018
    %v8102 = vunpack.c.l.b16 %v8019
    %v8103 = vunpack.c.h.b16 %v8019
    %v8104 = vunpack.c.l.b16 %v8020
    %v8105 = vunpack.c.h.b16 %v8020
    %v8106 = vunpack.c.l.b16 %v8021
    %v8107 = vunpack.c.h.b16 %v8021
    %v8108 = vunpack.c.l.b16 %v8022
    %v8109 = vunpack.c.h.b16 %v8022
    %v8110 = vunpack.c.l.b16 %v8023
    %v8111 = vunpack.c.h.b16 %v8023
    %v8112 = vunpack.c.l.b16 %v8024
    %v8113 = vunpack.c.h.b16 %v8024
    %v8114 = vunpack.c.l.b16 %v8025
    %v8115 = vunpack.c.h.b16 %v8025
    %v8116 = vunpack.c.l.b16 %v8026
    %v8117 = vunpack.c.h.b16 %v8026
    %v8118 = vunpack.c.l.b16 %v8027
    %v8119 = vunpack.c.h.b16 %v8027
    %v8120 = vunpack.c.l.b16 %v8028
    %v8121 = vunpack.c.h.b16 %v8028
    %v8122 = vunpack.c.l.b16 %v8029
    %v8123 = vunpack.c.h.b16 %v8029
    %v8124 = vunpack.c.l.b16 %v8030
    %v8125 = vunpack.c.h.b16 %v8030
    %v8126 = vunpack.c.l.b16 %v8031
    %v8127 = vunpack.c.h.b16 %v8031
    %v8128 = vunpack.c.l.b16 %v8032
    %v8129 = vunpack.c.h.b16 %v8032
    %v8130 = vunpack.c.l.b16 %v8033
    %v8131 = vunpack.c.h.b16 %v8033
    %v8132 = vunpack.c.l.b16 %v8034
    %v8133 = vunpack.c.h.b16 %v8034
    %v8134 = vunpack.c.l.b16 %v8035
    %v8135 = vunpack.c.h.b16 %v8035
    %v8136 = vunpack.c.l.b16 %v8036
    %v8137 = vunpack.c.h.b16 %v8036
    %v8138 = vunpack.c.l.b16 %v8037
    %v8139 = vunpack.c.h.b16 %v8037
    %v8140 = vunpack.c.l.b16 %v8038
    %v8141 = vunpack.c.h.b16 %v8038
    %v8142 = vunpack.c.l.b16 %v8039
    %v8143 = vunpack.c.h.b16 %v8039
    %v8144 = vunpack.c.l.b16 %v8040
    %v8145 = vunpack.c.h.b16 %v8040
    %v8146 = vunpack.c.l.b16 %v8041
    %v8147 = vunpack.c.h.b16 %v8041
    %v8148 = vunpack.c.l.b16 %v8042
    %v8149 = vunpack.c.h.b16 %v8042
    %v8150 = vunpack.c.l.b16 %v8043
    %v8151 = vunpack.c.h.b16 %v8043
    %v8152 = vpack.c.b16 %v8090, %v8088
    %v8153 = vpack.c.b16 %v8091, %v8089
    %v8154 = vpack.c.b16 %v8094, %v8092
    %v8155 = vpack.c.b16 %v8095, %v8093
    %v8156 = vpack.c.b16 %v8098, %v8096
    %v8157 = vpack.c.b16 %v8099, %v8097
    %v8158 = vpack.c.b16 %v8102, %v8100
    %v8159 = vpack.c.b16 %v8103, %v8101
    %v8160 = vpack.c.b16 %v8106, %v8104
    %v8161 = vpack.c.b16 %v8107, %v8105
    %v8162 = vpack.c.b16 %v8110, %v8108
    %v8163 = vpack.c.b16 %v8111, %v8109
    %v8164 = vpack.c.b16 %v8114, %v8112
    %v8165 = vpack.c.b16 %v8115, %v8113
    %v8166 = vpack.c.b16 %v8118, %v8116
    %v8167 = vpack.c.b16 %v8119, %v8117
    %v8168 = vpack.c.b16 %v8122, %v8120
    %v8169 = vpack.c.b16 %v8123, %v8121
    %v8170 = vpack.c.b16 %v8126, %v8124
    %v8171 = vpack.c.b16 %v8127, %v8125
    %v8172 = vpack.c.b16 %v8130, %v8128
    %v8173 = vpack.c.b16 %v8131, %v8129
    %v8174 = vpack.c.b16 %v8134, %v8132
    %v8175 = vpack.c.b16 %v8135, %v8133
    %v8176 = vpack.c.b16 %v8138, %v8136
    %v8177 = vpack.c.b16 %v8139, %v8137
    %v8178 = vpack.c.b16 %v8142, %v8140
    %v8179 = vpack.c.b16 %v8143, %v8141
    %v8180 = vpack.c.b16 %v8146, %v8144
    %v8181 = vpack.c.b16 %v8147, %v8145
    %v8182 = vpack.c.b16 %v8150, %v8148
    %v8183 = vpack.c.b16 %v8151, %v8149
    %8216 = vmatprep.subr.bf16.mxu0 %v8167
    %8217 = vmatpush1.bf16.msra.mxu0 %v8166
    %8218 = vmatprep.subr.bf16.mxu0 %v8165
    %8219 = vmatpush1.bf16.msra.mxu0 %v8164
    %8220 = vmatprep.subr.bf16.mxu0 %v8163
    %8221 = vmatpush1.bf16.msra.mxu0 %v8162
    %8222 = vmatprep.subr.bf16.mxu0 %v8161
    %8223 = vmatpush1.bf16.msra.mxu0 %v8160
    %8224 = vmatprep.subr.bf16.mxu0 %v8159
    %8225 = vmatpush1.bf16.msra.mxu0 %v8158
    %8226 = vmatprep.subr.bf16.mxu0 %v8157
    %8227 = vmatpush1.bf16.msra.mxu0 %v8156
    %8228 = vmatprep.subr.bf16.mxu0 %v8155
    %8229 = vmatpush1.bf16.msra.mxu0 %v8154
    %8230 = vmatprep.subr.bf16.mxu0 %v8153
    %8231 = vmatpush1.bf16.msra.mxu0 %v8152
    %8232 = vmatprep.subr.bf16.mxu0 %v8183
    %8233 = vmatpush2.bf16.msra.mxu0 %v8182
    %8234 = vmatprep.subr.bf16.mxu0 %v8181
    %8235 = vmatpush2.bf16.msra.mxu0 %v8180
    %8236 = vmatprep.subr.bf16.mxu0 %v8179
    %8237 = vmatpush2.bf16.msra.mxu0 %v8178
    %8238 = vmatprep.subr.bf16.mxu0 %v8177
    %8239 = vmatpush2.bf16.msra.mxu0 %v8176
    %8240 = vmatprep.subr.bf16.mxu0 %v8175
    %8241 = vmatpush2.bf16.msra.mxu0 %v8174
    %8242 = vmatprep.subr.bf16.mxu0 %v8173
    %8243 = vmatpush2.bf16.msra.mxu0 %v8172
    %8244 = vmatprep.subr.bf16.mxu0 %v8171
    %8245 = vmatpush2.bf16.msra.mxu0 %v8170
    %8246 = vmatprep.subr.bf16.mxu0 %v8169
    %8247 = vmatpush2.bf16.msra.mxu0 %v8168
    %8248 = vmatprep.mubr.bf16.mxu0 %v8011
    %8249 = vmatmul.mubr.bf16.gmra.mxu0 %v8010
    %v8250 = vpop.f32.mrf.mxu0
    %v8251 = vadd.f32 %v8049, %v8250
    %v8252 = vpop.f32.mrf.mxu0
    %v8253 = vadd.f32 %v8053, %v8252
    %v8254 = vpop.f32.mrf.mxu0
    %v8255 = vpop.f32.mrf.mxu0
    %8256 = vdwg.mxu0
    %v8257 = vmax.f32 %v8251, 0.0
    %v8258 = vmax.f32 %v8253, 0.0
    %v8259 = vpack.c.bf16 %v8257, %v8257
    %v8260 = vpack.c.bf16 %v8258, %v8258
    %v8261 = vld [vmem:[#allocation12] sm:$0xf]
    %v8262 = vld [vmem:[#allocation12 + $0x4] sm:$0xf]
    %v8263 = vld [vmem:[#allocation12 + $0x8] sm:$0xf]
    %v8264 = vld [vmem:[#allocation12 + $0xc] sm:$0xf]
    %v8265 = vld [vmem:[#allocation12 + $0x10] sm:$0xf]
    %v8266 = vld [vmem:[#allocation12 + $0x14] sm:$0xf]
    %v8267 = vld [vmem:[#allocation12 + $0x18] sm:$0xf]
    %v8268 = vld [vmem:[#allocation12 + $0x1c] sm:$0xf]
    %v8269 = vld [vmem:[#allocation12 + $0x20] sm:$0xf]
    %v8270 = vld [vmem:[#allocation12 + $0x24] sm:$0xf]
    %v8271 = vld [vmem:[#allocation12 + $0x28] sm:$0xf]
    %v8272 = vld [vmem:[#allocation12 + $0x2c] sm:$0xf]
    %v8273 = vld [vmem:[#allocation12 + $0x30] sm:$0xf]
    %v8274 = vld [vmem:[#allocation12 + $0x34] sm:$0xf]
    %v8275 = vld [vmem:[#allocation12 + $0x38] sm:$0xf]
    %v8276 = vld [vmem:[#allocation12 + $0x3c] sm:$0xf]
    %v8277 = vld [vmem:[#allocation12 + $0x40] sm:$0xf]
    %v8278 = vld [vmem:[#allocation12 + $0x44] sm:$0xf]
    %v8279 = vld [vmem:[#allocation12 + $0x48] sm:$0xf]
    %v8280 = vld [vmem:[#allocation12 + $0x4c] sm:$0xf]
    %v8281 = vld [vmem:[#allocation12 + $0x50] sm:$0xf]
    %v8282 = vld [vmem:[#allocation12 + $0x54] sm:$0xf]
    %v8283 = vld [vmem:[#allocation12 + $0x58] sm:$0xf]
    %v8284 = vld [vmem:[#allocation12 + $0x5c] sm:$0xf]
    %v8285 = vld [vmem:[#allocation12 + $0x60] sm:$0xf]
    %v8286 = vld [vmem:[#allocation12 + $0x64] sm:$0xf]
    %v8287 = vld [vmem:[#allocation12 + $0x68] sm:$0xf]
    %v8288 = vld [vmem:[#allocation12 + $0x6c] sm:$0xf]
    %v8289 = vld [vmem:[#allocation12 + $0x70] sm:$0xf]
    %v8290 = vld [vmem:[#allocation12 + $0x74] sm:$0xf]
    %v8291 = vld [vmem:[#allocation12 + $0x78] sm:$0xf]
    %v8292 = vld [vmem:[#allocation12 + $0x7c] sm:$0xf]
    %v8293 = vld [vmem:[#allocation13] sm:$0x1]
    %v8295 = vlaneseq
    %v8296 = vshrl.u32 %v8295, 7
    %v8297 = vsub.s32 0, %v8296
    %v8298 = vrot.slane %v8293, %v8297
    %v8332 = vunpack.c.l.b16 %v8261
    %v8333 = vunpack.c.l.b16 %v8262
    %v8334 = vunpack.c.l.b16 %v8263
    %v8335 = vunpack.c.l.b16 %v8264
    %v8336 = vunpack.c.l.b16 %v8265
    %v8337 = vunpack.c.l.b16 %v8266
    %v8338 = vunpack.c.l.b16 %v8267
    %v8339 = vunpack.c.l.b16 %v8268
    %v8340 = vunpack.c.l.b16 %v8269
    %v8341 = vunpack.c.l.b16 %v8270
    %v8342 = vunpack.c.l.b16 %v8271
    %v8343 = vunpack.c.l.b16 %v8272
    %v8344 = vunpack.c.l.b16 %v8273
    %v8345 = vunpack.c.l.b16 %v8274
    %v8346 = vunpack.c.l.b16 %v8275
    %v8347 = vunpack.c.l.b16 %v8276
    %v8348 = vunpack.c.l.b16 %v8277
    %v8349 = vunpack.c.l.b16 %v8278
    %v8350 = vunpack.c.l.b16 %v8279
    %v8351 = vunpack.c.l.b16 %v8280
    %v8352 = vunpack.c.l.b16 %v8281
    %v8353 = vunpack.c.l.b16 %v8282
    %v8354 = vunpack.c.l.b16 %v8283
    %v8355 = vunpack.c.l.b16 %v8284
    %v8356 = vunpack.c.l.b16 %v8285
    %v8357 = vunpack.c.l.b16 %v8286
    %v8358 = vunpack.c.l.b16 %v8287
    %v8359 = vunpack.c.l.b16 %v8288
    %v8360 = vunpack.c.l.b16 %v8289
    %v8361 = vunpack.c.l.b16 %v8290
    %v8362 = vunpack.c.l.b16 %v8291
    %v8363 = vunpack.c.l.b16 %v8292
    %v8364 = vpack.c.b16 %v8333, %v8332
    %v8365 = vpack.c.b16 %v8335, %v8334
    %v8366 = vpack.c.b16 %v8337, %v8336
    %v8367 = vpack.c.b16 %v8339, %v8338
    %v8368 = vpack.c.b16 %v8341, %v8340
    %v8369 = vpack.c.b16 %v8343, %v8342
    %v8370 = vpack.c.b16 %v8345, %v8344
    %v8371 = vpack.c.b16 %v8347, %v8346
    %v8372 = vpack.c.b16 %v8349, %v8348
    %v8373 = vpack.c.b16 %v8351, %v8350
    %v8374 = vpack.c.b16 %v8353, %v8352
    %v8375 = vpack.c.b16 %v8355, %v8354
    %v8376 = vpack.c.b16 %v8357, %v8356
    %v8377 = vpack.c.b16 %v8359, %v8358
    %v8378 = vpack.c.b16 %v8361, %v8360
    %v8379 = vpack.c.b16 %v8363, %v8362
    %8396 = vmatprep.subr.bf16.mxu0 0
    %8397 = vmatpush1.bf16.msra.mxu0 %v8371
    %8398 = vmatprep.subr.bf16.mxu0 0
    %8399 = vmatpush1.bf16.msra.mxu0 %v8370
    %8400 = vmatprep.subr.bf16.mxu0 0
    %8401 = vmatpush1.bf16.msra.mxu0 %v8369
    %8402 = vmatprep.subr.bf16.mxu0 0
    %8403 = vmatpush1.bf16.msra.mxu0 %v8368
    %8404 = vmatprep.subr.bf16.mxu0 0
    %8405 = vmatpush1.bf16.msra.mxu0 %v8367
    %8406 = vmatprep.subr.bf16.mxu0 0
    %8407 = vmatpush1.bf16.msra.mxu0 %v8366
    %8408 = vmatprep.subr.bf16.mxu0 0
    %8409 = vmatpush1.bf16.msra.mxu0 %v8365
    %8410 = vmatprep.subr.bf16.mxu0 0
    %8411 = vmatpush1.bf16.msra.mxu0 %v8364
    %8412 = vmatprep.subr.bf16.mxu0 0
    %8413 = vmatpush2.bf16.msra.mxu0 %v8379
    %8414 = vmatprep.subr.bf16.mxu0 0
    %8415 = vmatpush2.bf16.msra.mxu0 %v8378
    %8416 = vmatprep.subr.bf16.mxu0 0
    %8417 = vmatpush2.bf16.msra.mxu0 %v8377
    %8418 = vmatprep.subr.bf16.mxu0 0
    %8419 = vmatpush2.bf16.msra.mxu0 %v8376
    %8420 = vmatprep.subr.bf16.mxu0 0
    %8421 = vmatpush2.bf16.msra.mxu0 %v8375
    %8422 = vmatprep.subr.bf16.mxu0 0
    %8423 = vmatpush2.bf16.msra.mxu0 %v8374
    %8424 = vmatprep.subr.bf16.mxu0 0
    %8425 = vmatpush2.bf16.msra.mxu0 %v8373
    %8426 = vmatprep.subr.bf16.mxu0 0
    %8427 = vmatpush2.bf16.msra.mxu0 %v8372
    %8428 = vmatprep.mubr.bf16.mxu0 %v8260
    %8429 = vmatmul.mubr.bf16.gmra.mxu0 %v8259
    %v8430 = vpop.f32.mrf.mxu0
    %v8431 = vadd.f32 %v8298, %v8430
    %v8432 = vpop.f32.mrf.mxu0
    %v8433 = vpop.f32.mrf.mxu0
    %v8434 = vpop.f32.mrf.mxu0
    %8435 = vdwg.mxu0
    %v8436 = vlaneseq
    %v8437 = vand.u32 %v8436, 127
    %vm8438 = vcmp.lt.s32.totalorder %v8437, 4
    %v8439 = vsel %vm8438, %v8431, -1e+09
    %vm8440 = vcmask 1041408
    %v8441 = vsel %vm8440, %v8439, -inf
    %8442 = vmax.xlane.f32.xlu0 %v8441
    %v8443 = vpop.xlane.xlu0 %8442
    %v8444 = vsub.f32 %v8439, %v8443
    %v8445 = vmul.f32 %v8444, 1.442695
    %v8446 = vpow.pop %v8445
    %v8447 = vsel %vm8440, %v8446, 0.0
    %8448 = vadd.xlane.f32.xlu0 %v8447
    %v8449 = vpop.xlane.xlu0 %8448
    %v8450 = vlog2.pop %v8449
    %v8451 = vmul.f32 %v8450, 0.6931472
    %v8452 = vsub.f32 %v8444, %v8451
    %v8453 = vld [vmem:[%s1] sm:$0x3]
    %8454 = vset.pattern.permute.xlu0 0
    %8455 = vperm.xlu0 %8454, %v8453
    %v8456 = vpop.permute.xlu0 %8455
    %vm8457 = vcmp.eq.s32.totalorder %v8437, %v8456
    %v8458 = vsel %vm8457, %v8452, 0.0
    %v8459 = vsel %vm8440, %v8458, 0.0
    %8460 = vadd.xlane.f32.xlu0 %v8459
    %v8461 = vpop.xlane.xlu0 %8460
    %vm8462 = vcmp.eq.s32.totalorder %v8437, 4
    %v8463 = vsel %vm8462, %v8461, %v8452
    %8464 = vst [vmem:[%s10] sm:$0x3] %v8463
    // Predicated region
    $region74: #{cnn_categorical_actor_forward.1} parent=1 // pred_check
      _
    $region75: #{cnn_categorical_actor_forward.1} parent=1 // pred_check_branch
      %8466 = sbr.rel (0) target = $region77
    $region76: #{cnn_categorical_actor_forward.1} parent=1 // pred_region
      _
    $region77: #{cnn_categorical_actor_forward.1} parent=1 // pred_fallthru
      _
    // Predicated region
    $region78: #{cnn_categorical_actor_forward.1} parent=1 // pred_check
      _
    $region79: #{cnn_categorical_actor_forward.1} parent=1 // pred_check_branch
      %8468 = sbr.rel (0) target = $region81
    $region80: #{cnn_categorical_actor_forward.1} parent=1 // pred_region
      _
    $region81: #{cnn_categorical_actor_forward.1} parent=1 // pred_fallthru
      _
    %8469 = vsyncpa [#allocation3], 1
    %8470 = vsyncpa [#allocation5], 1
    %8471 = vsyncpa [#allocation8], 1
    %8472 = vsyncpa [#allocation11], 1
    %8473 = vsyncpa [#allocation14], 1

</llo_original>
